<compile_context>
chip_gen: v7x
topology: tpu7x:2x2x1
jax: 0.10.0
libtpu: 0.0.40
codegen_flags: <defaults>
</compile_context>

<pallas_src>
import numpy as np
import jax
import jax.numpy as jnp
from jax.experimental import pallas as pl
from jax.experimental.pallas import tpu as pltpu

BN_EPS = 1e-3  # PyTorch BatchNorm2d(eps=0.001)


def _softplus(x):
    # numerically-stable softplus, same math as F.softplus
    return jnp.maximum(x, 0.0) + jnp.log(1.0 + jnp.exp(-jnp.abs(x)))


def _sigmoid(x):
    # tanh formulation: EUP slot, no f32 divide on the VPU.
    return 0.5 * (jnp.tanh(0.5 * x) + 1.0)


# ---------------------------------------------------------------------------
# Pallas kernel: the whole T-step recurrence in one invocation
# ---------------------------------------------------------------------------
def _make_kernel(B, H, W, C, K, T):
    P = K // 2
    BH = B * H
    WC = W * C
    inv_n = 1.0 / float(B * H * W)
    n_roll = int(round(np.log2(W)))          # W is asserted to be a power of 2

    def kernel(x_ref, h0_ref, winh_ref, wexc_ref, u1_ref, u2_ref, par_ref,
               newh_ref, g2_ref, hstate_ref, pad_ref):
        # One-time init: zero the y-padded conv slab.  Only its one-row
        # top/bottom border is relied on to stay zero for all T steps; the
        # interior rows are overwritten by every conv and the x-padding lives
        # inside the banded weight blocks.
        pad_ref[...] = jnp.zeros_like(pad_ref)
        hstate_ref[...] = h0_ref[...]

        def prow(i):  # (1, WC) lane-tiled per-channel parameter row
            return par_ref[i:i + 1, :]

        def gate(v, u_ref, bias):
            # 1x1 conv over channels == block-diagonal matmul in the folded
            # (B*H, W*C) layout; bf16 operands, f32 accumulation on the MXU.
            z = jnp.dot(v.astype(jnp.bfloat16), u_ref[...],
                        preferred_element_type=jnp.float32)
            return _sigmoid(z + bias)

        def conv_kxk(v, w_ref):
            # 'same' KxK conv: K row-shifted views of the y-padded slab, each
            # multiplied by its banded (WC, WC) weight block and accumulated
            # in f32 on the MXU (no lane-concatenate copy).
            pad_ref[:, P:P + H, :] = v.reshape(B, H, WC)
            acc = jnp.zeros((BH, WC), jnp.float32)
            for dy in range(K):                           # static, unrolled
                lhs = pad_ref[:, dy:dy + H, :].reshape(BH, WC)
                acc = acc + jnp.dot(lhs.astype(jnp.bfloat16), w_ref[dy],
                                    preferred_element_type=jnp.float32)
            return acc

        def batchnorm(c, scale, bias):
            # Single-pass BN over (B, H, W) per channel.  Cheap sublane row
            # reduce first, then log2(W) lane roll-adds sum the W channel
            # groups folded into the lane dim; the result is already
            # lane-broadcast, so no lane<->sublane relayout and no f32 matmul.
            s = jnp.concatenate(
                [jnp.sum(c, axis=0, keepdims=True),
                 jnp.sum(c * c, axis=0, keepdims=True)], axis=0)   # (2, WC)
            shift = C
            for _ in range(n_roll):
                s = s + pltpu.roll(s, shift, axis=1)
                shift *= 2
            mean = s[0:1, :] * inv_n
            ex2 = s[1:2, :] * inv_n
            var = jnp.maximum(ex2 - mean * mean, 0.0)   # cancellation guard
            return scale * (c - mean) * jax.lax.rsqrt(var + BN_EPS) + bias

        # ---- T-step hConvGRUCell recurrence, state resident in VMEM --------
        @pl.loop(0, T)
        def _step(t):
            alpha, mu = prow(0), prow(1)
            kappa, gamma, w_p = prow(2), prow(3), prow(4)

            x2 = x_ref[t]                 # (BH, WC) f32, lane-dense
            h2 = hstate_ref[...]          # (BH, WC) f32

            g1 = gate(h2, u1_ref, prow(9))
            c1 = batchnorm(conv_kxk(h2 * g1, winh_ref), prow(5), prow(6))
            next1 = _softplus(x2 - _softplus(c1 * (alpha * h2 + mu)))
            c2 = batchnorm(conv_kxk(next1, wexc_ref), prow(7), prow(8))
            h2t = _softplus(kappa * next1 + gamma * c2 + w_p * next1 * c2)
            g2 = gate(next1, u2_ref, prow(10))
            newh = _softplus((1.0 - g2) * h2 + g2 * h2t)

            hstate_ref[...] = newh
            newh_ref[t] = newh
            g2_ref[t] = g2

    return kernel


# ---------------------------------------------------------------------------
# Wrapper: one-time weight re-packing + layout plumbing + pallas_call
# ---------------------------------------------------------------------------
def _banded_conv_blocks(w_hwio, W):
    """(K,K,Cin,Cout) 'same' conv -> (K, W*Cin, W*Cout) banded matmul blocks.

    Block dy holds the weights applied to image rows shifted by dy; the dx
    taps and the zero x-padding are encoded in the band structure.
    """
    K, _, Ci, Co = w_hwio.shape
    P = K // 2
    M = np.zeros((K, W, Ci, W, Co), np.float32)
    for dy in range(K):
        for x in range(W):
            for dx in range(K):
                xp = x + dx - P
                if 0 <= xp < W:
                    M[dy, xp, :, x, :] = w_hwio[dy, dx]
    return M.reshape(K, W * Ci, W * Co)


def hgru_sequence_forward(x_seq_nchw, h0_nchw, params):
    """Run T hConvGRUCell steps in ONE pallas_call (state stays in VMEM)."""
    T, B, C, H, W = x_seq_nchw.shape
    K = params["w_inh"].shape[0]
    P = K // 2
    BH, WC = B * H, W * C
    assert WC % 128 == 0 and BH % 8 == 0, "lane-folded layout needs W*C % 128 == 0"
    assert W & (W - 1) == 0, "roll-based BN group-sum needs W to be a power of 2"

    kernel = _make_kernel(B, H, W, C, K, T)

    # one-time layout plumbing: NCHW -> lane-folded (rows=B*H, lanes=W*C)
    x_f = jnp.transpose(x_seq_nchw, (0, 1, 3, 4, 2)).astype(jnp.float32)
    x_f = x_f.reshape(T, BH, WC)
    h_f = jnp.transpose(h0_nchw, (0, 2, 3, 1)).astype(jnp.float32).reshape(BH, WC)

    # one-time weight re-packing (host side), bf16 for MXU operands
    winh_blk = jnp.asarray(
        _banded_conv_blocks(np.asarray(params["w_inh"], np.float32), W),
        jnp.bfloat16)
    wexc_blk = jnp.asarray(
        _banded_conv_blocks(np.asarray(params["w_exc"], np.float32), W),
        jnp.bfloat16)
    eye_w = np.eye(W, dtype=np.float32)
    u1m = jnp.asarray(np.kron(eye_w, np.asarray(params["u1_w"], np.float32)),
                      jnp.bfloat16)
    u2m = jnp.asarray(np.kron(eye_w, np.asarray(params["u2_w"], np.float32)),
                      jnp.bfloat16)

    def tile_c(name):
        return jnp.tile(params[name].astype(jnp.float32), W)  # (C,) -> (W*C,)

    par = jnp.stack([tile_c(k) for k in
                     ("alpha", "mu", "kappa", "gamma", "w",
                      "bn1_w", "bn1_b", "bn3_w", "bn3_b", "u1_b", "u2_b")],
                    axis=0)                                     # (11, WC)

    full2 = lambda s: pl.BlockSpec(s, lambda i: (0, 0))
    full3 = lambda s: pl.BlockSpec(s, lambda i: (0, 0, 0))

    newh_seq, g2_seq = pl.pallas_call(
        kernel,
        grid=(1,),                       # whole recurrence in one invocation
        in_specs=[
            full3((T, BH, WC)),          # x sequence (resident in VMEM)
            full2((BH, WC)),             # h0
            full3((K, WC, WC)),          # banded inh conv weight blocks (bf16)
            full3((K, WC, WC)),          # banded exc conv weight blocks (bf16)
            full2((WC, WC)),             # block-diag u1 (bf16)
            full2((WC, WC)),             # block-diag u2 (bf16)
            full2((11, WC)),             # lane-tiled per-channel params (f32)
        ],
        out_specs=(full3((T, BH, WC)), full3((T, BH, WC))),
        out_shape=(jax.ShapeDtypeStruct((T, BH, WC), jnp.float32),
                   jax.ShapeDtypeStruct((T, BH, WC), jnp.float32)),
        scratch_shapes=[
            pltpu.VMEM((BH, WC), jnp.float32),            # recurrent state
            pltpu.VMEM((B, H + 2 * P, WC), jnp.float32),  # y-padded conv slab
        ],
        compiler_params=pltpu.CompilerParams(
            dimension_semantics=("arbitrary",),
            vmem_limit_bytes=32 * 1024 * 1024),
    )(x_f, h_f, winh_blk, wexc_blk, u1m, u2m, par)

    # back to the module's NCHW convention, once for the whole sequence
    newh = jnp.transpose(newh_seq.reshape(T, B, H, W, C), (0, 1, 4, 2, 3))
    g2 = jnp.transpose(g2_seq.reshape(T, B, H, W, C), (0, 1, 4, 2, 3))
    return newh, g2


def hgru_cell_forward(x_nchw, h_nchw, params):
    """Single-step API mirroring hConvGRUCell.forward (T == 1)."""
    newh, g2 = hgru_sequence_forward(x_nchw[None], h_nchw, params)
    return newh[0], g2[0]


# ---------------------------------------------------------------------------
# Deterministic parameter init (mirrors hConvGRUCell.__init__)
# ---------------------------------------------------------------------------
def _orthogonal(rng, shape):
    rows = shape[0]
    cols = int(np.prod(shape[1:]))
    flat = rng.standard_normal((rows, cols))
    if rows < cols:
        flat = flat.T
    q, r = np.linalg.qr(flat)
    q = q * np.sign(np.diag(r) + 1e-12)
    if rows < cols:
        q = q.T
    return np.ascontiguousarray(q[:rows, :cols]).reshape(shape).astype(np.float32)


def init_params(C, K, seed=0):
    rng = np.random.RandomState(seed)
    w_inh_oikk = _orthogonal(rng, (C, C, K, K))   # torch layout (Cout, Cin, K, K)
    w_exc_oikk = _orthogonal(rng, (C, C, K, K))
    u1_oi = _orthogonal(rng, (C, C))              # (Cout, Cin)
    u2_oi = _orthogonal(rng, (C, C))
    # init.uniform_(u1.bias, 1, 7); the `.log()` in __init__ is not assigned -> no-op
    u1_b = rng.uniform(1.0, 7.0, size=(C,)).astype(np.float32)
    u2_b = (-u1_b).astype(np.float32)
    return {
        "w_inh": jnp.asarray(np.transpose(w_inh_oikk, (2, 3, 1, 0))),  # HWIO
        "w_exc": jnp.asarray(np.transpose(w_exc_oikk, (2, 3, 1, 0))),
        "u1_w": jnp.asarray(u1_oi.T),                                  # (Cin, Cout)
        "u2_w": jnp.asarray(u2_oi.T),
        "u1_b": jnp.asarray(u1_b),
        "u2_b": jnp.asarray(u2_b),
        "alpha": jnp.full((C,), 0.1, jnp.float32),
        "mu":    jnp.full((C,), 1.0, jnp.float32),
        "gamma": jnp.full((C,), 1.0, jnp.float32),
        "kappa": jnp.full((C,), 0.5, jnp.float32),
        "w":     jnp.full((C,), 0.5, jnp.float32),
        "bn1_w": jnp.full((C,), 0.1, jnp.float32),
        "bn1_b": jnp.zeros((C,), jnp.float32),
        "bn3_w": jnp.full((C,), 0.1, jnp.float32),
        "bn3_b": jnp.zeros((C,), jnp.float32),
    }


# ---------------------------------------------------------------------------
# Pure-JAX reference (same math; matmul operands cast to bf16 to match the
# kernel's MXU precision policy, everything else f32)
# ---------------------------------------------------------------------------
def hgru_ref_sequence(x_seq_nchw, h0_nchw, params):
    T = x_seq_nchw.shape[0]
    x = jnp.transpose(x_seq_nchw, (0, 1, 3, 4, 2)).astype(jnp.float32)
    h = jnp.transpose(h0_nchw, (0, 2, 3, 1)).astype(jnp.float32)
    K = params["w_inh"].shape[0]
    P = K // 2
    w_inh = params["w_inh"].astype(jnp.bfloat16)
    w_exc = params["w_exc"].astype(jnp.bfloat16)
    u1 = params["u1_w"].astype(jnp.bfloat16)
    u2 = params["u2_w"].astype(jnp.bfloat16)

    def conv(v, wk):
        return jax.lax.conv_general_dilated(
            v.astype(jnp.bfloat16), wk, window_strides=(1, 1),
            padding=((P, P), (P, P)),
            dimension_numbers=("NHWC", "HWIO", "NHWC"),
            preferred_element_type=jnp.float32)

    def bn(v, s, b):
        mean = jnp.mean(v, axis=(0, 1, 2), keepdims=True)
        var = jnp.mean(v * v, axis=(0, 1, 2), keepdims=True) - mean * mean
        return s * (v - mean) * jax.lax.rsqrt(var + BN_EPS) + b

    newhs, g2s = [], []
    for t in range(T):
        g1 = _sigmoid(jnp.einsum("bhwc,cd->bhwd", h.astype(jnp.bfloat16), u1,
                                 preferred_element_type=jnp.float32)
                      + params["u1_b"])
        c1 = bn(conv(h * g1, w_inh), params["bn1_w"], params["bn1_b"])
        next1 = _softplus(x[t] - _softplus(c1 * (params["alpha"] * h
                                                 + params["mu"])))
        g2 = _sigmoid(jnp.einsum("bhwc,cd->bhwd", next1.astype(jnp.bfloat16), u2,
                                 preferred_element_type=jnp.float32)
                      + params["u2_b"])
        c2 = bn(conv(next1, w_exc), params["bn3_w"], params["bn3_b"])
        h2t = _softplus(params["kappa"] * next1 + params["gamma"] * c2
                        + params["w"] * next1 * c2)
        h = _softplus((1.0 - g2) * h + g2 * h2t)
        newhs.append(h)
        g2s.append(g2)

    newh = jnp.transpose(jnp.stack(newhs), (0, 1, 4, 2, 3))
    g2o = jnp.transpose(jnp.stack(g2s), (0, 1, 4, 2, 3))
    return newh, g2o


if __name__ == "__main__":
    # input channels == hidden_size for this cell; T = module's timesteps
    B, C, H, W, K, T = 2, 32, 16, 16, 3, 8
    params = init_params(C, K, seed=0)

    key = jax.random.PRNGKey(0)
    kx, kh = jax.random.split(key)
    x_seq = jax.random.normal(kx, (T, B, C, H, W), jnp.float32)     # input_ seq
    h0 = 0.1 * jax.random.normal(kh, (B, C, H, W), jnp.float32)     # prev_state2

    newh_seq, g2_seq = jax.block_until_ready(
        hgru_sequence_forward(x_seq, h0, params))

    newh_ref, g2_ref = hgru_ref_sequence(x_seq, h0, params)
    np.testing.assert_allclose(np.asarray(newh_seq), np.asarray(newh_ref),
                               rtol=5e-3, atol=5e-3)
    np.testing.assert_allclose(np.asarray(g2_seq), np.asarray(g2_ref),
                               rtol=5e-3, atol=5e-3)
    print("KERNEL_OK")
</pallas_src>

<mosaic_0001>
module attributes {stable_mosaic.version = 11 : i64} {
  func.func @kernel(%arg0: i32, %arg1: memref<8x32x512xf32, #tpu.memory_space<vmem>>, %arg2: memref<32x512xf32, #tpu.memory_space<vmem>>, %arg3: memref<3x512x512xbf16, #tpu.memory_space<vmem>>, %arg4: memref<3x512x512xbf16, #tpu.memory_space<vmem>>, %arg5: memref<512x512xbf16, #tpu.memory_space<vmem>>, %arg6: memref<512x512xbf16, #tpu.memory_space<vmem>>, %arg7: memref<11x512xf32, #tpu.memory_space<vmem>>, %arg8: memref<8x32x512xf32, #tpu.memory_space<vmem>>, %arg9: memref<8x32x512xf32, #tpu.memory_space<vmem>>, %arg10: memref<32x512xf32, #tpu.memory_space<vmem>>, %arg11: memref<2x18x512xf32, #tpu.memory_space<vmem>>) attributes {dimension_semantics = [#tpu.dimension_semantics<arbitrary>], iteration_bounds = array<i64: 1>, scalar_prefetch = 0 : i64, scratch_operands = 2 : i64, tpu.core_type = #tpu.core_type<tc>, window_params = [{pipeline_mode = #tpu.pipeline_mode<synchronous>, transform_indices = @transform_0, window_bounds = array<i64: 8, 32, 512>}, {pipeline_mode = #tpu.pipeline_mode<synchronous>, transform_indices = @transform_1, window_bounds = array<i64: 32, 512>}, {pipeline_mode = #tpu.pipeline_mode<synchronous>, transform_indices = @transform_2, window_bounds = array<i64: 3, 512, 512>}, {pipeline_mode = #tpu.pipeline_mode<synchronous>, transform_indices = @transform_3, window_bounds = array<i64: 3, 512, 512>}, {pipeline_mode = #tpu.pipeline_mode<synchronous>, transform_indices = @transform_4, window_bounds = array<i64: 512, 512>}, {pipeline_mode = #tpu.pipeline_mode<synchronous>, transform_indices = @transform_5, window_bounds = array<i64: 512, 512>}, {pipeline_mode = #tpu.pipeline_mode<synchronous>, transform_indices = @transform_6, window_bounds = array<i64: 11, 512>}, {pipeline_mode = #tpu.pipeline_mode<synchronous>, transform_indices = @transform_7, window_bounds = array<i64: 8, 32, 512>}, {pipeline_mode = #tpu.pipeline_mode<synchronous>, transform_indices = @transform_8, window_bounds = array<i64: 8, 32, 512>}]} {
    %cst = arith.constant 0.000000e+00 : f32
    %0 = vector.broadcast %cst : f32 to vector<2x18x512xf32>
    %c0 = arith.constant 0 : index
    %c0_0 = arith.constant 0 : index
    %c0_1 = arith.constant 0 : index
    %1 = vector.load %arg11[%c0, %c0_0, %c0_1] : memref<2x18x512xf32, #tpu.memory_space<vmem>>, vector<2x18x512xf32>
    tpu.vector_store %arg11[%c0, %c0_0, %c0_1], %0 {strides = array<i32>} : memref<2x18x512xf32, #tpu.memory_space<vmem>>, vector<2x18x512xf32>,
    %c0_2 = arith.constant 0 : index
    %c0_3 = arith.constant 0 : index
    %2 = vector.load %arg2[%c0_2, %c0_3] : memref<32x512xf32, #tpu.memory_space<vmem>>, vector<32x512xf32>
    %c0_4 = arith.constant 0 : index
    %c0_5 = arith.constant 0 : index
    %3 = vector.load %arg10[%c0_4, %c0_5] : memref<32x512xf32, #tpu.memory_space<vmem>>, vector<32x512xf32>
    tpu.vector_store %arg10[%c0_4, %c0_5], %2 {strides = array<i32>} : memref<32x512xf32, #tpu.memory_space<vmem>>, vector<32x512xf32>,
    %c0_i32 = arith.constant 0 : i32
    %c8_i32 = arith.constant 8 : i32
    %4 = arith.addi %c0_i32, %c8_i32 : i32
    %c1_i32 = arith.constant 1 : i32
    scf.for %arg12 = %c0_i32 to %4 step %c1_i32  : i32 {
      %c1_i32_7 = arith.constant 1 : i32
      %5 = arith.muli %arg12, %c1_i32_7 : i32
      %c0_i32_8 = arith.constant 0 : i32
      %6 = arith.addi %c0_i32_8, %5 : i32
      %c0_9 = arith.constant 0 : index
      %c0_10 = arith.constant 0 : index
      %7 = vector.load %arg7[%c0_9, %c0_10] : memref<11x512xf32, #tpu.memory_space<vmem>>, vector<1x512xf32>
      %c1 = arith.constant 1 : index
      %c0_11 = arith.constant 0 : index
      %8 = vector.load %arg7[%c1, %c0_11] : memref<11x512xf32, #tpu.memory_space<vmem>>, vector<1x512xf32>
      %c2 = arith.constant 2 : index
      %c0_12 = arith.constant 0 : index
      %9 = vector.load %arg7[%c2, %c0_12] : memref<11x512xf32, #tpu.memory_space<vmem>>, vector<1x512xf32>
      %c3 = arith.constant 3 : index
      %c0_13 = arith.constant 0 : index
      %10 = vector.load %arg7[%c3, %c0_13] : memref<11x512xf32, #tpu.memory_space<vmem>>, vector<1x512xf32>
      %c4 = arith.constant 4 : index
      %c0_14 = arith.constant 0 : index
      %11 = vector.load %arg7[%c4, %c0_14] : memref<11x512xf32, #tpu.memory_space<vmem>>, vector<1x512xf32>
      %12 = arith.index_cast %6 : i32 to index
      %c0_15 = arith.constant 0 : index
      %c0_16 = arith.constant 0 : index
      %13 = vector.load %arg1[%12, %c0_15, %c0_16] : memref<8x32x512xf32, #tpu.memory_space<vmem>>, vector<1x32x512xf32>
      %14 = vector.shape_cast %13 : vector<1x32x512xf32> to vector<32x512xf32>
      %c0_17 = arith.constant 0 : index
      %c0_18 = arith.constant 0 : index
      %15 = vector.load %arg10[%c0_17, %c0_18] : memref<32x512xf32, #tpu.memory_space<vmem>>, vector<32x512xf32>
      %c9 = arith.constant 9 : index
      %c0_19 = arith.constant 0 : index
      %16 = vector.load %arg7[%c9, %c0_19] : memref<11x512xf32, #tpu.memory_space<vmem>>, vector<1x512xf32>
      %17 = arith.truncf %15 : vector<32x512xf32> to vector<32x512xbf16>
      %c0_20 = arith.constant 0 : index
      %c0_21 = arith.constant 0 : index
      %18 = vector.load %arg5[%c0_20, %c0_21] : memref<512x512xbf16, #tpu.memory_space<vmem>>, vector<512x512xbf16>
      %cst_22 = arith.constant dense<0.000000e+00> : vector<32x512xf32>
      %19 = tpu.matmul %17, %18, %cst_22 {dimension_numbers = #tpu.dot_dimension_numbers<[1], [0], [0], [1], [0, 0, 1, 1], [], []>} : vector<32x512xbf16>, vector<512x512xbf16>, vector<32x512xf32> -> vector<32x512xf32>
      %20 = vector.broadcast %16 : vector<1x512xf32> to vector<32x512xf32>
      %21 = arith.addf %19, %20 : vector<32x512xf32>
      %cst_23 = arith.constant 5.000000e-01 : f32
      %22 = vector.broadcast %cst_23 : f32 to vector<32x512xf32>
      %23 = arith.mulf %22, %21 : vector<32x512xf32>
      %24 = math.tanh %23 : vector<32x512xf32>
      %cst_24 = arith.constant 1.000000e+00 : f32
      %25 = vector.broadcast %cst_24 : f32 to vector<32x512xf32>
      %26 = arith.addf %24, %25 : vector<32x512xf32>
      %cst_25 = arith.constant 5.000000e-01 : f32
      %27 = vector.broadcast %cst_25 : f32 to vector<32x512xf32>
      %28 = arith.mulf %27, %26 : vector<32x512xf32>
      %29 = arith.mulf %15, %28 : vector<32x512xf32>
      %30 = vector.shape_cast %29 : vector<32x512xf32> to vector<2x16x512xf32>
      %c0_26 = arith.constant 0 : index
      %c1_27 = arith.constant 1 : index
      %c0_28 = arith.constant 0 : index
      %31 = vector.load %arg11[%c0_26, %c1_27, %c0_28] : memref<2x18x512xf32, #tpu.memory_space<vmem>>, vector<2x16x512xf32>
      tpu.vector_store %arg11[%c0_26, %c1_27, %c0_28], %30 {strides = array<i32>} : memref<2x18x512xf32, #tpu.memory_space<vmem>>, vector<2x16x512xf32>,
      %cst_29 = arith.constant 0.000000e+00 : f32
      %32 = vector.broadcast %cst_29 : f32 to vector<32x512xf32>
      %c0_30 = arith.constant 0 : index
      %c0_31 = arith.constant 0 : index
      %c0_32 = arith.constant 0 : index
      %33 = vector.load %arg11[%c0_30, %c0_31, %c0_32] : memref<2x18x512xf32, #tpu.memory_space<vmem>>, vector<2x16x512xf32>
      %34 = vector.shape_cast %33 : vector<2x16x512xf32> to vector<32x512xf32>
      %35 = arith.truncf %34 : vector<32x512xf32> to vector<32x512xbf16>
      %c0_33 = arith.constant 0 : index
      %c0_34 = arith.constant 0 : index
      %c0_35 = arith.constant 0 : index
      %36 = vector.load %arg3[%c0_33, %c0_34, %c0_35] : memref<3x512x512xbf16, #tpu.memory_space<vmem>>, vector<1x512x512xbf16>
      %37 = vector.shape_cast %36 : vector<1x512x512xbf16> to vector<512x512xbf16>
      %cst_36 = arith.constant dense<0.000000e+00> : vector<32x512xf32>
      %38 = tpu.matmul %35, %37, %cst_36 {dimension_numbers = #tpu.dot_dimension_numbers<[1], [0], [0], [1], [0, 0, 1, 1], [], []>} : vector<32x512xbf16>, vector<512x512xbf16>, vector<32x512xf32> -> vector<32x512xf32>
      %39 = arith.addf %32, %38 : vector<32x512xf32>
      %c0_37 = arith.constant 0 : index
      %c1_38 = arith.constant 1 : index
      %c0_39 = arith.constant 0 : index
      %40 = vector.load %arg11[%c0_37, %c1_38, %c0_39] : memref<2x18x512xf32, #tpu.memory_space<vmem>>, vector<2x16x512xf32>
      %41 = vector.shape_cast %40 : vector<2x16x512xf32> to vector<32x512xf32>
      %42 = arith.truncf %41 : vector<32x512xf32> to vector<32x512xbf16>
      %c1_40 = arith.constant 1 : index
      %c0_41 = arith.constant 0 : index
      %c0_42 = arith.constant 0 : index
      %43 = vector.load %arg3[%c1_40, %c0_41, %c0_42] : memref<3x512x512xbf16, #tpu.memory_space<vmem>>, vector<1x512x512xbf16>
      %44 = vector.shape_cast %43 : vector<1x512x512xbf16> to vector<512x512xbf16>
      %cst_43 = arith.constant dense<0.000000e+00> : vector<32x512xf32>
      %45 = tpu.matmul %42, %44, %cst_43 {dimension_numbers = #tpu.dot_dimension_numbers<[1], [0], [0], [1], [0, 0, 1, 1], [], []>} : vector<32x512xbf16>, vector<512x512xbf16>, vector<32x512xf32> -> vector<32x512xf32>
      %46 = arith.addf %39, %45 : vector<32x512xf32>
      %c0_44 = arith.constant 0 : index
      %c2_45 = arith.constant 2 : index
      %c0_46 = arith.constant 0 : index
      %47 = vector.load %arg11[%c0_44, %c2_45, %c0_46] : memref<2x18x512xf32, #tpu.memory_space<vmem>>, vector<2x16x512xf32>
      %48 = vector.shape_cast %47 : vector<2x16x512xf32> to vector<32x512xf32>
      %49 = arith.truncf %48 : vector<32x512xf32> to vector<32x512xbf16>
      %c2_47 = arith.constant 2 : index
      %c0_48 = arith.constant 0 : index
      %c0_49 = arith.constant 0 : index
      %50 = vector.load %arg3[%c2_47, %c0_48, %c0_49] : memref<3x512x512xbf16, #tpu.memory_space<vmem>>, vector<1x512x512xbf16>
      %51 = vector.shape_cast %50 : vector<1x512x512xbf16> to vector<512x512xbf16>
      %cst_50 = arith.constant dense<0.000000e+00> : vector<32x512xf32>
      %52 = tpu.matmul %49, %51, %cst_50 {dimension_numbers = #tpu.dot_dimension_numbers<[1], [0], [0], [1], [0, 0, 1, 1], [], []>} : vector<32x512xbf16>, vector<512x512xbf16>, vector<32x512xf32> -> vector<32x512xf32>
      %53 = arith.addf %46, %52 : vector<32x512xf32>
      %c5 = arith.constant 5 : index
      %c0_51 = arith.constant 0 : index
      %54 = vector.load %arg7[%c5, %c0_51] : memref<11x512xf32, #tpu.memory_space<vmem>>, vector<1x512xf32>
      %c6 = arith.constant 6 : index
      %c0_52 = arith.constant 0 : index
      %55 = vector.load %arg7[%c6, %c0_52] : memref<11x512xf32, #tpu.memory_space<vmem>>, vector<1x512xf32>
      %cst_53 = arith.constant dense<0.000000e+00> : vector<512xf32>
      %56 = vector.multi_reduction <add>, %53, %cst_53 [0] : vector<32x512xf32> to vector<512xf32>
      %57 = vector.shape_cast %56 : vector<512xf32> to vector<1x512xf32>
      %58 = arith.mulf %53, %53 : vector<32x512xf32>
      %cst_54 = arith.constant dense<0.000000e+00> : vector<512xf32>
      %59 = vector.multi_reduction <add>, %58, %cst_54 [0] : vector<32x512xf32> to vector<512xf32>
      %60 = vector.shape_cast %59 : vector<512xf32> to vector<1x512xf32>
      %61 = tpu.concatenate %57, %60 in 0 : vector<1x512xf32>, vector<1x512xf32> -> vector<2x512xf32>
      %c32_i32 = arith.constant 32 : i32
      %62 = tpu.dynamic_rotate %61 by %c32_i32 dim 1 : vector<2x512xf32>, i32 -> vector<2x512xf32>
      %63 = arith.addf %61, %62 : vector<2x512xf32>
      %c64_i32 = arith.constant 64 : i32
      %64 = tpu.dynamic_rotate %63 by %c64_i32 dim 1 : vector<2x512xf32>, i32 -> vector<2x512xf32>
      %65 = arith.addf %63, %64 : vector<2x512xf32>
      %c128_i32 = arith.constant 128 : i32
      %66 = tpu.dynamic_rotate %65 by %c128_i32 dim 1 : vector<2x512xf32>, i32 -> vector<2x512xf32>
      %67 = arith.addf %65, %66 : vector<2x512xf32>
      %c256_i32 = arith.constant 256 : i32
      %68 = tpu.dynamic_rotate %67 by %c256_i32 dim 1 : vector<2x512xf32>, i32 -> vector<2x512xf32>
      %69 = arith.addf %67, %68 : vector<2x512xf32>
      %70 = vector.extract_strided_slice %69 {offsets = [0, 0], sizes = [1, 512], strides = [1, 1]} : vector<2x512xf32> to vector<1x512xf32>
      %cst_55 = arith.constant 0.001953125 : f32
      %71 = vector.broadcast %cst_55 : f32 to vector<1x512xf32>
      %72 = arith.mulf %70, %71 : vector<1x512xf32>
      %73 = vector.extract_strided_slice %69 {offsets = [1, 0], sizes = [1, 512], strides = [1, 1]} : vector<2x512xf32> to vector<1x512xf32>
      %cst_56 = arith.constant 0.001953125 : f32
      %74 = vector.broadcast %cst_56 : f32 to vector<1x512xf32>
      %75 = arith.mulf %73, %74 : vector<1x512xf32>
      %76 = arith.mulf %72, %72 : vector<1x512xf32>
      %77 = arith.subf %75, %76 : vector<1x512xf32>
      %cst_57 = arith.constant 0.000000e+00 : f32
      %78 = vector.broadcast %cst_57 : f32 to vector<1x512xf32>
      %79 = arith.maximumf %77, %78 : vector<1x512xf32>
      %80 = vector.broadcast %72 : vector<1x512xf32> to vector<32x512xf32>
      %81 = arith.subf %53, %80 : vector<32x512xf32>
      %82 = vector.broadcast %54 : vector<1x512xf32> to vector<32x512xf32>
      %83 = arith.mulf %82, %81 : vector<32x512xf32>
      %cst_58 = arith.constant 1.000000e-03 : f32
      %84 = vector.broadcast %cst_58 : f32 to vector<1x512xf32>
      %85 = arith.addf %79, %84 : vector<1x512xf32>
      %86 = math.rsqrt %85 : vector<1x512xf32>
      %87 = vector.broadcast %86 : vector<1x512xf32> to vector<32x512xf32>
      %88 = arith.mulf %83, %87 : vector<32x512xf32>
      %89 = vector.broadcast %55 : vector<1x512xf32> to vector<32x512xf32>
      %90 = arith.addf %88, %89 : vector<32x512xf32>
      %91 = vector.broadcast %7 : vector<1x512xf32> to vector<32x512xf32>
      %92 = arith.mulf %91, %15 : vector<32x512xf32>
      %93 = vector.broadcast %8 : vector<1x512xf32> to vector<32x512xf32>
      %94 = arith.addf %92, %93 : vector<32x512xf32>
      %95 = arith.mulf %90, %94 : vector<32x512xf32>
      %cst_59 = arith.constant 0.000000e+00 : f32
      %96 = vector.broadcast %cst_59 : f32 to vector<32x512xf32>
      %97 = arith.maximumf %95, %96 : vector<32x512xf32>
      %98 = math.absf %95 : vector<32x512xf32>
      %cst_60 = arith.constant 0.000000e+00 : f32
      %99 = vector.broadcast %cst_60 : f32 to vector<32x512xf32>
      %100 = arith.subf %99, %98 : vector<32x512xf32>
      %101 = math.exp %100 : vector<32x512xf32>
      %cst_61 = arith.constant 1.000000e+00 : f32
      %102 = vector.broadcast %cst_61 : f32 to vector<32x512xf32>
      %103 = arith.addf %102, %101 : vector<32x512xf32>
      %104 = math.log %103 : vector<32x512xf32>
      %105 = arith.addf %97, %104 : vector<32x512xf32>
      %106 = arith.subf %14, %105 : vector<32x512xf32>
      %cst_62 = arith.constant 0.000000e+00 : f32
      %107 = vector.broadcast %cst_62 : f32 to vector<32x512xf32>
      %108 = arith.maximumf %106, %107 : vector<32x512xf32>
      %109 = math.absf %106 : vector<32x512xf32>
      %cst_63 = arith.constant 0.000000e+00 : f32
      %110 = vector.broadcast %cst_63 : f32 to vector<32x512xf32>
      %111 = arith.subf %110, %109 : vector<32x512xf32>
      %112 = math.exp %111 : vector<32x512xf32>
      %cst_64 = arith.constant 1.000000e+00 : f32
      %113 = vector.broadcast %cst_64 : f32 to vector<32x512xf32>
      %114 = arith.addf %113, %112 : vector<32x512xf32>
      %115 = math.log %114 : vector<32x512xf32>
      %116 = arith.addf %108, %115 : vector<32x512xf32>
      %117 = vector.shape_cast %116 : vector<32x512xf32> to vector<2x16x512xf32>
      %c0_65 = arith.constant 0 : index
      %c1_66 = arith.constant 1 : index
      %c0_67 = arith.constant 0 : index
      %118 = vector.load %arg11[%c0_65, %c1_66, %c0_67] : memref<2x18x512xf32, #tpu.memory_space<vmem>>, vector<2x16x512xf32>
      tpu.vector_store %arg11[%c0_65, %c1_66, %c0_67], %117 {strides = array<i32>} : memref<2x18x512xf32, #tpu.memory_space<vmem>>, vector<2x16x512xf32>,
      %cst_68 = arith.constant 0.000000e+00 : f32
      %119 = vector.broadcast %cst_68 : f32 to vector<32x512xf32>
      %c0_69 = arith.constant 0 : index
      %c0_70 = arith.constant 0 : index
      %c0_71 = arith.constant 0 : index
      %120 = vector.load %arg11[%c0_69, %c0_70, %c0_71] : memref<2x18x512xf32, #tpu.memory_space<vmem>>, vector<2x16x512xf32>
      %121 = vector.shape_cast %120 : vector<2x16x512xf32> to vector<32x512xf32>
      %122 = arith.truncf %121 : vector<32x512xf32> to vector<32x512xbf16>
      %c0_72 = arith.constant 0 : index
      %c0_73 = arith.constant 0 : index
      %c0_74 = arith.constant 0 : index
      %123 = vector.load %arg4[%c0_72, %c0_73, %c0_74] : memref<3x512x512xbf16, #tpu.memory_space<vmem>>, vector<1x512x512xbf16>
      %124 = vector.shape_cast %123 : vector<1x512x512xbf16> to vector<512x512xbf16>
      %cst_75 = arith.constant dense<0.000000e+00> : vector<32x512xf32>
      %125 = tpu.matmul %122, %124, %cst_75 {dimension_numbers = #tpu.dot_dimension_numbers<[1], [0], [0], [1], [0, 0, 1, 1], [], []>} : vector<32x512xbf16>, vector<512x512xbf16>, vector<32x512xf32> -> vector<32x512xf32>
      %126 = arith.addf %119, %125 : vector<32x512xf32>
      %c0_76 = arith.constant 0 : index
      %c1_77 = arith.constant 1 : index
      %c0_78 = arith.constant 0 : index
      %127 = vector.load %arg11[%c0_76, %c1_77, %c0_78] : memref<2x18x512xf32, #tpu.memory_space<vmem>>, vector<2x16x512xf32>
      %128 = vector.shape_cast %127 : vector<2x16x512xf32> to vector<32x512xf32>
      %129 = arith.truncf %128 : vector<32x512xf32> to vector<32x512xbf16>
      %c1_79 = arith.constant 1 : index
      %c0_80 = arith.constant 0 : index
      %c0_81 = arith.constant 0 : index
      %130 = vector.load %arg4[%c1_79, %c0_80, %c0_81] : memref<3x512x512xbf16, #tpu.memory_space<vmem>>, vector<1x512x512xbf16>
      %131 = vector.shape_cast %130 : vector<1x512x512xbf16> to vector<512x512xbf16>
      %cst_82 = arith.constant dense<0.000000e+00> : vector<32x512xf32>
      %132 = tpu.matmul %129, %131, %cst_82 {dimension_numbers = #tpu.dot_dimension_numbers<[1], [0], [0], [1], [0, 0, 1, 1], [], []>} : vector<32x512xbf16>, vector<512x512xbf16>, vector<32x512xf32> -> vector<32x512xf32>
      %133 = arith.addf %126, %132 : vector<32x512xf32>
      %c0_83 = arith.constant 0 : index
      %c2_84 = arith.constant 2 : index
      %c0_85 = arith.constant 0 : index
      %134 = vector.load %arg11[%c0_83, %c2_84, %c0_85] : memref<2x18x512xf32, #tpu.memory_space<vmem>>, vector<2x16x512xf32>
      %135 = vector.shape_cast %134 : vector<2x16x512xf32> to vector<32x512xf32>
      %136 = arith.truncf %135 : vector<32x512xf32> to vector<32x512xbf16>
      %c2_86 = arith.constant 2 : index
      %c0_87 = arith.constant 0 : index
      %c0_88 = arith.constant 0 : index
      %137 = vector.load %arg4[%c2_86, %c0_87, %c0_88] : memref<3x512x512xbf16, #tpu.memory_space<vmem>>, vector<1x512x512xbf16>
      %138 = vector.shape_cast %137 : vector<1x512x512xbf16> to vector<512x512xbf16>
      %cst_89 = arith.constant dense<0.000000e+00> : vector<32x512xf32>
      %139 = tpu.matmul %136, %138, %cst_89 {dimension_numbers = #tpu.dot_dimension_numbers<[1], [0], [0], [1], [0, 0, 1, 1], [], []>} : vector<32x512xbf16>, vector<512x512xbf16>, vector<32x512xf32> -> vector<32x512xf32>
      %140 = arith.addf %133, %139 : vector<32x512xf32>
      %c7 = arith.constant 7 : index
      %c0_90 = arith.constant 0 : index
      %141 = vector.load %arg7[%c7, %c0_90] : memref<11x512xf32, #tpu.memory_space<vmem>>, vector<1x512xf32>
      %c8 = arith.constant 8 : index
      %c0_91 = arith.constant 0 : index
      %142 = vector.load %arg7[%c8, %c0_91] : memref<11x512xf32, #tpu.memory_space<vmem>>, vector<1x512xf32>
      %cst_92 = arith.constant dense<0.000000e+00> : vector<512xf32>
      %143 = vector.multi_reduction <add>, %140, %cst_92 [0] : vector<32x512xf32> to vector<512xf32>
      %144 = vector.shape_cast %143 : vector<512xf32> to vector<1x512xf32>
      %145 = arith.mulf %140, %140 : vector<32x512xf32>
      %cst_93 = arith.constant dense<0.000000e+00> : vector<512xf32>
      %146 = vector.multi_reduction <add>, %145, %cst_93 [0] : vector<32x512xf32> to vector<512xf32>
      %147 = vector.shape_cast %146 : vector<512xf32> to vector<1x512xf32>
      %148 = tpu.concatenate %144, %147 in 0 : vector<1x512xf32>, vector<1x512xf32> -> vector<2x512xf32>
      %c32_i32_94 = arith.constant 32 : i32
      %149 = tpu.dynamic_rotate %148 by %c32_i32_94 dim 1 : vector<2x512xf32>, i32 -> vector<2x512xf32>
      %150 = arith.addf %148, %149 : vector<2x512xf32>
      %c64_i32_95 = arith.constant 64 : i32
      %151 = tpu.dynamic_rotate %150 by %c64_i32_95 dim 1 : vector<2x512xf32>, i32 -> vector<2x512xf32>
      %152 = arith.addf %150, %151 : vector<2x512xf32>
      %c128_i32_96 = arith.constant 128 : i32
      %153 = tpu.dynamic_rotate %152 by %c128_i32_96 dim 1 : vector<2x512xf32>, i32 -> vector<2x512xf32>
      %154 = arith.addf %152, %153 : vector<2x512xf32>
      %c256_i32_97 = arith.constant 256 : i32
      %155 = tpu.dynamic_rotate %154 by %c256_i32_97 dim 1 : vector<2x512xf32>, i32 -> vector<2x512xf32>
      %156 = arith.addf %154, %155 : vector<2x512xf32>
      %157 = vector.extract_strided_slice %156 {offsets = [0, 0], sizes = [1, 512], strides = [1, 1]} : vector<2x512xf32> to vector<1x512xf32>
      %cst_98 = arith.constant 0.001953125 : f32
      %158 = vector.broadcast %cst_98 : f32 to vector<1x512xf32>
      %159 = arith.mulf %157, %158 : vector<1x512xf32>
      %160 = vector.extract_strided_slice %156 {offsets = [1, 0], sizes = [1, 512], strides = [1, 1]} : vector<2x512xf32> to vector<1x512xf32>
      %cst_99 = arith.constant 0.001953125 : f32
      %161 = vector.broadcast %cst_99 : f32 to vector<1x512xf32>
      %162 = arith.mulf %160, %161 : vector<1x512xf32>
      %163 = arith.mulf %159, %159 : vector<1x512xf32>
      %164 = arith.subf %162, %163 : vector<1x512xf32>
      %cst_100 = arith.constant 0.000000e+00 : f32
      %165 = vector.broadcast %cst_100 : f32 to vector<1x512xf32>
      %166 = arith.maximumf %164, %165 : vector<1x512xf32>
      %167 = vector.broadcast %159 : vector<1x512xf32> to vector<32x512xf32>
      %168 = arith.subf %140, %167 : vector<32x512xf32>
      %169 = vector.broadcast %141 : vector<1x512xf32> to vector<32x512xf32>
      %170 = arith.mulf %169, %168 : vector<32x512xf32>
      %cst_101 = arith.constant 1.000000e-03 : f32
      %171 = vector.broadcast %cst_101 : f32 to vector<1x512xf32>
      %172 = arith.addf %166, %171 : vector<1x512xf32>
      %173 = math.rsqrt %172 : vector<1x512xf32>
      %174 = vector.broadcast %173 : vector<1x512xf32> to vector<32x512xf32>
      %175 = arith.mulf %170, %174 : vector<32x512xf32>
      %176 = vector.broadcast %142 : vector<1x512xf32> to vector<32x512xf32>
      %177 = arith.addf %175, %176 : vector<32x512xf32>
      %178 = vector.broadcast %9 : vector<1x512xf32> to vector<32x512xf32>
      %179 = arith.mulf %178, %116 : vector<32x512xf32>
      %180 = vector.broadcast %10 : vector<1x512xf32> to vector<32x512xf32>
      %181 = arith.mulf %180, %177 : vector<32x512xf32>
      %182 = arith.addf %179, %181 : vector<32x512xf32>
      %183 = vector.broadcast %11 : vector<1x512xf32> to vector<32x512xf32>
      %184 = arith.mulf %183, %116 : vector<32x512xf32>
      %185 = arith.mulf %184, %177 : vector<32x512xf32>
      %186 = arith.addf %182, %185 : vector<32x512xf32>
      %cst_102 = arith.constant 0.000000e+00 : f32
      %187 = vector.broadcast %cst_102 : f32 to vector<32x512xf32>
      %188 = arith.maximumf %186, %187 : vector<32x512xf32>
      %189 = math.absf %186 : vector<32x512xf32>
      %cst_103 = arith.constant 0.000000e+00 : f32
      %190 = vector.broadcast %cst_103 : f32 to vector<32x512xf32>
      %191 = arith.subf %190, %189 : vector<32x512xf32>
      %192 = math.exp %191 : vector<32x512xf32>
      %cst_104 = arith.constant 1.000000e+00 : f32
      %193 = vector.broadcast %cst_104 : f32 to vector<32x512xf32>
      %194 = arith.addf %193, %192 : vector<32x512xf32>
      %195 = math.log %194 : vector<32x512xf32>
      %196 = arith.addf %188, %195 : vector<32x512xf32>
      %c10 = arith.constant 10 : index
      %c0_105 = arith.constant 0 : index
      %197 = vector.load %arg7[%c10, %c0_105] : memref<11x512xf32, #tpu.memory_space<vmem>>, vector<1x512xf32>
      %198 = arith.truncf %116 : vector<32x512xf32> to vector<32x512xbf16>
      %c0_106 = arith.constant 0 : index
      %c0_107 = arith.constant 0 : index
      %199 = vector.load %arg6[%c0_106, %c0_107] : memref<512x512xbf16, #tpu.memory_space<vmem>>, vector<512x512xbf16>
      %cst_108 = arith.constant dense<0.000000e+00> : vector<32x512xf32>
      %200 = tpu.matmul %198, %199, %cst_108 {dimension_numbers = #tpu.dot_dimension_numbers<[1], [0], [0], [1], [0, 0, 1, 1], [], []>} : vector<32x512xbf16>, vector<512x512xbf16>, vector<32x512xf32> -> vector<32x512xf32>
      %201 = vector.broadcast %197 : vector<1x512xf32> to vector<32x512xf32>
      %202 = arith.addf %200, %201 : vector<32x512xf32>
      %cst_109 = arith.constant 5.000000e-01 : f32
      %203 = vector.broadcast %cst_109 : f32 to vector<32x512xf32>
      %204 = arith.mulf %203, %202 : vector<32x512xf32>
      %205 = math.tanh %204 : vector<32x512xf32>
      %cst_110 = arith.constant 1.000000e+00 : f32
      %206 = vector.broadcast %cst_110 : f32 to vector<32x512xf32>
      %207 = arith.addf %205, %206 : vector<32x512xf32>
      %cst_111 = arith.constant 5.000000e-01 : f32
      %208 = vector.broadcast %cst_111 : f32 to vector<32x512xf32>
      %209 = arith.mulf %208, %207 : vector<32x512xf32>
      %cst_112 = arith.constant 1.000000e+00 : f32
      %210 = vector.broadcast %cst_112 : f32 to vector<32x512xf32>
      %211 = arith.subf %210, %209 : vector<32x512xf32>
      %212 = arith.mulf %211, %15 : vector<32x512xf32>
      %213 = arith.mulf %209, %196 : vector<32x512xf32>
      %214 = arith.addf %212, %213 : vector<32x512xf32>
      %cst_113 = arith.constant 0.000000e+00 : f32
      %215 = vector.broadcast %cst_113 : f32 to vector<32x512xf32>
      %216 = arith.maximumf %214, %215 : vector<32x512xf32>
      %217 = math.absf %214 : vector<32x512xf32>
      %cst_114 = arith.constant 0.000000e+00 : f32
      %218 = vector.broadcast %cst_114 : f32 to vector<32x512xf32>
      %219 = arith.subf %218, %217 : vector<32x512xf32>
      %220 = math.exp %219 : vector<32x512xf32>
      %cst_115 = arith.constant 1.000000e+00 : f32
      %221 = vector.broadcast %cst_115 : f32 to vector<32x512xf32>
      %222 = arith.addf %221, %220 : vector<32x512xf32>
      %223 = math.log %222 : vector<32x512xf32>
      %224 = arith.addf %216, %223 : vector<32x512xf32>
      %c0_116 = arith.constant 0 : index
      %c0_117 = arith.constant 0 : index
      %225 = vector.load %arg10[%c0_116, %c0_117] : memref<32x512xf32, #tpu.memory_space<vmem>>, vector<32x512xf32>
      tpu.vector_store %arg10[%c0_116, %c0_117], %224 {strides = array<i32>} : memref<32x512xf32, #tpu.memory_space<vmem>>, vector<32x512xf32>,
      %226 = arith.index_cast %6 : i32 to index
      %c0_118 = arith.constant 0 : index
      %c0_119 = arith.constant 0 : index
      %227 = vector.load %arg8[%226, %c0_118, %c0_119] : memref<8x32x512xf32, #tpu.memory_space<vmem>>, vector<1x32x512xf32>
      %228 = vector.shape_cast %227 : vector<1x32x512xf32> to vector<32x512xf32>
      %229 = vector.shape_cast %224 : vector<32x512xf32> to vector<1x32x512xf32>
      tpu.vector_store %arg8[%226, %c0_118, %c0_119], %229 {strides = array<i32>} : memref<8x32x512xf32, #tpu.memory_space<vmem>>, vector<1x32x512xf32>,
      %230 = arith.index_cast %6 : i32 to index
      %c0_120 = arith.constant 0 : index
      %c0_121 = arith.constant 0 : index
      %231 = vector.load %arg9[%230, %c0_120, %c0_121] : memref<8x32x512xf32, #tpu.memory_space<vmem>>, vector<1x32x512xf32>
      %232 = vector.shape_cast %231 : vector<1x32x512xf32> to vector<32x512xf32>
      %233 = vector.shape_cast %209 : vector<32x512xf32> to vector<1x32x512xf32>
      tpu.vector_store %arg9[%230, %c0_120, %c0_121], %233 {strides = array<i32>} : memref<8x32x512xf32, #tpu.memory_space<vmem>>, vector<1x32x512xf32>,
    }
    %c8_i32_6 = arith.constant 8 : i32
    return
  }
  func.func @transform_0(%arg0: i32) -> (i32, i32, i32) {
    %c0_i32 = arith.constant 0 : i32
    %c0_i32_0 = arith.constant 0 : i32
    %c0_i32_1 = arith.constant 0 : i32
    %c0_i32_2 = arith.constant 0 : i32
    return %c0_i32, %c0_i32_0, %c0_i32_1 : i32, i32, i32
  }
  func.func @transform_1(%arg0: i32) -> (i32, i32) {
    %c0_i32 = arith.constant 0 : i32
    %c0_i32_0 = arith.constant 0 : i32
    %c0_i32_1 = arith.constant 0 : i32
    return %c0_i32, %c0_i32_0 : i32, i32
  }
  func.func @transform_2(%arg0: i32) -> (i32, i32, i32) {
    %c0_i32 = arith.constant 0 : i32
    %c0_i32_0 = arith.constant 0 : i32
    %c0_i32_1 = arith.constant 0 : i32
    %c0_i32_2 = arith.constant 0 : i32
    return %c0_i32, %c0_i32_0, %c0_i32_1 : i32, i32, i32
  }
  func.func @transform_3(%arg0: i32) -> (i32, i32, i32) {
    %c0_i32 = arith.constant 0 : i32
    %c0_i32_0 = arith.constant 0 : i32
    %c0_i32_1 = arith.constant 0 : i32
    %c0_i32_2 = arith.constant 0 : i32
    return %c0_i32, %c0_i32_0, %c0_i32_1 : i32, i32, i32
  }
  func.func @transform_4(%arg0: i32) -> (i32, i32) {
    %c0_i32 = arith.constant 0 : i32
    %c0_i32_0 = arith.constant 0 : i32
    %c0_i32_1 = arith.constant 0 : i32
    return %c0_i32, %c0_i32_0 : i32, i32
  }
  func.func @transform_5(%arg0: i32) -> (i32, i32) {
    %c0_i32 = arith.constant 0 : i32
    %c0_i32_0 = arith.constant 0 : i32
    %c0_i32_1 = arith.constant 0 : i32
    return %c0_i32, %c0_i32_0 : i32, i32
  }
  func.func @transform_6(%arg0: i32) -> (i32, i32) {
    %c0_i32 = arith.constant 0 : i32
    %c0_i32_0 = arith.constant 0 : i32
    %c0_i32_1 = arith.constant 0 : i32
    return %c0_i32, %c0_i32_0 : i32, i32
  }
  func.func @transform_7(%arg0: i32) -> (i32, i32, i32) {
    %c0_i32 = arith.constant 0 : i32
    %c0_i32_0 = arith.constant 0 : i32
    %c0_i32_1 = arith.constant 0 : i32
    %c0_i32_2 = arith.constant 0 : i32
    return %c0_i32, %c0_i32_0, %c0_i32_1 : i32, i32, i32
  }
  func.func @transform_8(%arg0: i32) -> (i32, i32, i32) {
    %c0_i32 = arith.constant 0 : i32
    %c0_i32_0 = arith.constant 0 : i32
    %c0_i32_1 = arith.constant 0 : i32
    %c0_i32_2 = arith.constant 0 : i32
    return %c0_i32, %c0_i32_0, %c0_i32_1 : i32, i32, i32
  }
}

</mosaic_0001>

<llo_original>
// kernel: tpu_custom_call.1
$region0: #{tpu_custom_call.1}
  #allocation0 [shape = 'u32[]', space=smem, size = 0x4, offset = 0x4, fixed_abs, tag = 'smem constant byte address 0x4 - core index']
  #allocation1 [shape = 'u32[144,128]{1,0:T(1,128)}', space=vmem, size = 0x12000, scoped, tag = 'internal scratch']
  #allocation2 [shape = 'f32[32,512]{1,0:T(8,128)}', space=vmem, size = 0x10000, scoped, tag = 'scratch operand']
  #allocation3 [shape = 'f32[2,18,512]{2,1,0:T(8,128)}', space=vmem, size = 0x18000, scoped, tag = 'scratch operand']
  %s0 = inlined_call_operand.hbm [shape: f32[8,32,512], index: 0, kind: input, shape index: {}]
  %s1 = inlined_call_operand.hbm [shape: f32[32,512], index: 1, kind: input, shape index: {}]
  %s2 = inlined_call_operand.hbm [shape: bf16[3,512,512], index: 2, kind: input, shape index: {}]
  %s3 = inlined_call_operand.hbm [shape: bf16[3,512,512], index: 3, kind: input, shape index: {}]
  %s4 = inlined_call_operand.hbm [shape: bf16[512,512], index: 4, kind: input, shape index: {}]
  %s5 = inlined_call_operand.hbm [shape: bf16[512,512], index: 5, kind: input, shape index: {}]
  %s6 = inlined_call_operand.hbm [shape: f32[11,512], index: 6, kind: input, shape index: {}]
  %s7 = inlined_call_operand.hbm [shape: f32[8,32,512], index: 7, kind: output, shape index: {0}]
  %s8 = inlined_call_operand.hbm [shape: f32[8,32,512], index: 8, kind: output, shape index: {1}]
  %9 = xla_tuple %s7, %s8
  %s10 = sld [smem:[#allocation0]]
  $region81: #{tpu_custom_call.1} parent=0
    _
  %s12 = ssub.s32 1, %s10
  %s13 = scalar_select 0, %s12, %s10
  $region1: #{tpu_custom_call.1} parent=0
    #allocation4 [shape = 'u8[524288]{0}', space=vmem, size = 0x80000, scoped, tag = 'input window, operand 0, single buffered']
    #allocation5 [shape = 's32[1]{0}', space=sflag, size = 0x4, scoped, tag = 'scoped memory for tpu_custom_call.1']
    #allocation6 [shape = 's32[1]{0}', space=sflag, size = 0x4, scoped, tag = 'scoped memory for tpu_custom_call.1']
    #allocation7 [shape = 'u8[65536]{0}', space=vmem, size = 0x10000, scoped, tag = 'input window, operand 1, single buffered']
    #allocation8 [shape = 's32[1]{0}', space=sflag, size = 0x4, scoped, tag = 'scoped memory for tpu_custom_call.1']
    #allocation9 [shape = 'u8[1572864]{0}', space=vmem, size = 0x180000, scoped, tag = 'input window, operand 2, single buffered']
    #allocation10 [shape = 'u8[1572864]{0}', space=vmem, size = 0x180000, scoped, tag = 'input window, operand 3, single buffered']
    #allocation11 [shape = 's32[1]{0}', space=sflag, size = 0x4, scoped, tag = 'scoped memory for tpu_custom_call.1']
    #allocation12 [shape = 'u8[524288]{0}', space=vmem, size = 0x80000, scoped, tag = 'input window, operand 4, single buffered']
    #allocation13 [shape = 'u8[524288]{0}', space=vmem, size = 0x80000, scoped, tag = 'input window, operand 5, single buffered']
    #allocation14 [shape = 's32[1]{0}', space=sflag, size = 0x4, scoped, tag = 'scoped memory for tpu_custom_call.1']
    #allocation15 [shape = 'u8[32768]{0}', space=vmem, size = 0x8000, scoped, tag = 'input window, operand 6, single buffered']
    #allocation16 [shape = 'u8[524288]{0}', space=vmem, size = 0x80000, scoped, tag = 'output window, operand 0, single buffered']
    #allocation17 [shape = 'u8[524288]{0}', space=vmem, size = 0x80000, scoped, tag = 'output window, operand 1, single buffered']
    #allocation18 [shape = 's32[1]{0}', space=sflag, size = 0x4, scoped, tag = 'scoped memory for tpu_custom_call.1']
    %14 = vsyncpa [#allocation5], 0
    %15 = vsyncpa [#allocation8], 0
    %16 = vsyncpa [#allocation11], 0
    %17 = vsyncpa [#allocation14], 0
    %18 = vsyncpa [#allocation6], 0
    %19 = vsyncpa [#allocation18], 0
    // Predicated region
    $region2: #{tpu_custom_call.1} parent=1 // pred_check
      _
    $region3: #{tpu_custom_call.1} parent=1 // pred_check_branch
      %21 = sbr.rel (0) target = $region5
    $region4: #{tpu_custom_call.1} parent=1 // pred_region
      %s23 = ssub.s32 16384, 16384
      %24 = vsyncadd [#allocation5], %s23
      %s25 = sshll.u32 [#allocation4], 4
      %s26 = int_to_ptr.vmem [resolvable:$true] %s25
      %31 = dma.hbm_to_vmem [thread:$0]  %s0, 16384, %s26, [#allocation5], 512, 512, 32
    $region5: #{tpu_custom_call.1} parent=1 // pred_fallthru
      _
    // Predicated region
    $region6: #{tpu_custom_call.1} parent=1 // pred_check
      _
    $region7: #{tpu_custom_call.1} parent=1 // pred_check_branch
      %33 = sbr.rel (0) target = $region9
    $region8: #{tpu_custom_call.1} parent=1 // pred_region
      %s35 = ssub.s32 2048, 2048
      %36 = vsyncadd [#allocation8], %s35
      %s37 = sshll.u32 [#allocation7], 4
      %s38 = int_to_ptr.vmem [resolvable:$true] %s37
      %43 = dma.hbm_to_vmem [thread:$0]  %s1, 2048, %s38, [#allocation8], 512, 512, 32
    $region9: #{tpu_custom_call.1} parent=1 // pred_fallthru
      _
    // Predicated region
    $region10: #{tpu_custom_call.1} parent=1 // pred_check
      _
    $region11: #{tpu_custom_call.1} parent=1 // pred_check_branch
      %45 = sbr.rel (0) target = $region13
    $region12: #{tpu_custom_call.1} parent=1 // pred_region
      %s47 = ssub.s32 49152, 49152
      %48 = vsyncadd [#allocation8], %s47
      %s49 = sshll.u32 [#allocation9], 4
      %s50 = int_to_ptr.vmem [resolvable:$true] %s49
      %55 = dma.hbm_to_vmem [thread:$0]  %s2, 49152, %s50, [#allocation8], 256, 256, 16
    $region13: #{tpu_custom_call.1} parent=1 // pred_fallthru
      _
    // Predicated region
    $region14: #{tpu_custom_call.1} parent=1 // pred_check
      _
    $region15: #{tpu_custom_call.1} parent=1 // pred_check_branch
      %57 = sbr.rel (0) target = $region17
    $region16: #{tpu_custom_call.1} parent=1 // pred_region
      %s59 = ssub.s32 49152, 49152
      %60 = vsyncadd [#allocation11], %s59
      %s61 = sshll.u32 [#allocation10], 4
      %s62 = int_to_ptr.vmem [resolvable:$true] %s61
      %67 = dma.hbm_to_vmem [thread:$0]  %s3, 49152, %s62, [#allocation11], 256, 256, 16
    $region17: #{tpu_custom_call.1} parent=1 // pred_fallthru
      _
    // Predicated region
    $region18: #{tpu_custom_call.1} parent=1 // pred_check
      _
    $region19: #{tpu_custom_call.1} parent=1 // pred_check_branch
      %69 = sbr.rel (0) target = $region21
    $region20: #{tpu_custom_call.1} parent=1 // pred_region
      %s71 = ssub.s32 16384, 16384
      %72 = vsyncadd [#allocation11], %s71
      %s73 = sshll.u32 [#allocation12], 4
      %s74 = int_to_ptr.vmem [resolvable:$true] %s73
      %79 = dma.hbm_to_vmem [thread:$0]  %s4, 16384, %s74, [#allocation11], 256, 256, 16
    $region21: #{tpu_custom_call.1} parent=1 // pred_fallthru
      _
    // Predicated region
    $region22: #{tpu_custom_call.1} parent=1 // pred_check
      _
    $region23: #{tpu_custom_call.1} parent=1 // pred_check_branch
      %81 = sbr.rel (0) target = $region25
    $region24: #{tpu_custom_call.1} parent=1 // pred_region
      %s83 = ssub.s32 16384, 16384
      %84 = vsyncadd [#allocation14], %s83
      %s85 = sshll.u32 [#allocation13], 4
      %s86 = int_to_ptr.vmem [resolvable:$true] %s85
      %91 = dma.hbm_to_vmem [thread:$0]  %s5, 16384, %s86, [#allocation14], 256, 256, 16
    $region25: #{tpu_custom_call.1} parent=1 // pred_fallthru
      _
    // Predicated region
    $region26: #{tpu_custom_call.1} parent=1 // pred_check
      _
    $region27: #{tpu_custom_call.1} parent=1 // pred_check_branch
      %93 = sbr.rel (0) target = $region29
    $region28: #{tpu_custom_call.1} parent=1 // pred_region
      %s95 = ssub.s32 1024, 1024
      %96 = vsyncadd [#allocation14], %s95
      %s97 = sshll.u32 [#allocation15], 4
      %s98 = int_to_ptr.vmem [resolvable:$true] %s97
      %103 = dma.hbm_to_vmem [thread:$0]  %s6, 1024, %s98, [#allocation14], 512, 512, 32
    $region29: #{tpu_custom_call.1} parent=1 // pred_fallthru
      _
    // Predicated region
    $region30: #{tpu_custom_call.1} parent=1 // pred_check
      _
    $region31: #{tpu_custom_call.1} parent=1 // pred_check_branch
      %105 = sbr.rel (0) target = $region33
    $region32: #{tpu_custom_call.1} parent=1 // pred_region
      %106 = dma.done [#allocation5], 16384
    $region33: #{tpu_custom_call.1} parent=1 // pred_fallthru
      _
    // Predicated region
    $region34: #{tpu_custom_call.1} parent=1 // pred_check
      _
    $region35: #{tpu_custom_call.1} parent=1 // pred_check_branch
      %108 = sbr.rel (0) target = $region37
    $region36: #{tpu_custom_call.1} parent=1 // pred_region
      %109 = dma.done [#allocation8], 2048
    $region37: #{tpu_custom_call.1} parent=1 // pred_fallthru
      _
    // Predicated region
    $region38: #{tpu_custom_call.1} parent=1 // pred_check
      _
    $region39: #{tpu_custom_call.1} parent=1 // pred_check_branch
      %111 = sbr.rel (0) target = $region41
    $region40: #{tpu_custom_call.1} parent=1 // pred_region
      %112 = dma.done [#allocation8], 49152
    $region41: #{tpu_custom_call.1} parent=1 // pred_fallthru
      _
    // Predicated region
    $region42: #{tpu_custom_call.1} parent=1 // pred_check
      _
    $region43: #{tpu_custom_call.1} parent=1 // pred_check_branch
      %114 = sbr.rel (0) target = $region45
    $region44: #{tpu_custom_call.1} parent=1 // pred_region
      %115 = dma.done [#allocation11], 49152
    $region45: #{tpu_custom_call.1} parent=1 // pred_fallthru
      _
    // Predicated region
    $region46: #{tpu_custom_call.1} parent=1 // pred_check
      _
    $region47: #{tpu_custom_call.1} parent=1 // pred_check_branch
      %117 = sbr.rel (0) target = $region49
    $region48: #{tpu_custom_call.1} parent=1 // pred_region
      %118 = dma.done [#allocation11], 16384
    $region49: #{tpu_custom_call.1} parent=1 // pred_fallthru
      _
    // Predicated region
    $region50: #{tpu_custom_call.1} parent=1 // pred_check
      _
    $region51: #{tpu_custom_call.1} parent=1 // pred_check_branch
      %120 = sbr.rel (0) target = $region53
    $region52: #{tpu_custom_call.1} parent=1 // pred_region
      %121 = dma.done [#allocation14], 16384
    $region53: #{tpu_custom_call.1} parent=1 // pred_fallthru
      _
    // Predicated region
    $region54: #{tpu_custom_call.1} parent=1 // pred_check
      _
    $region55: #{tpu_custom_call.1} parent=1 // pred_check_branch
      %123 = sbr.rel (0) target = $region57
    $region56: #{tpu_custom_call.1} parent=1 // pred_region
      %124 = dma.done [#allocation14], 1024
    $region57: #{tpu_custom_call.1} parent=1 // pred_fallthru
      _
    %125 = vst [vmem:[#allocation3] sm:$0xff] 0.0
    %126 = vst [vmem:[#allocation3 + $0x8] sm:$0xff] 0.0
    %127 = vst [vmem:[#allocation3 + $0x10] sm:$0xff] 0.0
    %128 = vst [vmem:[#allocation3 + $0x18] sm:$0xff] 0.0
    %129 = vst [vmem:[#allocation3 + $0x20] sm:$0xff] 0.0
    %130 = vst [vmem:[#allocation3 + $0x28] sm:$0xff] 0.0
    %131 = vst [vmem:[#allocation3 + $0x30] sm:$0xff] 0.0
    %132 = vst [vmem:[#allocation3 + $0x38] sm:$0xff] 0.0
    %133 = vst [vmem:[#allocation3 + $0x40] sm:$0x3] 0.0
    %134 = vst [vmem:[#allocation3 + $0x48] sm:$0x3] 0.0
    %135 = vst [vmem:[#allocation3 + $0x50] sm:$0x3] 0.0
    %136 = vst [vmem:[#allocation3 + $0x58] sm:$0x3] 0.0
    %137 = vst [vmem:[#allocation3 + $0x60] sm:$0xff] 0.0
    %138 = vst [vmem:[#allocation3 + $0x68] sm:$0xff] 0.0
    %139 = vst [vmem:[#allocation3 + $0x70] sm:$0xff] 0.0
    %140 = vst [vmem:[#allocation3 + $0x78] sm:$0xff] 0.0
    %141 = vst [vmem:[#allocation3 + $0x80] sm:$0xff] 0.0
    %142 = vst [vmem:[#allocation3 + $0x88] sm:$0xff] 0.0
    %143 = vst [vmem:[#allocation3 + $0x90] sm:$0xff] 0.0
    %144 = vst [vmem:[#allocation3 + $0x98] sm:$0xff] 0.0
    %145 = vst [vmem:[#allocation3 + $0xa0] sm:$0x3] 0.0
    %146 = vst [vmem:[#allocation3 + $0xa8] sm:$0x3] 0.0
    %147 = vst [vmem:[#allocation3 + $0xb0] sm:$0x3] 0.0
    %148 = vst [vmem:[#allocation3 + $0xb8] sm:$0x3] 0.0
    %v149 = vld [vmem:[#allocation7] sm:$0xff]
    %v150 = vld [vmem:[#allocation7 + $0x8] sm:$0xff]
    %v151 = vld [vmem:[#allocation7 + $0x10] sm:$0xff]
    %v152 = vld [vmem:[#allocation7 + $0x18] sm:$0xff]
    %v153 = vld [vmem:[#allocation7 + $0x20] sm:$0xff]
    %v154 = vld [vmem:[#allocation7 + $0x28] sm:$0xff]
    %v155 = vld [vmem:[#allocation7 + $0x30] sm:$0xff]
    %v156 = vld [vmem:[#allocation7 + $0x38] sm:$0xff]
    %v157 = vld [vmem:[#allocation7 + $0x40] sm:$0xff]
    %v158 = vld [vmem:[#allocation7 + $0x48] sm:$0xff]
    %v159 = vld [vmem:[#allocation7 + $0x50] sm:$0xff]
    %v160 = vld [vmem:[#allocation7 + $0x58] sm:$0xff]
    %v161 = vld [vmem:[#allocation7 + $0x60] sm:$0xff]
    %v162 = vld [vmem:[#allocation7 + $0x68] sm:$0xff]
    %v163 = vld [vmem:[#allocation7 + $0x70] sm:$0xff]
    %v164 = vld [vmem:[#allocation7 + $0x78] sm:$0xff]
    %165 = vst [vmem:[#allocation2] sm:$0xff] %v149
    %166 = vst [vmem:[#allocation2 + $0x8] sm:$0xff] %v150
    %167 = vst [vmem:[#allocation2 + $0x10] sm:$0xff] %v151
    %168 = vst [vmem:[#allocation2 + $0x18] sm:$0xff] %v152
    %169 = vst [vmem:[#allocation2 + $0x20] sm:$0xff] %v153
    %170 = vst [vmem:[#allocation2 + $0x28] sm:$0xff] %v154
    %171 = vst [vmem:[#allocation2 + $0x30] sm:$0xff] %v155
    %172 = vst [vmem:[#allocation2 + $0x38] sm:$0xff] %v156
    %173 = vst [vmem:[#allocation2 + $0x40] sm:$0xff] %v157
    %174 = vst [vmem:[#allocation2 + $0x48] sm:$0xff] %v158
    %175 = vst [vmem:[#allocation2 + $0x50] sm:$0xff] %v159
    %176 = vst [vmem:[#allocation2 + $0x58] sm:$0xff] %v160
    %177 = vst [vmem:[#allocation2 + $0x60] sm:$0xff] %v161
    %178 = vst [vmem:[#allocation2 + $0x68] sm:$0xff] %v162
    %179 = vst [vmem:[#allocation2 + $0x70] sm:$0xff] %v163
    %180 = vst [vmem:[#allocation2 + $0x78] sm:$0xff] %v164
    loop: start=0, step=1, limit=8
    $region58: #{tpu_custom_call.1} parent=1 // loop_pre_header
      _
    $region59: #{tpu_custom_call.1} parent=1 // loop_header
      %s182 = sphi 0, %s186
      %p183 = scmp.ge.s32.totalorder %s182, 8
    $region60: #{tpu_custom_call.1} parent=1 // loop_header_branch
      %185 = sbr.rel (%p183) target = $region64
    $region61: #{tpu_custom_call.1} parent=1 // loop_body
      %v187 = vld [vmem:[#allocation15] ss:$8 sm:$0xf]
      %s188 = scalar_lea.vmem [#allocation15], 1
      %v189 = vld [vmem:[%s188] ss:$8 sm:$0xf]
      %s190 = scalar_lea.vmem [#allocation15], 2
      %v191 = vld [vmem:[%s190] ss:$8 sm:$0xf]
      %s192 = scalar_lea.vmem [#allocation15], 3
      %v193 = vld [vmem:[%s192] ss:$8 sm:$0xf]
      %s194 = scalar_lea.vmem [#allocation15], 4
      %v195 = vld [vmem:[%s194] ss:$8 sm:$0xf]
      %s196 = smul.u32 %s182, 16
      %s197 = smul.addr %s196, 8
      %s198 = scalar_lea.vmem [#allocation4], %s197
      %v199 = vld [vmem:[%s198] sm:$0xff]
      %v200 = vld [vmem:[%s198 + $0x8] sm:$0xff]
      %v201 = vld [vmem:[%s198 + $0x10] sm:$0xff]
      %v202 = vld [vmem:[%s198 + $0x18] sm:$0xff]
      %v203 = vld [vmem:[%s198 + $0x20] sm:$0xff]
      %v204 = vld [vmem:[%s198 + $0x28] sm:$0xff]
      %v205 = vld [vmem:[%s198 + $0x30] sm:$0xff]
      %v206 = vld [vmem:[%s198 + $0x38] sm:$0xff]
      %v207 = vld [vmem:[%s198 + $0x40] sm:$0xff]
      %v208 = vld [vmem:[%s198 + $0x48] sm:$0xff]
      %v209 = vld [vmem:[%s198 + $0x50] sm:$0xff]
      %v210 = vld [vmem:[%s198 + $0x58] sm:$0xff]
      %v211 = vld [vmem:[%s198 + $0x60] sm:$0xff]
      %v212 = vld [vmem:[%s198 + $0x68] sm:$0xff]
      %v213 = vld [vmem:[%s198 + $0x70] sm:$0xff]
      %v214 = vld [vmem:[%s198 + $0x78] sm:$0xff]
      %v215 = vld [vmem:[#allocation2] sm:$0xff]
      %v216 = vld [vmem:[#allocation2 + $0x8] sm:$0xff]
      %v217 = vld [vmem:[#allocation2 + $0x10] sm:$0xff]
      %v218 = vld [vmem:[#allocation2 + $0x18] sm:$0xff]
      %v219 = vld [vmem:[#allocation2 + $0x20] sm:$0xff]
      %v220 = vld [vmem:[#allocation2 + $0x28] sm:$0xff]
      %v221 = vld [vmem:[#allocation2 + $0x30] sm:$0xff]
      %v222 = vld [vmem:[#allocation2 + $0x38] sm:$0xff]
      %v223 = vld [vmem:[#allocation2 + $0x40] sm:$0xff]
      %v224 = vld [vmem:[#allocation2 + $0x48] sm:$0xff]
      %v225 = vld [vmem:[#allocation2 + $0x50] sm:$0xff]
      %v226 = vld [vmem:[#allocation2 + $0x58] sm:$0xff]
      %v227 = vld [vmem:[#allocation2 + $0x60] sm:$0xff]
      %v228 = vld [vmem:[#allocation2 + $0x68] sm:$0xff]
      %v229 = vld [vmem:[#allocation2 + $0x70] sm:$0xff]
      %v230 = vld [vmem:[#allocation2 + $0x78] sm:$0xff]
      %s231 = scalar_lea.vmem [#allocation15], 33
      %v232 = vld [vmem:[%s231] ss:$8 sm:$0xf]
      %v233 = vpack.c.bf16 %v219, %v215
      %v234 = vpack.c.bf16 %v220, %v216
      %v235 = vpack.c.bf16 %v221, %v217
      %v236 = vpack.c.bf16 %v222, %v218
      %v237 = vpack.c.bf16 %v227, %v223
      %v238 = vpack.c.bf16 %v228, %v224
      %v239 = vpack.c.bf16 %v229, %v225
      %v240 = vpack.c.bf16 %v230, %v226
      %v241 = vld [vmem:[#allocation12] sm:$0xff]
      %v242 = vld [vmem:[#allocation12 + $0x8] sm:$0xff]
      %v243 = vld [vmem:[#allocation12 + $0x10] sm:$0xff]
      %v244 = vld [vmem:[#allocation12 + $0x18] sm:$0xff]
      %v245 = vld [vmem:[#allocation12 + $0x20] sm:$0xff]
      %v246 = vld [vmem:[#allocation12 + $0x28] sm:$0xff]
      %v247 = vld [vmem:[#allocation12 + $0x30] sm:$0xff]
      %v248 = vld [vmem:[#allocation12 + $0x38] sm:$0xff]
      %v249 = vld [vmem:[#allocation12 + $0x40] sm:$0xff]
      %v250 = vld [vmem:[#allocation12 + $0x48] sm:$0xff]
      %v251 = vld [vmem:[#allocation12 + $0x50] sm:$0xff]
      %v252 = vld [vmem:[#allocation12 + $0x58] sm:$0xff]
      %v253 = vld [vmem:[#allocation12 + $0x60] sm:$0xff]
      %v254 = vld [vmem:[#allocation12 + $0x68] sm:$0xff]
      %v255 = vld [vmem:[#allocation12 + $0x70] sm:$0xff]
      %v256 = vld [vmem:[#allocation12 + $0x78] sm:$0xff]
      %v257 = vld [vmem:[#allocation12 + $0x80] sm:$0xff]
      %v258 = vld [vmem:[#allocation12 + $0x88] sm:$0xff]
      %v259 = vld [vmem:[#allocation12 + $0x90] sm:$0xff]
      %v260 = vld [vmem:[#allocation12 + $0x98] sm:$0xff]
      %v261 = vld [vmem:[#allocation12 + $0xa0] sm:$0xff]
      %v262 = vld [vmem:[#allocation12 + $0xa8] sm:$0xff]
      %v263 = vld [vmem:[#allocation12 + $0xb0] sm:$0xff]
      %v264 = vld [vmem:[#allocation12 + $0xb8] sm:$0xff]
      %v265 = vld [vmem:[#allocation12 + $0xc0] sm:$0xff]
      %v266 = vld [vmem:[#allocation12 + $0xc8] sm:$0xff]
      %v267 = vld [vmem:[#allocation12 + $0xd0] sm:$0xff]
      %v268 = vld [vmem:[#allocation12 + $0xd8] sm:$0xff]
      %v269 = vld [vmem:[#allocation12 + $0xe0] sm:$0xff]
      %v270 = vld [vmem:[#allocation12 + $0xe8] sm:$0xff]
      %v271 = vld [vmem:[#allocation12 + $0xf0] sm:$0xff]
      %v272 = vld [vmem:[#allocation12 + $0xf8] sm:$0xff]
      %v273 = vld [vmem:[#allocation12 + $0x100] sm:$0xff]
      %v274 = vld [vmem:[#allocation12 + $0x108] sm:$0xff]
      %v275 = vld [vmem:[#allocation12 + $0x110] sm:$0xff]
      %v276 = vld [vmem:[#allocation12 + $0x118] sm:$0xff]
      %v277 = vld [vmem:[#allocation12 + $0x120] sm:$0xff]
      %v278 = vld [vmem:[#allocation12 + $0x128] sm:$0xff]
      %v279 = vld [vmem:[#allocation12 + $0x130] sm:$0xff]
      %v280 = vld [vmem:[#allocation12 + $0x138] sm:$0xff]
      %v281 = vld [vmem:[#allocation12 + $0x140] sm:$0xff]
      %v282 = vld [vmem:[#allocation12 + $0x148] sm:$0xff]
      %v283 = vld [vmem:[#allocation12 + $0x150] sm:$0xff]
      %v284 = vld [vmem:[#allocation12 + $0x158] sm:$0xff]
      %v285 = vld [vmem:[#allocation12 + $0x160] sm:$0xff]
      %v286 = vld [vmem:[#allocation12 + $0x168] sm:$0xff]
      %v287 = vld [vmem:[#allocation12 + $0x170] sm:$0xff]
      %v288 = vld [vmem:[#allocation12 + $0x178] sm:$0xff]
      %v289 = vld [vmem:[#allocation12 + $0x180] sm:$0xff]
      %v290 = vld [vmem:[#allocation12 + $0x188] sm:$0xff]
      %v291 = vld [vmem:[#allocation12 + $0x190] sm:$0xff]
      %v292 = vld [vmem:[#allocation12 + $0x198] sm:$0xff]
      %v293 = vld [vmem:[#allocation12 + $0x1a0] sm:$0xff]
      %v294 = vld [vmem:[#allocation12 + $0x1a8] sm:$0xff]
      %v295 = vld [vmem:[#allocation12 + $0x1b0] sm:$0xff]
      %v296 = vld [vmem:[#allocation12 + $0x1b8] sm:$0xff]
      %v297 = vld [vmem:[#allocation12 + $0x1c0] sm:$0xff]
      %v298 = vld [vmem:[#allocation12 + $0x1c8] sm:$0xff]
      %v299 = vld [vmem:[#allocation12 + $0x1d0] sm:$0xff]
      %v300 = vld [vmem:[#allocation12 + $0x1d8] sm:$0xff]
      %v301 = vld [vmem:[#allocation12 + $0x1e0] sm:$0xff]
      %v302 = vld [vmem:[#allocation12 + $0x1e8] sm:$0xff]
      %v303 = vld [vmem:[#allocation12 + $0x1f0] sm:$0xff]
      %v304 = vld [vmem:[#allocation12 + $0x1f8] sm:$0xff]
      %v305 = vld [vmem:[#allocation12 + $0x200] sm:$0xff]
      %v306 = vld [vmem:[#allocation12 + $0x208] sm:$0xff]
      %v307 = vld [vmem:[#allocation12 + $0x210] sm:$0xff]
      %v308 = vld [vmem:[#allocation12 + $0x218] sm:$0xff]
      %v309 = vld [vmem:[#allocation12 + $0x220] sm:$0xff]
      %v310 = vld [vmem:[#allocation12 + $0x228] sm:$0xff]
      %v311 = vld [vmem:[#allocation12 + $0x230] sm:$0xff]
      %v312 = vld [vmem:[#allocation12 + $0x238] sm:$0xff]
      %v313 = vld [vmem:[#allocation12 + $0x240] sm:$0xff]
      %v314 = vld [vmem:[#allocation12 + $0x248] sm:$0xff]
      %v315 = vld [vmem:[#allocation12 + $0x250] sm:$0xff]
      %v316 = vld [vmem:[#allocation12 + $0x258] sm:$0xff]
      %v317 = vld [vmem:[#allocation12 + $0x260] sm:$0xff]
      %v318 = vld [vmem:[#allocation12 + $0x268] sm:$0xff]
      %v319 = vld [vmem:[#allocation12 + $0x270] sm:$0xff]
      %v320 = vld [vmem:[#allocation12 + $0x278] sm:$0xff]
      %v321 = vld [vmem:[#allocation12 + $0x280] sm:$0xff]
      %v322 = vld [vmem:[#allocation12 + $0x288] sm:$0xff]
      %v323 = vld [vmem:[#allocation12 + $0x290] sm:$0xff]
      %v324 = vld [vmem:[#allocation12 + $0x298] sm:$0xff]
      %v325 = vld [vmem:[#allocation12 + $0x2a0] sm:$0xff]
      %v326 = vld [vmem:[#allocation12 + $0x2a8] sm:$0xff]
      %v327 = vld [vmem:[#allocation12 + $0x2b0] sm:$0xff]
      %v328 = vld [vmem:[#allocation12 + $0x2b8] sm:$0xff]
      %v329 = vld [vmem:[#allocation12 + $0x2c0] sm:$0xff]
      %v330 = vld [vmem:[#allocation12 + $0x2c8] sm:$0xff]
      %v331 = vld [vmem:[#allocation12 + $0x2d0] sm:$0xff]
      %v332 = vld [vmem:[#allocation12 + $0x2d8] sm:$0xff]
      %v333 = vld [vmem:[#allocation12 + $0x2e0] sm:$0xff]
      %v334 = vld [vmem:[#allocation12 + $0x2e8] sm:$0xff]
      %v335 = vld [vmem:[#allocation12 + $0x2f0] sm:$0xff]
      %v336 = vld [vmem:[#allocation12 + $0x2f8] sm:$0xff]
      %v337 = vld [vmem:[#allocation12 + $0x300] sm:$0xff]
      %v338 = vld [vmem:[#allocation12 + $0x308] sm:$0xff]
      %v339 = vld [vmem:[#allocation12 + $0x310] sm:$0xff]
      %v340 = vld [vmem:[#allocation12 + $0x318] sm:$0xff]
      %v341 = vld [vmem:[#allocation12 + $0x320] sm:$0xff]
      %v342 = vld [vmem:[#allocation12 + $0x328] sm:$0xff]
      %v343 = vld [vmem:[#allocation12 + $0x330] sm:$0xff]
      %v344 = vld [vmem:[#allocation12 + $0x338] sm:$0xff]
      %v345 = vld [vmem:[#allocation12 + $0x340] sm:$0xff]
      %v346 = vld [vmem:[#allocation12 + $0x348] sm:$0xff]
      %v347 = vld [vmem:[#allocation12 + $0x350] sm:$0xff]
      %v348 = vld [vmem:[#allocation12 + $0x358] sm:$0xff]
      %v349 = vld [vmem:[#allocation12 + $0x360] sm:$0xff]
      %v350 = vld [vmem:[#allocation12 + $0x368] sm:$0xff]
      %v351 = vld [vmem:[#allocation12 + $0x370] sm:$0xff]
      %v352 = vld [vmem:[#allocation12 + $0x378] sm:$0xff]
      %v353 = vld [vmem:[#allocation12 + $0x380] sm:$0xff]
      %v354 = vld [vmem:[#allocation12 + $0x388] sm:$0xff]
      %v355 = vld [vmem:[#allocation12 + $0x390] sm:$0xff]
      %v356 = vld [vmem:[#allocation12 + $0x398] sm:$0xff]
      %v357 = vld [vmem:[#allocation12 + $0x3a0] sm:$0xff]
      %v358 = vld [vmem:[#allocation12 + $0x3a8] sm:$0xff]
      %v359 = vld [vmem:[#allocation12 + $0x3b0] sm:$0xff]
      %v360 = vld [vmem:[#allocation12 + $0x3b8] sm:$0xff]
      %v361 = vld [vmem:[#allocation12 + $0x3c0] sm:$0xff]
      %v362 = vld [vmem:[#allocation12 + $0x3c8] sm:$0xff]
      %v363 = vld [vmem:[#allocation12 + $0x3d0] sm:$0xff]
      %v364 = vld [vmem:[#allocation12 + $0x3d8] sm:$0xff]
      %v365 = vld [vmem:[#allocation12 + $0x3e0] sm:$0xff]
      %v366 = vld [vmem:[#allocation12 + $0x3e8] sm:$0xff]
      %v367 = vld [vmem:[#allocation12 + $0x3f0] sm:$0xff]
      %v368 = vld [vmem:[#allocation12 + $0x3f8] sm:$0xff]
      %v370 = vlaneseq
      %v371 = vshrl.u32 %v370, 7
      %v372 = vsub.s32 0, %v371
      %v373 = vrot.slane %v232, %v372
      %v374 = vlaneseq
      %v375 = vshrl.u32 %v374, 7
      %v376 = vsub.s32 1, %v375
      %v377 = vrot.slane %v232, %v376
      %v378 = vlaneseq
      %v379 = vshrl.u32 %v378, 7
      %v380 = vsub.s32 2, %v379
      %v381 = vrot.slane %v232, %v380
      %v382 = vlaneseq
      %v383 = vshrl.u32 %v382, 7
      %v384 = vsub.s32 3, %v383
      %v385 = vrot.slane %v232, %v384
      %v518 = vunpack.c.l.b16 %v241
      %v519 = vunpack.c.h.b16 %v241
      %v520 = vunpack.c.l.b16 %v242
      %v521 = vunpack.c.h.b16 %v242
      %v522 = vunpack.c.l.b16 %v243
      %v523 = vunpack.c.h.b16 %v243
      %v524 = vunpack.c.l.b16 %v244
      %v525 = vunpack.c.h.b16 %v244
      %v526 = vunpack.c.l.b16 %v245
      %v527 = vunpack.c.h.b16 %v245
      %v528 = vunpack.c.l.b16 %v246
      %v529 = vunpack.c.h.b16 %v246
      %v530 = vunpack.c.l.b16 %v247
      %v531 = vunpack.c.h.b16 %v247
      %v532 = vunpack.c.l.b16 %v248
      %v533 = vunpack.c.h.b16 %v248
      %v534 = vunpack.c.l.b16 %v249
      %v535 = vunpack.c.h.b16 %v249
      %v536 = vunpack.c.l.b16 %v250
      %v537 = vunpack.c.h.b16 %v250
      %v538 = vunpack.c.l.b16 %v251
      %v539 = vunpack.c.h.b16 %v251
      %v540 = vunpack.c.l.b16 %v252
      %v541 = vunpack.c.h.b16 %v252
      %v542 = vunpack.c.l.b16 %v253
      %v543 = vunpack.c.h.b16 %v253
      %v544 = vunpack.c.l.b16 %v254
      %v545 = vunpack.c.h.b16 %v254
      %v546 = vunpack.c.l.b16 %v255
      %v547 = vunpack.c.h.b16 %v255
      %v548 = vunpack.c.l.b16 %v256
      %v549 = vunpack.c.h.b16 %v256
      %v550 = vunpack.c.l.b16 %v257
      %v551 = vunpack.c.h.b16 %v257
      %v552 = vunpack.c.l.b16 %v258
      %v553 = vunpack.c.h.b16 %v258
      %v554 = vunpack.c.l.b16 %v259
      %v555 = vunpack.c.h.b16 %v259
      %v556 = vunpack.c.l.b16 %v260
      %v557 = vunpack.c.h.b16 %v260
      %v558 = vunpack.c.l.b16 %v261
      %v559 = vunpack.c.h.b16 %v261
      %v560 = vunpack.c.l.b16 %v262
      %v561 = vunpack.c.h.b16 %v262
      %v562 = vunpack.c.l.b16 %v263
      %v563 = vunpack.c.h.b16 %v263
      %v564 = vunpack.c.l.b16 %v264
      %v565 = vunpack.c.h.b16 %v264
      %v566 = vunpack.c.l.b16 %v265
      %v567 = vunpack.c.h.b16 %v265
      %v568 = vunpack.c.l.b16 %v266
      %v569 = vunpack.c.h.b16 %v266
      %v570 = vunpack.c.l.b16 %v267
      %v571 = vunpack.c.h.b16 %v267
      %v572 = vunpack.c.l.b16 %v268
      %v573 = vunpack.c.h.b16 %v268
      %v574 = vunpack.c.l.b16 %v269
      %v575 = vunpack.c.h.b16 %v269
      %v576 = vunpack.c.l.b16 %v270
      %v577 = vunpack.c.h.b16 %v270
      %v578 = vunpack.c.l.b16 %v271
      %v579 = vunpack.c.h.b16 %v271
      %v580 = vunpack.c.l.b16 %v272
      %v581 = vunpack.c.h.b16 %v272
      %v582 = vunpack.c.l.b16 %v273
      %v583 = vunpack.c.h.b16 %v273
      %v584 = vunpack.c.l.b16 %v274
      %v585 = vunpack.c.h.b16 %v274
      %v586 = vunpack.c.l.b16 %v275
      %v587 = vunpack.c.h.b16 %v275
      %v588 = vunpack.c.l.b16 %v276
      %v589 = vunpack.c.h.b16 %v276
      %v590 = vunpack.c.l.b16 %v277
      %v591 = vunpack.c.h.b16 %v277
      %v592 = vunpack.c.l.b16 %v278
      %v593 = vunpack.c.h.b16 %v278
      %v594 = vunpack.c.l.b16 %v279
      %v595 = vunpack.c.h.b16 %v279
      %v596 = vunpack.c.l.b16 %v280
      %v597 = vunpack.c.h.b16 %v280
      %v598 = vunpack.c.l.b16 %v281
      %v599 = vunpack.c.h.b16 %v281
      %v600 = vunpack.c.l.b16 %v282
      %v601 = vunpack.c.h.b16 %v282
      %v602 = vunpack.c.l.b16 %v283
      %v603 = vunpack.c.h.b16 %v283
      %v604 = vunpack.c.l.b16 %v284
      %v605 = vunpack.c.h.b16 %v284
      %v606 = vunpack.c.l.b16 %v285
      %v607 = vunpack.c.h.b16 %v285
      %v608 = vunpack.c.l.b16 %v286
      %v609 = vunpack.c.h.b16 %v286
      %v610 = vunpack.c.l.b16 %v287
      %v611 = vunpack.c.h.b16 %v287
      %v612 = vunpack.c.l.b16 %v288
      %v613 = vunpack.c.h.b16 %v288
      %v614 = vunpack.c.l.b16 %v289
      %v615 = vunpack.c.h.b16 %v289
      %v616 = vunpack.c.l.b16 %v290
      %v617 = vunpack.c.h.b16 %v290
      %v618 = vunpack.c.l.b16 %v291
      %v619 = vunpack.c.h.b16 %v291
      %v620 = vunpack.c.l.b16 %v292
      %v621 = vunpack.c.h.b16 %v292
      %v622 = vunpack.c.l.b16 %v293
      %v623 = vunpack.c.h.b16 %v293
      %v624 = vunpack.c.l.b16 %v294
      %v625 = vunpack.c.h.b16 %v294
      %v626 = vunpack.c.l.b16 %v295
      %v627 = vunpack.c.h.b16 %v295
      %v628 = vunpack.c.l.b16 %v296
      %v629 = vunpack.c.h.b16 %v296
      %v630 = vunpack.c.l.b16 %v297
      %v631 = vunpack.c.h.b16 %v297
      %v632 = vunpack.c.l.b16 %v298
      %v633 = vunpack.c.h.b16 %v298
      %v634 = vunpack.c.l.b16 %v299
      %v635 = vunpack.c.h.b16 %v299
      %v636 = vunpack.c.l.b16 %v300
      %v637 = vunpack.c.h.b16 %v300
      %v638 = vunpack.c.l.b16 %v301
      %v639 = vunpack.c.h.b16 %v301
      %v640 = vunpack.c.l.b16 %v302
      %v641 = vunpack.c.h.b16 %v302
      %v642 = vunpack.c.l.b16 %v303
      %v643 = vunpack.c.h.b16 %v303
      %v644 = vunpack.c.l.b16 %v304
      %v645 = vunpack.c.h.b16 %v304
      %v646 = vunpack.c.l.b16 %v305
      %v647 = vunpack.c.h.b16 %v305
      %v648 = vunpack.c.l.b16 %v306
      %v649 = vunpack.c.h.b16 %v306
      %v650 = vunpack.c.l.b16 %v307
      %v651 = vunpack.c.h.b16 %v307
      %v652 = vunpack.c.l.b16 %v308
      %v653 = vunpack.c.h.b16 %v308
      %v654 = vunpack.c.l.b16 %v309
      %v655 = vunpack.c.h.b16 %v309
      %v656 = vunpack.c.l.b16 %v310
      %v657 = vunpack.c.h.b16 %v310
      %v658 = vunpack.c.l.b16 %v311
      %v659 = vunpack.c.h.b16 %v311
      %v660 = vunpack.c.l.b16 %v312
      %v661 = vunpack.c.h.b16 %v312
      %v662 = vunpack.c.l.b16 %v313
      %v663 = vunpack.c.h.b16 %v313
      %v664 = vunpack.c.l.b16 %v314
      %v665 = vunpack.c.h.b16 %v314
      %v666 = vunpack.c.l.b16 %v315
      %v667 = vunpack.c.h.b16 %v315
      %v668 = vunpack.c.l.b16 %v316
      %v669 = vunpack.c.h.b16 %v316
      %v670 = vunpack.c.l.b16 %v317
      %v671 = vunpack.c.h.b16 %v317
      %v672 = vunpack.c.l.b16 %v318
      %v673 = vunpack.c.h.b16 %v318
      %v674 = vunpack.c.l.b16 %v319
      %v675 = vunpack.c.h.b16 %v319
      %v676 = vunpack.c.l.b16 %v320
      %v677 = vunpack.c.h.b16 %v320
      %v678 = vunpack.c.l.b16 %v321
      %v679 = vunpack.c.h.b16 %v321
      %v680 = vunpack.c.l.b16 %v322
      %v681 = vunpack.c.h.b16 %v322
      %v682 = vunpack.c.l.b16 %v323
      %v683 = vunpack.c.h.b16 %v323
      %v684 = vunpack.c.l.b16 %v324
      %v685 = vunpack.c.h.b16 %v324
      %v686 = vunpack.c.l.b16 %v325
      %v687 = vunpack.c.h.b16 %v325
      %v688 = vunpack.c.l.b16 %v326
      %v689 = vunpack.c.h.b16 %v326
      %v690 = vunpack.c.l.b16 %v327
      %v691 = vunpack.c.h.b16 %v327
      %v692 = vunpack.c.l.b16 %v328
      %v693 = vunpack.c.h.b16 %v328
      %v694 = vunpack.c.l.b16 %v329
      %v695 = vunpack.c.h.b16 %v329
      %v696 = vunpack.c.l.b16 %v330
      %v697 = vunpack.c.h.b16 %v330
      %v698 = vunpack.c.l.b16 %v331
      %v699 = vunpack.c.h.b16 %v331
      %v700 = vunpack.c.l.b16 %v332
      %v701 = vunpack.c.h.b16 %v332
      %v702 = vunpack.c.l.b16 %v333
      %v703 = vunpack.c.h.b16 %v333
      %v704 = vunpack.c.l.b16 %v334
      %v705 = vunpack.c.h.b16 %v334
      %v706 = vunpack.c.l.b16 %v335
      %v707 = vunpack.c.h.b16 %v335
      %v708 = vunpack.c.l.b16 %v336
      %v709 = vunpack.c.h.b16 %v336
      %v710 = vunpack.c.l.b16 %v337
      %v711 = vunpack.c.h.b16 %v337
      %v712 = vunpack.c.l.b16 %v338
      %v713 = vunpack.c.h.b16 %v338
      %v714 = vunpack.c.l.b16 %v339
      %v715 = vunpack.c.h.b16 %v339
      %v716 = vunpack.c.l.b16 %v340
      %v717 = vunpack.c.h.b16 %v340
      %v718 = vunpack.c.l.b16 %v341
      %v719 = vunpack.c.h.b16 %v341
      %v720 = vunpack.c.l.b16 %v342
      %v721 = vunpack.c.h.b16 %v342
      %v722 = vunpack.c.l.b16 %v343
      %v723 = vunpack.c.h.b16 %v343
      %v724 = vunpack.c.l.b16 %v344
      %v725 = vunpack.c.h.b16 %v344
      %v726 = vunpack.c.l.b16 %v345
      %v727 = vunpack.c.h.b16 %v345
      %v728 = vunpack.c.l.b16 %v346
      %v729 = vunpack.c.h.b16 %v346
      %v730 = vunpack.c.l.b16 %v347
      %v731 = vunpack.c.h.b16 %v347
      %v732 = vunpack.c.l.b16 %v348
      %v733 = vunpack.c.h.b16 %v348
      %v734 = vunpack.c.l.b16 %v349
      %v735 = vunpack.c.h.b16 %v349
      %v736 = vunpack.c.l.b16 %v350
      %v737 = vunpack.c.h.b16 %v350
      %v738 = vunpack.c.l.b16 %v351
      %v739 = vunpack.c.h.b16 %v351
      %v740 = vunpack.c.l.b16 %v352
      %v741 = vunpack.c.h.b16 %v352
      %v742 = vunpack.c.l.b16 %v353
      %v743 = vunpack.c.h.b16 %v353
      %v744 = vunpack.c.l.b16 %v354
      %v745 = vunpack.c.h.b16 %v354
      %v746 = vunpack.c.l.b16 %v355
      %v747 = vunpack.c.h.b16 %v355
      %v748 = vunpack.c.l.b16 %v356
      %v749 = vunpack.c.h.b16 %v356
      %v750 = vunpack.c.l.b16 %v357
      %v751 = vunpack.c.h.b16 %v357
      %v752 = vunpack.c.l.b16 %v358
      %v753 = vunpack.c.h.b16 %v358
      %v754 = vunpack.c.l.b16 %v359
      %v755 = vunpack.c.h.b16 %v359
      %v756 = vunpack.c.l.b16 %v360
      %v757 = vunpack.c.h.b16 %v360
      %v758 = vunpack.c.l.b16 %v361
      %v759 = vunpack.c.h.b16 %v361
      %v760 = vunpack.c.l.b16 %v362
      %v761 = vunpack.c.h.b16 %v362
      %v762 = vunpack.c.l.b16 %v363
      %v763 = vunpack.c.h.b16 %v363
      %v764 = vunpack.c.l.b16 %v364
      %v765 = vunpack.c.h.b16 %v364
      %v766 = vunpack.c.l.b16 %v365
      %v767 = vunpack.c.h.b16 %v365
      %v768 = vunpack.c.l.b16 %v366
      %v769 = vunpack.c.h.b16 %v366
      %v770 = vunpack.c.l.b16 %v367
      %v771 = vunpack.c.h.b16 %v367
      %v772 = vunpack.c.l.b16 %v368
      %v773 = vunpack.c.h.b16 %v368
      %v774 = vpack.c.b16 %v522, %v518
      %v775 = vpack.c.b16 %v523, %v519
      %v776 = vpack.c.b16 %v524, %v520
      %v777 = vpack.c.b16 %v525, %v521
      %v778 = vpack.c.b16 %v530, %v526
      %v779 = vpack.c.b16 %v531, %v527
      %v780 = vpack.c.b16 %v532, %v528
      %v781 = vpack.c.b16 %v533, %v529
      %v782 = vpack.c.b16 %v538, %v534
      %v783 = vpack.c.b16 %v539, %v535
      %v784 = vpack.c.b16 %v540, %v536
      %v785 = vpack.c.b16 %v541, %v537
      %v786 = vpack.c.b16 %v546, %v542
      %v787 = vpack.c.b16 %v547, %v543
      %v788 = vpack.c.b16 %v548, %v544
      %v789 = vpack.c.b16 %v549, %v545
      %v790 = vpack.c.b16 %v554, %v550
      %v791 = vpack.c.b16 %v555, %v551
      %v792 = vpack.c.b16 %v556, %v552
      %v793 = vpack.c.b16 %v557, %v553
      %v794 = vpack.c.b16 %v562, %v558
      %v795 = vpack.c.b16 %v563, %v559
      %v796 = vpack.c.b16 %v564, %v560
      %v797 = vpack.c.b16 %v565, %v561
      %v798 = vpack.c.b16 %v570, %v566
      %v799 = vpack.c.b16 %v571, %v567
      %v800 = vpack.c.b16 %v572, %v568
      %v801 = vpack.c.b16 %v573, %v569
      %v802 = vpack.c.b16 %v578, %v574
      %v803 = vpack.c.b16 %v579, %v575
      %v804 = vpack.c.b16 %v580, %v576
      %v805 = vpack.c.b16 %v581, %v577
      %v806 = vpack.c.b16 %v586, %v582
      %v807 = vpack.c.b16 %v587, %v583
      %v808 = vpack.c.b16 %v588, %v584
      %v809 = vpack.c.b16 %v589, %v585
      %v810 = vpack.c.b16 %v594, %v590
      %v811 = vpack.c.b16 %v595, %v591
      %v812 = vpack.c.b16 %v596, %v592
      %v813 = vpack.c.b16 %v597, %v593
      %v814 = vpack.c.b16 %v602, %v598
      %v815 = vpack.c.b16 %v603, %v599
      %v816 = vpack.c.b16 %v604, %v600
      %v817 = vpack.c.b16 %v605, %v601
      %v818 = vpack.c.b16 %v610, %v606
      %v819 = vpack.c.b16 %v611, %v607
      %v820 = vpack.c.b16 %v612, %v608
      %v821 = vpack.c.b16 %v613, %v609
      %v822 = vpack.c.b16 %v618, %v614
      %v823 = vpack.c.b16 %v619, %v615
      %v824 = vpack.c.b16 %v620, %v616
      %v825 = vpack.c.b16 %v621, %v617
      %v826 = vpack.c.b16 %v626, %v622
      %v827 = vpack.c.b16 %v627, %v623
      %v828 = vpack.c.b16 %v628, %v624
      %v829 = vpack.c.b16 %v629, %v625
      %v830 = vpack.c.b16 %v634, %v630
      %v831 = vpack.c.b16 %v635, %v631
      %v832 = vpack.c.b16 %v636, %v632
      %v833 = vpack.c.b16 %v637, %v633
      %v834 = vpack.c.b16 %v642, %v638
      %v835 = vpack.c.b16 %v643, %v639
      %v836 = vpack.c.b16 %v644, %v640
      %v837 = vpack.c.b16 %v645, %v641
      %v838 = vpack.c.b16 %v650, %v646
      %v839 = vpack.c.b16 %v651, %v647
      %v840 = vpack.c.b16 %v652, %v648
      %v841 = vpack.c.b16 %v653, %v649
      %v842 = vpack.c.b16 %v658, %v654
      %v843 = vpack.c.b16 %v659, %v655
      %v844 = vpack.c.b16 %v660, %v656
      %v845 = vpack.c.b16 %v661, %v657
      %v846 = vpack.c.b16 %v666, %v662
      %v847 = vpack.c.b16 %v667, %v663
      %v848 = vpack.c.b16 %v668, %v664
      %v849 = vpack.c.b16 %v669, %v665
      %v850 = vpack.c.b16 %v674, %v670
      %v851 = vpack.c.b16 %v675, %v671
      %v852 = vpack.c.b16 %v676, %v672
      %v853 = vpack.c.b16 %v677, %v673
      %v854 = vpack.c.b16 %v682, %v678
      %v855 = vpack.c.b16 %v683, %v679
      %v856 = vpack.c.b16 %v684, %v680
      %v857 = vpack.c.b16 %v685, %v681
      %v858 = vpack.c.b16 %v690, %v686
      %v859 = vpack.c.b16 %v691, %v687
      %v860 = vpack.c.b16 %v692, %v688
      %v861 = vpack.c.b16 %v693, %v689
      %v862 = vpack.c.b16 %v698, %v694
      %v863 = vpack.c.b16 %v699, %v695
      %v864 = vpack.c.b16 %v700, %v696
      %v865 = vpack.c.b16 %v701, %v697
      %v866 = vpack.c.b16 %v706, %v702
      %v867 = vpack.c.b16 %v707, %v703
      %v868 = vpack.c.b16 %v708, %v704
      %v869 = vpack.c.b16 %v709, %v705
      %v870 = vpack.c.b16 %v714, %v710
      %v871 = vpack.c.b16 %v715, %v711
      %v872 = vpack.c.b16 %v716, %v712
      %v873 = vpack.c.b16 %v717, %v713
      %v874 = vpack.c.b16 %v722, %v718
      %v875 = vpack.c.b16 %v723, %v719
      %v876 = vpack.c.b16 %v724, %v720
      %v877 = vpack.c.b16 %v725, %v721
      %v878 = vpack.c.b16 %v730, %v726
      %v879 = vpack.c.b16 %v731, %v727
      %v880 = vpack.c.b16 %v732, %v728
      %v881 = vpack.c.b16 %v733, %v729
      %v882 = vpack.c.b16 %v738, %v734
      %v883 = vpack.c.b16 %v739, %v735
      %v884 = vpack.c.b16 %v740, %v736
      %v885 = vpack.c.b16 %v741, %v737
      %v886 = vpack.c.b16 %v746, %v742
      %v887 = vpack.c.b16 %v747, %v743
      %v888 = vpack.c.b16 %v748, %v744
      %v889 = vpack.c.b16 %v749, %v745
      %v890 = vpack.c.b16 %v754, %v750
      %v891 = vpack.c.b16 %v755, %v751
      %v892 = vpack.c.b16 %v756, %v752
      %v893 = vpack.c.b16 %v757, %v753
      %v894 = vpack.c.b16 %v762, %v758
      %v895 = vpack.c.b16 %v763, %v759
      %v896 = vpack.c.b16 %v764, %v760
      %v897 = vpack.c.b16 %v765, %v761
      %v898 = vpack.c.b16 %v770, %v766
      %v899 = vpack.c.b16 %v771, %v767
      %v900 = vpack.c.b16 %v772, %v768
      %v901 = vpack.c.b16 %v773, %v769
      %1030 = vmatprep.subr.bf16.mxu0 %v775
      %1031 = vmatpush1.bf16.msra.mxu0 %v774
      %1032 = vmatprep.subr.bf16.mxu0 %v779
      %1033 = vmatpush1.bf16.msra.mxu0 %v778
      %1034 = vmatprep.subr.bf16.mxu0 %v783
      %1035 = vmatpush1.bf16.msra.mxu0 %v782
      %1036 = vmatprep.subr.bf16.mxu0 %v787
      %1037 = vmatpush1.bf16.msra.mxu0 %v786
      %1038 = vmatprep.subr.bf16.mxu0 %v791
      %1039 = vmatpush1.bf16.msra.mxu0 %v790
      %1040 = vmatprep.subr.bf16.mxu0 %v795
      %1041 = vmatpush1.bf16.msra.mxu0 %v794
      %1042 = vmatprep.subr.bf16.mxu0 %v799
      %1043 = vmatpush1.bf16.msra.mxu0 %v798
      %1044 = vmatprep.subr.bf16.mxu0 %v803
      %1045 = vmatpush1.bf16.msra.mxu0 %v802
      %1046 = vmatprep.subr.bf16.mxu0 %v807
      %1047 = vmatpush1.bf16.msra.mxu0 %v806
      %1048 = vmatprep.subr.bf16.mxu0 %v811
      %1049 = vmatpush1.bf16.msra.mxu0 %v810
      %1050 = vmatprep.subr.bf16.mxu0 %v815
      %1051 = vmatpush1.bf16.msra.mxu0 %v814
      %1052 = vmatprep.subr.bf16.mxu0 %v819
      %1053 = vmatpush1.bf16.msra.mxu0 %v818
      %1054 = vmatprep.subr.bf16.mxu0 %v823
      %1055 = vmatpush1.bf16.msra.mxu0 %v822
      %1056 = vmatprep.subr.bf16.mxu0 %v827
      %1057 = vmatpush1.bf16.msra.mxu0 %v826
      %1058 = vmatprep.subr.bf16.mxu0 %v831
      %1059 = vmatpush1.bf16.msra.mxu0 %v830
      %1060 = vmatprep.subr.bf16.mxu0 %v835
      %1061 = vmatpush1.bf16.msra.mxu0 %v834
      %1062 = vmatprep.mubr.bf16.mxu0 %v234
      %1063 = vmatmul.mubr.bf16.gmra.mrb[0].mxu0 %v233
      %v1064 = vpop.f32.mrb[0].mxu0
      %v1065 = vadd.f32 %v373, %v1064
      %v1066 = vpop.f32.mrb[0].mxu0
      %v1067 = vadd.f32 %v377, %v1066
      %v1068 = vpop.f32.mrb[0].mxu0
      %v1069 = vadd.f32 %v373, %v1068
      %v1070 = vpop.f32.mrb[0].mxu0
      %v1071 = vadd.f32 %v377, %v1070
      %1072 = vmatprep.mubr.bf16.mxu0 %v238
      %1073 = vmatmul.mubr.bf16.gmra.mrb[0].mxu0 %v237
      %v1074 = vpop.f32.mrb[0].mxu0
      %v1075 = vadd.f32 %v373, %v1074
      %v1076 = vpop.f32.mrb[0].mxu0
      %v1077 = vadd.f32 %v377, %v1076
      %v1078 = vpop.f32.mrb[0].mxu0
      %v1079 = vadd.f32 %v373, %v1078
      %v1080 = vpop.f32.mrb[0].mxu0
      %v1081 = vadd.f32 %v377, %v1080
      %1082 = vdwg.mxu0
      %1083 = vmatprep.subr.bf16.mxu0 %v839
      %1084 = vmatpush1.bf16.msra.mxu0 %v838
      %1085 = vmatprep.subr.bf16.mxu0 %v843
      %1086 = vmatpush1.bf16.msra.mxu0 %v842
      %1087 = vmatprep.subr.bf16.mxu0 %v847
      %1088 = vmatpush1.bf16.msra.mxu0 %v846
      %1089 = vmatprep.subr.bf16.mxu0 %v851
      %1090 = vmatpush1.bf16.msra.mxu0 %v850
      %1091 = vmatprep.subr.bf16.mxu0 %v855
      %1092 = vmatpush1.bf16.msra.mxu0 %v854
      %1093 = vmatprep.subr.bf16.mxu0 %v859
      %1094 = vmatpush1.bf16.msra.mxu0 %v858
      %1095 = vmatprep.subr.bf16.mxu0 %v863
      %1096 = vmatpush1.bf16.msra.mxu0 %v862
      %1097 = vmatprep.subr.bf16.mxu0 %v867
      %1098 = vmatpush1.bf16.msra.mxu0 %v866
      %1099 = vmatprep.subr.bf16.mxu0 %v871
      %1100 = vmatpush1.bf16.msra.mxu0 %v870
      %1101 = vmatprep.subr.bf16.mxu0 %v875
      %1102 = vmatpush1.bf16.msra.mxu0 %v874
      %1103 = vmatprep.subr.bf16.mxu0 %v879
      %1104 = vmatpush1.bf16.msra.mxu0 %v878
      %1105 = vmatprep.subr.bf16.mxu0 %v883
      %1106 = vmatpush1.bf16.msra.mxu0 %v882
      %1107 = vmatprep.subr.bf16.mxu0 %v887
      %1108 = vmatpush1.bf16.msra.mxu0 %v886
      %1109 = vmatprep.subr.bf16.mxu0 %v891
      %1110 = vmatpush1.bf16.msra.mxu0 %v890
      %1111 = vmatprep.subr.bf16.mxu0 %v895
      %1112 = vmatpush1.bf16.msra.mxu0 %v894
      %1113 = vmatprep.subr.bf16.mxu0 %v899
      %1114 = vmatpush1.bf16.msra.mxu0 %v898
      %1115 = vmatprep.mubr.bf16.mxu0 %v236
      %1116 = vmatmul.mubr.bf16.gmra.mrb[0].mxu0 %v235
      %v1117 = vpop.f32.mrb[0].mxu0
      %v1118 = vadd.f32 %v1065, %v1117
      %v1119 = vpop.f32.mrb[0].mxu0
      %v1120 = vadd.f32 %v1067, %v1119
      %v1121 = vpop.f32.mrb[0].mxu0
      %v1122 = vadd.f32 %v1069, %v1121
      %v1123 = vpop.f32.mrb[0].mxu0
      %v1124 = vadd.f32 %v1071, %v1123
      %1125 = vmatprep.mubr.bf16.mxu0 %v240
      %1126 = vmatmul.mubr.bf16.gmra.mrb[0].mxu0 %v239
      %v1127 = vpop.f32.mrb[0].mxu0
      %v1128 = vadd.f32 %v1075, %v1127
      %v1129 = vpop.f32.mrb[0].mxu0
      %v1130 = vadd.f32 %v1077, %v1129
      %v1131 = vpop.f32.mrb[0].mxu0
      %v1132 = vadd.f32 %v1079, %v1131
      %v1133 = vpop.f32.mrb[0].mxu0
      %v1134 = vadd.f32 %v1081, %v1133
      %1135 = vdwg.mxu0
      %1136 = vmatprep.subr.bf16.mxu0 %v777
      %1137 = vmatpush1.bf16.msra.mxu0 %v776
      %1138 = vmatprep.subr.bf16.mxu0 %v781
      %1139 = vmatpush1.bf16.msra.mxu0 %v780
      %1140 = vmatprep.subr.bf16.mxu0 %v785
      %1141 = vmatpush1.bf16.msra.mxu0 %v784
      %1142 = vmatprep.subr.bf16.mxu0 %v789
      %1143 = vmatpush1.bf16.msra.mxu0 %v788
      %1144 = vmatprep.subr.bf16.mxu0 %v793
      %1145 = vmatpush1.bf16.msra.mxu0 %v792
      %1146 = vmatprep.subr.bf16.mxu0 %v797
      %1147 = vmatpush1.bf16.msra.mxu0 %v796
      %1148 = vmatprep.subr.bf16.mxu0 %v801
      %1149 = vmatpush1.bf16.msra.mxu0 %v800
      %1150 = vmatprep.subr.bf16.mxu0 %v805
      %1151 = vmatpush1.bf16.msra.mxu0 %v804
      %1152 = vmatprep.subr.bf16.mxu0 %v809
      %1153 = vmatpush1.bf16.msra.mxu0 %v808
      %1154 = vmatprep.subr.bf16.mxu0 %v813
      %1155 = vmatpush1.bf16.msra.mxu0 %v812
      %1156 = vmatprep.subr.bf16.mxu0 %v817
      %1157 = vmatpush1.bf16.msra.mxu0 %v816
      %1158 = vmatprep.subr.bf16.mxu0 %v821
      %1159 = vmatpush1.bf16.msra.mxu0 %v820
      %1160 = vmatprep.subr.bf16.mxu0 %v825
      %1161 = vmatpush1.bf16.msra.mxu0 %v824
      %1162 = vmatprep.subr.bf16.mxu0 %v829
      %1163 = vmatpush1.bf16.msra.mxu0 %v828
      %1164 = vmatprep.subr.bf16.mxu0 %v833
      %1165 = vmatpush1.bf16.msra.mxu0 %v832
      %1166 = vmatprep.subr.bf16.mxu0 %v837
      %1167 = vmatpush1.bf16.msra.mxu0 %v836
      %1168 = vmatprep.mubr.bf16.mxu0 %v234
      %1169 = vmatmul.mubr.bf16.gmra.mrb[0].mxu0 %v233
      %v1170 = vpop.f32.mrb[0].mxu0
      %v1171 = vadd.f32 %v381, %v1170
      %v1172 = vpop.f32.mrb[0].mxu0
      %v1173 = vadd.f32 %v385, %v1172
      %v1174 = vpop.f32.mrb[0].mxu0
      %v1175 = vadd.f32 %v381, %v1174
      %v1176 = vpop.f32.mrb[0].mxu0
      %v1177 = vadd.f32 %v385, %v1176
      %1178 = vmatprep.mubr.bf16.mxu0 %v238
      %1179 = vmatmul.mubr.bf16.gmra.mrb[0].mxu0 %v237
      %v1180 = vpop.f32.mrb[0].mxu0
      %v1181 = vadd.f32 %v381, %v1180
      %v1182 = vpop.f32.mrb[0].mxu0
      %v1183 = vadd.f32 %v385, %v1182
      %v1184 = vpop.f32.mrb[0].mxu0
      %v1185 = vadd.f32 %v381, %v1184
      %v1186 = vpop.f32.mrb[0].mxu0
      %v1187 = vadd.f32 %v385, %v1186
      %1188 = vdwg.mxu0
      %1189 = vmatprep.subr.bf16.mxu0 %v841
      %1190 = vmatpush1.bf16.msra.mxu0 %v840
      %1191 = vmatprep.subr.bf16.mxu0 %v845
      %1192 = vmatpush1.bf16.msra.mxu0 %v844
      %1193 = vmatprep.subr.bf16.mxu0 %v849
      %1194 = vmatpush1.bf16.msra.mxu0 %v848
      %1195 = vmatprep.subr.bf16.mxu0 %v853
      %1196 = vmatpush1.bf16.msra.mxu0 %v852
      %1197 = vmatprep.subr.bf16.mxu0 %v857
      %1198 = vmatpush1.bf16.msra.mxu0 %v856
      %1199 = vmatprep.subr.bf16.mxu0 %v861
      %1200 = vmatpush1.bf16.msra.mxu0 %v860
      %1201 = vmatprep.subr.bf16.mxu0 %v865
      %1202 = vmatpush1.bf16.msra.mxu0 %v864
      %1203 = vmatprep.subr.bf16.mxu0 %v869
      %1204 = vmatpush1.bf16.msra.mxu0 %v868
      %1205 = vmatprep.subr.bf16.mxu0 %v873
      %1206 = vmatpush1.bf16.msra.mxu0 %v872
      %1207 = vmatprep.subr.bf16.mxu0 %v877
      %1208 = vmatpush1.bf16.msra.mxu0 %v876
      %1209 = vmatprep.subr.bf16.mxu0 %v881
      %1210 = vmatpush1.bf16.msra.mxu0 %v880
      %1211 = vmatprep.subr.bf16.mxu0 %v885
      %1212 = vmatpush1.bf16.msra.mxu0 %v884
      %1213 = vmatprep.subr.bf16.mxu0 %v889
      %1214 = vmatpush1.bf16.msra.mxu0 %v888
      %1215 = vmatprep.subr.bf16.mxu0 %v893
      %1216 = vmatpush1.bf16.msra.mxu0 %v892
      %1217 = vmatprep.subr.bf16.mxu0 %v897
      %1218 = vmatpush1.bf16.msra.mxu0 %v896
      %1219 = vmatprep.subr.bf16.mxu0 %v901
      %1220 = vmatpush1.bf16.msra.mxu0 %v900
      %1221 = vmatprep.mubr.bf16.mxu0 %v236
      %1222 = vmatmul.mubr.bf16.gmra.mrb[0].mxu0 %v235
      %v1223 = vpop.f32.mrb[0].mxu0
      %v1224 = vadd.f32 %v1171, %v1223
      %v1225 = vpop.f32.mrb[0].mxu0
      %v1226 = vadd.f32 %v1173, %v1225
      %v1227 = vpop.f32.mrb[0].mxu0
      %v1228 = vadd.f32 %v1175, %v1227
      %v1229 = vpop.f32.mrb[0].mxu0
      %v1230 = vadd.f32 %v1177, %v1229
      %1231 = vmatprep.mubr.bf16.mxu0 %v240
      %1232 = vmatmul.mubr.bf16.gmra.mrb[0].mxu0 %v239
      %v1233 = vpop.f32.mrb[0].mxu0
      %v1234 = vadd.f32 %v1181, %v1233
      %v1235 = vpop.f32.mrb[0].mxu0
      %v1236 = vadd.f32 %v1183, %v1235
      %v1237 = vpop.f32.mrb[0].mxu0
      %v1238 = vadd.f32 %v1185, %v1237
      %v1239 = vpop.f32.mrb[0].mxu0
      %v1240 = vadd.f32 %v1187, %v1239
      %1241 = vdwg.mxu0
      %v1242 = vmul.f32 %v1118, 0.5
      %v1243 = vmul.f32 %v1120, 0.5
      %v1244 = vmul.f32 %v1224, 0.5
      %v1245 = vmul.f32 %v1226, 0.5
      %v1246 = vmul.f32 %v1122, 0.5
      %v1247 = vmul.f32 %v1124, 0.5
      %v1248 = vmul.f32 %v1228, 0.5
      %v1249 = vmul.f32 %v1230, 0.5
      %v1250 = vmul.f32 %v1128, 0.5
      %v1251 = vmul.f32 %v1130, 0.5
      %v1252 = vmul.f32 %v1234, 0.5
      %v1253 = vmul.f32 %v1236, 0.5
      %v1254 = vmul.f32 %v1132, 0.5
      %v1255 = vmul.f32 %v1134, 0.5
      %v1256 = vmul.f32 %v1238, 0.5
      %v1257 = vmul.f32 %v1240, 0.5
      %v1258 = vtanh.pop %v1242
      %v1259 = vtanh.pop %v1243
      %v1260 = vtanh.pop %v1244
      %v1261 = vtanh.pop %v1245
      %v1262 = vtanh.pop %v1246
      %v1263 = vtanh.pop %v1247
      %v1264 = vtanh.pop %v1248
      %v1265 = vtanh.pop %v1249
      %v1266 = vtanh.pop %v1250
      %v1267 = vtanh.pop %v1251
      %v1268 = vtanh.pop %v1252
      %v1269 = vtanh.pop %v1253
      %v1270 = vtanh.pop %v1254
      %v1271 = vtanh.pop %v1255
      %v1272 = vtanh.pop %v1256
      %v1273 = vtanh.pop %v1257
      %v1274 = vadd.f32 %v1258, 1.0
      %v1275 = vadd.f32 %v1259, 1.0
      %v1276 = vadd.f32 %v1260, 1.0
      %v1277 = vadd.f32 %v1261, 1.0
      %v1278 = vadd.f32 %v1262, 1.0
      %v1279 = vadd.f32 %v1263, 1.0
      %v1280 = vadd.f32 %v1264, 1.0
      %v1281 = vadd.f32 %v1265, 1.0
      %v1282 = vadd.f32 %v1266, 1.0
      %v1283 = vadd.f32 %v1267, 1.0
      %v1284 = vadd.f32 %v1268, 1.0
      %v1285 = vadd.f32 %v1269, 1.0
      %v1286 = vadd.f32 %v1270, 1.0
      %v1287 = vadd.f32 %v1271, 1.0
      %v1288 = vadd.f32 %v1272, 1.0
      %v1289 = vadd.f32 %v1273, 1.0
      %v1290 = vmul.f32 %v1274, 0.5
      %v1291 = vmul.f32 %v1275, 0.5
      %v1292 = vmul.f32 %v1276, 0.5
      %v1293 = vmul.f32 %v1277, 0.5
      %v1294 = vmul.f32 %v1278, 0.5
      %v1295 = vmul.f32 %v1279, 0.5
      %v1296 = vmul.f32 %v1280, 0.5
      %v1297 = vmul.f32 %v1281, 0.5
      %v1298 = vmul.f32 %v1282, 0.5
      %v1299 = vmul.f32 %v1283, 0.5
      %v1300 = vmul.f32 %v1284, 0.5
      %v1301 = vmul.f32 %v1285, 0.5
      %v1302 = vmul.f32 %v1286, 0.5
      %v1303 = vmul.f32 %v1287, 0.5
      %v1304 = vmul.f32 %v1288, 0.5
      %v1305 = vmul.f32 %v1289, 0.5
      %v1306 = vmul.f32 %v215, %v1290
      %v1307 = vmul.f32 %v216, %v1291
      %v1308 = vmul.f32 %v217, %v1292
      %v1309 = vmul.f32 %v218, %v1293
      %v1310 = vmul.f32 %v219, %v1294
      %v1311 = vmul.f32 %v220, %v1295
      %v1312 = vmul.f32 %v221, %v1296
      %v1313 = vmul.f32 %v222, %v1297
      %v1314 = vmul.f32 %v223, %v1298
      %v1315 = vmul.f32 %v224, %v1299
      %v1316 = vmul.f32 %v225, %v1300
      %v1317 = vmul.f32 %v226, %v1301
      %v1318 = vmul.f32 %v227, %v1302
      %v1319 = vmul.f32 %v228, %v1303
      %v1320 = vmul.f32 %v229, %v1304
      %v1321 = vmul.f32 %v230, %v1305
      %vm1338 = vcmask 1040384
      %v1339 = vrot.slane %v1306, 7
      %v1340 = vrot.slane %v1307, 7
      %v1341 = vrot.slane %v1308, 7
      %v1342 = vrot.slane %v1309, 7
      %v1343 = vrot.slane %v1310, 7
      %v1344 = vsel %vm1338, %v1339, %v1343
      %v1345 = vrot.slane %v1311, 7
      %v1346 = vsel %vm1338, %v1340, %v1345
      %v1347 = vrot.slane %v1312, 7
      %v1348 = vsel %vm1338, %v1341, %v1347
      %v1349 = vrot.slane %v1313, 7
      %v1350 = vsel %vm1338, %v1342, %v1349
      %v1351 = vrot.slane %v1314, 7
      %v1352 = vrot.slane %v1315, 7
      %v1353 = vrot.slane %v1316, 7
      %v1354 = vrot.slane %v1317, 7
      %v1355 = vrot.slane %v1318, 7
      %v1356 = vsel %vm1338, %v1351, %v1355
      %v1357 = vrot.slane %v1319, 7
      %v1358 = vsel %vm1338, %v1352, %v1357
      %v1359 = vrot.slane %v1320, 7
      %v1360 = vsel %vm1338, %v1353, %v1359
      %v1361 = vrot.slane %v1321, 7
      %v1362 = vsel %vm1338, %v1354, %v1361
      %1387 = vst [vmem:[#allocation3] sm:$0xfe] %v1339
      %1388 = vst [vmem:[#allocation3 + $0x8] sm:$0xfe] %v1340
      %1389 = vst [vmem:[#allocation3 + $0x10] sm:$0xfe] %v1341
      %1390 = vst [vmem:[#allocation3 + $0x18] sm:$0xfe] %v1342
      %1391 = vst [vmem:[#allocation3 + $0x20] sm:$0xff] %v1344
      %1392 = vst [vmem:[#allocation3 + $0x28] sm:$0xff] %v1346
      %1393 = vst [vmem:[#allocation3 + $0x30] sm:$0xff] %v1348
      %1394 = vst [vmem:[#allocation3 + $0x38] sm:$0xff] %v1350
      %1395 = vst [vmem:[#allocation3 + $0x40] sm:$0x1] %v1343
      %1396 = vst [vmem:[#allocation3 + $0x48] sm:$0x1] %v1345
      %1397 = vst [vmem:[#allocation3 + $0x50] sm:$0x1] %v1347
      %1398 = vst [vmem:[#allocation3 + $0x58] sm:$0x1] %v1349
      %1399 = vst [vmem:[#allocation3 + $0x60] sm:$0xfe] %v1351
      %1400 = vst [vmem:[#allocation3 + $0x68] sm:$0xfe] %v1352
      %1401 = vst [vmem:[#allocation3 + $0x70] sm:$0xfe] %v1353
      %1402 = vst [vmem:[#allocation3 + $0x78] sm:$0xfe] %v1354
      %1403 = vst [vmem:[#allocation3 + $0x80] sm:$0xff] %v1356
      %1404 = vst [vmem:[#allocation3 + $0x88] sm:$0xff] %v1358
      %1405 = vst [vmem:[#allocation3 + $0x90] sm:$0xff] %v1360
      %1406 = vst [vmem:[#allocation3 + $0x98] sm:$0xff] %v1362
      %1407 = vst [vmem:[#allocation3 + $0xa0] sm:$0x1] %v1355
      %1408 = vst [vmem:[#allocation3 + $0xa8] sm:$0x1] %v1357
      %1409 = vst [vmem:[#allocation3 + $0xb0] sm:$0x1] %v1359
      %1410 = vst [vmem:[#allocation3 + $0xb8] sm:$0x1] %v1361
      %v1411 = vld [vmem:[#allocation3] sm:$0xff]
      %v1412 = vld [vmem:[#allocation3 + $0x8] sm:$0xff]
      %v1413 = vld [vmem:[#allocation3 + $0x10] sm:$0xff]
      %v1414 = vld [vmem:[#allocation3 + $0x18] sm:$0xff]
      %v1415 = vld [vmem:[#allocation3 + $0x20] sm:$0xff]
      %v1416 = vld [vmem:[#allocation3 + $0x28] sm:$0xff]
      %v1417 = vld [vmem:[#allocation3 + $0x30] sm:$0xff]
      %v1418 = vld [vmem:[#allocation3 + $0x38] sm:$0xff]
      %v1419 = vld [vmem:[#allocation3 + $0x60] sm:$0xff]
      %v1420 = vld [vmem:[#allocation3 + $0x68] sm:$0xff]
      %v1421 = vld [vmem:[#allocation3 + $0x70] sm:$0xff]
      %v1422 = vld [vmem:[#allocation3 + $0x78] sm:$0xff]
      %v1423 = vld [vmem:[#allocation3 + $0x80] sm:$0xff]
      %v1424 = vld [vmem:[#allocation3 + $0x88] sm:$0xff]
      %v1425 = vld [vmem:[#allocation3 + $0x90] sm:$0xff]
      %v1426 = vld [vmem:[#allocation3 + $0x98] sm:$0xff]
      %v1427 = vpack.c.bf16 %v1415, %v1411
      %v1428 = vpack.c.bf16 %v1416, %v1412
      %v1429 = vpack.c.bf16 %v1417, %v1413
      %v1430 = vpack.c.bf16 %v1418, %v1414
      %v1431 = vpack.c.bf16 %v1423, %v1419
      %v1432 = vpack.c.bf16 %v1424, %v1420
      %v1433 = vpack.c.bf16 %v1425, %v1421
      %v1434 = vpack.c.bf16 %v1426, %v1422
      %v1435 = vld [vmem:[#allocation9] sm:$0xff]
      %v1436 = vld [vmem:[#allocation9 + $0x8] sm:$0xff]
      %v1437 = vld [vmem:[#allocation9 + $0x10] sm:$0xff]
      %v1438 = vld [vmem:[#allocation9 + $0x18] sm:$0xff]
      %v1439 = vld [vmem:[#allocation9 + $0x20] sm:$0xff]
      %v1440 = vld [vmem:[#allocation9 + $0x28] sm:$0xff]
      %v1441 = vld [vmem:[#allocation9 + $0x30] sm:$0xff]
      %v1442 = vld [vmem:[#allocation9 + $0x38] sm:$0xff]
      %v1443 = vld [vmem:[#allocation9 + $0x40] sm:$0xff]
      %v1444 = vld [vmem:[#allocation9 + $0x48] sm:$0xff]
      %v1445 = vld [vmem:[#allocation9 + $0x50] sm:$0xff]
      %v1446 = vld [vmem:[#allocation9 + $0x58] sm:$0xff]
      %v1447 = vld [vmem:[#allocation9 + $0x60] sm:$0xff]
      %v1448 = vld [vmem:[#allocation9 + $0x68] sm:$0xff]
      %v1449 = vld [vmem:[#allocation9 + $0x70] sm:$0xff]
      %v1450 = vld [vmem:[#allocation9 + $0x78] sm:$0xff]
      %v1451 = vld [vmem:[#allocation9 + $0x80] sm:$0xff]
      %v1452 = vld [vmem:[#allocation9 + $0x88] sm:$0xff]
      %v1453 = vld [vmem:[#allocation9 + $0x90] sm:$0xff]
      %v1454 = vld [vmem:[#allocation9 + $0x98] sm:$0xff]
      %v1455 = vld [vmem:[#allocation9 + $0xa0] sm:$0xff]
      %v1456 = vld [vmem:[#allocation9 + $0xa8] sm:$0xff]
      %v1457 = vld [vmem:[#allocation9 + $0xb0] sm:$0xff]
      %v1458 = vld [vmem:[#allocation9 + $0xb8] sm:$0xff]
      %v1459 = vld [vmem:[#allocation9 + $0xc0] sm:$0xff]
      %v1460 = vld [vmem:[#allocation9 + $0xc8] sm:$0xff]
      %v1461 = vld [vmem:[#allocation9 + $0xd0] sm:$0xff]
      %v1462 = vld [vmem:[#allocation9 + $0xd8] sm:$0xff]
      %v1463 = vld [vmem:[#allocation9 + $0xe0] sm:$0xff]
      %v1464 = vld [vmem:[#allocation9 + $0xe8] sm:$0xff]
      %v1465 = vld [vmem:[#allocation9 + $0xf0] sm:$0xff]
      %v1466 = vld [vmem:[#allocation9 + $0xf8] sm:$0xff]
      %v1467 = vld [vmem:[#allocation9 + $0x100] sm:$0xff]
      %v1468 = vld [vmem:[#allocation9 + $0x108] sm:$0xff]
      %v1469 = vld [vmem:[#allocation9 + $0x110] sm:$0xff]
      %v1470 = vld [vmem:[#allocation9 + $0x118] sm:$0xff]
      %v1471 = vld [vmem:[#allocation9 + $0x120] sm:$0xff]
      %v1472 = vld [vmem:[#allocation9 + $0x128] sm:$0xff]
      %v1473 = vld [vmem:[#allocation9 + $0x130] sm:$0xff]
      %v1474 = vld [vmem:[#allocation9 + $0x138] sm:$0xff]
      %v1475 = vld [vmem:[#allocation9 + $0x140] sm:$0xff]
      %v1476 = vld [vmem:[#allocation9 + $0x148] sm:$0xff]
      %v1477 = vld [vmem:[#allocation9 + $0x150] sm:$0xff]
      %v1478 = vld [vmem:[#allocation9 + $0x158] sm:$0xff]
      %v1479 = vld [vmem:[#allocation9 + $0x160] sm:$0xff]
      %v1480 = vld [vmem:[#allocation9 + $0x168] sm:$0xff]
      %v1481 = vld [vmem:[#allocation9 + $0x170] sm:$0xff]
      %v1482 = vld [vmem:[#allocation9 + $0x178] sm:$0xff]
      %v1483 = vld [vmem:[#allocation9 + $0x180] sm:$0xff]
      %v1484 = vld [vmem:[#allocation9 + $0x188] sm:$0xff]
      %v1485 = vld [vmem:[#allocation9 + $0x190] sm:$0xff]
      %v1486 = vld [vmem:[#allocation9 + $0x198] sm:$0xff]
      %v1487 = vld [vmem:[#allocation9 + $0x1a0] sm:$0xff]
      %v1488 = vld [vmem:[#allocation9 + $0x1a8] sm:$0xff]
      %v1489 = vld [vmem:[#allocation9 + $0x1b0] sm:$0xff]
      %v1490 = vld [vmem:[#allocation9 + $0x1b8] sm:$0xff]
      %v1491 = vld [vmem:[#allocation9 + $0x1c0] sm:$0xff]
      %v1492 = vld [vmem:[#allocation9 + $0x1c8] sm:$0xff]
      %v1493 = vld [vmem:[#allocation9 + $0x1d0] sm:$0xff]
      %v1494 = vld [vmem:[#allocation9 + $0x1d8] sm:$0xff]
      %v1495 = vld [vmem:[#allocation9 + $0x1e0] sm:$0xff]
      %v1496 = vld [vmem:[#allocation9 + $0x1e8] sm:$0xff]
      %v1497 = vld [vmem:[#allocation9 + $0x1f0] sm:$0xff]
      %v1498 = vld [vmem:[#allocation9 + $0x1f8] sm:$0xff]
      %v1499 = vld [vmem:[#allocation9 + $0x200] sm:$0xff]
      %v1500 = vld [vmem:[#allocation9 + $0x208] sm:$0xff]
      %v1501 = vld [vmem:[#allocation9 + $0x210] sm:$0xff]
      %v1502 = vld [vmem:[#allocation9 + $0x218] sm:$0xff]
      %v1503 = vld [vmem:[#allocation9 + $0x220] sm:$0xff]
      %v1504 = vld [vmem:[#allocation9 + $0x228] sm:$0xff]
      %v1505 = vld [vmem:[#allocation9 + $0x230] sm:$0xff]
      %v1506 = vld [vmem:[#allocation9 + $0x238] sm:$0xff]
      %v1507 = vld [vmem:[#allocation9 + $0x240] sm:$0xff]
      %v1508 = vld [vmem:[#allocation9 + $0x248] sm:$0xff]
      %v1509 = vld [vmem:[#allocation9 + $0x250] sm:$0xff]
      %v1510 = vld [vmem:[#allocation9 + $0x258] sm:$0xff]
      %v1511 = vld [vmem:[#allocation9 + $0x260] sm:$0xff]
      %v1512 = vld [vmem:[#allocation9 + $0x268] sm:$0xff]
      %v1513 = vld [vmem:[#allocation9 + $0x270] sm:$0xff]
      %v1514 = vld [vmem:[#allocation9 + $0x278] sm:$0xff]
      %v1515 = vld [vmem:[#allocation9 + $0x280] sm:$0xff]
      %v1516 = vld [vmem:[#allocation9 + $0x288] sm:$0xff]
      %v1517 = vld [vmem:[#allocation9 + $0x290] sm:$0xff]
      %v1518 = vld [vmem:[#allocation9 + $0x298] sm:$0xff]
      %v1519 = vld [vmem:[#allocation9 + $0x2a0] sm:$0xff]
      %v1520 = vld [vmem:[#allocation9 + $0x2a8] sm:$0xff]
      %v1521 = vld [vmem:[#allocation9 + $0x2b0] sm:$0xff]
      %v1522 = vld [vmem:[#allocation9 + $0x2b8] sm:$0xff]
      %v1523 = vld [vmem:[#allocation9 + $0x2c0] sm:$0xff]
      %v1524 = vld [vmem:[#allocation9 + $0x2c8] sm:$0xff]
      %v1525 = vld [vmem:[#allocation9 + $0x2d0] sm:$0xff]
      %v1526 = vld [vmem:[#allocation9 + $0x2d8] sm:$0xff]
      %v1527 = vld [vmem:[#allocation9 + $0x2e0] sm:$0xff]
      %v1528 = vld [vmem:[#allocation9 + $0x2e8] sm:$0xff]
      %v1529 = vld [vmem:[#allocation9 + $0x2f0] sm:$0xff]
      %v1530 = vld [vmem:[#allocation9 + $0x2f8] sm:$0xff]
      %v1531 = vld [vmem:[#allocation9 + $0x300] sm:$0xff]
      %v1532 = vld [vmem:[#allocation9 + $0x308] sm:$0xff]
      %v1533 = vld [vmem:[#allocation9 + $0x310] sm:$0xff]
      %v1534 = vld [vmem:[#allocation9 + $0x318] sm:$0xff]
      %v1535 = vld [vmem:[#allocation9 + $0x320] sm:$0xff]
      %v1536 = vld [vmem:[#allocation9 + $0x328] sm:$0xff]
      %v1537 = vld [vmem:[#allocation9 + $0x330] sm:$0xff]
      %v1538 = vld [vmem:[#allocation9 + $0x338] sm:$0xff]
      %v1539 = vld [vmem:[#allocation9 + $0x340] sm:$0xff]
      %v1540 = vld [vmem:[#allocation9 + $0x348] sm:$0xff]
      %v1541 = vld [vmem:[#allocation9 + $0x350] sm:$0xff]
      %v1542 = vld [vmem:[#allocation9 + $0x358] sm:$0xff]
      %v1543 = vld [vmem:[#allocation9 + $0x360] sm:$0xff]
      %v1544 = vld [vmem:[#allocation9 + $0x368] sm:$0xff]
      %v1545 = vld [vmem:[#allocation9 + $0x370] sm:$0xff]
      %v1546 = vld [vmem:[#allocation9 + $0x378] sm:$0xff]
      %v1547 = vld [vmem:[#allocation9 + $0x380] sm:$0xff]
      %v1548 = vld [vmem:[#allocation9 + $0x388] sm:$0xff]
      %v1549 = vld [vmem:[#allocation9 + $0x390] sm:$0xff]
      %v1550 = vld [vmem:[#allocation9 + $0x398] sm:$0xff]
      %v1551 = vld [vmem:[#allocation9 + $0x3a0] sm:$0xff]
      %v1552 = vld [vmem:[#allocation9 + $0x3a8] sm:$0xff]
      %v1553 = vld [vmem:[#allocation9 + $0x3b0] sm:$0xff]
      %v1554 = vld [vmem:[#allocation9 + $0x3b8] sm:$0xff]
      %v1555 = vld [vmem:[#allocation9 + $0x3c0] sm:$0xff]
      %v1556 = vld [vmem:[#allocation9 + $0x3c8] sm:$0xff]
      %v1557 = vld [vmem:[#allocation9 + $0x3d0] sm:$0xff]
      %v1558 = vld [vmem:[#allocation9 + $0x3d8] sm:$0xff]
      %v1559 = vld [vmem:[#allocation9 + $0x3e0] sm:$0xff]
      %v1560 = vld [vmem:[#allocation9 + $0x3e8] sm:$0xff]
      %v1561 = vld [vmem:[#allocation9 + $0x3f0] sm:$0xff]
      %v1562 = vld [vmem:[#allocation9 + $0x3f8] sm:$0xff]
      %v1563 = vld [vmem:[#allocation3] sm:$0xfe]
      %v1564 = vld [vmem:[#allocation3 + $0x8] sm:$0xfe]
      %v1565 = vld [vmem:[#allocation3 + $0x10] sm:$0xfe]
      %v1566 = vld [vmem:[#allocation3 + $0x18] sm:$0xfe]
      %v1567 = vld [vmem:[#allocation3 + $0x40] sm:$0x1]
      %v1568 = vld [vmem:[#allocation3 + $0x48] sm:$0x1]
      %v1569 = vld [vmem:[#allocation3 + $0x50] sm:$0x1]
      %v1570 = vld [vmem:[#allocation3 + $0x58] sm:$0x1]
      %v1571 = vld [vmem:[#allocation3 + $0x60] sm:$0xfe]
      %v1572 = vld [vmem:[#allocation3 + $0x68] sm:$0xfe]
      %v1573 = vld [vmem:[#allocation3 + $0x70] sm:$0xfe]
      %v1574 = vld [vmem:[#allocation3 + $0x78] sm:$0xfe]
      %v1575 = vld [vmem:[#allocation3 + $0xa0] sm:$0x1]
      %v1576 = vld [vmem:[#allocation3 + $0xa8] sm:$0x1]
      %v1577 = vld [vmem:[#allocation3 + $0xb0] sm:$0x1]
      %v1578 = vld [vmem:[#allocation3 + $0xb8] sm:$0x1]
      %vm1603 = vcmask 1046528
      %v1604 = vrot.slane %v1563, 1
      %v1605 = vrot.slane %v1415, 1
      %v1606 = vsel %vm1603, %v1604, %v1605
      %v1607 = vrot.slane %v1564, 1
      %v1608 = vrot.slane %v1416, 1
      %v1609 = vsel %vm1603, %v1607, %v1608
      %v1610 = vrot.slane %v1565, 1
      %v1611 = vrot.slane %v1417, 1
      %v1612 = vsel %vm1603, %v1610, %v1611
      %v1613 = vrot.slane %v1566, 1
      %v1614 = vrot.slane %v1418, 1
      %v1615 = vsel %vm1603, %v1613, %v1614
      %v1616 = vrot.slane %v1567, 1
      %v1617 = vsel %vm1603, %v1605, %v1616
      %v1618 = vrot.slane %v1568, 1
      %v1619 = vsel %vm1603, %v1608, %v1618
      %v1620 = vrot.slane %v1569, 1
      %v1621 = vsel %vm1603, %v1611, %v1620
      %v1622 = vrot.slane %v1570, 1
      %v1623 = vsel %vm1603, %v1614, %v1622
      %v1624 = vrot.slane %v1571, 1
      %v1625 = vrot.slane %v1423, 1
      %v1626 = vsel %vm1603, %v1624, %v1625
      %v1627 = vrot.slane %v1572, 1
      %v1628 = vrot.slane %v1424, 1
      %v1629 = vsel %vm1603, %v1627, %v1628
      %v1630 = vrot.slane %v1573, 1
      %v1631 = vrot.slane %v1425, 1
      %v1632 = vsel %vm1603, %v1630, %v1631
      %v1633 = vrot.slane %v1574, 1
      %v1634 = vrot.slane %v1426, 1
      %v1635 = vsel %vm1603, %v1633, %v1634
      %v1636 = vrot.slane %v1575, 1
      %v1637 = vsel %vm1603, %v1625, %v1636
      %v1638 = vrot.slane %v1576, 1
      %v1639 = vsel %vm1603, %v1628, %v1638
      %v1640 = vrot.slane %v1577, 1
      %v1641 = vsel %vm1603, %v1631, %v1640
      %v1642 = vrot.slane %v1578, 1
      %v1643 = vsel %vm1603, %v1634, %v1642
      %v1660 = vpack.c.bf16 %v1617, %v1606
      %v1661 = vpack.c.bf16 %v1619, %v1609
      %v1662 = vpack.c.bf16 %v1621, %v1612
      %v1663 = vpack.c.bf16 %v1623, %v1615
      %v1664 = vpack.c.bf16 %v1637, %v1626
      %v1665 = vpack.c.bf16 %v1639, %v1629
      %v1666 = vpack.c.bf16 %v1641, %v1632
      %v1667 = vpack.c.bf16 %v1643, %v1635
      %s1668 = scalar_lea.vmem [#allocation9], 1024
      %v1669 = vld [vmem:[%s1668] sm:$0xff]
      %v1670 = vld [vmem:[%s1668 + $0x8] sm:$0xff]
      %v1671 = vld [vmem:[%s1668 + $0x10] sm:$0xff]
      %v1672 = vld [vmem:[%s1668 + $0x18] sm:$0xff]
      %v1673 = vld [vmem:[%s1668 + $0x20] sm:$0xff]
      %v1674 = vld [vmem:[%s1668 + $0x28] sm:$0xff]
      %v1675 = vld [vmem:[%s1668 + $0x30] sm:$0xff]
      %v1676 = vld [vmem:[%s1668 + $0x38] sm:$0xff]
      %v1677 = vld [vmem:[%s1668 + $0x40] sm:$0xff]
      %v1678 = vld [vmem:[%s1668 + $0x48] sm:$0xff]
      %v1679 = vld [vmem:[%s1668 + $0x50] sm:$0xff]
      %v1680 = vld [vmem:[%s1668 + $0x58] sm:$0xff]
      %v1681 = vld [vmem:[%s1668 + $0x60] sm:$0xff]
      %v1682 = vld [vmem:[%s1668 + $0x68] sm:$0xff]
      %v1683 = vld [vmem:[%s1668 + $0x70] sm:$0xff]
      %v1684 = vld [vmem:[%s1668 + $0x78] sm:$0xff]
      %v1685 = vld [vmem:[%s1668 + $0x80] sm:$0xff]
      %v1686 = vld [vmem:[%s1668 + $0x88] sm:$0xff]
      %v1687 = vld [vmem:[%s1668 + $0x90] sm:$0xff]
      %v1688 = vld [vmem:[%s1668 + $0x98] sm:$0xff]
      %v1689 = vld [vmem:[%s1668 + $0xa0] sm:$0xff]
      %v1690 = vld [vmem:[%s1668 + $0xa8] sm:$0xff]
      %v1691 = vld [vmem:[%s1668 + $0xb0] sm:$0xff]
      %v1692 = vld [vmem:[%s1668 + $0xb8] sm:$0xff]
      %v1693 = vld [vmem:[%s1668 + $0xc0] sm:$0xff]
      %v1694 = vld [vmem:[%s1668 + $0xc8] sm:$0xff]
      %v1695 = vld [vmem:[%s1668 + $0xd0] sm:$0xff]
      %v1696 = vld [vmem:[%s1668 + $0xd8] sm:$0xff]
      %v1697 = vld [vmem:[%s1668 + $0xe0] sm:$0xff]
      %v1698 = vld [vmem:[%s1668 + $0xe8] sm:$0xff]
      %v1699 = vld [vmem:[%s1668 + $0xf0] sm:$0xff]
      %v1700 = vld [vmem:[%s1668 + $0xf8] sm:$0xff]
      %v1701 = vld [vmem:[%s1668 + $0x100] sm:$0xff]
      %v1702 = vld [vmem:[%s1668 + $0x108] sm:$0xff]
      %v1703 = vld [vmem:[%s1668 + $0x110] sm:$0xff]
      %v1704 = vld [vmem:[%s1668 + $0x118] sm:$0xff]
      %v1705 = vld [vmem:[%s1668 + $0x120] sm:$0xff]
      %v1706 = vld [vmem:[%s1668 + $0x128] sm:$0xff]
      %v1707 = vld [vmem:[%s1668 + $0x130] sm:$0xff]
      %v1708 = vld [vmem:[%s1668 + $0x138] sm:$0xff]
      %v1709 = vld [vmem:[%s1668 + $0x140] sm:$0xff]
      %v1710 = vld [vmem:[%s1668 + $0x148] sm:$0xff]
      %v1711 = vld [vmem:[%s1668 + $0x150] sm:$0xff]
      %v1712 = vld [vmem:[%s1668 + $0x158] sm:$0xff]
      %v1713 = vld [vmem:[%s1668 + $0x160] sm:$0xff]
      %v1714 = vld [vmem:[%s1668 + $0x168] sm:$0xff]
      %v1715 = vld [vmem:[%s1668 + $0x170] sm:$0xff]
      %v1716 = vld [vmem:[%s1668 + $0x178] sm:$0xff]
      %v1717 = vld [vmem:[%s1668 + $0x180] sm:$0xff]
      %v1718 = vld [vmem:[%s1668 + $0x188] sm:$0xff]
      %v1719 = vld [vmem:[%s1668 + $0x190] sm:$0xff]
      %v1720 = vld [vmem:[%s1668 + $0x198] sm:$0xff]
      %v1721 = vld [vmem:[%s1668 + $0x1a0] sm:$0xff]
      %v1722 = vld [vmem:[%s1668 + $0x1a8] sm:$0xff]
      %v1723 = vld [vmem:[%s1668 + $0x1b0] sm:$0xff]
      %v1724 = vld [vmem:[%s1668 + $0x1b8] sm:$0xff]
      %v1725 = vld [vmem:[%s1668 + $0x1c0] sm:$0xff]
      %v1726 = vld [vmem:[%s1668 + $0x1c8] sm:$0xff]
      %v1727 = vld [vmem:[%s1668 + $0x1d0] sm:$0xff]
      %v1728 = vld [vmem:[%s1668 + $0x1d8] sm:$0xff]
      %v1729 = vld [vmem:[%s1668 + $0x1e0] sm:$0xff]
      %v1730 = vld [vmem:[%s1668 + $0x1e8] sm:$0xff]
      %v1731 = vld [vmem:[%s1668 + $0x1f0] sm:$0xff]
      %v1732 = vld [vmem:[%s1668 + $0x1f8] sm:$0xff]
      %v1733 = vld [vmem:[%s1668 + $0x200] sm:$0xff]
      %v1734 = vld [vmem:[%s1668 + $0x208] sm:$0xff]
      %v1735 = vld [vmem:[%s1668 + $0x210] sm:$0xff]
      %v1736 = vld [vmem:[%s1668 + $0x218] sm:$0xff]
      %v1737 = vld [vmem:[%s1668 + $0x220] sm:$0xff]
      %v1738 = vld [vmem:[%s1668 + $0x228] sm:$0xff]
      %v1739 = vld [vmem:[%s1668 + $0x230] sm:$0xff]
      %v1740 = vld [vmem:[%s1668 + $0x238] sm:$0xff]
      %v1741 = vld [vmem:[%s1668 + $0x240] sm:$0xff]
      %v1742 = vld [vmem:[%s1668 + $0x248] sm:$0xff]
      %v1743 = vld [vmem:[%s1668 + $0x250] sm:$0xff]
      %v1744 = vld [vmem:[%s1668 + $0x258] sm:$0xff]
      %v1745 = vld [vmem:[%s1668 + $0x260] sm:$0xff]
      %v1746 = vld [vmem:[%s1668 + $0x268] sm:$0xff]
      %v1747 = vld [vmem:[%s1668 + $0x270] sm:$0xff]
      %v1748 = vld [vmem:[%s1668 + $0x278] sm:$0xff]
      %v1749 = vld [vmem:[%s1668 + $0x280] sm:$0xff]
      %v1750 = vld [vmem:[%s1668 + $0x288] sm:$0xff]
      %v1751 = vld [vmem:[%s1668 + $0x290] sm:$0xff]
      %v1752 = vld [vmem:[%s1668 + $0x298] sm:$0xff]
      %v1753 = vld [vmem:[%s1668 + $0x2a0] sm:$0xff]
      %v1754 = vld [vmem:[%s1668 + $0x2a8] sm:$0xff]
      %v1755 = vld [vmem:[%s1668 + $0x2b0] sm:$0xff]
      %v1756 = vld [vmem:[%s1668 + $0x2b8] sm:$0xff]
      %v1757 = vld [vmem:[%s1668 + $0x2c0] sm:$0xff]
      %v1758 = vld [vmem:[%s1668 + $0x2c8] sm:$0xff]
      %v1759 = vld [vmem:[%s1668 + $0x2d0] sm:$0xff]
      %v1760 = vld [vmem:[%s1668 + $0x2d8] sm:$0xff]
      %v1761 = vld [vmem:[%s1668 + $0x2e0] sm:$0xff]
      %v1762 = vld [vmem:[%s1668 + $0x2e8] sm:$0xff]
      %v1763 = vld [vmem:[%s1668 + $0x2f0] sm:$0xff]
      %v1764 = vld [vmem:[%s1668 + $0x2f8] sm:$0xff]
      %v1765 = vld [vmem:[%s1668 + $0x300] sm:$0xff]
      %v1766 = vld [vmem:[%s1668 + $0x308] sm:$0xff]
      %v1767 = vld [vmem:[%s1668 + $0x310] sm:$0xff]
      %v1768 = vld [vmem:[%s1668 + $0x318] sm:$0xff]
      %v1769 = vld [vmem:[%s1668 + $0x320] sm:$0xff]
      %v1770 = vld [vmem:[%s1668 + $0x328] sm:$0xff]
      %v1771 = vld [vmem:[%s1668 + $0x330] sm:$0xff]
      %v1772 = vld [vmem:[%s1668 + $0x338] sm:$0xff]
      %v1773 = vld [vmem:[%s1668 + $0x340] sm:$0xff]
      %v1774 = vld [vmem:[%s1668 + $0x348] sm:$0xff]
      %v1775 = vld [vmem:[%s1668 + $0x350] sm:$0xff]
      %v1776 = vld [vmem:[%s1668 + $0x358] sm:$0xff]
      %v1777 = vld [vmem:[%s1668 + $0x360] sm:$0xff]
      %v1778 = vld [vmem:[%s1668 + $0x368] sm:$0xff]
      %v1779 = vld [vmem:[%s1668 + $0x370] sm:$0xff]
      %v1780 = vld [vmem:[%s1668 + $0x378] sm:$0xff]
      %v1781 = vld [vmem:[%s1668 + $0x380] sm:$0xff]
      %v1782 = vld [vmem:[%s1668 + $0x388] sm:$0xff]
      %v1783 = vld [vmem:[%s1668 + $0x390] sm:$0xff]
      %v1784 = vld [vmem:[%s1668 + $0x398] sm:$0xff]
      %v1785 = vld [vmem:[%s1668 + $0x3a0] sm:$0xff]
      %v1786 = vld [vmem:[%s1668 + $0x3a8] sm:$0xff]
      %v1787 = vld [vmem:[%s1668 + $0x3b0] sm:$0xff]
      %v1788 = vld [vmem:[%s1668 + $0x3b8] sm:$0xff]
      %v1789 = vld [vmem:[%s1668 + $0x3c0] sm:$0xff]
      %v1790 = vld [vmem:[%s1668 + $0x3c8] sm:$0xff]
      %v1791 = vld [vmem:[%s1668 + $0x3d0] sm:$0xff]
      %v1792 = vld [vmem:[%s1668 + $0x3d8] sm:$0xff]
      %v1793 = vld [vmem:[%s1668 + $0x3e0] sm:$0xff]
      %v1794 = vld [vmem:[%s1668 + $0x3e8] sm:$0xff]
      %v1795 = vld [vmem:[%s1668 + $0x3f0] sm:$0xff]
      %v1796 = vld [vmem:[%s1668 + $0x3f8] sm:$0xff]
      %v1925 = vunpack.c.l.b16 %v1669
      %v1926 = vunpack.c.h.b16 %v1669
      %v1927 = vunpack.c.l.b16 %v1670
      %v1928 = vunpack.c.h.b16 %v1670
      %v1929 = vunpack.c.l.b16 %v1671
      %v1930 = vunpack.c.h.b16 %v1671
      %v1931 = vunpack.c.l.b16 %v1672
      %v1932 = vunpack.c.h.b16 %v1672
      %v1933 = vunpack.c.l.b16 %v1673
      %v1934 = vunpack.c.h.b16 %v1673
      %v1935 = vunpack.c.l.b16 %v1674
      %v1936 = vunpack.c.h.b16 %v1674
      %v1937 = vunpack.c.l.b16 %v1675
      %v1938 = vunpack.c.h.b16 %v1675
      %v1939 = vunpack.c.l.b16 %v1676
      %v1940 = vunpack.c.h.b16 %v1676
      %v1941 = vunpack.c.l.b16 %v1677
      %v1942 = vunpack.c.h.b16 %v1677
      %v1943 = vunpack.c.l.b16 %v1678
      %v1944 = vunpack.c.h.b16 %v1678
      %v1945 = vunpack.c.l.b16 %v1679
      %v1946 = vunpack.c.h.b16 %v1679
      %v1947 = vunpack.c.l.b16 %v1680
      %v1948 = vunpack.c.h.b16 %v1680
      %v1949 = vunpack.c.l.b16 %v1681
      %v1950 = vunpack.c.h.b16 %v1681
      %v1951 = vunpack.c.l.b16 %v1682
      %v1952 = vunpack.c.h.b16 %v1682
      %v1953 = vunpack.c.l.b16 %v1683
      %v1954 = vunpack.c.h.b16 %v1683
      %v1955 = vunpack.c.l.b16 %v1684
      %v1956 = vunpack.c.h.b16 %v1684
      %v1957 = vunpack.c.l.b16 %v1685
      %v1958 = vunpack.c.h.b16 %v1685
      %v1959 = vunpack.c.l.b16 %v1686
      %v1960 = vunpack.c.h.b16 %v1686
      %v1961 = vunpack.c.l.b16 %v1687
      %v1962 = vunpack.c.h.b16 %v1687
      %v1963 = vunpack.c.l.b16 %v1688
      %v1964 = vunpack.c.h.b16 %v1688
      %v1965 = vunpack.c.l.b16 %v1689
      %v1966 = vunpack.c.h.b16 %v1689
      %v1967 = vunpack.c.l.b16 %v1690
      %v1968 = vunpack.c.h.b16 %v1690
      %v1969 = vunpack.c.l.b16 %v1691
      %v1970 = vunpack.c.h.b16 %v1691
      %v1971 = vunpack.c.l.b16 %v1692
      %v1972 = vunpack.c.h.b16 %v1692
      %v1973 = vunpack.c.l.b16 %v1693
      %v1974 = vunpack.c.h.b16 %v1693
      %v1975 = vunpack.c.l.b16 %v1694
      %v1976 = vunpack.c.h.b16 %v1694
      %v1977 = vunpack.c.l.b16 %v1695
      %v1978 = vunpack.c.h.b16 %v1695
      %v1979 = vunpack.c.l.b16 %v1696
      %v1980 = vunpack.c.h.b16 %v1696
      %v1981 = vunpack.c.l.b16 %v1697
      %v1982 = vunpack.c.h.b16 %v1697
      %v1983 = vunpack.c.l.b16 %v1698
      %v1984 = vunpack.c.h.b16 %v1698
      %v1985 = vunpack.c.l.b16 %v1699
      %v1986 = vunpack.c.h.b16 %v1699
      %v1987 = vunpack.c.l.b16 %v1700
      %v1988 = vunpack.c.h.b16 %v1700
      %v1989 = vunpack.c.l.b16 %v1701
      %v1990 = vunpack.c.h.b16 %v1701
      %v1991 = vunpack.c.l.b16 %v1702
      %v1992 = vunpack.c.h.b16 %v1702
      %v1993 = vunpack.c.l.b16 %v1703
      %v1994 = vunpack.c.h.b16 %v1703
      %v1995 = vunpack.c.l.b16 %v1704
      %v1996 = vunpack.c.h.b16 %v1704
      %v1997 = vunpack.c.l.b16 %v1705
      %v1998 = vunpack.c.h.b16 %v1705
      %v1999 = vunpack.c.l.b16 %v1706
      %v2000 = vunpack.c.h.b16 %v1706
      %v2001 = vunpack.c.l.b16 %v1707
      %v2002 = vunpack.c.h.b16 %v1707
      %v2003 = vunpack.c.l.b16 %v1708
      %v2004 = vunpack.c.h.b16 %v1708
      %v2005 = vunpack.c.l.b16 %v1709
      %v2006 = vunpack.c.h.b16 %v1709
      %v2007 = vunpack.c.l.b16 %v1710
      %v2008 = vunpack.c.h.b16 %v1710
      %v2009 = vunpack.c.l.b16 %v1711
      %v2010 = vunpack.c.h.b16 %v1711
      %v2011 = vunpack.c.l.b16 %v1712
      %v2012 = vunpack.c.h.b16 %v1712
      %v2013 = vunpack.c.l.b16 %v1713
      %v2014 = vunpack.c.h.b16 %v1713
      %v2015 = vunpack.c.l.b16 %v1714
      %v2016 = vunpack.c.h.b16 %v1714
      %v2017 = vunpack.c.l.b16 %v1715
      %v2018 = vunpack.c.h.b16 %v1715
      %v2019 = vunpack.c.l.b16 %v1716
      %v2020 = vunpack.c.h.b16 %v1716
      %v2021 = vunpack.c.l.b16 %v1717
      %v2022 = vunpack.c.h.b16 %v1717
      %v2023 = vunpack.c.l.b16 %v1718
      %v2024 = vunpack.c.h.b16 %v1718
      %v2025 = vunpack.c.l.b16 %v1719
      %v2026 = vunpack.c.h.b16 %v1719
      %v2027 = vunpack.c.l.b16 %v1720
      %v2028 = vunpack.c.h.b16 %v1720
      %v2029 = vunpack.c.l.b16 %v1721
      %v2030 = vunpack.c.h.b16 %v1721
      %v2031 = vunpack.c.l.b16 %v1722
      %v2032 = vunpack.c.h.b16 %v1722
      %v2033 = vunpack.c.l.b16 %v1723
      %v2034 = vunpack.c.h.b16 %v1723
      %v2035 = vunpack.c.l.b16 %v1724
      %v2036 = vunpack.c.h.b16 %v1724
      %v2037 = vunpack.c.l.b16 %v1725
      %v2038 = vunpack.c.h.b16 %v1725
      %v2039 = vunpack.c.l.b16 %v1726
      %v2040 = vunpack.c.h.b16 %v1726
      %v2041 = vunpack.c.l.b16 %v1727
      %v2042 = vunpack.c.h.b16 %v1727
      %v2043 = vunpack.c.l.b16 %v1728
      %v2044 = vunpack.c.h.b16 %v1728
      %v2045 = vunpack.c.l.b16 %v1729
      %v2046 = vunpack.c.h.b16 %v1729
      %v2047 = vunpack.c.l.b16 %v1730
      %v2048 = vunpack.c.h.b16 %v1730
      %v2049 = vunpack.c.l.b16 %v1731
      %v2050 = vunpack.c.h.b16 %v1731
      %v2051 = vunpack.c.l.b16 %v1732
      %v2052 = vunpack.c.h.b16 %v1732
      %v2053 = vunpack.c.l.b16 %v1733
      %v2054 = vunpack.c.h.b16 %v1733
      %v2055 = vunpack.c.l.b16 %v1734
      %v2056 = vunpack.c.h.b16 %v1734
      %v2057 = vunpack.c.l.b16 %v1735
      %v2058 = vunpack.c.h.b16 %v1735
      %v2059 = vunpack.c.l.b16 %v1736
      %v2060 = vunpack.c.h.b16 %v1736
      %v2061 = vunpack.c.l.b16 %v1737
      %v2062 = vunpack.c.h.b16 %v1737
      %v2063 = vunpack.c.l.b16 %v1738
      %v2064 = vunpack.c.h.b16 %v1738
      %v2065 = vunpack.c.l.b16 %v1739
      %v2066 = vunpack.c.h.b16 %v1739
      %v2067 = vunpack.c.l.b16 %v1740
      %v2068 = vunpack.c.h.b16 %v1740
      %v2069 = vunpack.c.l.b16 %v1741
      %v2070 = vunpack.c.h.b16 %v1741
      %v2071 = vunpack.c.l.b16 %v1742
      %v2072 = vunpack.c.h.b16 %v1742
      %v2073 = vunpack.c.l.b16 %v1743
      %v2074 = vunpack.c.h.b16 %v1743
      %v2075 = vunpack.c.l.b16 %v1744
      %v2076 = vunpack.c.h.b16 %v1744
      %v2077 = vunpack.c.l.b16 %v1745
      %v2078 = vunpack.c.h.b16 %v1745
      %v2079 = vunpack.c.l.b16 %v1746
      %v2080 = vunpack.c.h.b16 %v1746
      %v2081 = vunpack.c.l.b16 %v1747
      %v2082 = vunpack.c.h.b16 %v1747
      %v2083 = vunpack.c.l.b16 %v1748
      %v2084 = vunpack.c.h.b16 %v1748
      %v2085 = vunpack.c.l.b16 %v1749
      %v2086 = vunpack.c.h.b16 %v1749
      %v2087 = vunpack.c.l.b16 %v1750
      %v2088 = vunpack.c.h.b16 %v1750
      %v2089 = vunpack.c.l.b16 %v1751
      %v2090 = vunpack.c.h.b16 %v1751
      %v2091 = vunpack.c.l.b16 %v1752
      %v2092 = vunpack.c.h.b16 %v1752
      %v2093 = vunpack.c.l.b16 %v1753
      %v2094 = vunpack.c.h.b16 %v1753
      %v2095 = vunpack.c.l.b16 %v1754
      %v2096 = vunpack.c.h.b16 %v1754
      %v2097 = vunpack.c.l.b16 %v1755
      %v2098 = vunpack.c.h.b16 %v1755
      %v2099 = vunpack.c.l.b16 %v1756
      %v2100 = vunpack.c.h.b16 %v1756
      %v2101 = vunpack.c.l.b16 %v1757
      %v2102 = vunpack.c.h.b16 %v1757
      %v2103 = vunpack.c.l.b16 %v1758
      %v2104 = vunpack.c.h.b16 %v1758
      %v2105 = vunpack.c.l.b16 %v1759
      %v2106 = vunpack.c.h.b16 %v1759
      %v2107 = vunpack.c.l.b16 %v1760
      %v2108 = vunpack.c.h.b16 %v1760
      %v2109 = vunpack.c.l.b16 %v1761
      %v2110 = vunpack.c.h.b16 %v1761
      %v2111 = vunpack.c.l.b16 %v1762
      %v2112 = vunpack.c.h.b16 %v1762
      %v2113 = vunpack.c.l.b16 %v1763
      %v2114 = vunpack.c.h.b16 %v1763
      %v2115 = vunpack.c.l.b16 %v1764
      %v2116 = vunpack.c.h.b16 %v1764
      %v2117 = vunpack.c.l.b16 %v1765
      %v2118 = vunpack.c.h.b16 %v1765
      %v2119 = vunpack.c.l.b16 %v1766
      %v2120 = vunpack.c.h.b16 %v1766
      %v2121 = vunpack.c.l.b16 %v1767
      %v2122 = vunpack.c.h.b16 %v1767
      %v2123 = vunpack.c.l.b16 %v1768
      %v2124 = vunpack.c.h.b16 %v1768
      %v2125 = vunpack.c.l.b16 %v1769
      %v2126 = vunpack.c.h.b16 %v1769
      %v2127 = vunpack.c.l.b16 %v1770
      %v2128 = vunpack.c.h.b16 %v1770
      %v2129 = vunpack.c.l.b16 %v1771
      %v2130 = vunpack.c.h.b16 %v1771
      %v2131 = vunpack.c.l.b16 %v1772
      %v2132 = vunpack.c.h.b16 %v1772
      %v2133 = vunpack.c.l.b16 %v1773
      %v2134 = vunpack.c.h.b16 %v1773
      %v2135 = vunpack.c.l.b16 %v1774
      %v2136 = vunpack.c.h.b16 %v1774
      %v2137 = vunpack.c.l.b16 %v1775
      %v2138 = vunpack.c.h.b16 %v1775
      %v2139 = vunpack.c.l.b16 %v1776
      %v2140 = vunpack.c.h.b16 %v1776
      %v2141 = vunpack.c.l.b16 %v1777
      %v2142 = vunpack.c.h.b16 %v1777
      %v2143 = vunpack.c.l.b16 %v1778
      %v2144 = vunpack.c.h.b16 %v1778
      %v2145 = vunpack.c.l.b16 %v1779
      %v2146 = vunpack.c.h.b16 %v1779
      %v2147 = vunpack.c.l.b16 %v1780
      %v2148 = vunpack.c.h.b16 %v1780
      %v2149 = vunpack.c.l.b16 %v1781
      %v2150 = vunpack.c.h.b16 %v1781
      %v2151 = vunpack.c.l.b16 %v1782
      %v2152 = vunpack.c.h.b16 %v1782
      %v2153 = vunpack.c.l.b16 %v1783
      %v2154 = vunpack.c.h.b16 %v1783
      %v2155 = vunpack.c.l.b16 %v1784
      %v2156 = vunpack.c.h.b16 %v1784
      %v2157 = vunpack.c.l.b16 %v1785
      %v2158 = vunpack.c.h.b16 %v1785
      %v2159 = vunpack.c.l.b16 %v1786
      %v2160 = vunpack.c.h.b16 %v1786
      %v2161 = vunpack.c.l.b16 %v1787
      %v2162 = vunpack.c.h.b16 %v1787
      %v2163 = vunpack.c.l.b16 %v1788
      %v2164 = vunpack.c.h.b16 %v1788
      %v2165 = vunpack.c.l.b16 %v1789
      %v2166 = vunpack.c.h.b16 %v1789
      %v2167 = vunpack.c.l.b16 %v1790
      %v2168 = vunpack.c.h.b16 %v1790
      %v2169 = vunpack.c.l.b16 %v1791
      %v2170 = vunpack.c.h.b16 %v1791
      %v2171 = vunpack.c.l.b16 %v1792
      %v2172 = vunpack.c.h.b16 %v1792
      %v2173 = vunpack.c.l.b16 %v1793
      %v2174 = vunpack.c.h.b16 %v1793
      %v2175 = vunpack.c.l.b16 %v1794
      %v2176 = vunpack.c.h.b16 %v1794
      %v2177 = vunpack.c.l.b16 %v1795
      %v2178 = vunpack.c.h.b16 %v1795
      %v2179 = vunpack.c.l.b16 %v1796
      %v2180 = vunpack.c.h.b16 %v1796
      %v2181 = vpack.c.b16 %v1929, %v1925
      %v2182 = vpack.c.b16 %v1930, %v1926
      %v2183 = vpack.c.b16 %v1931, %v1927
      %v2184 = vpack.c.b16 %v1932, %v1928
      %v2185 = vpack.c.b16 %v1937, %v1933
      %v2186 = vpack.c.b16 %v1938, %v1934
      %v2187 = vpack.c.b16 %v1939, %v1935
      %v2188 = vpack.c.b16 %v1940, %v1936
      %v2189 = vpack.c.b16 %v1945, %v1941
      %v2190 = vpack.c.b16 %v1946, %v1942
      %v2191 = vpack.c.b16 %v1947, %v1943
      %v2192 = vpack.c.b16 %v1948, %v1944
      %v2193 = vpack.c.b16 %v1953, %v1949
      %v2194 = vpack.c.b16 %v1954, %v1950
      %v2195 = vpack.c.b16 %v1955, %v1951
      %v2196 = vpack.c.b16 %v1956, %v1952
      %v2197 = vpack.c.b16 %v1961, %v1957
      %v2198 = vpack.c.b16 %v1962, %v1958
      %v2199 = vpack.c.b16 %v1963, %v1959
      %v2200 = vpack.c.b16 %v1964, %v1960
      %v2201 = vpack.c.b16 %v1969, %v1965
      %v2202 = vpack.c.b16 %v1970, %v1966
      %v2203 = vpack.c.b16 %v1971, %v1967
      %v2204 = vpack.c.b16 %v1972, %v1968
      %v2205 = vpack.c.b16 %v1977, %v1973
      %v2206 = vpack.c.b16 %v1978, %v1974
      %v2207 = vpack.c.b16 %v1979, %v1975
      %v2208 = vpack.c.b16 %v1980, %v1976
      %v2209 = vpack.c.b16 %v1985, %v1981
      %v2210 = vpack.c.b16 %v1986, %v1982
      %v2211 = vpack.c.b16 %v1987, %v1983
      %v2212 = vpack.c.b16 %v1988, %v1984
      %v2213 = vpack.c.b16 %v1993, %v1989
      %v2214 = vpack.c.b16 %v1994, %v1990
      %v2215 = vpack.c.b16 %v1995, %v1991
      %v2216 = vpack.c.b16 %v1996, %v1992
      %v2217 = vpack.c.b16 %v2001, %v1997
      %v2218 = vpack.c.b16 %v2002, %v1998
      %v2219 = vpack.c.b16 %v2003, %v1999
      %v2220 = vpack.c.b16 %v2004, %v2000
      %v2221 = vpack.c.b16 %v2009, %v2005
      %v2222 = vpack.c.b16 %v2010, %v2006
      %v2223 = vpack.c.b16 %v2011, %v2007
      %v2224 = vpack.c.b16 %v2012, %v2008
      %v2225 = vpack.c.b16 %v2017, %v2013
      %v2226 = vpack.c.b16 %v2018, %v2014
      %v2227 = vpack.c.b16 %v2019, %v2015
      %v2228 = vpack.c.b16 %v2020, %v2016
      %v2229 = vpack.c.b16 %v2025, %v2021
      %v2230 = vpack.c.b16 %v2026, %v2022
      %v2231 = vpack.c.b16 %v2027, %v2023
      %v2232 = vpack.c.b16 %v2028, %v2024
      %v2233 = vpack.c.b16 %v2033, %v2029
      %v2234 = vpack.c.b16 %v2034, %v2030
      %v2235 = vpack.c.b16 %v2035, %v2031
      %v2236 = vpack.c.b16 %v2036, %v2032
      %v2237 = vpack.c.b16 %v2041, %v2037
      %v2238 = vpack.c.b16 %v2042, %v2038
      %v2239 = vpack.c.b16 %v2043, %v2039
      %v2240 = vpack.c.b16 %v2044, %v2040
      %v2241 = vpack.c.b16 %v2049, %v2045
      %v2242 = vpack.c.b16 %v2050, %v2046
      %v2243 = vpack.c.b16 %v2051, %v2047
      %v2244 = vpack.c.b16 %v2052, %v2048
      %v2245 = vpack.c.b16 %v2057, %v2053
      %v2246 = vpack.c.b16 %v2058, %v2054
      %v2247 = vpack.c.b16 %v2059, %v2055
      %v2248 = vpack.c.b16 %v2060, %v2056
      %v2249 = vpack.c.b16 %v2065, %v2061
      %v2250 = vpack.c.b16 %v2066, %v2062
      %v2251 = vpack.c.b16 %v2067, %v2063
      %v2252 = vpack.c.b16 %v2068, %v2064
      %v2253 = vpack.c.b16 %v2073, %v2069
      %v2254 = vpack.c.b16 %v2074, %v2070
      %v2255 = vpack.c.b16 %v2075, %v2071
      %v2256 = vpack.c.b16 %v2076, %v2072
      %v2257 = vpack.c.b16 %v2081, %v2077
      %v2258 = vpack.c.b16 %v2082, %v2078
      %v2259 = vpack.c.b16 %v2083, %v2079
      %v2260 = vpack.c.b16 %v2084, %v2080
      %v2261 = vpack.c.b16 %v2089, %v2085
      %v2262 = vpack.c.b16 %v2090, %v2086
      %v2263 = vpack.c.b16 %v2091, %v2087
      %v2264 = vpack.c.b16 %v2092, %v2088
      %v2265 = vpack.c.b16 %v2097, %v2093
      %v2266 = vpack.c.b16 %v2098, %v2094
      %v2267 = vpack.c.b16 %v2099, %v2095
      %v2268 = vpack.c.b16 %v2100, %v2096
      %v2269 = vpack.c.b16 %v2105, %v2101
      %v2270 = vpack.c.b16 %v2106, %v2102
      %v2271 = vpack.c.b16 %v2107, %v2103
      %v2272 = vpack.c.b16 %v2108, %v2104
      %v2273 = vpack.c.b16 %v2113, %v2109
      %v2274 = vpack.c.b16 %v2114, %v2110
      %v2275 = vpack.c.b16 %v2115, %v2111
      %v2276 = vpack.c.b16 %v2116, %v2112
      %v2277 = vpack.c.b16 %v2121, %v2117
      %v2278 = vpack.c.b16 %v2122, %v2118
      %v2279 = vpack.c.b16 %v2123, %v2119
      %v2280 = vpack.c.b16 %v2124, %v2120
      %v2281 = vpack.c.b16 %v2129, %v2125
      %v2282 = vpack.c.b16 %v2130, %v2126
      %v2283 = vpack.c.b16 %v2131, %v2127
      %v2284 = vpack.c.b16 %v2132, %v2128
      %v2285 = vpack.c.b16 %v2137, %v2133
      %v2286 = vpack.c.b16 %v2138, %v2134
      %v2287 = vpack.c.b16 %v2139, %v2135
      %v2288 = vpack.c.b16 %v2140, %v2136
      %v2289 = vpack.c.b16 %v2145, %v2141
      %v2290 = vpack.c.b16 %v2146, %v2142
      %v2291 = vpack.c.b16 %v2147, %v2143
      %v2292 = vpack.c.b16 %v2148, %v2144
      %v2293 = vpack.c.b16 %v2153, %v2149
      %v2294 = vpack.c.b16 %v2154, %v2150
      %v2295 = vpack.c.b16 %v2155, %v2151
      %v2296 = vpack.c.b16 %v2156, %v2152
      %v2297 = vpack.c.b16 %v2161, %v2157
      %v2298 = vpack.c.b16 %v2162, %v2158
      %v2299 = vpack.c.b16 %v2163, %v2159
      %v2300 = vpack.c.b16 %v2164, %v2160
      %v2301 = vpack.c.b16 %v2169, %v2165
      %v2302 = vpack.c.b16 %v2170, %v2166
      %v2303 = vpack.c.b16 %v2171, %v2167
      %v2304 = vpack.c.b16 %v2172, %v2168
      %v2305 = vpack.c.b16 %v2177, %v2173
      %v2306 = vpack.c.b16 %v2178, %v2174
      %v2307 = vpack.c.b16 %v2179, %v2175
      %v2308 = vpack.c.b16 %v2180, %v2176
      %2437 = vmatprep.subr.bf16.mxu0 %v2182
      %2438 = vmatpush1.bf16.msra.mxu0 %v2181
      %2439 = vmatprep.subr.bf16.mxu0 %v2186
      %2440 = vmatpush1.bf16.msra.mxu0 %v2185
      %2441 = vmatprep.subr.bf16.mxu0 %v2190
      %2442 = vmatpush1.bf16.msra.mxu0 %v2189
      %2443 = vmatprep.subr.bf16.mxu0 %v2194
      %2444 = vmatpush1.bf16.msra.mxu0 %v2193
      %2445 = vmatprep.subr.bf16.mxu0 %v2198
      %2446 = vmatpush1.bf16.msra.mxu0 %v2197
      %2447 = vmatprep.subr.bf16.mxu0 %v2202
      %2448 = vmatpush1.bf16.msra.mxu0 %v2201
      %2449 = vmatprep.subr.bf16.mxu0 %v2206
      %2450 = vmatpush1.bf16.msra.mxu0 %v2205
      %2451 = vmatprep.subr.bf16.mxu0 %v2210
      %2452 = vmatpush1.bf16.msra.mxu0 %v2209
      %2453 = vmatprep.subr.bf16.mxu0 %v2214
      %2454 = vmatpush1.bf16.msra.mxu0 %v2213
      %2455 = vmatprep.subr.bf16.mxu0 %v2218
      %2456 = vmatpush1.bf16.msra.mxu0 %v2217
      %2457 = vmatprep.subr.bf16.mxu0 %v2222
      %2458 = vmatpush1.bf16.msra.mxu0 %v2221
      %2459 = vmatprep.subr.bf16.mxu0 %v2226
      %2460 = vmatpush1.bf16.msra.mxu0 %v2225
      %2461 = vmatprep.subr.bf16.mxu0 %v2230
      %2462 = vmatpush1.bf16.msra.mxu0 %v2229
      %2463 = vmatprep.subr.bf16.mxu0 %v2234
      %2464 = vmatpush1.bf16.msra.mxu0 %v2233
      %2465 = vmatprep.subr.bf16.mxu0 %v2238
      %2466 = vmatpush1.bf16.msra.mxu0 %v2237
      %2467 = vmatprep.subr.bf16.mxu0 %v2242
      %2468 = vmatpush1.bf16.msra.mxu0 %v2241
      %2469 = vmatprep.mubr.bf16.mxu0 %v1661
      %2470 = vmatmul.mubr.bf16.gmra.mrb[0].mxu0 %v1660
      %v2471 = vpop.f32.mrb[0].mxu0
      %v2472 = vadd.f32 0.0, %v2471
      %v2473 = vpop.f32.mrb[0].mxu0
      %v2474 = vadd.f32 0.0, %v2473
      %v2475 = vpop.f32.mrb[0].mxu0
      %v2476 = vadd.f32 0.0, %v2475
      %v2477 = vpop.f32.mrb[0].mxu0
      %v2478 = vadd.f32 0.0, %v2477
      %2479 = vmatprep.mubr.bf16.mxu0 %v1665
      %2480 = vmatmul.mubr.bf16.gmra.mrb[0].mxu0 %v1664
      %v2481 = vpop.f32.mrb[0].mxu0
      %v2482 = vadd.f32 0.0, %v2481
      %v2483 = vpop.f32.mrb[0].mxu0
      %v2484 = vadd.f32 0.0, %v2483
      %v2485 = vpop.f32.mrb[0].mxu0
      %v2486 = vadd.f32 0.0, %v2485
      %v2487 = vpop.f32.mrb[0].mxu0
      %v2488 = vadd.f32 0.0, %v2487
      %2489 = vdwg.mxu0
      %2490 = vmatprep.subr.bf16.mxu0 %v2246
      %2491 = vmatpush1.bf16.msra.mxu0 %v2245
      %2492 = vmatprep.subr.bf16.mxu0 %v2250
      %2493 = vmatpush1.bf16.msra.mxu0 %v2249
      %2494 = vmatprep.subr.bf16.mxu0 %v2254
      %2495 = vmatpush1.bf16.msra.mxu0 %v2253
      %2496 = vmatprep.subr.bf16.mxu0 %v2258
      %2497 = vmatpush1.bf16.msra.mxu0 %v2257
      %2498 = vmatprep.subr.bf16.mxu0 %v2262
      %2499 = vmatpush1.bf16.msra.mxu0 %v2261
      %2500 = vmatprep.subr.bf16.mxu0 %v2266
      %2501 = vmatpush1.bf16.msra.mxu0 %v2265
      %2502 = vmatprep.subr.bf16.mxu0 %v2270
      %2503 = vmatpush1.bf16.msra.mxu0 %v2269
      %2504 = vmatprep.subr.bf16.mxu0 %v2274
      %2505 = vmatpush1.bf16.msra.mxu0 %v2273
      %2506 = vmatprep.subr.bf16.mxu0 %v2278
      %2507 = vmatpush1.bf16.msra.mxu0 %v2277
      %2508 = vmatprep.subr.bf16.mxu0 %v2282
      %2509 = vmatpush1.bf16.msra.mxu0 %v2281
      %2510 = vmatprep.subr.bf16.mxu0 %v2286
      %2511 = vmatpush1.bf16.msra.mxu0 %v2285
      %2512 = vmatprep.subr.bf16.mxu0 %v2290
      %2513 = vmatpush1.bf16.msra.mxu0 %v2289
      %2514 = vmatprep.subr.bf16.mxu0 %v2294
      %2515 = vmatpush1.bf16.msra.mxu0 %v2293
      %2516 = vmatprep.subr.bf16.mxu0 %v2298
      %2517 = vmatpush1.bf16.msra.mxu0 %v2297
      %2518 = vmatprep.subr.bf16.mxu0 %v2302
      %2519 = vmatpush1.bf16.msra.mxu0 %v2301
      %2520 = vmatprep.subr.bf16.mxu0 %v2306
      %2521 = vmatpush1.bf16.msra.mxu0 %v2305
      %2522 = vmatprep.mubr.bf16.mxu0 %v1663
      %2523 = vmatmul.mubr.bf16.gmra.mrb[0].mxu0 %v1662
      %v2524 = vpop.f32.mrb[0].mxu0
      %v2525 = vadd.f32 %v2472, %v2524
      %v2526 = vpop.f32.mrb[0].mxu0
      %v2527 = vadd.f32 %v2474, %v2526
      %v2528 = vpop.f32.mrb[0].mxu0
      %v2529 = vadd.f32 %v2476, %v2528
      %v2530 = vpop.f32.mrb[0].mxu0
      %v2531 = vadd.f32 %v2478, %v2530
      %2532 = vmatprep.mubr.bf16.mxu0 %v1667
      %2533 = vmatmul.mubr.bf16.gmra.mrb[0].mxu0 %v1666
      %v2534 = vpop.f32.mrb[0].mxu0
      %v2535 = vadd.f32 %v2482, %v2534
      %v2536 = vpop.f32.mrb[0].mxu0
      %v2537 = vadd.f32 %v2484, %v2536
      %v2538 = vpop.f32.mrb[0].mxu0
      %v2539 = vadd.f32 %v2486, %v2538
      %v2540 = vpop.f32.mrb[0].mxu0
      %v2541 = vadd.f32 %v2488, %v2540
      %2542 = vdwg.mxu0
      %2543 = vmatprep.subr.bf16.mxu0 %v2184
      %2544 = vmatpush1.bf16.msra.mxu0 %v2183
      %2545 = vmatprep.subr.bf16.mxu0 %v2188
      %2546 = vmatpush1.bf16.msra.mxu0 %v2187
      %2547 = vmatprep.subr.bf16.mxu0 %v2192
      %2548 = vmatpush1.bf16.msra.mxu0 %v2191
      %2549 = vmatprep.subr.bf16.mxu0 %v2196
      %2550 = vmatpush1.bf16.msra.mxu0 %v2195
      %2551 = vmatprep.subr.bf16.mxu0 %v2200
      %2552 = vmatpush1.bf16.msra.mxu0 %v2199
      %2553 = vmatprep.subr.bf16.mxu0 %v2204
      %2554 = vmatpush1.bf16.msra.mxu0 %v2203
      %2555 = vmatprep.subr.bf16.mxu0 %v2208
      %2556 = vmatpush1.bf16.msra.mxu0 %v2207
      %2557 = vmatprep.subr.bf16.mxu0 %v2212
      %2558 = vmatpush1.bf16.msra.mxu0 %v2211
      %2559 = vmatprep.subr.bf16.mxu0 %v2216
      %2560 = vmatpush1.bf16.msra.mxu0 %v2215
      %2561 = vmatprep.subr.bf16.mxu0 %v2220
      %2562 = vmatpush1.bf16.msra.mxu0 %v2219
      %2563 = vmatprep.subr.bf16.mxu0 %v2224
      %2564 = vmatpush1.bf16.msra.mxu0 %v2223
      %2565 = vmatprep.subr.bf16.mxu0 %v2228
      %2566 = vmatpush1.bf16.msra.mxu0 %v2227
      %2567 = vmatprep.subr.bf16.mxu0 %v2232
      %2568 = vmatpush1.bf16.msra.mxu0 %v2231
      %2569 = vmatprep.subr.bf16.mxu0 %v2236
      %2570 = vmatpush1.bf16.msra.mxu0 %v2235
      %2571 = vmatprep.subr.bf16.mxu0 %v2240
      %2572 = vmatpush1.bf16.msra.mxu0 %v2239
      %2573 = vmatprep.subr.bf16.mxu0 %v2244
      %2574 = vmatpush1.bf16.msra.mxu0 %v2243
      %2575 = vmatprep.mubr.bf16.mxu0 %v1661
      %2576 = vmatmul.mubr.bf16.gmra.mrb[0].mxu0 %v1660
      %v2577 = vpop.f32.mrb[0].mxu0
      %v2578 = vadd.f32 0.0, %v2577
      %v2579 = vpop.f32.mrb[0].mxu0
      %v2580 = vadd.f32 0.0, %v2579
      %v2581 = vpop.f32.mrb[0].mxu0
      %v2582 = vadd.f32 0.0, %v2581
      %v2583 = vpop.f32.mrb[0].mxu0
      %v2584 = vadd.f32 0.0, %v2583
      %2585 = vmatprep.mubr.bf16.mxu0 %v1665
      %2586 = vmatmul.mubr.bf16.gmra.mrb[0].mxu0 %v1664
      %v2587 = vpop.f32.mrb[0].mxu0
      %v2588 = vadd.f32 0.0, %v2587
      %v2589 = vpop.f32.mrb[0].mxu0
      %v2590 = vadd.f32 0.0, %v2589
      %v2591 = vpop.f32.mrb[0].mxu0
      %v2592 = vadd.f32 0.0, %v2591
      %v2593 = vpop.f32.mrb[0].mxu0
      %v2594 = vadd.f32 0.0, %v2593
      %2595 = vdwg.mxu0
      %2596 = vmatprep.subr.bf16.mxu0 %v2248
      %2597 = vmatpush1.bf16.msra.mxu0 %v2247
      %2598 = vmatprep.subr.bf16.mxu0 %v2252
      %2599 = vmatpush1.bf16.msra.mxu0 %v2251
      %2600 = vmatprep.subr.bf16.mxu0 %v2256
      %2601 = vmatpush1.bf16.msra.mxu0 %v2255
      %2602 = vmatprep.subr.bf16.mxu0 %v2260
      %2603 = vmatpush1.bf16.msra.mxu0 %v2259
      %2604 = vmatprep.subr.bf16.mxu0 %v2264
      %2605 = vmatpush1.bf16.msra.mxu0 %v2263
      %2606 = vmatprep.subr.bf16.mxu0 %v2268
      %2607 = vmatpush1.bf16.msra.mxu0 %v2267
      %2608 = vmatprep.subr.bf16.mxu0 %v2272
      %2609 = vmatpush1.bf16.msra.mxu0 %v2271
      %2610 = vmatprep.subr.bf16.mxu0 %v2276
      %2611 = vmatpush1.bf16.msra.mxu0 %v2275
      %2612 = vmatprep.subr.bf16.mxu0 %v2280
      %2613 = vmatpush1.bf16.msra.mxu0 %v2279
      %2614 = vmatprep.subr.bf16.mxu0 %v2284
      %2615 = vmatpush1.bf16.msra.mxu0 %v2283
      %2616 = vmatprep.subr.bf16.mxu0 %v2288
      %2617 = vmatpush1.bf16.msra.mxu0 %v2287
      %2618 = vmatprep.subr.bf16.mxu0 %v2292
      %2619 = vmatpush1.bf16.msra.mxu0 %v2291
      %2620 = vmatprep.subr.bf16.mxu0 %v2296
      %2621 = vmatpush1.bf16.msra.mxu0 %v2295
      %2622 = vmatprep.subr.bf16.mxu0 %v2300
      %2623 = vmatpush1.bf16.msra.mxu0 %v2299
      %2624 = vmatprep.subr.bf16.mxu0 %v2304
      %2625 = vmatpush1.bf16.msra.mxu0 %v2303
      %2626 = vmatprep.subr.bf16.mxu0 %v2308
      %2627 = vmatpush1.bf16.msra.mxu0 %v2307
      %2628 = vmatprep.mubr.bf16.mxu0 %v1663
      %2629 = vmatmul.mubr.bf16.gmra.mrb[0].mxu0 %v1662
      %v2630 = vpop.f32.mrb[0].mxu0
      %v2631 = vadd.f32 %v2578, %v2630
      %v2632 = vpop.f32.mrb[0].mxu0
      %v2633 = vadd.f32 %v2580, %v2632
      %v2634 = vpop.f32.mrb[0].mxu0
      %v2635 = vadd.f32 %v2582, %v2634
      %v2636 = vpop.f32.mrb[0].mxu0
      %v2637 = vadd.f32 %v2584, %v2636
      %2638 = vmatprep.mubr.bf16.mxu0 %v1667
      %2639 = vmatmul.mubr.bf16.gmra.mrb[0].mxu0 %v1666
      %v2640 = vpop.f32.mrb[0].mxu0
      %v2641 = vadd.f32 %v2588, %v2640
      %v2642 = vpop.f32.mrb[0].mxu0
      %v2643 = vadd.f32 %v2590, %v2642
      %v2644 = vpop.f32.mrb[0].mxu0
      %v2645 = vadd.f32 %v2592, %v2644
      %v2646 = vpop.f32.mrb[0].mxu0
      %v2647 = vadd.f32 %v2594, %v2646
      %2648 = vdwg.mxu0
      %v2777 = vunpack.c.l.b16 %v1435
      %v2778 = vunpack.c.h.b16 %v1435
      %v2779 = vunpack.c.l.b16 %v1436
      %v2780 = vunpack.c.h.b16 %v1436
      %v2781 = vunpack.c.l.b16 %v1437
      %v2782 = vunpack.c.h.b16 %v1437
      %v2783 = vunpack.c.l.b16 %v1438
      %v2784 = vunpack.c.h.b16 %v1438
      %v2785 = vunpack.c.l.b16 %v1439
      %v2786 = vunpack.c.h.b16 %v1439
      %v2787 = vunpack.c.l.b16 %v1440
      %v2788 = vunpack.c.h.b16 %v1440
      %v2789 = vunpack.c.l.b16 %v1441
      %v2790 = vunpack.c.h.b16 %v1441
      %v2791 = vunpack.c.l.b16 %v1442
      %v2792 = vunpack.c.h.b16 %v1442
      %v2793 = vunpack.c.l.b16 %v1443
      %v2794 = vunpack.c.h.b16 %v1443
      %v2795 = vunpack.c.l.b16 %v1444
      %v2796 = vunpack.c.h.b16 %v1444
      %v2797 = vunpack.c.l.b16 %v1445
      %v2798 = vunpack.c.h.b16 %v1445
      %v2799 = vunpack.c.l.b16 %v1446
      %v2800 = vunpack.c.h.b16 %v1446
      %v2801 = vunpack.c.l.b16 %v1447
      %v2802 = vunpack.c.h.b16 %v1447
      %v2803 = vunpack.c.l.b16 %v1448
      %v2804 = vunpack.c.h.b16 %v1448
      %v2805 = vunpack.c.l.b16 %v1449
      %v2806 = vunpack.c.h.b16 %v1449
      %v2807 = vunpack.c.l.b16 %v1450
      %v2808 = vunpack.c.h.b16 %v1450
      %v2809 = vunpack.c.l.b16 %v1451
      %v2810 = vunpack.c.h.b16 %v1451
      %v2811 = vunpack.c.l.b16 %v1452
      %v2812 = vunpack.c.h.b16 %v1452
      %v2813 = vunpack.c.l.b16 %v1453
      %v2814 = vunpack.c.h.b16 %v1453
      %v2815 = vunpack.c.l.b16 %v1454
      %v2816 = vunpack.c.h.b16 %v1454
      %v2817 = vunpack.c.l.b16 %v1455
      %v2818 = vunpack.c.h.b16 %v1455
      %v2819 = vunpack.c.l.b16 %v1456
      %v2820 = vunpack.c.h.b16 %v1456
      %v2821 = vunpack.c.l.b16 %v1457
      %v2822 = vunpack.c.h.b16 %v1457
      %v2823 = vunpack.c.l.b16 %v1458
      %v2824 = vunpack.c.h.b16 %v1458
      %v2825 = vunpack.c.l.b16 %v1459
      %v2826 = vunpack.c.h.b16 %v1459
      %v2827 = vunpack.c.l.b16 %v1460
      %v2828 = vunpack.c.h.b16 %v1460
      %v2829 = vunpack.c.l.b16 %v1461
      %v2830 = vunpack.c.h.b16 %v1461
      %v2831 = vunpack.c.l.b16 %v1462
      %v2832 = vunpack.c.h.b16 %v1462
      %v2833 = vunpack.c.l.b16 %v1463
      %v2834 = vunpack.c.h.b16 %v1463
      %v2835 = vunpack.c.l.b16 %v1464
      %v2836 = vunpack.c.h.b16 %v1464
      %v2837 = vunpack.c.l.b16 %v1465
      %v2838 = vunpack.c.h.b16 %v1465
      %v2839 = vunpack.c.l.b16 %v1466
      %v2840 = vunpack.c.h.b16 %v1466
      %v2841 = vunpack.c.l.b16 %v1467
      %v2842 = vunpack.c.h.b16 %v1467
      %v2843 = vunpack.c.l.b16 %v1468
      %v2844 = vunpack.c.h.b16 %v1468
      %v2845 = vunpack.c.l.b16 %v1469
      %v2846 = vunpack.c.h.b16 %v1469
      %v2847 = vunpack.c.l.b16 %v1470
      %v2848 = vunpack.c.h.b16 %v1470
      %v2849 = vunpack.c.l.b16 %v1471
      %v2850 = vunpack.c.h.b16 %v1471
      %v2851 = vunpack.c.l.b16 %v1472
      %v2852 = vunpack.c.h.b16 %v1472
      %v2853 = vunpack.c.l.b16 %v1473
      %v2854 = vunpack.c.h.b16 %v1473
      %v2855 = vunpack.c.l.b16 %v1474
      %v2856 = vunpack.c.h.b16 %v1474
      %v2857 = vunpack.c.l.b16 %v1475
      %v2858 = vunpack.c.h.b16 %v1475
      %v2859 = vunpack.c.l.b16 %v1476
      %v2860 = vunpack.c.h.b16 %v1476
      %v2861 = vunpack.c.l.b16 %v1477
      %v2862 = vunpack.c.h.b16 %v1477
      %v2863 = vunpack.c.l.b16 %v1478
      %v2864 = vunpack.c.h.b16 %v1478
      %v2865 = vunpack.c.l.b16 %v1479
      %v2866 = vunpack.c.h.b16 %v1479
      %v2867 = vunpack.c.l.b16 %v1480
      %v2868 = vunpack.c.h.b16 %v1480
      %v2869 = vunpack.c.l.b16 %v1481
      %v2870 = vunpack.c.h.b16 %v1481
      %v2871 = vunpack.c.l.b16 %v1482
      %v2872 = vunpack.c.h.b16 %v1482
      %v2873 = vunpack.c.l.b16 %v1483
      %v2874 = vunpack.c.h.b16 %v1483
      %v2875 = vunpack.c.l.b16 %v1484
      %v2876 = vunpack.c.h.b16 %v1484
      %v2877 = vunpack.c.l.b16 %v1485
      %v2878 = vunpack.c.h.b16 %v1485
      %v2879 = vunpack.c.l.b16 %v1486
      %v2880 = vunpack.c.h.b16 %v1486
      %v2881 = vunpack.c.l.b16 %v1487
      %v2882 = vunpack.c.h.b16 %v1487
      %v2883 = vunpack.c.l.b16 %v1488
      %v2884 = vunpack.c.h.b16 %v1488
      %v2885 = vunpack.c.l.b16 %v1489
      %v2886 = vunpack.c.h.b16 %v1489
      %v2887 = vunpack.c.l.b16 %v1490
      %v2888 = vunpack.c.h.b16 %v1490
      %v2889 = vunpack.c.l.b16 %v1491
      %v2890 = vunpack.c.h.b16 %v1491
      %v2891 = vunpack.c.l.b16 %v1492
      %v2892 = vunpack.c.h.b16 %v1492
      %v2893 = vunpack.c.l.b16 %v1493
      %v2894 = vunpack.c.h.b16 %v1493
      %v2895 = vunpack.c.l.b16 %v1494
      %v2896 = vunpack.c.h.b16 %v1494
      %v2897 = vunpack.c.l.b16 %v1495
      %v2898 = vunpack.c.h.b16 %v1495
      %v2899 = vunpack.c.l.b16 %v1496
      %v2900 = vunpack.c.h.b16 %v1496
      %v2901 = vunpack.c.l.b16 %v1497
      %v2902 = vunpack.c.h.b16 %v1497
      %v2903 = vunpack.c.l.b16 %v1498
      %v2904 = vunpack.c.h.b16 %v1498
      %v2905 = vunpack.c.l.b16 %v1499
      %v2906 = vunpack.c.h.b16 %v1499
      %v2907 = vunpack.c.l.b16 %v1500
      %v2908 = vunpack.c.h.b16 %v1500
      %v2909 = vunpack.c.l.b16 %v1501
      %v2910 = vunpack.c.h.b16 %v1501
      %v2911 = vunpack.c.l.b16 %v1502
      %v2912 = vunpack.c.h.b16 %v1502
      %v2913 = vunpack.c.l.b16 %v1503
      %v2914 = vunpack.c.h.b16 %v1503
      %v2915 = vunpack.c.l.b16 %v1504
      %v2916 = vunpack.c.h.b16 %v1504
      %v2917 = vunpack.c.l.b16 %v1505
      %v2918 = vunpack.c.h.b16 %v1505
      %v2919 = vunpack.c.l.b16 %v1506
      %v2920 = vunpack.c.h.b16 %v1506
      %v2921 = vunpack.c.l.b16 %v1507
      %v2922 = vunpack.c.h.b16 %v1507
      %v2923 = vunpack.c.l.b16 %v1508
      %v2924 = vunpack.c.h.b16 %v1508
      %v2925 = vunpack.c.l.b16 %v1509
      %v2926 = vunpack.c.h.b16 %v1509
      %v2927 = vunpack.c.l.b16 %v1510
      %v2928 = vunpack.c.h.b16 %v1510
      %v2929 = vunpack.c.l.b16 %v1511
      %v2930 = vunpack.c.h.b16 %v1511
      %v2931 = vunpack.c.l.b16 %v1512
      %v2932 = vunpack.c.h.b16 %v1512
      %v2933 = vunpack.c.l.b16 %v1513
      %v2934 = vunpack.c.h.b16 %v1513
      %v2935 = vunpack.c.l.b16 %v1514
      %v2936 = vunpack.c.h.b16 %v1514
      %v2937 = vunpack.c.l.b16 %v1515
      %v2938 = vunpack.c.h.b16 %v1515
      %v2939 = vunpack.c.l.b16 %v1516
      %v2940 = vunpack.c.h.b16 %v1516
      %v2941 = vunpack.c.l.b16 %v1517
      %v2942 = vunpack.c.h.b16 %v1517
      %v2943 = vunpack.c.l.b16 %v1518
      %v2944 = vunpack.c.h.b16 %v1518
      %v2945 = vunpack.c.l.b16 %v1519
      %v2946 = vunpack.c.h.b16 %v1519
      %v2947 = vunpack.c.l.b16 %v1520
      %v2948 = vunpack.c.h.b16 %v1520
      %v2949 = vunpack.c.l.b16 %v1521
      %v2950 = vunpack.c.h.b16 %v1521
      %v2951 = vunpack.c.l.b16 %v1522
      %v2952 = vunpack.c.h.b16 %v1522
      %v2953 = vunpack.c.l.b16 %v1523
      %v2954 = vunpack.c.h.b16 %v1523
      %v2955 = vunpack.c.l.b16 %v1524
      %v2956 = vunpack.c.h.b16 %v1524
      %v2957 = vunpack.c.l.b16 %v1525
      %v2958 = vunpack.c.h.b16 %v1525
      %v2959 = vunpack.c.l.b16 %v1526
      %v2960 = vunpack.c.h.b16 %v1526
      %v2961 = vunpack.c.l.b16 %v1527
      %v2962 = vunpack.c.h.b16 %v1527
      %v2963 = vunpack.c.l.b16 %v1528
      %v2964 = vunpack.c.h.b16 %v1528
      %v2965 = vunpack.c.l.b16 %v1529
      %v2966 = vunpack.c.h.b16 %v1529
      %v2967 = vunpack.c.l.b16 %v1530
      %v2968 = vunpack.c.h.b16 %v1530
      %v2969 = vunpack.c.l.b16 %v1531
      %v2970 = vunpack.c.h.b16 %v1531
      %v2971 = vunpack.c.l.b16 %v1532
      %v2972 = vunpack.c.h.b16 %v1532
      %v2973 = vunpack.c.l.b16 %v1533
      %v2974 = vunpack.c.h.b16 %v1533
      %v2975 = vunpack.c.l.b16 %v1534
      %v2976 = vunpack.c.h.b16 %v1534
      %v2977 = vunpack.c.l.b16 %v1535
      %v2978 = vunpack.c.h.b16 %v1535
      %v2979 = vunpack.c.l.b16 %v1536
      %v2980 = vunpack.c.h.b16 %v1536
      %v2981 = vunpack.c.l.b16 %v1537
      %v2982 = vunpack.c.h.b16 %v1537
      %v2983 = vunpack.c.l.b16 %v1538
      %v2984 = vunpack.c.h.b16 %v1538
      %v2985 = vunpack.c.l.b16 %v1539
      %v2986 = vunpack.c.h.b16 %v1539
      %v2987 = vunpack.c.l.b16 %v1540
      %v2988 = vunpack.c.h.b16 %v1540
      %v2989 = vunpack.c.l.b16 %v1541
      %v2990 = vunpack.c.h.b16 %v1541
      %v2991 = vunpack.c.l.b16 %v1542
      %v2992 = vunpack.c.h.b16 %v1542
      %v2993 = vunpack.c.l.b16 %v1543
      %v2994 = vunpack.c.h.b16 %v1543
      %v2995 = vunpack.c.l.b16 %v1544
      %v2996 = vunpack.c.h.b16 %v1544
      %v2997 = vunpack.c.l.b16 %v1545
      %v2998 = vunpack.c.h.b16 %v1545
      %v2999 = vunpack.c.l.b16 %v1546
      %v3000 = vunpack.c.h.b16 %v1546
      %v3001 = vunpack.c.l.b16 %v1547
      %v3002 = vunpack.c.h.b16 %v1547
      %v3003 = vunpack.c.l.b16 %v1548
      %v3004 = vunpack.c.h.b16 %v1548
      %v3005 = vunpack.c.l.b16 %v1549
      %v3006 = vunpack.c.h.b16 %v1549
      %v3007 = vunpack.c.l.b16 %v1550
      %v3008 = vunpack.c.h.b16 %v1550
      %v3009 = vunpack.c.l.b16 %v1551
      %v3010 = vunpack.c.h.b16 %v1551
      %v3011 = vunpack.c.l.b16 %v1552
      %v3012 = vunpack.c.h.b16 %v1552
      %v3013 = vunpack.c.l.b16 %v1553
      %v3014 = vunpack.c.h.b16 %v1553
      %v3015 = vunpack.c.l.b16 %v1554
      %v3016 = vunpack.c.h.b16 %v1554
      %v3017 = vunpack.c.l.b16 %v1555
      %v3018 = vunpack.c.h.b16 %v1555
      %v3019 = vunpack.c.l.b16 %v1556
      %v3020 = vunpack.c.h.b16 %v1556
      %v3021 = vunpack.c.l.b16 %v1557
      %v3022 = vunpack.c.h.b16 %v1557
      %v3023 = vunpack.c.l.b16 %v1558
      %v3024 = vunpack.c.h.b16 %v1558
      %v3025 = vunpack.c.l.b16 %v1559
      %v3026 = vunpack.c.h.b16 %v1559
      %v3027 = vunpack.c.l.b16 %v1560
      %v3028 = vunpack.c.h.b16 %v1560
      %v3029 = vunpack.c.l.b16 %v1561
      %v3030 = vunpack.c.h.b16 %v1561
      %v3031 = vunpack.c.l.b16 %v1562
      %v3032 = vunpack.c.h.b16 %v1562
      %v3033 = vpack.c.b16 %v2781, %v2777
      %v3034 = vpack.c.b16 %v2782, %v2778
      %v3035 = vpack.c.b16 %v2783, %v2779
      %v3036 = vpack.c.b16 %v2784, %v2780
      %v3037 = vpack.c.b16 %v2789, %v2785
      %v3038 = vpack.c.b16 %v2790, %v2786
      %v3039 = vpack.c.b16 %v2791, %v2787
      %v3040 = vpack.c.b16 %v2792, %v2788
      %v3041 = vpack.c.b16 %v2797, %v2793
      %v3042 = vpack.c.b16 %v2798, %v2794
      %v3043 = vpack.c.b16 %v2799, %v2795
      %v3044 = vpack.c.b16 %v2800, %v2796
      %v3045 = vpack.c.b16 %v2805, %v2801
      %v3046 = vpack.c.b16 %v2806, %v2802
      %v3047 = vpack.c.b16 %v2807, %v2803
      %v3048 = vpack.c.b16 %v2808, %v2804
      %v3049 = vpack.c.b16 %v2813, %v2809
      %v3050 = vpack.c.b16 %v2814, %v2810
      %v3051 = vpack.c.b16 %v2815, %v2811
      %v3052 = vpack.c.b16 %v2816, %v2812
      %v3053 = vpack.c.b16 %v2821, %v2817
      %v3054 = vpack.c.b16 %v2822, %v2818
      %v3055 = vpack.c.b16 %v2823, %v2819
      %v3056 = vpack.c.b16 %v2824, %v2820
      %v3057 = vpack.c.b16 %v2829, %v2825
      %v3058 = vpack.c.b16 %v2830, %v2826
      %v3059 = vpack.c.b16 %v2831, %v2827
      %v3060 = vpack.c.b16 %v2832, %v2828
      %v3061 = vpack.c.b16 %v2837, %v2833
      %v3062 = vpack.c.b16 %v2838, %v2834
      %v3063 = vpack.c.b16 %v2839, %v2835
      %v3064 = vpack.c.b16 %v2840, %v2836
      %v3065 = vpack.c.b16 %v2845, %v2841
      %v3066 = vpack.c.b16 %v2846, %v2842
      %v3067 = vpack.c.b16 %v2847, %v2843
      %v3068 = vpack.c.b16 %v2848, %v2844
      %v3069 = vpack.c.b16 %v2853, %v2849
      %v3070 = vpack.c.b16 %v2854, %v2850
      %v3071 = vpack.c.b16 %v2855, %v2851
      %v3072 = vpack.c.b16 %v2856, %v2852
      %v3073 = vpack.c.b16 %v2861, %v2857
      %v3074 = vpack.c.b16 %v2862, %v2858
      %v3075 = vpack.c.b16 %v2863, %v2859
      %v3076 = vpack.c.b16 %v2864, %v2860
      %v3077 = vpack.c.b16 %v2869, %v2865
      %v3078 = vpack.c.b16 %v2870, %v2866
      %v3079 = vpack.c.b16 %v2871, %v2867
      %v3080 = vpack.c.b16 %v2872, %v2868
      %v3081 = vpack.c.b16 %v2877, %v2873
      %v3082 = vpack.c.b16 %v2878, %v2874
      %v3083 = vpack.c.b16 %v2879, %v2875
      %v3084 = vpack.c.b16 %v2880, %v2876
      %v3085 = vpack.c.b16 %v2885, %v2881
      %v3086 = vpack.c.b16 %v2886, %v2882
      %v3087 = vpack.c.b16 %v2887, %v2883
      %v3088 = vpack.c.b16 %v2888, %v2884
      %v3089 = vpack.c.b16 %v2893, %v2889
      %v3090 = vpack.c.b16 %v2894, %v2890
      %v3091 = vpack.c.b16 %v2895, %v2891
      %v3092 = vpack.c.b16 %v2896, %v2892
      %v3093 = vpack.c.b16 %v2901, %v2897
      %v3094 = vpack.c.b16 %v2902, %v2898
      %v3095 = vpack.c.b16 %v2903, %v2899
      %v3096 = vpack.c.b16 %v2904, %v2900
      %v3097 = vpack.c.b16 %v2909, %v2905
      %v3098 = vpack.c.b16 %v2910, %v2906
      %v3099 = vpack.c.b16 %v2911, %v2907
      %v3100 = vpack.c.b16 %v2912, %v2908
      %v3101 = vpack.c.b16 %v2917, %v2913
      %v3102 = vpack.c.b16 %v2918, %v2914
      %v3103 = vpack.c.b16 %v2919, %v2915
      %v3104 = vpack.c.b16 %v2920, %v2916
      %v3105 = vpack.c.b16 %v2925, %v2921
      %v3106 = vpack.c.b16 %v2926, %v2922
      %v3107 = vpack.c.b16 %v2927, %v2923
      %v3108 = vpack.c.b16 %v2928, %v2924
      %v3109 = vpack.c.b16 %v2933, %v2929
      %v3110 = vpack.c.b16 %v2934, %v2930
      %v3111 = vpack.c.b16 %v2935, %v2931
      %v3112 = vpack.c.b16 %v2936, %v2932
      %v3113 = vpack.c.b16 %v2941, %v2937
      %v3114 = vpack.c.b16 %v2942, %v2938
      %v3115 = vpack.c.b16 %v2943, %v2939
      %v3116 = vpack.c.b16 %v2944, %v2940
      %v3117 = vpack.c.b16 %v2949, %v2945
      %v3118 = vpack.c.b16 %v2950, %v2946
      %v3119 = vpack.c.b16 %v2951, %v2947
      %v3120 = vpack.c.b16 %v2952, %v2948
      %v3121 = vpack.c.b16 %v2957, %v2953
      %v3122 = vpack.c.b16 %v2958, %v2954
      %v3123 = vpack.c.b16 %v2959, %v2955
      %v3124 = vpack.c.b16 %v2960, %v2956
      %v3125 = vpack.c.b16 %v2965, %v2961
      %v3126 = vpack.c.b16 %v2966, %v2962
      %v3127 = vpack.c.b16 %v2967, %v2963
      %v3128 = vpack.c.b16 %v2968, %v2964
      %v3129 = vpack.c.b16 %v2973, %v2969
      %v3130 = vpack.c.b16 %v2974, %v2970
      %v3131 = vpack.c.b16 %v2975, %v2971
      %v3132 = vpack.c.b16 %v2976, %v2972
      %v3133 = vpack.c.b16 %v2981, %v2977
      %v3134 = vpack.c.b16 %v2982, %v2978
      %v3135 = vpack.c.b16 %v2983, %v2979
      %v3136 = vpack.c.b16 %v2984, %v2980
      %v3137 = vpack.c.b16 %v2989, %v2985
      %v3138 = vpack.c.b16 %v2990, %v2986
      %v3139 = vpack.c.b16 %v2991, %v2987
      %v3140 = vpack.c.b16 %v2992, %v2988
      %v3141 = vpack.c.b16 %v2997, %v2993
      %v3142 = vpack.c.b16 %v2998, %v2994
      %v3143 = vpack.c.b16 %v2999, %v2995
      %v3144 = vpack.c.b16 %v3000, %v2996
      %v3145 = vpack.c.b16 %v3005, %v3001
      %v3146 = vpack.c.b16 %v3006, %v3002
      %v3147 = vpack.c.b16 %v3007, %v3003
      %v3148 = vpack.c.b16 %v3008, %v3004
      %v3149 = vpack.c.b16 %v3013, %v3009
      %v3150 = vpack.c.b16 %v3014, %v3010
      %v3151 = vpack.c.b16 %v3015, %v3011
      %v3152 = vpack.c.b16 %v3016, %v3012
      %v3153 = vpack.c.b16 %v3021, %v3017
      %v3154 = vpack.c.b16 %v3022, %v3018
      %v3155 = vpack.c.b16 %v3023, %v3019
      %v3156 = vpack.c.b16 %v3024, %v3020
      %v3157 = vpack.c.b16 %v3029, %v3025
      %v3158 = vpack.c.b16 %v3030, %v3026
      %v3159 = vpack.c.b16 %v3031, %v3027
      %v3160 = vpack.c.b16 %v3032, %v3028
      %3289 = vmatprep.subr.bf16.mxu0 %v3034
      %3290 = vmatpush1.bf16.msra.mxu0 %v3033
      %3291 = vmatprep.subr.bf16.mxu0 %v3038
      %3292 = vmatpush1.bf16.msra.mxu0 %v3037
      %3293 = vmatprep.subr.bf16.mxu0 %v3042
      %3294 = vmatpush1.bf16.msra.mxu0 %v3041
      %3295 = vmatprep.subr.bf16.mxu0 %v3046
      %3296 = vmatpush1.bf16.msra.mxu0 %v3045
      %3297 = vmatprep.subr.bf16.mxu0 %v3050
      %3298 = vmatpush1.bf16.msra.mxu0 %v3049
      %3299 = vmatprep.subr.bf16.mxu0 %v3054
      %3300 = vmatpush1.bf16.msra.mxu0 %v3053
      %3301 = vmatprep.subr.bf16.mxu0 %v3058
      %3302 = vmatpush1.bf16.msra.mxu0 %v3057
      %3303 = vmatprep.subr.bf16.mxu0 %v3062
      %3304 = vmatpush1.bf16.msra.mxu0 %v3061
      %3305 = vmatprep.subr.bf16.mxu0 %v3066
      %3306 = vmatpush1.bf16.msra.mxu0 %v3065
      %3307 = vmatprep.subr.bf16.mxu0 %v3070
      %3308 = vmatpush1.bf16.msra.mxu0 %v3069
      %3309 = vmatprep.subr.bf16.mxu0 %v3074
      %3310 = vmatpush1.bf16.msra.mxu0 %v3073
      %3311 = vmatprep.subr.bf16.mxu0 %v3078
      %3312 = vmatpush1.bf16.msra.mxu0 %v3077
      %3313 = vmatprep.subr.bf16.mxu0 %v3082
      %3314 = vmatpush1.bf16.msra.mxu0 %v3081
      %3315 = vmatprep.subr.bf16.mxu0 %v3086
      %3316 = vmatpush1.bf16.msra.mxu0 %v3085
      %3317 = vmatprep.subr.bf16.mxu0 %v3090
      %3318 = vmatpush1.bf16.msra.mxu0 %v3089
      %3319 = vmatprep.subr.bf16.mxu0 %v3094
      %3320 = vmatpush1.bf16.msra.mxu0 %v3093
      %3321 = vmatprep.mubr.bf16.mxu0 %v1428
      %3322 = vmatmul.mubr.bf16.gmra.mrb[0].mxu0 %v1427
      %v3323 = vpop.f32.mrb[0].mxu0
      %v3324 = vadd.f32 %v2525, %v3323
      %v3325 = vpop.f32.mrb[0].mxu0
      %v3326 = vadd.f32 %v2527, %v3325
      %v3327 = vpop.f32.mrb[0].mxu0
      %v3328 = vadd.f32 %v2529, %v3327
      %v3329 = vpop.f32.mrb[0].mxu0
      %v3330 = vadd.f32 %v2531, %v3329
      %3331 = vmatprep.mubr.bf16.mxu0 %v1432
      %3332 = vmatmul.mubr.bf16.gmra.mrb[0].mxu0 %v1431
      %v3333 = vpop.f32.mrb[0].mxu0
      %v3334 = vadd.f32 %v2535, %v3333
      %v3335 = vpop.f32.mrb[0].mxu0
      %v3336 = vadd.f32 %v2537, %v3335
      %v3337 = vpop.f32.mrb[0].mxu0
      %v3338 = vadd.f32 %v2539, %v3337
      %v3339 = vpop.f32.mrb[0].mxu0
      %v3340 = vadd.f32 %v2541, %v3339
      %3341 = vdwg.mxu0
      %3342 = vmatprep.subr.bf16.mxu0 %v3098
      %3343 = vmatpush1.bf16.msra.mxu0 %v3097
      %3344 = vmatprep.subr.bf16.mxu0 %v3102
      %3345 = vmatpush1.bf16.msra.mxu0 %v3101
      %3346 = vmatprep.subr.bf16.mxu0 %v3106
      %3347 = vmatpush1.bf16.msra.mxu0 %v3105
      %3348 = vmatprep.subr.bf16.mxu0 %v3110
      %3349 = vmatpush1.bf16.msra.mxu0 %v3109
      %3350 = vmatprep.subr.bf16.mxu0 %v3114
      %3351 = vmatpush1.bf16.msra.mxu0 %v3113
      %3352 = vmatprep.subr.bf16.mxu0 %v3118
      %3353 = vmatpush1.bf16.msra.mxu0 %v3117
      %3354 = vmatprep.subr.bf16.mxu0 %v3122
      %3355 = vmatpush1.bf16.msra.mxu0 %v3121
      %3356 = vmatprep.subr.bf16.mxu0 %v3126
      %3357 = vmatpush1.bf16.msra.mxu0 %v3125
      %3358 = vmatprep.subr.bf16.mxu0 %v3130
      %3359 = vmatpush1.bf16.msra.mxu0 %v3129
      %3360 = vmatprep.subr.bf16.mxu0 %v3134
      %3361 = vmatpush1.bf16.msra.mxu0 %v3133
      %3362 = vmatprep.subr.bf16.mxu0 %v3138
      %3363 = vmatpush1.bf16.msra.mxu0 %v3137
      %3364 = vmatprep.subr.bf16.mxu0 %v3142
      %3365 = vmatpush1.bf16.msra.mxu0 %v3141
      %3366 = vmatprep.subr.bf16.mxu0 %v3146
      %3367 = vmatpush1.bf16.msra.mxu0 %v3145
      %3368 = vmatprep.subr.bf16.mxu0 %v3150
      %3369 = vmatpush1.bf16.msra.mxu0 %v3149
      %3370 = vmatprep.subr.bf16.mxu0 %v3154
      %3371 = vmatpush1.bf16.msra.mxu0 %v3153
      %3372 = vmatprep.subr.bf16.mxu0 %v3158
      %3373 = vmatpush1.bf16.msra.mxu0 %v3157
      %3374 = vmatprep.mubr.bf16.mxu0 %v1430
      %3375 = vmatmul.mubr.bf16.gmra.mrb[0].mxu0 %v1429
      %v3376 = vpop.f32.mrb[0].mxu0
      %v3377 = vadd.f32 %v3324, %v3376
      %v3378 = vpop.f32.mrb[0].mxu0
      %v3379 = vadd.f32 %v3326, %v3378
      %v3380 = vpop.f32.mrb[0].mxu0
      %v3381 = vadd.f32 %v3328, %v3380
      %v3382 = vpop.f32.mrb[0].mxu0
      %v3383 = vadd.f32 %v3330, %v3382
      %3384 = vmatprep.mubr.bf16.mxu0 %v1434
      %3385 = vmatmul.mubr.bf16.gmra.mrb[0].mxu0 %v1433
      %v3386 = vpop.f32.mrb[0].mxu0
      %v3387 = vadd.f32 %v3334, %v3386
      %v3388 = vpop.f32.mrb[0].mxu0
      %v3389 = vadd.f32 %v3336, %v3388
      %v3390 = vpop.f32.mrb[0].mxu0
      %v3391 = vadd.f32 %v3338, %v3390
      %v3392 = vpop.f32.mrb[0].mxu0
      %v3393 = vadd.f32 %v3340, %v3392
      %3394 = vdwg.mxu0
      %3395 = vmatprep.subr.bf16.mxu0 %v3036
      %3396 = vmatpush1.bf16.msra.mxu0 %v3035
      %3397 = vmatprep.subr.bf16.mxu0 %v3040
      %3398 = vmatpush1.bf16.msra.mxu0 %v3039
      %3399 = vmatprep.subr.bf16.mxu0 %v3044
      %3400 = vmatpush1.bf16.msra.mxu0 %v3043
      %3401 = vmatprep.subr.bf16.mxu0 %v3048
      %3402 = vmatpush1.bf16.msra.mxu0 %v3047
      %3403 = vmatprep.subr.bf16.mxu0 %v3052
      %3404 = vmatpush1.bf16.msra.mxu0 %v3051
      %3405 = vmatprep.subr.bf16.mxu0 %v3056
      %3406 = vmatpush1.bf16.msra.mxu0 %v3055
      %3407 = vmatprep.subr.bf16.mxu0 %v3060
      %3408 = vmatpush1.bf16.msra.mxu0 %v3059
      %3409 = vmatprep.subr.bf16.mxu0 %v3064
      %3410 = vmatpush1.bf16.msra.mxu0 %v3063
      %3411 = vmatprep.subr.bf16.mxu0 %v3068
      %3412 = vmatpush1.bf16.msra.mxu0 %v3067
      %3413 = vmatprep.subr.bf16.mxu0 %v3072
      %3414 = vmatpush1.bf16.msra.mxu0 %v3071
      %3415 = vmatprep.subr.bf16.mxu0 %v3076
      %3416 = vmatpush1.bf16.msra.mxu0 %v3075
      %3417 = vmatprep.subr.bf16.mxu0 %v3080
      %3418 = vmatpush1.bf16.msra.mxu0 %v3079
      %3419 = vmatprep.subr.bf16.mxu0 %v3084
      %3420 = vmatpush1.bf16.msra.mxu0 %v3083
      %3421 = vmatprep.subr.bf16.mxu0 %v3088
      %3422 = vmatpush1.bf16.msra.mxu0 %v3087
      %3423 = vmatprep.subr.bf16.mxu0 %v3092
      %3424 = vmatpush1.bf16.msra.mxu0 %v3091
      %3425 = vmatprep.subr.bf16.mxu0 %v3096
      %3426 = vmatpush1.bf16.msra.mxu0 %v3095
      %3427 = vmatprep.mubr.bf16.mxu0 %v1428
      %3428 = vmatmul.mubr.bf16.gmra.mrb[0].mxu0 %v1427
      %v3429 = vpop.f32.mrb[0].mxu0
      %v3430 = vadd.f32 %v2631, %v3429
      %v3431 = vpop.f32.mrb[0].mxu0
      %v3432 = vadd.f32 %v2633, %v3431
      %v3433 = vpop.f32.mrb[0].mxu0
      %v3434 = vadd.f32 %v2635, %v3433
      %v3435 = vpop.f32.mrb[0].mxu0
      %v3436 = vadd.f32 %v2637, %v3435
      %3437 = vmatprep.mubr.bf16.mxu0 %v1432
      %3438 = vmatmul.mubr.bf16.gmra.mrb[0].mxu0 %v1431
      %v3439 = vpop.f32.mrb[0].mxu0
      %v3440 = vadd.f32 %v2641, %v3439
      %v3441 = vpop.f32.mrb[0].mxu0
      %v3442 = vadd.f32 %v2643, %v3441
      %v3443 = vpop.f32.mrb[0].mxu0
      %v3444 = vadd.f32 %v2645, %v3443
      %v3445 = vpop.f32.mrb[0].mxu0
      %v3446 = vadd.f32 %v2647, %v3445
      %3447 = vdwg.mxu0
      %3448 = vmatprep.subr.bf16.mxu0 %v3100
      %3449 = vmatpush1.bf16.msra.mxu0 %v3099
      %3450 = vmatprep.subr.bf16.mxu0 %v3104
      %3451 = vmatpush1.bf16.msra.mxu0 %v3103
      %3452 = vmatprep.subr.bf16.mxu0 %v3108
      %3453 = vmatpush1.bf16.msra.mxu0 %v3107
      %3454 = vmatprep.subr.bf16.mxu0 %v3112
      %3455 = vmatpush1.bf16.msra.mxu0 %v3111
      %3456 = vmatprep.subr.bf16.mxu0 %v3116
      %3457 = vmatpush1.bf16.msra.mxu0 %v3115
      %3458 = vmatprep.subr.bf16.mxu0 %v3120
      %3459 = vmatpush1.bf16.msra.mxu0 %v3119
      %3460 = vmatprep.subr.bf16.mxu0 %v3124
      %3461 = vmatpush1.bf16.msra.mxu0 %v3123
      %3462 = vmatprep.subr.bf16.mxu0 %v3128
      %3463 = vmatpush1.bf16.msra.mxu0 %v3127
      %3464 = vmatprep.subr.bf16.mxu0 %v3132
      %3465 = vmatpush1.bf16.msra.mxu0 %v3131
      %3466 = vmatprep.subr.bf16.mxu0 %v3136
      %3467 = vmatpush1.bf16.msra.mxu0 %v3135
      %3468 = vmatprep.subr.bf16.mxu0 %v3140
      %3469 = vmatpush1.bf16.msra.mxu0 %v3139
      %3470 = vmatprep.subr.bf16.mxu0 %v3144
      %3471 = vmatpush1.bf16.msra.mxu0 %v3143
      %3472 = vmatprep.subr.bf16.mxu0 %v3148
      %3473 = vmatpush1.bf16.msra.mxu0 %v3147
      %3474 = vmatprep.subr.bf16.mxu0 %v3152
      %3475 = vmatpush1.bf16.msra.mxu0 %v3151
      %3476 = vmatprep.subr.bf16.mxu0 %v3156
      %3477 = vmatpush1.bf16.msra.mxu0 %v3155
      %3478 = vmatprep.subr.bf16.mxu0 %v3160
      %3479 = vmatpush1.bf16.msra.mxu0 %v3159
      %3480 = vmatprep.mubr.bf16.mxu0 %v1430
      %3481 = vmatmul.mubr.bf16.gmra.mrb[0].mxu0 %v1429
      %v3482 = vpop.f32.mrb[0].mxu0
      %v3483 = vadd.f32 %v3430, %v3482
      %v3484 = vpop.f32.mrb[0].mxu0
      %v3485 = vadd.f32 %v3432, %v3484
      %v3486 = vpop.f32.mrb[0].mxu0
      %v3487 = vadd.f32 %v3434, %v3486
      %v3488 = vpop.f32.mrb[0].mxu0
      %v3489 = vadd.f32 %v3436, %v3488
      %3490 = vmatprep.mubr.bf16.mxu0 %v1434
      %3491 = vmatmul.mubr.bf16.gmra.mrb[0].mxu0 %v1433
      %v3492 = vpop.f32.mrb[0].mxu0
      %v3493 = vadd.f32 %v3440, %v3492
      %v3494 = vpop.f32.mrb[0].mxu0
      %v3495 = vadd.f32 %v3442, %v3494
      %v3496 = vpop.f32.mrb[0].mxu0
      %v3497 = vadd.f32 %v3444, %v3496
      %v3498 = vpop.f32.mrb[0].mxu0
      %v3499 = vadd.f32 %v3446, %v3498
      %3500 = vdwg.mxu0
      %v3501 = vld [vmem:[#allocation3] sm:$0xfc]
      %v3502 = vld [vmem:[#allocation3 + $0x8] sm:$0xfc]
      %v3503 = vld [vmem:[#allocation3 + $0x10] sm:$0xfc]
      %v3504 = vld [vmem:[#allocation3 + $0x18] sm:$0xfc]
      %v3505 = vld [vmem:[#allocation3 + $0x40] sm:$0x3]
      %v3506 = vld [vmem:[#allocation3 + $0x48] sm:$0x3]
      %v3507 = vld [vmem:[#allocation3 + $0x50] sm:$0x3]
      %v3508 = vld [vmem:[#allocation3 + $0x58] sm:$0x3]
      %v3509 = vld [vmem:[#allocation3 + $0x60] sm:$0xfc]
      %v3510 = vld [vmem:[#allocation3 + $0x68] sm:$0xfc]
      %v3511 = vld [vmem:[#allocation3 + $0x70] sm:$0xfc]
      %v3512 = vld [vmem:[#allocation3 + $0x78] sm:$0xfc]
      %v3513 = vld [vmem:[#allocation3 + $0xa0] sm:$0x3]
      %v3514 = vld [vmem:[#allocation3 + $0xa8] sm:$0x3]
      %v3515 = vld [vmem:[#allocation3 + $0xb0] sm:$0x3]
      %v3516 = vld [vmem:[#allocation3 + $0xb8] sm:$0x3]
      %vm3533 = vcmask 1045504
      %v3534 = vrot.slane %v3501, 2
      %v3535 = vrot.slane %v1415, 2
      %v3536 = vsel %vm3533, %v3534, %v3535
      %v3537 = vrot.slane %v3502, 2
      %v3538 = vrot.slane %v1416, 2
      %v3539 = vsel %vm3533, %v3537, %v3538
      %v3540 = vrot.slane %v3503, 2
      %v3541 = vrot.slane %v1417, 2
      %v3542 = vsel %vm3533, %v3540, %v3541
      %v3543 = vrot.slane %v3504, 2
      %v3544 = vrot.slane %v1418, 2
      %v3545 = vsel %vm3533, %v3543, %v3544
      %v3546 = vrot.slane %v3505, 2
      %v3547 = vsel %vm3533, %v3535, %v3546
      %v3548 = vrot.slane %v3506, 2
      %v3549 = vsel %vm3533, %v3538, %v3548
      %v3550 = vrot.slane %v3507, 2
      %v3551 = vsel %vm3533, %v3541, %v3550
      %v3552 = vrot.slane %v3508, 2
      %v3553 = vsel %vm3533, %v3544, %v3552
      %v3554 = vrot.slane %v3509, 2
      %v3555 = vrot.slane %v1423, 2
      %v3556 = vsel %vm3533, %v3554, %v3555
      %v3557 = vrot.slane %v3510, 2
      %v3558 = vrot.slane %v1424, 2
      %v3559 = vsel %vm3533, %v3557, %v3558
      %v3560 = vrot.slane %v3511, 2
      %v3561 = vrot.slane %v1425, 2
      %v3562 = vsel %vm3533, %v3560, %v3561
      %v3563 = vrot.slane %v3512, 2
      %v3564 = vrot.slane %v1426, 2
      %v3565 = vsel %vm3533, %v3563, %v3564
      %v3566 = vrot.slane %v3513, 2
      %v3567 = vsel %vm3533, %v3555, %v3566
      %v3568 = vrot.slane %v3514, 2
      %v3569 = vsel %vm3533, %v3558, %v3568
      %v3570 = vrot.slane %v3515, 2
      %v3571 = vsel %vm3533, %v3561, %v3570
      %v3572 = vrot.slane %v3516, 2
      %v3573 = vsel %vm3533, %v3564, %v3572
      %v3590 = vpack.c.bf16 %v3547, %v3536
      %v3591 = vpack.c.bf16 %v3549, %v3539
      %v3592 = vpack.c.bf16 %v3551, %v3542
      %v3593 = vpack.c.bf16 %v3553, %v3545
      %v3594 = vpack.c.bf16 %v3567, %v3556
      %v3595 = vpack.c.bf16 %v3569, %v3559
      %v3596 = vpack.c.bf16 %v3571, %v3562
      %v3597 = vpack.c.bf16 %v3573, %v3565
      %s3598 = scalar_lea.vmem [#allocation9], 2048
      %v3599 = vld [vmem:[%s3598] sm:$0xff]
      %v3600 = vld [vmem:[%s3598 + $0x8] sm:$0xff]
      %v3601 = vld [vmem:[%s3598 + $0x10] sm:$0xff]
      %v3602 = vld [vmem:[%s3598 + $0x18] sm:$0xff]
      %v3603 = vld [vmem:[%s3598 + $0x20] sm:$0xff]
      %v3604 = vld [vmem:[%s3598 + $0x28] sm:$0xff]
      %v3605 = vld [vmem:[%s3598 + $0x30] sm:$0xff]
      %v3606 = vld [vmem:[%s3598 + $0x38] sm:$0xff]
      %v3607 = vld [vmem:[%s3598 + $0x40] sm:$0xff]
      %v3608 = vld [vmem:[%s3598 + $0x48] sm:$0xff]
      %v3609 = vld [vmem:[%s3598 + $0x50] sm:$0xff]
      %v3610 = vld [vmem:[%s3598 + $0x58] sm:$0xff]
      %v3611 = vld [vmem:[%s3598 + $0x60] sm:$0xff]
      %v3612 = vld [vmem:[%s3598 + $0x68] sm:$0xff]
      %v3613 = vld [vmem:[%s3598 + $0x70] sm:$0xff]
      %v3614 = vld [vmem:[%s3598 + $0x78] sm:$0xff]
      %v3615 = vld [vmem:[%s3598 + $0x80] sm:$0xff]
      %v3616 = vld [vmem:[%s3598 + $0x88] sm:$0xff]
      %v3617 = vld [vmem:[%s3598 + $0x90] sm:$0xff]
      %v3618 = vld [vmem:[%s3598 + $0x98] sm:$0xff]
      %v3619 = vld [vmem:[%s3598 + $0xa0] sm:$0xff]
      %v3620 = vld [vmem:[%s3598 + $0xa8] sm:$0xff]
      %v3621 = vld [vmem:[%s3598 + $0xb0] sm:$0xff]
      %v3622 = vld [vmem:[%s3598 + $0xb8] sm:$0xff]
      %v3623 = vld [vmem:[%s3598 + $0xc0] sm:$0xff]
      %v3624 = vld [vmem:[%s3598 + $0xc8] sm:$0xff]
      %v3625 = vld [vmem:[%s3598 + $0xd0] sm:$0xff]
      %v3626 = vld [vmem:[%s3598 + $0xd8] sm:$0xff]
      %v3627 = vld [vmem:[%s3598 + $0xe0] sm:$0xff]
      %v3628 = vld [vmem:[%s3598 + $0xe8] sm:$0xff]
      %v3629 = vld [vmem:[%s3598 + $0xf0] sm:$0xff]
      %v3630 = vld [vmem:[%s3598 + $0xf8] sm:$0xff]
      %v3631 = vld [vmem:[%s3598 + $0x100] sm:$0xff]
      %v3632 = vld [vmem:[%s3598 + $0x108] sm:$0xff]
      %v3633 = vld [vmem:[%s3598 + $0x110] sm:$0xff]
      %v3634 = vld [vmem:[%s3598 + $0x118] sm:$0xff]
      %v3635 = vld [vmem:[%s3598 + $0x120] sm:$0xff]
      %v3636 = vld [vmem:[%s3598 + $0x128] sm:$0xff]
      %v3637 = vld [vmem:[%s3598 + $0x130] sm:$0xff]
      %v3638 = vld [vmem:[%s3598 + $0x138] sm:$0xff]
      %v3639 = vld [vmem:[%s3598 + $0x140] sm:$0xff]
      %v3640 = vld [vmem:[%s3598 + $0x148] sm:$0xff]
      %v3641 = vld [vmem:[%s3598 + $0x150] sm:$0xff]
      %v3642 = vld [vmem:[%s3598 + $0x158] sm:$0xff]
      %v3643 = vld [vmem:[%s3598 + $0x160] sm:$0xff]
      %v3644 = vld [vmem:[%s3598 + $0x168] sm:$0xff]
      %v3645 = vld [vmem:[%s3598 + $0x170] sm:$0xff]
      %v3646 = vld [vmem:[%s3598 + $0x178] sm:$0xff]
      %v3647 = vld [vmem:[%s3598 + $0x180] sm:$0xff]
      %v3648 = vld [vmem:[%s3598 + $0x188] sm:$0xff]
      %v3649 = vld [vmem:[%s3598 + $0x190] sm:$0xff]
      %v3650 = vld [vmem:[%s3598 + $0x198] sm:$0xff]
      %v3651 = vld [vmem:[%s3598 + $0x1a0] sm:$0xff]
      %v3652 = vld [vmem:[%s3598 + $0x1a8] sm:$0xff]
      %v3653 = vld [vmem:[%s3598 + $0x1b0] sm:$0xff]
      %v3654 = vld [vmem:[%s3598 + $0x1b8] sm:$0xff]
      %v3655 = vld [vmem:[%s3598 + $0x1c0] sm:$0xff]
      %v3656 = vld [vmem:[%s3598 + $0x1c8] sm:$0xff]
      %v3657 = vld [vmem:[%s3598 + $0x1d0] sm:$0xff]
      %v3658 = vld [vmem:[%s3598 + $0x1d8] sm:$0xff]
      %v3659 = vld [vmem:[%s3598 + $0x1e0] sm:$0xff]
      %v3660 = vld [vmem:[%s3598 + $0x1e8] sm:$0xff]
      %v3661 = vld [vmem:[%s3598 + $0x1f0] sm:$0xff]
      %v3662 = vld [vmem:[%s3598 + $0x1f8] sm:$0xff]
      %v3663 = vld [vmem:[%s3598 + $0x200] sm:$0xff]
      %v3664 = vld [vmem:[%s3598 + $0x208] sm:$0xff]
      %v3665 = vld [vmem:[%s3598 + $0x210] sm:$0xff]
      %v3666 = vld [vmem:[%s3598 + $0x218] sm:$0xff]
      %v3667 = vld [vmem:[%s3598 + $0x220] sm:$0xff]
      %v3668 = vld [vmem:[%s3598 + $0x228] sm:$0xff]
      %v3669 = vld [vmem:[%s3598 + $0x230] sm:$0xff]
      %v3670 = vld [vmem:[%s3598 + $0x238] sm:$0xff]
      %v3671 = vld [vmem:[%s3598 + $0x240] sm:$0xff]
      %v3672 = vld [vmem:[%s3598 + $0x248] sm:$0xff]
      %v3673 = vld [vmem:[%s3598 + $0x250] sm:$0xff]
      %v3674 = vld [vmem:[%s3598 + $0x258] sm:$0xff]
      %v3675 = vld [vmem:[%s3598 + $0x260] sm:$0xff]
      %v3676 = vld [vmem:[%s3598 + $0x268] sm:$0xff]
      %v3677 = vld [vmem:[%s3598 + $0x270] sm:$0xff]
      %v3678 = vld [vmem:[%s3598 + $0x278] sm:$0xff]
      %v3679 = vld [vmem:[%s3598 + $0x280] sm:$0xff]
      %v3680 = vld [vmem:[%s3598 + $0x288] sm:$0xff]
      %v3681 = vld [vmem:[%s3598 + $0x290] sm:$0xff]
      %v3682 = vld [vmem:[%s3598 + $0x298] sm:$0xff]
      %v3683 = vld [vmem:[%s3598 + $0x2a0] sm:$0xff]
      %v3684 = vld [vmem:[%s3598 + $0x2a8] sm:$0xff]
      %v3685 = vld [vmem:[%s3598 + $0x2b0] sm:$0xff]
      %v3686 = vld [vmem:[%s3598 + $0x2b8] sm:$0xff]
      %v3687 = vld [vmem:[%s3598 + $0x2c0] sm:$0xff]
      %v3688 = vld [vmem:[%s3598 + $0x2c8] sm:$0xff]
      %v3689 = vld [vmem:[%s3598 + $0x2d0] sm:$0xff]
      %v3690 = vld [vmem:[%s3598 + $0x2d8] sm:$0xff]
      %v3691 = vld [vmem:[%s3598 + $0x2e0] sm:$0xff]
      %v3692 = vld [vmem:[%s3598 + $0x2e8] sm:$0xff]
      %v3693 = vld [vmem:[%s3598 + $0x2f0] sm:$0xff]
      %v3694 = vld [vmem:[%s3598 + $0x2f8] sm:$0xff]
      %v3695 = vld [vmem:[%s3598 + $0x300] sm:$0xff]
      %v3696 = vld [vmem:[%s3598 + $0x308] sm:$0xff]
      %v3697 = vld [vmem:[%s3598 + $0x310] sm:$0xff]
      %v3698 = vld [vmem:[%s3598 + $0x318] sm:$0xff]
      %v3699 = vld [vmem:[%s3598 + $0x320] sm:$0xff]
      %v3700 = vld [vmem:[%s3598 + $0x328] sm:$0xff]
      %v3701 = vld [vmem:[%s3598 + $0x330] sm:$0xff]
      %v3702 = vld [vmem:[%s3598 + $0x338] sm:$0xff]
      %v3703 = vld [vmem:[%s3598 + $0x340] sm:$0xff]
      %v3704 = vld [vmem:[%s3598 + $0x348] sm:$0xff]
      %v3705 = vld [vmem:[%s3598 + $0x350] sm:$0xff]
      %v3706 = vld [vmem:[%s3598 + $0x358] sm:$0xff]
      %v3707 = vld [vmem:[%s3598 + $0x360] sm:$0xff]
      %v3708 = vld [vmem:[%s3598 + $0x368] sm:$0xff]
      %v3709 = vld [vmem:[%s3598 + $0x370] sm:$0xff]
      %v3710 = vld [vmem:[%s3598 + $0x378] sm:$0xff]
      %v3711 = vld [vmem:[%s3598 + $0x380] sm:$0xff]
      %v3712 = vld [vmem:[%s3598 + $0x388] sm:$0xff]
      %v3713 = vld [vmem:[%s3598 + $0x390] sm:$0xff]
      %v3714 = vld [vmem:[%s3598 + $0x398] sm:$0xff]
      %v3715 = vld [vmem:[%s3598 + $0x3a0] sm:$0xff]
      %v3716 = vld [vmem:[%s3598 + $0x3a8] sm:$0xff]
      %v3717 = vld [vmem:[%s3598 + $0x3b0] sm:$0xff]
      %v3718 = vld [vmem:[%s3598 + $0x3b8] sm:$0xff]
      %v3719 = vld [vmem:[%s3598 + $0x3c0] sm:$0xff]
      %v3720 = vld [vmem:[%s3598 + $0x3c8] sm:$0xff]
      %v3721 = vld [vmem:[%s3598 + $0x3d0] sm:$0xff]
      %v3722 = vld [vmem:[%s3598 + $0x3d8] sm:$0xff]
      %v3723 = vld [vmem:[%s3598 + $0x3e0] sm:$0xff]
      %v3724 = vld [vmem:[%s3598 + $0x3e8] sm:$0xff]
      %v3725 = vld [vmem:[%s3598 + $0x3f0] sm:$0xff]
      %v3726 = vld [vmem:[%s3598 + $0x3f8] sm:$0xff]
      %v3855 = vunpack.c.l.b16 %v3599
      %v3856 = vunpack.c.h.b16 %v3599
      %v3857 = vunpack.c.l.b16 %v3600
      %v3858 = vunpack.c.h.b16 %v3600
      %v3859 = vunpack.c.l.b16 %v3601
      %v3860 = vunpack.c.h.b16 %v3601
      %v3861 = vunpack.c.l.b16 %v3602
      %v3862 = vunpack.c.h.b16 %v3602
      %v3863 = vunpack.c.l.b16 %v3603
      %v3864 = vunpack.c.h.b16 %v3603
      %v3865 = vunpack.c.l.b16 %v3604
      %v3866 = vunpack.c.h.b16 %v3604
      %v3867 = vunpack.c.l.b16 %v3605
      %v3868 = vunpack.c.h.b16 %v3605
      %v3869 = vunpack.c.l.b16 %v3606
      %v3870 = vunpack.c.h.b16 %v3606
      %v3871 = vunpack.c.l.b16 %v3607
      %v3872 = vunpack.c.h.b16 %v3607
      %v3873 = vunpack.c.l.b16 %v3608
      %v3874 = vunpack.c.h.b16 %v3608
      %v3875 = vunpack.c.l.b16 %v3609
      %v3876 = vunpack.c.h.b16 %v3609
      %v3877 = vunpack.c.l.b16 %v3610
      %v3878 = vunpack.c.h.b16 %v3610
      %v3879 = vunpack.c.l.b16 %v3611
      %v3880 = vunpack.c.h.b16 %v3611
      %v3881 = vunpack.c.l.b16 %v3612
      %v3882 = vunpack.c.h.b16 %v3612
      %v3883 = vunpack.c.l.b16 %v3613
      %v3884 = vunpack.c.h.b16 %v3613
      %v3885 = vunpack.c.l.b16 %v3614
      %v3886 = vunpack.c.h.b16 %v3614
      %v3887 = vunpack.c.l.b16 %v3615
      %v3888 = vunpack.c.h.b16 %v3615
      %v3889 = vunpack.c.l.b16 %v3616
      %v3890 = vunpack.c.h.b16 %v3616
      %v3891 = vunpack.c.l.b16 %v3617
      %v3892 = vunpack.c.h.b16 %v3617
      %v3893 = vunpack.c.l.b16 %v3618
      %v3894 = vunpack.c.h.b16 %v3618
      %v3895 = vunpack.c.l.b16 %v3619
      %v3896 = vunpack.c.h.b16 %v3619
      %v3897 = vunpack.c.l.b16 %v3620
      %v3898 = vunpack.c.h.b16 %v3620
      %v3899 = vunpack.c.l.b16 %v3621
      %v3900 = vunpack.c.h.b16 %v3621
      %v3901 = vunpack.c.l.b16 %v3622
      %v3902 = vunpack.c.h.b16 %v3622
      %v3903 = vunpack.c.l.b16 %v3623
      %v3904 = vunpack.c.h.b16 %v3623
      %v3905 = vunpack.c.l.b16 %v3624
      %v3906 = vunpack.c.h.b16 %v3624
      %v3907 = vunpack.c.l.b16 %v3625
      %v3908 = vunpack.c.h.b16 %v3625
      %v3909 = vunpack.c.l.b16 %v3626
      %v3910 = vunpack.c.h.b16 %v3626
      %v3911 = vunpack.c.l.b16 %v3627
      %v3912 = vunpack.c.h.b16 %v3627
      %v3913 = vunpack.c.l.b16 %v3628
      %v3914 = vunpack.c.h.b16 %v3628
      %v3915 = vunpack.c.l.b16 %v3629
      %v3916 = vunpack.c.h.b16 %v3629
      %v3917 = vunpack.c.l.b16 %v3630
      %v3918 = vunpack.c.h.b16 %v3630
      %v3919 = vunpack.c.l.b16 %v3631
      %v3920 = vunpack.c.h.b16 %v3631
      %v3921 = vunpack.c.l.b16 %v3632
      %v3922 = vunpack.c.h.b16 %v3632
      %v3923 = vunpack.c.l.b16 %v3633
      %v3924 = vunpack.c.h.b16 %v3633
      %v3925 = vunpack.c.l.b16 %v3634
      %v3926 = vunpack.c.h.b16 %v3634
      %v3927 = vunpack.c.l.b16 %v3635
      %v3928 = vunpack.c.h.b16 %v3635
      %v3929 = vunpack.c.l.b16 %v3636
      %v3930 = vunpack.c.h.b16 %v3636
      %v3931 = vunpack.c.l.b16 %v3637
      %v3932 = vunpack.c.h.b16 %v3637
      %v3933 = vunpack.c.l.b16 %v3638
      %v3934 = vunpack.c.h.b16 %v3638
      %v3935 = vunpack.c.l.b16 %v3639
      %v3936 = vunpack.c.h.b16 %v3639
      %v3937 = vunpack.c.l.b16 %v3640
      %v3938 = vunpack.c.h.b16 %v3640
      %v3939 = vunpack.c.l.b16 %v3641
      %v3940 = vunpack.c.h.b16 %v3641
      %v3941 = vunpack.c.l.b16 %v3642
      %v3942 = vunpack.c.h.b16 %v3642
      %v3943 = vunpack.c.l.b16 %v3643
      %v3944 = vunpack.c.h.b16 %v3643
      %v3945 = vunpack.c.l.b16 %v3644
      %v3946 = vunpack.c.h.b16 %v3644
      %v3947 = vunpack.c.l.b16 %v3645
      %v3948 = vunpack.c.h.b16 %v3645
      %v3949 = vunpack.c.l.b16 %v3646
      %v3950 = vunpack.c.h.b16 %v3646
      %v3951 = vunpack.c.l.b16 %v3647
      %v3952 = vunpack.c.h.b16 %v3647
      %v3953 = vunpack.c.l.b16 %v3648
      %v3954 = vunpack.c.h.b16 %v3648
      %v3955 = vunpack.c.l.b16 %v3649
      %v3956 = vunpack.c.h.b16 %v3649
      %v3957 = vunpack.c.l.b16 %v3650
      %v3958 = vunpack.c.h.b16 %v3650
      %v3959 = vunpack.c.l.b16 %v3651
      %v3960 = vunpack.c.h.b16 %v3651
      %v3961 = vunpack.c.l.b16 %v3652
      %v3962 = vunpack.c.h.b16 %v3652
      %v3963 = vunpack.c.l.b16 %v3653
      %v3964 = vunpack.c.h.b16 %v3653
      %v3965 = vunpack.c.l.b16 %v3654
      %v3966 = vunpack.c.h.b16 %v3654
      %v3967 = vunpack.c.l.b16 %v3655
      %v3968 = vunpack.c.h.b16 %v3655
      %v3969 = vunpack.c.l.b16 %v3656
      %v3970 = vunpack.c.h.b16 %v3656
      %v3971 = vunpack.c.l.b16 %v3657
      %v3972 = vunpack.c.h.b16 %v3657
      %v3973 = vunpack.c.l.b16 %v3658
      %v3974 = vunpack.c.h.b16 %v3658
      %v3975 = vunpack.c.l.b16 %v3659
      %v3976 = vunpack.c.h.b16 %v3659
      %v3977 = vunpack.c.l.b16 %v3660
      %v3978 = vunpack.c.h.b16 %v3660
      %v3979 = vunpack.c.l.b16 %v3661
      %v3980 = vunpack.c.h.b16 %v3661
      %v3981 = vunpack.c.l.b16 %v3662
      %v3982 = vunpack.c.h.b16 %v3662
      %v3983 = vunpack.c.l.b16 %v3663
      %v3984 = vunpack.c.h.b16 %v3663
      %v3985 = vunpack.c.l.b16 %v3664
      %v3986 = vunpack.c.h.b16 %v3664
      %v3987 = vunpack.c.l.b16 %v3665
      %v3988 = vunpack.c.h.b16 %v3665
      %v3989 = vunpack.c.l.b16 %v3666
      %v3990 = vunpack.c.h.b16 %v3666
      %v3991 = vunpack.c.l.b16 %v3667
      %v3992 = vunpack.c.h.b16 %v3667
      %v3993 = vunpack.c.l.b16 %v3668
      %v3994 = vunpack.c.h.b16 %v3668
      %v3995 = vunpack.c.l.b16 %v3669
      %v3996 = vunpack.c.h.b16 %v3669
      %v3997 = vunpack.c.l.b16 %v3670
      %v3998 = vunpack.c.h.b16 %v3670
      %v3999 = vunpack.c.l.b16 %v3671
      %v4000 = vunpack.c.h.b16 %v3671
      %v4001 = vunpack.c.l.b16 %v3672
      %v4002 = vunpack.c.h.b16 %v3672
      %v4003 = vunpack.c.l.b16 %v3673
      %v4004 = vunpack.c.h.b16 %v3673
      %v4005 = vunpack.c.l.b16 %v3674
      %v4006 = vunpack.c.h.b16 %v3674
      %v4007 = vunpack.c.l.b16 %v3675
      %v4008 = vunpack.c.h.b16 %v3675
      %v4009 = vunpack.c.l.b16 %v3676
      %v4010 = vunpack.c.h.b16 %v3676
      %v4011 = vunpack.c.l.b16 %v3677
      %v4012 = vunpack.c.h.b16 %v3677
      %v4013 = vunpack.c.l.b16 %v3678
      %v4014 = vunpack.c.h.b16 %v3678
      %v4015 = vunpack.c.l.b16 %v3679
      %v4016 = vunpack.c.h.b16 %v3679
      %v4017 = vunpack.c.l.b16 %v3680
      %v4018 = vunpack.c.h.b16 %v3680
      %v4019 = vunpack.c.l.b16 %v3681
      %v4020 = vunpack.c.h.b16 %v3681
      %v4021 = vunpack.c.l.b16 %v3682
      %v4022 = vunpack.c.h.b16 %v3682
      %v4023 = vunpack.c.l.b16 %v3683
      %v4024 = vunpack.c.h.b16 %v3683
      %v4025 = vunpack.c.l.b16 %v3684
      %v4026 = vunpack.c.h.b16 %v3684
      %v4027 = vunpack.c.l.b16 %v3685
      %v4028 = vunpack.c.h.b16 %v3685
      %v4029 = vunpack.c.l.b16 %v3686
      %v4030 = vunpack.c.h.b16 %v3686
      %v4031 = vunpack.c.l.b16 %v3687
      %v4032 = vunpack.c.h.b16 %v3687
      %v4033 = vunpack.c.l.b16 %v3688
      %v4034 = vunpack.c.h.b16 %v3688
      %v4035 = vunpack.c.l.b16 %v3689
      %v4036 = vunpack.c.h.b16 %v3689
      %v4037 = vunpack.c.l.b16 %v3690
      %v4038 = vunpack.c.h.b16 %v3690
      %v4039 = vunpack.c.l.b16 %v3691
      %v4040 = vunpack.c.h.b16 %v3691
      %v4041 = vunpack.c.l.b16 %v3692
      %v4042 = vunpack.c.h.b16 %v3692
      %v4043 = vunpack.c.l.b16 %v3693
      %v4044 = vunpack.c.h.b16 %v3693
      %v4045 = vunpack.c.l.b16 %v3694
      %v4046 = vunpack.c.h.b16 %v3694
      %v4047 = vunpack.c.l.b16 %v3695
      %v4048 = vunpack.c.h.b16 %v3695
      %v4049 = vunpack.c.l.b16 %v3696
      %v4050 = vunpack.c.h.b16 %v3696
      %v4051 = vunpack.c.l.b16 %v3697
      %v4052 = vunpack.c.h.b16 %v3697
      %v4053 = vunpack.c.l.b16 %v3698
      %v4054 = vunpack.c.h.b16 %v3698
      %v4055 = vunpack.c.l.b16 %v3699
      %v4056 = vunpack.c.h.b16 %v3699
      %v4057 = vunpack.c.l.b16 %v3700
      %v4058 = vunpack.c.h.b16 %v3700
      %v4059 = vunpack.c.l.b16 %v3701
      %v4060 = vunpack.c.h.b16 %v3701
      %v4061 = vunpack.c.l.b16 %v3702
      %v4062 = vunpack.c.h.b16 %v3702
      %v4063 = vunpack.c.l.b16 %v3703
      %v4064 = vunpack.c.h.b16 %v3703
      %v4065 = vunpack.c.l.b16 %v3704
      %v4066 = vunpack.c.h.b16 %v3704
      %v4067 = vunpack.c.l.b16 %v3705
      %v4068 = vunpack.c.h.b16 %v3705
      %v4069 = vunpack.c.l.b16 %v3706
      %v4070 = vunpack.c.h.b16 %v3706
      %v4071 = vunpack.c.l.b16 %v3707
      %v4072 = vunpack.c.h.b16 %v3707
      %v4073 = vunpack.c.l.b16 %v3708
      %v4074 = vunpack.c.h.b16 %v3708
      %v4075 = vunpack.c.l.b16 %v3709
      %v4076 = vunpack.c.h.b16 %v3709
      %v4077 = vunpack.c.l.b16 %v3710
      %v4078 = vunpack.c.h.b16 %v3710
      %v4079 = vunpack.c.l.b16 %v3711
      %v4080 = vunpack.c.h.b16 %v3711
      %v4081 = vunpack.c.l.b16 %v3712
      %v4082 = vunpack.c.h.b16 %v3712
      %v4083 = vunpack.c.l.b16 %v3713
      %v4084 = vunpack.c.h.b16 %v3713
      %v4085 = vunpack.c.l.b16 %v3714
      %v4086 = vunpack.c.h.b16 %v3714
      %v4087 = vunpack.c.l.b16 %v3715
      %v4088 = vunpack.c.h.b16 %v3715
      %v4089 = vunpack.c.l.b16 %v3716
      %v4090 = vunpack.c.h.b16 %v3716
      %v4091 = vunpack.c.l.b16 %v3717
      %v4092 = vunpack.c.h.b16 %v3717
      %v4093 = vunpack.c.l.b16 %v3718
      %v4094 = vunpack.c.h.b16 %v3718
      %v4095 = vunpack.c.l.b16 %v3719
      %v4096 = vunpack.c.h.b16 %v3719
      %v4097 = vunpack.c.l.b16 %v3720
      %v4098 = vunpack.c.h.b16 %v3720
      %v4099 = vunpack.c.l.b16 %v3721
      %v4100 = vunpack.c.h.b16 %v3721
      %v4101 = vunpack.c.l.b16 %v3722
      %v4102 = vunpack.c.h.b16 %v3722
      %v4103 = vunpack.c.l.b16 %v3723
      %v4104 = vunpack.c.h.b16 %v3723
      %v4105 = vunpack.c.l.b16 %v3724
      %v4106 = vunpack.c.h.b16 %v3724
      %v4107 = vunpack.c.l.b16 %v3725
      %v4108 = vunpack.c.h.b16 %v3725
      %v4109 = vunpack.c.l.b16 %v3726
      %v4110 = vunpack.c.h.b16 %v3726
      %v4111 = vpack.c.b16 %v3859, %v3855
      %v4112 = vpack.c.b16 %v3860, %v3856
      %v4113 = vpack.c.b16 %v3861, %v3857
      %v4114 = vpack.c.b16 %v3862, %v3858
      %v4115 = vpack.c.b16 %v3867, %v3863
      %v4116 = vpack.c.b16 %v3868, %v3864
      %v4117 = vpack.c.b16 %v3869, %v3865
      %v4118 = vpack.c.b16 %v3870, %v3866
      %v4119 = vpack.c.b16 %v3875, %v3871
      %v4120 = vpack.c.b16 %v3876, %v3872
      %v4121 = vpack.c.b16 %v3877, %v3873
      %v4122 = vpack.c.b16 %v3878, %v3874
      %v4123 = vpack.c.b16 %v3883, %v3879
      %v4124 = vpack.c.b16 %v3884, %v3880
      %v4125 = vpack.c.b16 %v3885, %v3881
      %v4126 = vpack.c.b16 %v3886, %v3882
      %v4127 = vpack.c.b16 %v3891, %v3887
      %v4128 = vpack.c.b16 %v3892, %v3888
      %v4129 = vpack.c.b16 %v3893, %v3889
      %v4130 = vpack.c.b16 %v3894, %v3890
      %v4131 = vpack.c.b16 %v3899, %v3895
      %v4132 = vpack.c.b16 %v3900, %v3896
      %v4133 = vpack.c.b16 %v3901, %v3897
      %v4134 = vpack.c.b16 %v3902, %v3898
      %v4135 = vpack.c.b16 %v3907, %v3903
      %v4136 = vpack.c.b16 %v3908, %v3904
      %v4137 = vpack.c.b16 %v3909, %v3905
      %v4138 = vpack.c.b16 %v3910, %v3906
      %v4139 = vpack.c.b16 %v3915, %v3911
      %v4140 = vpack.c.b16 %v3916, %v3912
      %v4141 = vpack.c.b16 %v3917, %v3913
      %v4142 = vpack.c.b16 %v3918, %v3914
      %v4143 = vpack.c.b16 %v3923, %v3919
      %v4144 = vpack.c.b16 %v3924, %v3920
      %v4145 = vpack.c.b16 %v3925, %v3921
      %v4146 = vpack.c.b16 %v3926, %v3922
      %v4147 = vpack.c.b16 %v3931, %v3927
      %v4148 = vpack.c.b16 %v3932, %v3928
      %v4149 = vpack.c.b16 %v3933, %v3929
      %v4150 = vpack.c.b16 %v3934, %v3930
      %v4151 = vpack.c.b16 %v3939, %v3935
      %v4152 = vpack.c.b16 %v3940, %v3936
      %v4153 = vpack.c.b16 %v3941, %v3937
      %v4154 = vpack.c.b16 %v3942, %v3938
      %v4155 = vpack.c.b16 %v3947, %v3943
      %v4156 = vpack.c.b16 %v3948, %v3944
      %v4157 = vpack.c.b16 %v3949, %v3945
      %v4158 = vpack.c.b16 %v3950, %v3946
      %v4159 = vpack.c.b16 %v3955, %v3951
      %v4160 = vpack.c.b16 %v3956, %v3952
      %v4161 = vpack.c.b16 %v3957, %v3953
      %v4162 = vpack.c.b16 %v3958, %v3954
      %v4163 = vpack.c.b16 %v3963, %v3959
      %v4164 = vpack.c.b16 %v3964, %v3960
      %v4165 = vpack.c.b16 %v3965, %v3961
      %v4166 = vpack.c.b16 %v3966, %v3962
      %v4167 = vpack.c.b16 %v3971, %v3967
      %v4168 = vpack.c.b16 %v3972, %v3968
      %v4169 = vpack.c.b16 %v3973, %v3969
      %v4170 = vpack.c.b16 %v3974, %v3970
      %v4171 = vpack.c.b16 %v3979, %v3975
      %v4172 = vpack.c.b16 %v3980, %v3976
      %v4173 = vpack.c.b16 %v3981, %v3977
      %v4174 = vpack.c.b16 %v3982, %v3978
      %v4175 = vpack.c.b16 %v3987, %v3983
      %v4176 = vpack.c.b16 %v3988, %v3984
      %v4177 = vpack.c.b16 %v3989, %v3985
      %v4178 = vpack.c.b16 %v3990, %v3986
      %v4179 = vpack.c.b16 %v3995, %v3991
      %v4180 = vpack.c.b16 %v3996, %v3992
      %v4181 = vpack.c.b16 %v3997, %v3993
      %v4182 = vpack.c.b16 %v3998, %v3994
      %v4183 = vpack.c.b16 %v4003, %v3999
      %v4184 = vpack.c.b16 %v4004, %v4000
      %v4185 = vpack.c.b16 %v4005, %v4001
      %v4186 = vpack.c.b16 %v4006, %v4002
      %v4187 = vpack.c.b16 %v4011, %v4007
      %v4188 = vpack.c.b16 %v4012, %v4008
      %v4189 = vpack.c.b16 %v4013, %v4009
      %v4190 = vpack.c.b16 %v4014, %v4010
      %v4191 = vpack.c.b16 %v4019, %v4015
      %v4192 = vpack.c.b16 %v4020, %v4016
      %v4193 = vpack.c.b16 %v4021, %v4017
      %v4194 = vpack.c.b16 %v4022, %v4018
      %v4195 = vpack.c.b16 %v4027, %v4023
      %v4196 = vpack.c.b16 %v4028, %v4024
      %v4197 = vpack.c.b16 %v4029, %v4025
      %v4198 = vpack.c.b16 %v4030, %v4026
      %v4199 = vpack.c.b16 %v4035, %v4031
      %v4200 = vpack.c.b16 %v4036, %v4032
      %v4201 = vpack.c.b16 %v4037, %v4033
      %v4202 = vpack.c.b16 %v4038, %v4034
      %v4203 = vpack.c.b16 %v4043, %v4039
      %v4204 = vpack.c.b16 %v4044, %v4040
      %v4205 = vpack.c.b16 %v4045, %v4041
      %v4206 = vpack.c.b16 %v4046, %v4042
      %v4207 = vpack.c.b16 %v4051, %v4047
      %v4208 = vpack.c.b16 %v4052, %v4048
      %v4209 = vpack.c.b16 %v4053, %v4049
      %v4210 = vpack.c.b16 %v4054, %v4050
      %v4211 = vpack.c.b16 %v4059, %v4055
      %v4212 = vpack.c.b16 %v4060, %v4056
      %v4213 = vpack.c.b16 %v4061, %v4057
      %v4214 = vpack.c.b16 %v4062, %v4058
      %v4215 = vpack.c.b16 %v4067, %v4063
      %v4216 = vpack.c.b16 %v4068, %v4064
      %v4217 = vpack.c.b16 %v4069, %v4065
      %v4218 = vpack.c.b16 %v4070, %v4066
      %v4219 = vpack.c.b16 %v4075, %v4071
      %v4220 = vpack.c.b16 %v4076, %v4072
      %v4221 = vpack.c.b16 %v4077, %v4073
      %v4222 = vpack.c.b16 %v4078, %v4074
      %v4223 = vpack.c.b16 %v4083, %v4079
      %v4224 = vpack.c.b16 %v4084, %v4080
      %v4225 = vpack.c.b16 %v4085, %v4081
      %v4226 = vpack.c.b16 %v4086, %v4082
      %v4227 = vpack.c.b16 %v4091, %v4087
      %v4228 = vpack.c.b16 %v4092, %v4088
      %v4229 = vpack.c.b16 %v4093, %v4089
      %v4230 = vpack.c.b16 %v4094, %v4090
      %v4231 = vpack.c.b16 %v4099, %v4095
      %v4232 = vpack.c.b16 %v4100, %v4096
      %v4233 = vpack.c.b16 %v4101, %v4097
      %v4234 = vpack.c.b16 %v4102, %v4098
      %v4235 = vpack.c.b16 %v4107, %v4103
      %v4236 = vpack.c.b16 %v4108, %v4104
      %v4237 = vpack.c.b16 %v4109, %v4105
      %v4238 = vpack.c.b16 %v4110, %v4106
      %4367 = vmatprep.subr.bf16.mxu0 %v4112
      %4368 = vmatpush1.bf16.msra.mxu0 %v4111
      %4369 = vmatprep.subr.bf16.mxu0 %v4116
      %4370 = vmatpush1.bf16.msra.mxu0 %v4115
      %4371 = vmatprep.subr.bf16.mxu0 %v4120
      %4372 = vmatpush1.bf16.msra.mxu0 %v4119
      %4373 = vmatprep.subr.bf16.mxu0 %v4124
      %4374 = vmatpush1.bf16.msra.mxu0 %v4123
      %4375 = vmatprep.subr.bf16.mxu0 %v4128
      %4376 = vmatpush1.bf16.msra.mxu0 %v4127
      %4377 = vmatprep.subr.bf16.mxu0 %v4132
      %4378 = vmatpush1.bf16.msra.mxu0 %v4131
      %4379 = vmatprep.subr.bf16.mxu0 %v4136
      %4380 = vmatpush1.bf16.msra.mxu0 %v4135
      %4381 = vmatprep.subr.bf16.mxu0 %v4140
      %4382 = vmatpush1.bf16.msra.mxu0 %v4139
      %4383 = vmatprep.subr.bf16.mxu0 %v4144
      %4384 = vmatpush1.bf16.msra.mxu0 %v4143
      %4385 = vmatprep.subr.bf16.mxu0 %v4148
      %4386 = vmatpush1.bf16.msra.mxu0 %v4147
      %4387 = vmatprep.subr.bf16.mxu0 %v4152
      %4388 = vmatpush1.bf16.msra.mxu0 %v4151
      %4389 = vmatprep.subr.bf16.mxu0 %v4156
      %4390 = vmatpush1.bf16.msra.mxu0 %v4155
      %4391 = vmatprep.subr.bf16.mxu0 %v4160
      %4392 = vmatpush1.bf16.msra.mxu0 %v4159
      %4393 = vmatprep.subr.bf16.mxu0 %v4164
      %4394 = vmatpush1.bf16.msra.mxu0 %v4163
      %4395 = vmatprep.subr.bf16.mxu0 %v4168
      %4396 = vmatpush1.bf16.msra.mxu0 %v4167
      %4397 = vmatprep.subr.bf16.mxu0 %v4172
      %4398 = vmatpush1.bf16.msra.mxu0 %v4171
      %4399 = vmatprep.mubr.bf16.mxu0 %v3591
      %4400 = vmatmul.mubr.bf16.gmra.mrb[0].mxu0 %v3590
      %v4401 = vpop.f32.mrb[0].mxu0
      %v4402 = vadd.f32 0.0, %v4401
      %v4403 = vpop.f32.mrb[0].mxu0
      %v4404 = vadd.f32 0.0, %v4403
      %v4405 = vpop.f32.mrb[0].mxu0
      %v4406 = vadd.f32 0.0, %v4405
      %v4407 = vpop.f32.mrb[0].mxu0
      %v4408 = vadd.f32 0.0, %v4407
      %4409 = vmatprep.mubr.bf16.mxu0 %v3595
      %4410 = vmatmul.mubr.bf16.gmra.mrb[0].mxu0 %v3594
      %v4411 = vpop.f32.mrb[0].mxu0
      %v4412 = vadd.f32 0.0, %v4411
      %v4413 = vpop.f32.mrb[0].mxu0
      %v4414 = vadd.f32 0.0, %v4413
      %v4415 = vpop.f32.mrb[0].mxu0
      %v4416 = vadd.f32 0.0, %v4415
      %v4417 = vpop.f32.mrb[0].mxu0
      %v4418 = vadd.f32 0.0, %v4417
      %4419 = vdwg.mxu0
      %4420 = vmatprep.subr.bf16.mxu0 %v4176
      %4421 = vmatpush1.bf16.msra.mxu0 %v4175
      %4422 = vmatprep.subr.bf16.mxu0 %v4180
      %4423 = vmatpush1.bf16.msra.mxu0 %v4179
      %4424 = vmatprep.subr.bf16.mxu0 %v4184
      %4425 = vmatpush1.bf16.msra.mxu0 %v4183
      %4426 = vmatprep.subr.bf16.mxu0 %v4188
      %4427 = vmatpush1.bf16.msra.mxu0 %v4187
      %4428 = vmatprep.subr.bf16.mxu0 %v4192
      %4429 = vmatpush1.bf16.msra.mxu0 %v4191
      %4430 = vmatprep.subr.bf16.mxu0 %v4196
      %4431 = vmatpush1.bf16.msra.mxu0 %v4195
      %4432 = vmatprep.subr.bf16.mxu0 %v4200
      %4433 = vmatpush1.bf16.msra.mxu0 %v4199
      %4434 = vmatprep.subr.bf16.mxu0 %v4204
      %4435 = vmatpush1.bf16.msra.mxu0 %v4203
      %4436 = vmatprep.subr.bf16.mxu0 %v4208
      %4437 = vmatpush1.bf16.msra.mxu0 %v4207
      %4438 = vmatprep.subr.bf16.mxu0 %v4212
      %4439 = vmatpush1.bf16.msra.mxu0 %v4211
      %4440 = vmatprep.subr.bf16.mxu0 %v4216
      %4441 = vmatpush1.bf16.msra.mxu0 %v4215
      %4442 = vmatprep.subr.bf16.mxu0 %v4220
      %4443 = vmatpush1.bf16.msra.mxu0 %v4219
      %4444 = vmatprep.subr.bf16.mxu0 %v4224
      %4445 = vmatpush1.bf16.msra.mxu0 %v4223
      %4446 = vmatprep.subr.bf16.mxu0 %v4228
      %4447 = vmatpush1.bf16.msra.mxu0 %v4227
      %4448 = vmatprep.subr.bf16.mxu0 %v4232
      %4449 = vmatpush1.bf16.msra.mxu0 %v4231
      %4450 = vmatprep.subr.bf16.mxu0 %v4236
      %4451 = vmatpush1.bf16.msra.mxu0 %v4235
      %4452 = vmatprep.mubr.bf16.mxu0 %v3593
      %4453 = vmatmul.mubr.bf16.gmra.mrb[0].mxu0 %v3592
      %v4454 = vpop.f32.mrb[0].mxu0
      %v4455 = vadd.f32 %v4402, %v4454
      %v4456 = vpop.f32.mrb[0].mxu0
      %v4457 = vadd.f32 %v4404, %v4456
      %v4458 = vpop.f32.mrb[0].mxu0
      %v4459 = vadd.f32 %v4406, %v4458
      %v4460 = vpop.f32.mrb[0].mxu0
      %v4461 = vadd.f32 %v4408, %v4460
      %4462 = vmatprep.mubr.bf16.mxu0 %v3597
      %4463 = vmatmul.mubr.bf16.gmra.mrb[0].mxu0 %v3596
      %v4464 = vpop.f32.mrb[0].mxu0
      %v4465 = vadd.f32 %v4412, %v4464
      %v4466 = vpop.f32.mrb[0].mxu0
      %v4467 = vadd.f32 %v4414, %v4466
      %v4468 = vpop.f32.mrb[0].mxu0
      %v4469 = vadd.f32 %v4416, %v4468
      %v4470 = vpop.f32.mrb[0].mxu0
      %v4471 = vadd.f32 %v4418, %v4470
      %4472 = vdwg.mxu0
      %4473 = vmatprep.subr.bf16.mxu0 %v4114
      %4474 = vmatpush1.bf16.msra.mxu0 %v4113
      %4475 = vmatprep.subr.bf16.mxu0 %v4118
      %4476 = vmatpush1.bf16.msra.mxu0 %v4117
      %4477 = vmatprep.subr.bf16.mxu0 %v4122
      %4478 = vmatpush1.bf16.msra.mxu0 %v4121
      %4479 = vmatprep.subr.bf16.mxu0 %v4126
      %4480 = vmatpush1.bf16.msra.mxu0 %v4125
      %4481 = vmatprep.subr.bf16.mxu0 %v4130
      %4482 = vmatpush1.bf16.msra.mxu0 %v4129
      %4483 = vmatprep.subr.bf16.mxu0 %v4134
      %4484 = vmatpush1.bf16.msra.mxu0 %v4133
      %4485 = vmatprep.subr.bf16.mxu0 %v4138
      %4486 = vmatpush1.bf16.msra.mxu0 %v4137
      %4487 = vmatprep.subr.bf16.mxu0 %v4142
      %4488 = vmatpush1.bf16.msra.mxu0 %v4141
      %4489 = vmatprep.subr.bf16.mxu0 %v4146
      %4490 = vmatpush1.bf16.msra.mxu0 %v4145
      %4491 = vmatprep.subr.bf16.mxu0 %v4150
      %4492 = vmatpush1.bf16.msra.mxu0 %v4149
      %4493 = vmatprep.subr.bf16.mxu0 %v4154
      %4494 = vmatpush1.bf16.msra.mxu0 %v4153
      %4495 = vmatprep.subr.bf16.mxu0 %v4158
      %4496 = vmatpush1.bf16.msra.mxu0 %v4157
      %4497 = vmatprep.subr.bf16.mxu0 %v4162
      %4498 = vmatpush1.bf16.msra.mxu0 %v4161
      %4499 = vmatprep.subr.bf16.mxu0 %v4166
      %4500 = vmatpush1.bf16.msra.mxu0 %v4165
      %4501 = vmatprep.subr.bf16.mxu0 %v4170
      %4502 = vmatpush1.bf16.msra.mxu0 %v4169
      %4503 = vmatprep.subr.bf16.mxu0 %v4174
      %4504 = vmatpush1.bf16.msra.mxu0 %v4173
      %4505 = vmatprep.mubr.bf16.mxu0 %v3591
      %4506 = vmatmul.mubr.bf16.gmra.mrb[0].mxu0 %v3590
      %v4507 = vpop.f32.mrb[0].mxu0
      %v4508 = vadd.f32 0.0, %v4507
      %v4509 = vpop.f32.mrb[0].mxu0
      %v4510 = vadd.f32 0.0, %v4509
      %v4511 = vpop.f32.mrb[0].mxu0
      %v4512 = vadd.f32 0.0, %v4511
      %v4513 = vpop.f32.mrb[0].mxu0
      %v4514 = vadd.f32 0.0, %v4513
      %4515 = vmatprep.mubr.bf16.mxu0 %v3595
      %4516 = vmatmul.mubr.bf16.gmra.mrb[0].mxu0 %v3594
      %v4517 = vpop.f32.mrb[0].mxu0
      %v4518 = vadd.f32 0.0, %v4517
      %v4519 = vpop.f32.mrb[0].mxu0
      %v4520 = vadd.f32 0.0, %v4519
      %v4521 = vpop.f32.mrb[0].mxu0
      %v4522 = vadd.f32 0.0, %v4521
      %v4523 = vpop.f32.mrb[0].mxu0
      %v4524 = vadd.f32 0.0, %v4523
      %4525 = vdwg.mxu0
      %4526 = vmatprep.subr.bf16.mxu0 %v4178
      %4527 = vmatpush1.bf16.msra.mxu0 %v4177
      %4528 = vmatprep.subr.bf16.mxu0 %v4182
      %4529 = vmatpush1.bf16.msra.mxu0 %v4181
      %4530 = vmatprep.subr.bf16.mxu0 %v4186
      %4531 = vmatpush1.bf16.msra.mxu0 %v4185
      %4532 = vmatprep.subr.bf16.mxu0 %v4190
      %4533 = vmatpush1.bf16.msra.mxu0 %v4189
      %4534 = vmatprep.subr.bf16.mxu0 %v4194
      %4535 = vmatpush1.bf16.msra.mxu0 %v4193
      %4536 = vmatprep.subr.bf16.mxu0 %v4198
      %4537 = vmatpush1.bf16.msra.mxu0 %v4197
      %4538 = vmatprep.subr.bf16.mxu0 %v4202
      %4539 = vmatpush1.bf16.msra.mxu0 %v4201
      %4540 = vmatprep.subr.bf16.mxu0 %v4206
      %4541 = vmatpush1.bf16.msra.mxu0 %v4205
      %4542 = vmatprep.subr.bf16.mxu0 %v4210
      %4543 = vmatpush1.bf16.msra.mxu0 %v4209
      %4544 = vmatprep.subr.bf16.mxu0 %v4214
      %4545 = vmatpush1.bf16.msra.mxu0 %v4213
      %4546 = vmatprep.subr.bf16.mxu0 %v4218
      %4547 = vmatpush1.bf16.msra.mxu0 %v4217
      %4548 = vmatprep.subr.bf16.mxu0 %v4222
      %4549 = vmatpush1.bf16.msra.mxu0 %v4221
      %4550 = vmatprep.subr.bf16.mxu0 %v4226
      %4551 = vmatpush1.bf16.msra.mxu0 %v4225
      %4552 = vmatprep.subr.bf16.mxu0 %v4230
      %4553 = vmatpush1.bf16.msra.mxu0 %v4229
      %4554 = vmatprep.subr.bf16.mxu0 %v4234
      %4555 = vmatpush1.bf16.msra.mxu0 %v4233
      %4556 = vmatprep.subr.bf16.mxu0 %v4238
      %4557 = vmatpush1.bf16.msra.mxu0 %v4237
      %4558 = vmatprep.mubr.bf16.mxu0 %v3593
      %4559 = vmatmul.mubr.bf16.gmra.mrb[0].mxu0 %v3592
      %v4560 = vpop.f32.mrb[0].mxu0
      %v4561 = vadd.f32 %v4508, %v4560
      %v4562 = vpop.f32.mrb[0].mxu0
      %v4563 = vadd.f32 %v4510, %v4562
      %v4564 = vpop.f32.mrb[0].mxu0
      %v4565 = vadd.f32 %v4512, %v4564
      %v4566 = vpop.f32.mrb[0].mxu0
      %v4567 = vadd.f32 %v4514, %v4566
      %4568 = vmatprep.mubr.bf16.mxu0 %v3597
      %4569 = vmatmul.mubr.bf16.gmra.mrb[0].mxu0 %v3596
      %v4570 = vpop.f32.mrb[0].mxu0
      %v4571 = vadd.f32 %v4518, %v4570
      %v4572 = vpop.f32.mrb[0].mxu0
      %v4573 = vadd.f32 %v4520, %v4572
      %v4574 = vpop.f32.mrb[0].mxu0
      %v4575 = vadd.f32 %v4522, %v4574
      %v4576 = vpop.f32.mrb[0].mxu0
      %v4577 = vadd.f32 %v4524, %v4576
      %4578 = vdwg.mxu0
      %v4579 = vadd.f32 %v3377, %v4455
      %v4580 = vadd.f32 %v3379, %v4457
      %v4581 = vadd.f32 %v3483, %v4561
      %v4582 = vadd.f32 %v3485, %v4563
      %v4583 = vadd.f32 %v3381, %v4459
      %v4584 = vadd.f32 %v3383, %v4461
      %v4585 = vadd.f32 %v3487, %v4565
      %v4586 = vadd.f32 %v3489, %v4567
      %v4587 = vadd.f32 %v3387, %v4465
      %v4588 = vadd.f32 %v3389, %v4467
      %v4589 = vadd.f32 %v3493, %v4571
      %v4590 = vadd.f32 %v3495, %v4573
      %v4591 = vadd.f32 %v3391, %v4469
      %v4592 = vadd.f32 %v3393, %v4471
      %v4593 = vadd.f32 %v3497, %v4575
      %v4594 = vadd.f32 %v3499, %v4577
      %s4595 = scalar_lea.vmem [#allocation15], 5
      %v4596 = vld [vmem:[%s4595] ss:$8 sm:$0xf]
      %s4597 = scalar_lea.vmem [#allocation15], 6
      %v4598 = vld [vmem:[%s4597] ss:$8 sm:$0xf]
      %v4599 = vadd.f32 %v4579, %v4583
      %v4600 = vadd.f32 %v4599, %v4587
      %v4601 = vadd.f32 %v4600, %v4591
      %v4602 = vrot.slane %v4601, 4
      %v4603 = vadd.f32 %v4601, %v4602
      %v4604 = vrot.slane %v4603, 2
      %v4605 = vadd.f32 %v4603, %v4604
      %v4606 = vrot.slane %v4605, 1
      %v4607 = vadd.f32 %v4605, %v4606
      %v4608 = vadd.f32 %v4580, %v4584
      %v4609 = vadd.f32 %v4608, %v4588
      %v4610 = vadd.f32 %v4609, %v4592
      %v4611 = vrot.slane %v4610, 4
      %v4612 = vadd.f32 %v4610, %v4611
      %v4613 = vrot.slane %v4612, 2
      %v4614 = vadd.f32 %v4612, %v4613
      %v4615 = vrot.slane %v4614, 1
      %v4616 = vadd.f32 %v4614, %v4615
      %v4617 = vadd.f32 %v4581, %v4585
      %v4618 = vadd.f32 %v4617, %v4589
      %v4619 = vadd.f32 %v4618, %v4593
      %v4620 = vrot.slane %v4619, 4
      %v4621 = vadd.f32 %v4619, %v4620
      %v4622 = vrot.slane %v4621, 2
      %v4623 = vadd.f32 %v4621, %v4622
      %v4624 = vrot.slane %v4623, 1
      %v4625 = vadd.f32 %v4623, %v4624
      %v4626 = vadd.f32 %v4582, %v4586
      %v4627 = vadd.f32 %v4626, %v4590
      %v4628 = vadd.f32 %v4627, %v4594
      %v4629 = vrot.slane %v4628, 4
      %v4630 = vadd.f32 %v4628, %v4629
      %v4631 = vrot.slane %v4630, 2
      %v4632 = vadd.f32 %v4630, %v4631
      %v4633 = vrot.slane %v4632, 1
      %v4634 = vadd.f32 %v4632, %v4633
      %v4635 = vmul.f32 %v4579, %v4579
      %v4636 = vmul.f32 %v4580, %v4580
      %v4637 = vmul.f32 %v4581, %v4581
      %v4638 = vmul.f32 %v4582, %v4582
      %v4639 = vmul.f32 %v4583, %v4583
      %v4640 = vmul.f32 %v4584, %v4584
      %v4641 = vmul.f32 %v4585, %v4585
      %v4642 = vmul.f32 %v4586, %v4586
      %v4643 = vmul.f32 %v4587, %v4587
      %v4644 = vmul.f32 %v4588, %v4588
      %v4645 = vmul.f32 %v4589, %v4589
      %v4646 = vmul.f32 %v4590, %v4590
      %v4647 = vmul.f32 %v4591, %v4591
      %v4648 = vmul.f32 %v4592, %v4592
      %v4649 = vmul.f32 %v4593, %v4593
      %v4650 = vmul.f32 %v4594, %v4594
      %v4651 = vadd.f32 %v4635, %v4639
      %v4652 = vadd.f32 %v4651, %v4643
      %v4653 = vadd.f32 %v4652, %v4647
      %v4654 = vrot.slane %v4653, 4
      %v4655 = vadd.f32 %v4653, %v4654
      %v4656 = vrot.slane %v4655, 2
      %v4657 = vadd.f32 %v4655, %v4656
      %v4658 = vrot.slane %v4657, 1
      %v4659 = vadd.f32 %v4657, %v4658
      %v4660 = vadd.f32 %v4636, %v4640
      %v4661 = vadd.f32 %v4660, %v4644
      %v4662 = vadd.f32 %v4661, %v4648
      %v4663 = vrot.slane %v4662, 4
      %v4664 = vadd.f32 %v4662, %v4663
      %v4665 = vrot.slane %v4664, 2
      %v4666 = vadd.f32 %v4664, %v4665
      %v4667 = vrot.slane %v4666, 1
      %v4668 = vadd.f32 %v4666, %v4667
      %v4669 = vadd.f32 %v4637, %v4641
      %v4670 = vadd.f32 %v4669, %v4645
      %v4671 = vadd.f32 %v4670, %v4649
      %v4672 = vrot.slane %v4671, 4
      %v4673 = vadd.f32 %v4671, %v4672
      %v4674 = vrot.slane %v4673, 2
      %v4675 = vadd.f32 %v4673, %v4674
      %v4676 = vrot.slane %v4675, 1
      %v4677 = vadd.f32 %v4675, %v4676
      %v4678 = vadd.f32 %v4638, %v4642
      %v4679 = vadd.f32 %v4678, %v4646
      %v4680 = vadd.f32 %v4679, %v4650
      %v4681 = vrot.slane %v4680, 4
      %v4682 = vadd.f32 %v4680, %v4681
      %v4683 = vrot.slane %v4682, 2
      %v4684 = vadd.f32 %v4682, %v4683
      %v4685 = vrot.slane %v4684, 1
      %v4686 = vadd.f32 %v4684, %v4685
      %v4687 = vsel %vm1338, %v4607, %v4659
      %v4688 = vsel %vm1338, %v4616, %v4668
      %v4689 = vsel %vm1338, %v4625, %v4677
      %v4690 = vsel %vm1338, %v4634, %v4686
      %4691 = vrot.lane.b32.xlu0 %v4687, 32
      %v4692 = vpop.permute.xlu0 %4691
      %4693 = vrot.lane.b32.xlu0 %v4688, 32
      %v4694 = vpop.permute.xlu0 %4693
      %4695 = vrot.lane.b32.xlu0 %v4689, 32
      %v4696 = vpop.permute.xlu0 %4695
      %4697 = vrot.lane.b32.xlu0 %v4690, 32
      %v4698 = vpop.permute.xlu0 %4697
      %v4699 = vlaneseq
      %v4700 = vand.u32 %v4699, 127
      %vm4701 = vcmp.lt.s32.totalorder %v4700, 32
      %v4702 = vsel %vm4701, %v4696, %v4698
      %v4703 = vsel %vm4701, %v4694, %v4696
      %v4704 = vsel %vm4701, %v4692, %v4694
      %v4705 = vsel %vm4701, %v4698, %v4692
      %v4706 = vadd.f32 %v4687, %v4705
      %v4707 = vadd.f32 %v4688, %v4704
      %v4708 = vadd.f32 %v4689, %v4703
      %v4709 = vadd.f32 %v4690, %v4702
      %4710 = vrot.lane.b32.xlu0 %v4706, 64
      %v4711 = vpop.permute.xlu0 %4710
      %4712 = vrot.lane.b32.xlu0 %v4707, 64
      %v4713 = vpop.permute.xlu0 %4712
      %4714 = vrot.lane.b32.xlu0 %v4708, 64
      %v4715 = vpop.permute.xlu0 %4714
      %4716 = vrot.lane.b32.xlu0 %v4709, 64
      %v4717 = vpop.permute.xlu0 %4716
      %vm4718 = vcmp.lt.s32.totalorder %v4700, 64
      %v4719 = vsel %vm4718, %v4715, %v4717
      %v4720 = vsel %vm4718, %v4713, %v4715
      %v4721 = vsel %vm4718, %v4711, %v4713
      %v4722 = vsel %vm4718, %v4717, %v4711
      %v4723 = vadd.f32 %v4706, %v4722
      %v4724 = vadd.f32 %v4707, %v4721
      %v4725 = vadd.f32 %v4708, %v4720
      %v4726 = vadd.f32 %v4709, %v4719
      %v4727 = vadd.f32 %v4723, %v4726
      %v4728 = vadd.f32 %v4724, %v4723
      %v4729 = vadd.f32 %v4725, %v4724
      %v4730 = vadd.f32 %v4726, %v4725
      %v4731 = vadd.f32 %v4727, %v4729
      %v4732 = vadd.f32 %v4728, %v4730
      %v4733 = vmul.f32 %v4731, 0.001953125
      %v4734 = vmul.f32 %v4732, 0.001953125
      %v4735 = vmul.f32 %v4733, %v4733
      %v4736 = vmul.f32 %v4734, %v4734
      %v4739 = vrot.slane %v4735, 7
      %v4740 = vrot.slane %v4736, 7
      %v4743 = vsub.f32 %v4733, %v4739
      %v4744 = vsub.f32 %v4734, %v4740
      %v4745 = vmax.f32 %v4743, 0.0
      %v4746 = vmax.f32 %v4744, 0.0
      %v4747 = vlaneseq
      %v4748 = vshrl.u32 %v4747, 7
      %v4749 = vsub.s32 0, %v4748
      %v4750 = vrot.slane %v4733, %v4749
      %v4751 = vlaneseq
      %v4752 = vshrl.u32 %v4751, 7
      %v4753 = vsub.s32 0, %v4752
      %v4754 = vrot.slane %v4734, %v4753
      %v4755 = vsub.f32 %v4579, %v4750
      %v4756 = vsub.f32 %v4580, %v4754
      %v4757 = vsub.f32 %v4581, %v4750
      %v4758 = vsub.f32 %v4582, %v4754
      %v4759 = vsub.f32 %v4583, %v4750
      %v4760 = vsub.f32 %v4584, %v4754
      %v4761 = vsub.f32 %v4585, %v4750
      %v4762 = vsub.f32 %v4586, %v4754
      %v4763 = vsub.f32 %v4587, %v4750
      %v4764 = vsub.f32 %v4588, %v4754
      %v4765 = vsub.f32 %v4589, %v4750
      %v4766 = vsub.f32 %v4590, %v4754
      %v4767 = vsub.f32 %v4591, %v4750
      %v4768 = vsub.f32 %v4592, %v4754
      %v4769 = vsub.f32 %v4593, %v4750
      %v4770 = vsub.f32 %v4594, %v4754
      %v4772 = vlaneseq
      %v4773 = vshrl.u32 %v4772, 7
      %v4774 = vsub.s32 0, %v4773
      %v4775 = vrot.slane %v4596, %v4774
      %v4776 = vlaneseq
      %v4777 = vshrl.u32 %v4776, 7
      %v4778 = vsub.s32 1, %v4777
      %v4779 = vrot.slane %v4596, %v4778
      %v4780 = vlaneseq
      %v4781 = vshrl.u32 %v4780, 7
      %v4782 = vsub.s32 2, %v4781
      %v4783 = vrot.slane %v4596, %v4782
      %v4784 = vlaneseq
      %v4785 = vshrl.u32 %v4784, 7
      %v4786 = vsub.s32 3, %v4785
      %v4787 = vrot.slane %v4596, %v4786
      %v4792 = vmul.f32 %v4775, %v4755
      %v4793 = vmul.f32 %v4779, %v4756
      %v4794 = vmul.f32 %v4783, %v4757
      %v4795 = vmul.f32 %v4787, %v4758
      %v4796 = vmul.f32 %v4775, %v4759
      %v4797 = vmul.f32 %v4779, %v4760
      %v4798 = vmul.f32 %v4783, %v4761
      %v4799 = vmul.f32 %v4787, %v4762
      %v4800 = vmul.f32 %v4775, %v4763
      %v4801 = vmul.f32 %v4779, %v4764
      %v4802 = vmul.f32 %v4783, %v4765
      %v4803 = vmul.f32 %v4787, %v4766
      %v4804 = vmul.f32 %v4775, %v4767
      %v4805 = vmul.f32 %v4779, %v4768
      %v4806 = vmul.f32 %v4783, %v4769
      %v4807 = vmul.f32 %v4787, %v4770
      %v4808 = vadd.f32 %v4745, 0.001
      %v4809 = vadd.f32 %v4746, 0.001
      %v4810 = vrsqrt.pop %v4808
      %v4811 = vrsqrt.pop %v4809
      %v4812 = vlaneseq
      %v4813 = vshrl.u32 %v4812, 7
      %v4814 = vsub.s32 1, %v4813
      %v4815 = vrot.slane %v4810, %v4814
      %v4816 = vlaneseq
      %v4817 = vshrl.u32 %v4816, 7
      %v4818 = vsub.s32 1, %v4817
      %v4819 = vrot.slane %v4811, %v4818
      %v4820 = vmul.f32 %v4792, %v4815
      %v4821 = vmul.f32 %v4793, %v4819
      %v4822 = vmul.f32 %v4794, %v4815
      %v4823 = vmul.f32 %v4795, %v4819
      %v4824 = vmul.f32 %v4796, %v4815
      %v4825 = vmul.f32 %v4797, %v4819
      %v4826 = vmul.f32 %v4798, %v4815
      %v4827 = vmul.f32 %v4799, %v4819
      %v4828 = vmul.f32 %v4800, %v4815
      %v4829 = vmul.f32 %v4801, %v4819
      %v4830 = vmul.f32 %v4802, %v4815
      %v4831 = vmul.f32 %v4803, %v4819
      %v4832 = vmul.f32 %v4804, %v4815
      %v4833 = vmul.f32 %v4805, %v4819
      %v4834 = vmul.f32 %v4806, %v4815
      %v4835 = vmul.f32 %v4807, %v4819
      %v4837 = vlaneseq
      %v4838 = vshrl.u32 %v4837, 7
      %v4839 = vsub.s32 0, %v4838
      %v4840 = vrot.slane %v4598, %v4839
      %v4841 = vlaneseq
      %v4842 = vshrl.u32 %v4841, 7
      %v4843 = vsub.s32 1, %v4842
      %v4844 = vrot.slane %v4598, %v4843
      %v4845 = vlaneseq
      %v4846 = vshrl.u32 %v4845, 7
      %v4847 = vsub.s32 2, %v4846
      %v4848 = vrot.slane %v4598, %v4847
      %v4849 = vlaneseq
      %v4850 = vshrl.u32 %v4849, 7
      %v4851 = vsub.s32 3, %v4850
      %v4852 = vrot.slane %v4598, %v4851
      %v4857 = vadd.f32 %v4820, %v4840
      %v4858 = vadd.f32 %v4821, %v4844
      %v4859 = vadd.f32 %v4822, %v4848
      %v4860 = vadd.f32 %v4823, %v4852
      %v4861 = vadd.f32 %v4824, %v4840
      %v4862 = vadd.f32 %v4825, %v4844
      %v4863 = vadd.f32 %v4826, %v4848
      %v4864 = vadd.f32 %v4827, %v4852
      %v4865 = vadd.f32 %v4828, %v4840
      %v4866 = vadd.f32 %v4829, %v4844
      %v4867 = vadd.f32 %v4830, %v4848
      %v4868 = vadd.f32 %v4831, %v4852
      %v4869 = vadd.f32 %v4832, %v4840
      %v4870 = vadd.f32 %v4833, %v4844
      %v4871 = vadd.f32 %v4834, %v4848
      %v4872 = vadd.f32 %v4835, %v4852
      %v4874 = vlaneseq
      %v4875 = vshrl.u32 %v4874, 7
      %v4876 = vsub.s32 0, %v4875
      %v4877 = vrot.slane %v187, %v4876
      %v4878 = vlaneseq
      %v4879 = vshrl.u32 %v4878, 7
      %v4880 = vsub.s32 1, %v4879
      %v4881 = vrot.slane %v187, %v4880
      %v4882 = vlaneseq
      %v4883 = vshrl.u32 %v4882, 7
      %v4884 = vsub.s32 2, %v4883
      %v4885 = vrot.slane %v187, %v4884
      %v4886 = vlaneseq
      %v4887 = vshrl.u32 %v4886, 7
      %v4888 = vsub.s32 3, %v4887
      %v4889 = vrot.slane %v187, %v4888
      %v4894 = vmul.f32 %v4877, %v215
      %v4895 = vmul.f32 %v4881, %v216
      %v4896 = vmul.f32 %v4885, %v217
      %v4897 = vmul.f32 %v4889, %v218
      %v4898 = vmul.f32 %v4877, %v219
      %v4899 = vmul.f32 %v4881, %v220
      %v4900 = vmul.f32 %v4885, %v221
      %v4901 = vmul.f32 %v4889, %v222
      %v4902 = vmul.f32 %v4877, %v223
      %v4903 = vmul.f32 %v4881, %v224
      %v4904 = vmul.f32 %v4885, %v225
      %v4905 = vmul.f32 %v4889, %v226
      %v4906 = vmul.f32 %v4877, %v227
      %v4907 = vmul.f32 %v4881, %v228
      %v4908 = vmul.f32 %v4885, %v229
      %v4909 = vmul.f32 %v4889, %v230
      %v4911 = vlaneseq
      %v4912 = vshrl.u32 %v4911, 7
      %v4913 = vsub.s32 0, %v4912
      %v4914 = vrot.slane %v189, %v4913
      %v4915 = vlaneseq
      %v4916 = vshrl.u32 %v4915, 7
      %v4917 = vsub.s32 1, %v4916
      %v4918 = vrot.slane %v189, %v4917
      %v4919 = vlaneseq
      %v4920 = vshrl.u32 %v4919, 7
      %v4921 = vsub.s32 2, %v4920
      %v4922 = vrot.slane %v189, %v4921
      %v4923 = vlaneseq
      %v4924 = vshrl.u32 %v4923, 7
      %v4925 = vsub.s32 3, %v4924
      %v4926 = vrot.slane %v189, %v4925
      %v4931 = vadd.f32 %v4894, %v4914
      %v4932 = vadd.f32 %v4895, %v4918
      %v4933 = vadd.f32 %v4896, %v4922
      %v4934 = vadd.f32 %v4897, %v4926
      %v4935 = vadd.f32 %v4898, %v4914
      %v4936 = vadd.f32 %v4899, %v4918
      %v4937 = vadd.f32 %v4900, %v4922
      %v4938 = vadd.f32 %v4901, %v4926
      %v4939 = vadd.f32 %v4902, %v4914
      %v4940 = vadd.f32 %v4903, %v4918
      %v4941 = vadd.f32 %v4904, %v4922
      %v4942 = vadd.f32 %v4905, %v4926
      %v4943 = vadd.f32 %v4906, %v4914
      %v4944 = vadd.f32 %v4907, %v4918
      %v4945 = vadd.f32 %v4908, %v4922
      %v4946 = vadd.f32 %v4909, %v4926
      %v4947 = vmul.f32 %v4857, %v4931
      %v4948 = vmul.f32 %v4858, %v4932
      %v4949 = vmul.f32 %v4859, %v4933
      %v4950 = vmul.f32 %v4860, %v4934
      %v4951 = vmul.f32 %v4861, %v4935
      %v4952 = vmul.f32 %v4862, %v4936
      %v4953 = vmul.f32 %v4863, %v4937
      %v4954 = vmul.f32 %v4864, %v4938
      %v4955 = vmul.f32 %v4865, %v4939
      %v4956 = vmul.f32 %v4866, %v4940
      %v4957 = vmul.f32 %v4867, %v4941
      %v4958 = vmul.f32 %v4868, %v4942
      %v4959 = vmul.f32 %v4869, %v4943
      %v4960 = vmul.f32 %v4870, %v4944
      %v4961 = vmul.f32 %v4871, %v4945
      %v4962 = vmul.f32 %v4872, %v4946
      %v4963 = vmax.f32 %v4947, 0.0
      %v4964 = vmax.f32 %v4948, 0.0
      %v4965 = vmax.f32 %v4949, 0.0
      %v4966 = vmax.f32 %v4950, 0.0
      %v4967 = vmax.f32 %v4951, 0.0
      %v4968 = vmax.f32 %v4952, 0.0
      %v4969 = vmax.f32 %v4953, 0.0
      %v4970 = vmax.f32 %v4954, 0.0
      %v4971 = vmax.f32 %v4955, 0.0
      %v4972 = vmax.f32 %v4956, 0.0
      %v4973 = vmax.f32 %v4957, 0.0
      %v4974 = vmax.f32 %v4958, 0.0
      %v4975 = vmax.f32 %v4959, 0.0
      %v4976 = vmax.f32 %v4960, 0.0
      %v4977 = vmax.f32 %v4961, 0.0
      %v4978 = vmax.f32 %v4962, 0.0
      %v4979 = vand.u32 2147483647, %v4947
      %v4980 = vand.u32 2147483647, %v4948
      %v4981 = vand.u32 2147483647, %v4949
      %v4982 = vand.u32 2147483647, %v4950
      %v4983 = vand.u32 2147483647, %v4951
      %v4984 = vand.u32 2147483647, %v4952
      %v4985 = vand.u32 2147483647, %v4953
      %v4986 = vand.u32 2147483647, %v4954
      %v4987 = vand.u32 2147483647, %v4955
      %v4988 = vand.u32 2147483647, %v4956
      %v4989 = vand.u32 2147483647, %v4957
      %v4990 = vand.u32 2147483647, %v4958
      %v4991 = vand.u32 2147483647, %v4959
      %v4992 = vand.u32 2147483647, %v4960
      %v4993 = vand.u32 2147483647, %v4961
      %v4994 = vand.u32 2147483647, %v4962
      %v4995 = vsub.f32 0.0, %v4979
      %v4996 = vsub.f32 0.0, %v4980
      %v4997 = vsub.f32 0.0, %v4981
      %v4998 = vsub.f32 0.0, %v4982
      %v4999 = vsub.f32 0.0, %v4983
      %v5000 = vsub.f32 0.0, %v4984
      %v5001 = vsub.f32 0.0, %v4985
      %v5002 = vsub.f32 0.0, %v4986
      %v5003 = vsub.f32 0.0, %v4987
      %v5004 = vsub.f32 0.0, %v4988
      %v5005 = vsub.f32 0.0, %v4989
      %v5006 = vsub.f32 0.0, %v4990
      %v5007 = vsub.f32 0.0, %v4991
      %v5008 = vsub.f32 0.0, %v4992
      %v5009 = vsub.f32 0.0, %v4993
      %v5010 = vsub.f32 0.0, %v4994
      %v5011 = vmul.f32 %v4995, 1.442695
      %v5012 = vpow.pop %v5011
      %v5013 = vmul.f32 %v4996, 1.442695
      %v5014 = vpow.pop %v5013
      %v5015 = vmul.f32 %v4997, 1.442695
      %v5016 = vpow.pop %v5015
      %v5017 = vmul.f32 %v4998, 1.442695
      %v5018 = vpow.pop %v5017
      %v5019 = vmul.f32 %v4999, 1.442695
      %v5020 = vpow.pop %v5019
      %v5021 = vmul.f32 %v5000, 1.442695
      %v5022 = vpow.pop %v5021
      %v5023 = vmul.f32 %v5001, 1.442695
      %v5024 = vpow.pop %v5023
      %v5025 = vmul.f32 %v5002, 1.442695
      %v5026 = vpow.pop %v5025
      %v5027 = vmul.f32 %v5003, 1.442695
      %v5028 = vpow.pop %v5027
      %v5029 = vmul.f32 %v5004, 1.442695
      %v5030 = vpow.pop %v5029
      %v5031 = vmul.f32 %v5005, 1.442695
      %v5032 = vpow.pop %v5031
      %v5033 = vmul.f32 %v5006, 1.442695
      %v5034 = vpow.pop %v5033
      %v5035 = vmul.f32 %v5007, 1.442695
      %v5036 = vpow.pop %v5035
      %v5037 = vmul.f32 %v5008, 1.442695
      %v5038 = vpow.pop %v5037
      %v5039 = vmul.f32 %v5009, 1.442695
      %v5040 = vpow.pop %v5039
      %v5041 = vmul.f32 %v5010, 1.442695
      %v5042 = vpow.pop %v5041
      %v5043 = vadd.f32 %v5012, 1.0
      %v5044 = vadd.f32 %v5014, 1.0
      %v5045 = vadd.f32 %v5016, 1.0
      %v5046 = vadd.f32 %v5018, 1.0
      %v5047 = vadd.f32 %v5020, 1.0
      %v5048 = vadd.f32 %v5022, 1.0
      %v5049 = vadd.f32 %v5024, 1.0
      %v5050 = vadd.f32 %v5026, 1.0
      %v5051 = vadd.f32 %v5028, 1.0
      %v5052 = vadd.f32 %v5030, 1.0
      %v5053 = vadd.f32 %v5032, 1.0
      %v5054 = vadd.f32 %v5034, 1.0
      %v5055 = vadd.f32 %v5036, 1.0
      %v5056 = vadd.f32 %v5038, 1.0
      %v5057 = vadd.f32 %v5040, 1.0
      %v5058 = vadd.f32 %v5042, 1.0
      %v5059 = vlog2.pop %v5043
      %v5060 = vmul.f32 %v5059, 0.6931472
      %v5061 = vlog2.pop %v5044
      %v5062 = vmul.f32 %v5061, 0.6931472
      %v5063 = vlog2.pop %v5045
      %v5064 = vmul.f32 %v5063, 0.6931472
      %v5065 = vlog2.pop %v5046
      %v5066 = vmul.f32 %v5065, 0.6931472
      %v5067 = vlog2.pop %v5047
      %v5068 = vmul.f32 %v5067, 0.6931472
      %v5069 = vlog2.pop %v5048
      %v5070 = vmul.f32 %v5069, 0.6931472
      %v5071 = vlog2.pop %v5049
      %v5072 = vmul.f32 %v5071, 0.6931472
      %v5073 = vlog2.pop %v5050
      %v5074 = vmul.f32 %v5073, 0.6931472
      %v5075 = vlog2.pop %v5051
      %v5076 = vmul.f32 %v5075, 0.6931472
      %v5077 = vlog2.pop %v5052
      %v5078 = vmul.f32 %v5077, 0.6931472
      %v5079 = vlog2.pop %v5053
      %v5080 = vmul.f32 %v5079, 0.6931472
      %v5081 = vlog2.pop %v5054
      %v5082 = vmul.f32 %v5081, 0.6931472
      %v5083 = vlog2.pop %v5055
      %v5084 = vmul.f32 %v5083, 0.6931472
      %v5085 = vlog2.pop %v5056
      %v5086 = vmul.f32 %v5085, 0.6931472
      %v5087 = vlog2.pop %v5057
      %v5088 = vmul.f32 %v5087, 0.6931472
      %v5089 = vlog2.pop %v5058
      %v5090 = vmul.f32 %v5089, 0.6931472
      %v5091 = vadd.f32 %v4963, %v5060
      %v5092 = vadd.f32 %v4964, %v5062
      %v5093 = vadd.f32 %v4965, %v5064
      %v5094 = vadd.f32 %v4966, %v5066
      %v5095 = vadd.f32 %v4967, %v5068
      %v5096 = vadd.f32 %v4968, %v5070
      %v5097 = vadd.f32 %v4969, %v5072
      %v5098 = vadd.f32 %v4970, %v5074
      %v5099 = vadd.f32 %v4971, %v5076
      %v5100 = vadd.f32 %v4972, %v5078
      %v5101 = vadd.f32 %v4973, %v5080
      %v5102 = vadd.f32 %v4974, %v5082
      %v5103 = vadd.f32 %v4975, %v5084
      %v5104 = vadd.f32 %v4976, %v5086
      %v5105 = vadd.f32 %v4977, %v5088
      %v5106 = vadd.f32 %v4978, %v5090
      %v5107 = vsub.f32 %v199, %v5091
      %v5108 = vsub.f32 %v200, %v5092
      %v5109 = vsub.f32 %v201, %v5093
      %v5110 = vsub.f32 %v202, %v5094
      %v5111 = vsub.f32 %v203, %v5095
      %v5112 = vsub.f32 %v204, %v5096
      %v5113 = vsub.f32 %v205, %v5097
      %v5114 = vsub.f32 %v206, %v5098
      %v5115 = vsub.f32 %v207, %v5099
      %v5116 = vsub.f32 %v208, %v5100
      %v5117 = vsub.f32 %v209, %v5101
      %v5118 = vsub.f32 %v210, %v5102
      %v5119 = vsub.f32 %v211, %v5103
      %v5120 = vsub.f32 %v212, %v5104
      %v5121 = vsub.f32 %v213, %v5105
      %v5122 = vsub.f32 %v214, %v5106
      %v5123 = vmax.f32 %v5107, 0.0
      %v5124 = vmax.f32 %v5108, 0.0
      %v5125 = vmax.f32 %v5109, 0.0
      %v5126 = vmax.f32 %v5110, 0.0
      %v5127 = vmax.f32 %v5111, 0.0
      %v5128 = vmax.f32 %v5112, 0.0
      %v5129 = vmax.f32 %v5113, 0.0
      %v5130 = vmax.f32 %v5114, 0.0
      %v5131 = vmax.f32 %v5115, 0.0
      %v5132 = vmax.f32 %v5116, 0.0
      %v5133 = vmax.f32 %v5117, 0.0
      %v5134 = vmax.f32 %v5118, 0.0
      %v5135 = vmax.f32 %v5119, 0.0
      %v5136 = vmax.f32 %v5120, 0.0
      %v5137 = vmax.f32 %v5121, 0.0
      %v5138 = vmax.f32 %v5122, 0.0
      %v5139 = vand.u32 2147483647, %v5107
      %v5140 = vand.u32 2147483647, %v5108
      %v5141 = vand.u32 2147483647, %v5109
      %v5142 = vand.u32 2147483647, %v5110
      %v5143 = vand.u32 2147483647, %v5111
      %v5144 = vand.u32 2147483647, %v5112
      %v5145 = vand.u32 2147483647, %v5113
      %v5146 = vand.u32 2147483647, %v5114
      %v5147 = vand.u32 2147483647, %v5115
      %v5148 = vand.u32 2147483647, %v5116
      %v5149 = vand.u32 2147483647, %v5117
      %v5150 = vand.u32 2147483647, %v5118
      %v5151 = vand.u32 2147483647, %v5119
      %v5152 = vand.u32 2147483647, %v5120
      %v5153 = vand.u32 2147483647, %v5121
      %v5154 = vand.u32 2147483647, %v5122
      %v5155 = vsub.f32 0.0, %v5139
      %v5156 = vsub.f32 0.0, %v5140
      %v5157 = vsub.f32 0.0, %v5141
      %v5158 = vsub.f32 0.0, %v5142
      %v5159 = vsub.f32 0.0, %v5143
      %v5160 = vsub.f32 0.0, %v5144
      %v5161 = vsub.f32 0.0, %v5145
      %v5162 = vsub.f32 0.0, %v5146
      %v5163 = vsub.f32 0.0, %v5147
      %v5164 = vsub.f32 0.0, %v5148
      %v5165 = vsub.f32 0.0, %v5149
      %v5166 = vsub.f32 0.0, %v5150
      %v5167 = vsub.f32 0.0, %v5151
      %v5168 = vsub.f32 0.0, %v5152
      %v5169 = vsub.f32 0.0, %v5153
      %v5170 = vsub.f32 0.0, %v5154
      %v5171 = vmul.f32 %v5155, 1.442695
      %v5172 = vpow.pop %v5171
      %v5173 = vmul.f32 %v5156, 1.442695
      %v5174 = vpow.pop %v5173
      %v5175 = vmul.f32 %v5157, 1.442695
      %v5176 = vpow.pop %v5175
      %v5177 = vmul.f32 %v5158, 1.442695
      %v5178 = vpow.pop %v5177
      %v5179 = vmul.f32 %v5159, 1.442695
      %v5180 = vpow.pop %v5179
      %v5181 = vmul.f32 %v5160, 1.442695
      %v5182 = vpow.pop %v5181
      %v5183 = vmul.f32 %v5161, 1.442695
      %v5184 = vpow.pop %v5183
      %v5185 = vmul.f32 %v5162, 1.442695
      %v5186 = vpow.pop %v5185
      %v5187 = vmul.f32 %v5163, 1.442695
      %v5188 = vpow.pop %v5187
      %v5189 = vmul.f32 %v5164, 1.442695
      %v5190 = vpow.pop %v5189
      %v5191 = vmul.f32 %v5165, 1.442695
      %v5192 = vpow.pop %v5191
      %v5193 = vmul.f32 %v5166, 1.442695
      %v5194 = vpow.pop %v5193
      %v5195 = vmul.f32 %v5167, 1.442695
      %v5196 = vpow.pop %v5195
      %v5197 = vmul.f32 %v5168, 1.442695
      %v5198 = vpow.pop %v5197
      %v5199 = vmul.f32 %v5169, 1.442695
      %v5200 = vpow.pop %v5199
      %v5201 = vmul.f32 %v5170, 1.442695
      %v5202 = vpow.pop %v5201
      %v5203 = vadd.f32 %v5172, 1.0
      %v5204 = vadd.f32 %v5174, 1.0
      %v5205 = vadd.f32 %v5176, 1.0
      %v5206 = vadd.f32 %v5178, 1.0
      %v5207 = vadd.f32 %v5180, 1.0
      %v5208 = vadd.f32 %v5182, 1.0
      %v5209 = vadd.f32 %v5184, 1.0
      %v5210 = vadd.f32 %v5186, 1.0
      %v5211 = vadd.f32 %v5188, 1.0
      %v5212 = vadd.f32 %v5190, 1.0
      %v5213 = vadd.f32 %v5192, 1.0
      %v5214 = vadd.f32 %v5194, 1.0
      %v5215 = vadd.f32 %v5196, 1.0
      %v5216 = vadd.f32 %v5198, 1.0
      %v5217 = vadd.f32 %v5200, 1.0
      %v5218 = vadd.f32 %v5202, 1.0
      %v5219 = vlog2.pop %v5203
      %v5220 = vmul.f32 %v5219, 0.6931472
      %v5221 = vlog2.pop %v5204
      %v5222 = vmul.f32 %v5221, 0.6931472
      %v5223 = vlog2.pop %v5205
      %v5224 = vmul.f32 %v5223, 0.6931472
      %v5225 = vlog2.pop %v5206
      %v5226 = vmul.f32 %v5225, 0.6931472
      %v5227 = vlog2.pop %v5207
      %v5228 = vmul.f32 %v5227, 0.6931472
      %v5229 = vlog2.pop %v5208
      %v5230 = vmul.f32 %v5229, 0.6931472
      %v5231 = vlog2.pop %v5209
      %v5232 = vmul.f32 %v5231, 0.6931472
      %v5233 = vlog2.pop %v5210
      %v5234 = vmul.f32 %v5233, 0.6931472
      %v5235 = vlog2.pop %v5211
      %v5236 = vmul.f32 %v5235, 0.6931472
      %v5237 = vlog2.pop %v5212
      %v5238 = vmul.f32 %v5237, 0.6931472
      %v5239 = vlog2.pop %v5213
      %v5240 = vmul.f32 %v5239, 0.6931472
      %v5241 = vlog2.pop %v5214
      %v5242 = vmul.f32 %v5241, 0.6931472
      %v5243 = vlog2.pop %v5215
      %v5244 = vmul.f32 %v5243, 0.6931472
      %v5245 = vlog2.pop %v5216
      %v5246 = vmul.f32 %v5245, 0.6931472
      %v5247 = vlog2.pop %v5217
      %v5248 = vmul.f32 %v5247, 0.6931472
      %v5249 = vlog2.pop %v5218
      %v5250 = vmul.f32 %v5249, 0.6931472
      %v5251 = vadd.f32 %v5123, %v5220
      %v5252 = vadd.f32 %v5124, %v5222
      %v5253 = vadd.f32 %v5125, %v5224
      %v5254 = vadd.f32 %v5126, %v5226
      %v5255 = vadd.f32 %v5127, %v5228
      %v5256 = vadd.f32 %v5128, %v5230
      %v5257 = vadd.f32 %v5129, %v5232
      %v5258 = vadd.f32 %v5130, %v5234
      %v5259 = vadd.f32 %v5131, %v5236
      %v5260 = vadd.f32 %v5132, %v5238
      %v5261 = vadd.f32 %v5133, %v5240
      %v5262 = vadd.f32 %v5134, %v5242
      %v5263 = vadd.f32 %v5135, %v5244
      %v5264 = vadd.f32 %v5136, %v5246
      %v5265 = vadd.f32 %v5137, %v5248
      %v5266 = vadd.f32 %v5138, %v5250
      %v5283 = vrot.slane %v5251, 7
      %v5284 = vrot.slane %v5252, 7
      %v5285 = vrot.slane %v5253, 7
      %v5286 = vrot.slane %v5254, 7
      %v5287 = vrot.slane %v5255, 7
      %v5288 = vsel %vm1338, %v5283, %v5287
      %v5289 = vrot.slane %v5256, 7
      %v5290 = vsel %vm1338, %v5284, %v5289
      %v5291 = vrot.slane %v5257, 7
      %v5292 = vsel %vm1338, %v5285, %v5291
      %v5293 = vrot.slane %v5258, 7
      %v5294 = vsel %vm1338, %v5286, %v5293
      %v5295 = vrot.slane %v5259, 7
      %v5296 = vrot.slane %v5260, 7
      %v5297 = vrot.slane %v5261, 7
      %v5298 = vrot.slane %v5262, 7
      %v5299 = vrot.slane %v5263, 7
      %v5300 = vsel %vm1338, %v5295, %v5299
      %v5301 = vrot.slane %v5264, 7
      %v5302 = vsel %vm1338, %v5296, %v5301
      %v5303 = vrot.slane %v5265, 7
      %v5304 = vsel %vm1338, %v5297, %v5303
      %v5305 = vrot.slane %v5266, 7
      %v5306 = vsel %vm1338, %v5298, %v5305
      %5331 = vst [vmem:[#allocation3] sm:$0xfe] %v5283
      %5332 = vst [vmem:[#allocation3 + $0x8] sm:$0xfe] %v5284
      %5333 = vst [vmem:[#allocation3 + $0x10] sm:$0xfe] %v5285
      %5334 = vst [vmem:[#allocation3 + $0x18] sm:$0xfe] %v5286
      %5335 = vst [vmem:[#allocation3 + $0x20] sm:$0xff] %v5288
      %5336 = vst [vmem:[#allocation3 + $0x28] sm:$0xff] %v5290
      %5337 = vst [vmem:[#allocation3 + $0x30] sm:$0xff] %v5292
      %5338 = vst [vmem:[#allocation3 + $0x38] sm:$0xff] %v5294
      %5339 = vst [vmem:[#allocation3 + $0x40] sm:$0x1] %v5287
      %5340 = vst [vmem:[#allocation3 + $0x48] sm:$0x1] %v5289
      %5341 = vst [vmem:[#allocation3 + $0x50] sm:$0x1] %v5291
      %5342 = vst [vmem:[#allocation3 + $0x58] sm:$0x1] %v5293
      %5343 = vst [vmem:[#allocation3 + $0x60] sm:$0xfe] %v5295
      %5344 = vst [vmem:[#allocation3 + $0x68] sm:$0xfe] %v5296
      %5345 = vst [vmem:[#allocation3 + $0x70] sm:$0xfe] %v5297
      %5346 = vst [vmem:[#allocation3 + $0x78] sm:$0xfe] %v5298
      %5347 = vst [vmem:[#allocation3 + $0x80] sm:$0xff] %v5300
      %5348 = vst [vmem:[#allocation3 + $0x88] sm:$0xff] %v5302
      %5349 = vst [vmem:[#allocation3 + $0x90] sm:$0xff] %v5304
      %5350 = vst [vmem:[#allocation3 + $0x98] sm:$0xff] %v5306
      %5351 = vst [vmem:[#allocation3 + $0xa0] sm:$0x1] %v5299
      %5352 = vst [vmem:[#allocation3 + $0xa8] sm:$0x1] %v5301
      %5353 = vst [vmem:[#allocation3 + $0xb0] sm:$0x1] %v5303
      %5354 = vst [vmem:[#allocation3 + $0xb8] sm:$0x1] %v5305
      %v5355 = vld [vmem:[#allocation3] sm:$0xff]
      %v5356 = vld [vmem:[#allocation3 + $0x8] sm:$0xff]
      %v5357 = vld [vmem:[#allocation3 + $0x10] sm:$0xff]
      %v5358 = vld [vmem:[#allocation3 + $0x18] sm:$0xff]
      %v5359 = vld [vmem:[#allocation3 + $0x20] sm:$0xff]
      %v5360 = vld [vmem:[#allocation3 + $0x28] sm:$0xff]
      %v5361 = vld [vmem:[#allocation3 + $0x30] sm:$0xff]
      %v5362 = vld [vmem:[#allocation3 + $0x38] sm:$0xff]
      %v5363 = vld [vmem:[#allocation3 + $0x60] sm:$0xff]
      %v5364 = vld [vmem:[#allocation3 + $0x68] sm:$0xff]
      %v5365 = vld [vmem:[#allocation3 + $0x70] sm:$0xff]
      %v5366 = vld [vmem:[#allocation3 + $0x78] sm:$0xff]
      %v5367 = vld [vmem:[#allocation3 + $0x80] sm:$0xff]
      %v5368 = vld [vmem:[#allocation3 + $0x88] sm:$0xff]
      %v5369 = vld [vmem:[#allocation3 + $0x90] sm:$0xff]
      %v5370 = vld [vmem:[#allocation3 + $0x98] sm:$0xff]
      %v5371 = vpack.c.bf16 %v5359, %v5355
      %v5372 = vpack.c.bf16 %v5360, %v5356
      %v5373 = vpack.c.bf16 %v5361, %v5357
      %v5374 = vpack.c.bf16 %v5362, %v5358
      %v5375 = vpack.c.bf16 %v5367, %v5363
      %v5376 = vpack.c.bf16 %v5368, %v5364
      %v5377 = vpack.c.bf16 %v5369, %v5365
      %v5378 = vpack.c.bf16 %v5370, %v5366
      %v5379 = vld [vmem:[#allocation10] sm:$0xff]
      %v5380 = vld [vmem:[#allocation10 + $0x8] sm:$0xff]
      %v5381 = vld [vmem:[#allocation10 + $0x10] sm:$0xff]
      %v5382 = vld [vmem:[#allocation10 + $0x18] sm:$0xff]
      %v5383 = vld [vmem:[#allocation10 + $0x20] sm:$0xff]
      %v5384 = vld [vmem:[#allocation10 + $0x28] sm:$0xff]
      %v5385 = vld [vmem:[#allocation10 + $0x30] sm:$0xff]
      %v5386 = vld [vmem:[#allocation10 + $0x38] sm:$0xff]
      %v5387 = vld [vmem:[#allocation10 + $0x40] sm:$0xff]
      %v5388 = vld [vmem:[#allocation10 + $0x48] sm:$0xff]
      %v5389 = vld [vmem:[#allocation10 + $0x50] sm:$0xff]
      %v5390 = vld [vmem:[#allocation10 + $0x58] sm:$0xff]
      %v5391 = vld [vmem:[#allocation10 + $0x60] sm:$0xff]
      %v5392 = vld [vmem:[#allocation10 + $0x68] sm:$0xff]
      %v5393 = vld [vmem:[#allocation10 + $0x70] sm:$0xff]
      %v5394 = vld [vmem:[#allocation10 + $0x78] sm:$0xff]
      %v5395 = vld [vmem:[#allocation10 + $0x80] sm:$0xff]
      %v5396 = vld [vmem:[#allocation10 + $0x88] sm:$0xff]
      %v5397 = vld [vmem:[#allocation10 + $0x90] sm:$0xff]
      %v5398 = vld [vmem:[#allocation10 + $0x98] sm:$0xff]
      %v5399 = vld [vmem:[#allocation10 + $0xa0] sm:$0xff]
      %v5400 = vld [vmem:[#allocation10 + $0xa8] sm:$0xff]
      %v5401 = vld [vmem:[#allocation10 + $0xb0] sm:$0xff]
      %v5402 = vld [vmem:[#allocation10 + $0xb8] sm:$0xff]
      %v5403 = vld [vmem:[#allocation10 + $0xc0] sm:$0xff]
      %v5404 = vld [vmem:[#allocation10 + $0xc8] sm:$0xff]
      %v5405 = vld [vmem:[#allocation10 + $0xd0] sm:$0xff]
      %v5406 = vld [vmem:[#allocation10 + $0xd8] sm:$0xff]
      %v5407 = vld [vmem:[#allocation10 + $0xe0] sm:$0xff]
      %v5408 = vld [vmem:[#allocation10 + $0xe8] sm:$0xff]
      %v5409 = vld [vmem:[#allocation10 + $0xf0] sm:$0xff]
      %v5410 = vld [vmem:[#allocation10 + $0xf8] sm:$0xff]
      %v5411 = vld [vmem:[#allocation10 + $0x100] sm:$0xff]
      %v5412 = vld [vmem:[#allocation10 + $0x108] sm:$0xff]
      %v5413 = vld [vmem:[#allocation10 + $0x110] sm:$0xff]
      %v5414 = vld [vmem:[#allocation10 + $0x118] sm:$0xff]
      %v5415 = vld [vmem:[#allocation10 + $0x120] sm:$0xff]
      %v5416 = vld [vmem:[#allocation10 + $0x128] sm:$0xff]
      %v5417 = vld [vmem:[#allocation10 + $0x130] sm:$0xff]
      %v5418 = vld [vmem:[#allocation10 + $0x138] sm:$0xff]
      %v5419 = vld [vmem:[#allocation10 + $0x140] sm:$0xff]
      %v5420 = vld [vmem:[#allocation10 + $0x148] sm:$0xff]
      %v5421 = vld [vmem:[#allocation10 + $0x150] sm:$0xff]
      %v5422 = vld [vmem:[#allocation10 + $0x158] sm:$0xff]
      %v5423 = vld [vmem:[#allocation10 + $0x160] sm:$0xff]
      %v5424 = vld [vmem:[#allocation10 + $0x168] sm:$0xff]
      %v5425 = vld [vmem:[#allocation10 + $0x170] sm:$0xff]
      %v5426 = vld [vmem:[#allocation10 + $0x178] sm:$0xff]
      %v5427 = vld [vmem:[#allocation10 + $0x180] sm:$0xff]
      %v5428 = vld [vmem:[#allocation10 + $0x188] sm:$0xff]
      %v5429 = vld [vmem:[#allocation10 + $0x190] sm:$0xff]
      %v5430 = vld [vmem:[#allocation10 + $0x198] sm:$0xff]
      %v5431 = vld [vmem:[#allocation10 + $0x1a0] sm:$0xff]
      %v5432 = vld [vmem:[#allocation10 + $0x1a8] sm:$0xff]
      %v5433 = vld [vmem:[#allocation10 + $0x1b0] sm:$0xff]
      %v5434 = vld [vmem:[#allocation10 + $0x1b8] sm:$0xff]
      %v5435 = vld [vmem:[#allocation10 + $0x1c0] sm:$0xff]
      %v5436 = vld [vmem:[#allocation10 + $0x1c8] sm:$0xff]
      %v5437 = vld [vmem:[#allocation10 + $0x1d0] sm:$0xff]
      %v5438 = vld [vmem:[#allocation10 + $0x1d8] sm:$0xff]
      %v5439 = vld [vmem:[#allocation10 + $0x1e0] sm:$0xff]
      %v5440 = vld [vmem:[#allocation10 + $0x1e8] sm:$0xff]
      %v5441 = vld [vmem:[#allocation10 + $0x1f0] sm:$0xff]
      %v5442 = vld [vmem:[#allocation10 + $0x1f8] sm:$0xff]
      %v5443 = vld [vmem:[#allocation10 + $0x200] sm:$0xff]
      %v5444 = vld [vmem:[#allocation10 + $0x208] sm:$0xff]
      %v5445 = vld [vmem:[#allocation10 + $0x210] sm:$0xff]
      %v5446 = vld [vmem:[#allocation10 + $0x218] sm:$0xff]
      %v5447 = vld [vmem:[#allocation10 + $0x220] sm:$0xff]
      %v5448 = vld [vmem:[#allocation10 + $0x228] sm:$0xff]
      %v5449 = vld [vmem:[#allocation10 + $0x230] sm:$0xff]
      %v5450 = vld [vmem:[#allocation10 + $0x238] sm:$0xff]
      %v5451 = vld [vmem:[#allocation10 + $0x240] sm:$0xff]
      %v5452 = vld [vmem:[#allocation10 + $0x248] sm:$0xff]
      %v5453 = vld [vmem:[#allocation10 + $0x250] sm:$0xff]
      %v5454 = vld [vmem:[#allocation10 + $0x258] sm:$0xff]
      %v5455 = vld [vmem:[#allocation10 + $0x260] sm:$0xff]
      %v5456 = vld [vmem:[#allocation10 + $0x268] sm:$0xff]
      %v5457 = vld [vmem:[#allocation10 + $0x270] sm:$0xff]
      %v5458 = vld [vmem:[#allocation10 + $0x278] sm:$0xff]
      %v5459 = vld [vmem:[#allocation10 + $0x280] sm:$0xff]
      %v5460 = vld [vmem:[#allocation10 + $0x288] sm:$0xff]
      %v5461 = vld [vmem:[#allocation10 + $0x290] sm:$0xff]
      %v5462 = vld [vmem:[#allocation10 + $0x298] sm:$0xff]
      %v5463 = vld [vmem:[#allocation10 + $0x2a0] sm:$0xff]
      %v5464 = vld [vmem:[#allocation10 + $0x2a8] sm:$0xff]
      %v5465 = vld [vmem:[#allocation10 + $0x2b0] sm:$0xff]
      %v5466 = vld [vmem:[#allocation10 + $0x2b8] sm:$0xff]
      %v5467 = vld [vmem:[#allocation10 + $0x2c0] sm:$0xff]
      %v5468 = vld [vmem:[#allocation10 + $0x2c8] sm:$0xff]
      %v5469 = vld [vmem:[#allocation10 + $0x2d0] sm:$0xff]
      %v5470 = vld [vmem:[#allocation10 + $0x2d8] sm:$0xff]
      %v5471 = vld [vmem:[#allocation10 + $0x2e0] sm:$0xff]
      %v5472 = vld [vmem:[#allocation10 + $0x2e8] sm:$0xff]
      %v5473 = vld [vmem:[#allocation10 + $0x2f0] sm:$0xff]
      %v5474 = vld [vmem:[#allocation10 + $0x2f8] sm:$0xff]
      %v5475 = vld [vmem:[#allocation10 + $0x300] sm:$0xff]
      %v5476 = vld [vmem:[#allocation10 + $0x308] sm:$0xff]
      %v5477 = vld [vmem:[#allocation10 + $0x310] sm:$0xff]
      %v5478 = vld [vmem:[#allocation10 + $0x318] sm:$0xff]
      %v5479 = vld [vmem:[#allocation10 + $0x320] sm:$0xff]
      %v5480 = vld [vmem:[#allocation10 + $0x328] sm:$0xff]
      %v5481 = vld [vmem:[#allocation10 + $0x330] sm:$0xff]
      %v5482 = vld [vmem:[#allocation10 + $0x338] sm:$0xff]
      %v5483 = vld [vmem:[#allocation10 + $0x340] sm:$0xff]
      %v5484 = vld [vmem:[#allocation10 + $0x348] sm:$0xff]
      %v5485 = vld [vmem:[#allocation10 + $0x350] sm:$0xff]
      %v5486 = vld [vmem:[#allocation10 + $0x358] sm:$0xff]
      %v5487 = vld [vmem:[#allocation10 + $0x360] sm:$0xff]
      %v5488 = vld [vmem:[#allocation10 + $0x368] sm:$0xff]
      %v5489 = vld [vmem:[#allocation10 + $0x370] sm:$0xff]
      %v5490 = vld [vmem:[#allocation10 + $0x378] sm:$0xff]
      %v5491 = vld [vmem:[#allocation10 + $0x380] sm:$0xff]
      %v5492 = vld [vmem:[#allocation10 + $0x388] sm:$0xff]
      %v5493 = vld [vmem:[#allocation10 + $0x390] sm:$0xff]
      %v5494 = vld [vmem:[#allocation10 + $0x398] sm:$0xff]
      %v5495 = vld [vmem:[#allocation10 + $0x3a0] sm:$0xff]
      %v5496 = vld [vmem:[#allocation10 + $0x3a8] sm:$0xff]
      %v5497 = vld [vmem:[#allocation10 + $0x3b0] sm:$0xff]
      %v5498 = vld [vmem:[#allocation10 + $0x3b8] sm:$0xff]
      %v5499 = vld [vmem:[#allocation10 + $0x3c0] sm:$0xff]
      %v5500 = vld [vmem:[#allocation10 + $0x3c8] sm:$0xff]
      %v5501 = vld [vmem:[#allocation10 + $0x3d0] sm:$0xff]
      %v5502 = vld [vmem:[#allocation10 + $0x3d8] sm:$0xff]
      %v5503 = vld [vmem:[#allocation10 + $0x3e0] sm:$0xff]
      %v5504 = vld [vmem:[#allocation10 + $0x3e8] sm:$0xff]
      %v5505 = vld [vmem:[#allocation10 + $0x3f0] sm:$0xff]
      %v5506 = vld [vmem:[#allocation10 + $0x3f8] sm:$0xff]
      %v5507 = vld [vmem:[#allocation3] sm:$0xfe]
      %v5508 = vld [vmem:[#allocation3 + $0x8] sm:$0xfe]
      %v5509 = vld [vmem:[#allocation3 + $0x10] sm:$0xfe]
      %v5510 = vld [vmem:[#allocation3 + $0x18] sm:$0xfe]
      %v5511 = vld [vmem:[#allocation3 + $0x40] sm:$0x1]
      %v5512 = vld [vmem:[#allocation3 + $0x48] sm:$0x1]
      %v5513 = vld [vmem:[#allocation3 + $0x50] sm:$0x1]
      %v5514 = vld [vmem:[#allocation3 + $0x58] sm:$0x1]
      %v5515 = vld [vmem:[#allocation3 + $0x60] sm:$0xfe]
      %v5516 = vld [vmem:[#allocation3 + $0x68] sm:$0xfe]
      %v5517 = vld [vmem:[#allocation3 + $0x70] sm:$0xfe]
      %v5518 = vld [vmem:[#allocation3 + $0x78] sm:$0xfe]
      %v5519 = vld [vmem:[#allocation3 + $0xa0] sm:$0x1]
      %v5520 = vld [vmem:[#allocation3 + $0xa8] sm:$0x1]
      %v5521 = vld [vmem:[#allocation3 + $0xb0] sm:$0x1]
      %v5522 = vld [vmem:[#allocation3 + $0xb8] sm:$0x1]
      %v5547 = vrot.slane %v5507, 1
      %v5548 = vrot.slane %v5359, 1
      %v5549 = vsel %vm1603, %v5547, %v5548
      %v5550 = vrot.slane %v5508, 1
      %v5551 = vrot.slane %v5360, 1
      %v5552 = vsel %vm1603, %v5550, %v5551
      %v5553 = vrot.slane %v5509, 1
      %v5554 = vrot.slane %v5361, 1
      %v5555 = vsel %vm1603, %v5553, %v5554
      %v5556 = vrot.slane %v5510, 1
      %v5557 = vrot.slane %v5362, 1
      %v5558 = vsel %vm1603, %v5556, %v5557
      %v5559 = vrot.slane %v5511, 1
      %v5560 = vsel %vm1603, %v5548, %v5559
      %v5561 = vrot.slane %v5512, 1
      %v5562 = vsel %vm1603, %v5551, %v5561
      %v5563 = vrot.slane %v5513, 1
      %v5564 = vsel %vm1603, %v5554, %v5563
      %v5565 = vrot.slane %v5514, 1
      %v5566 = vsel %vm1603, %v5557, %v5565
      %v5567 = vrot.slane %v5515, 1
      %v5568 = vrot.slane %v5367, 1
      %v5569 = vsel %vm1603, %v5567, %v5568
      %v5570 = vrot.slane %v5516, 1
      %v5571 = vrot.slane %v5368, 1
      %v5572 = vsel %vm1603, %v5570, %v5571
      %v5573 = vrot.slane %v5517, 1
      %v5574 = vrot.slane %v5369, 1
      %v5575 = vsel %vm1603, %v5573, %v5574
      %v5576 = vrot.slane %v5518, 1
      %v5577 = vrot.slane %v5370, 1
      %v5578 = vsel %vm1603, %v5576, %v5577
      %v5579 = vrot.slane %v5519, 1
      %v5580 = vsel %vm1603, %v5568, %v5579
      %v5581 = vrot.slane %v5520, 1
      %v5582 = vsel %vm1603, %v5571, %v5581
      %v5583 = vrot.slane %v5521, 1
      %v5584 = vsel %vm1603, %v5574, %v5583
      %v5585 = vrot.slane %v5522, 1
      %v5586 = vsel %vm1603, %v5577, %v5585
      %v5603 = vpack.c.bf16 %v5560, %v5549
      %v5604 = vpack.c.bf16 %v5562, %v5552
      %v5605 = vpack.c.bf16 %v5564, %v5555
      %v5606 = vpack.c.bf16 %v5566, %v5558
      %v5607 = vpack.c.bf16 %v5580, %v5569
      %v5608 = vpack.c.bf16 %v5582, %v5572
      %v5609 = vpack.c.bf16 %v5584, %v5575
      %v5610 = vpack.c.bf16 %v5586, %v5578
      %s5611 = scalar_lea.vmem [#allocation10], 1024
      %v5612 = vld [vmem:[%s5611] sm:$0xff]
      %v5613 = vld [vmem:[%s5611 + $0x8] sm:$0xff]
      %v5614 = vld [vmem:[%s5611 + $0x10] sm:$0xff]
      %v5615 = vld [vmem:[%s5611 + $0x18] sm:$0xff]
      %v5616 = vld [vmem:[%s5611 + $0x20] sm:$0xff]
      %v5617 = vld [vmem:[%s5611 + $0x28] sm:$0xff]
      %v5618 = vld [vmem:[%s5611 + $0x30] sm:$0xff]
      %v5619 = vld [vmem:[%s5611 + $0x38] sm:$0xff]
      %v5620 = vld [vmem:[%s5611 + $0x40] sm:$0xff]
      %v5621 = vld [vmem:[%s5611 + $0x48] sm:$0xff]
      %v5622 = vld [vmem:[%s5611 + $0x50] sm:$0xff]
      %v5623 = vld [vmem:[%s5611 + $0x58] sm:$0xff]
      %v5624 = vld [vmem:[%s5611 + $0x60] sm:$0xff]
      %v5625 = vld [vmem:[%s5611 + $0x68] sm:$0xff]
      %v5626 = vld [vmem:[%s5611 + $0x70] sm:$0xff]
      %v5627 = vld [vmem:[%s5611 + $0x78] sm:$0xff]
      %v5628 = vld [vmem:[%s5611 + $0x80] sm:$0xff]
      %v5629 = vld [vmem:[%s5611 + $0x88] sm:$0xff]
      %v5630 = vld [vmem:[%s5611 + $0x90] sm:$0xff]
      %v5631 = vld [vmem:[%s5611 + $0x98] sm:$0xff]
      %v5632 = vld [vmem:[%s5611 + $0xa0] sm:$0xff]
      %v5633 = vld [vmem:[%s5611 + $0xa8] sm:$0xff]
      %v5634 = vld [vmem:[%s5611 + $0xb0] sm:$0xff]
      %v5635 = vld [vmem:[%s5611 + $0xb8] sm:$0xff]
      %v5636 = vld [vmem:[%s5611 + $0xc0] sm:$0xff]
      %v5637 = vld [vmem:[%s5611 + $0xc8] sm:$0xff]
      %v5638 = vld [vmem:[%s5611 + $0xd0] sm:$0xff]
      %v5639 = vld [vmem:[%s5611 + $0xd8] sm:$0xff]
      %v5640 = vld [vmem:[%s5611 + $0xe0] sm:$0xff]
      %v5641 = vld [vmem:[%s5611 + $0xe8] sm:$0xff]
      %v5642 = vld [vmem:[%s5611 + $0xf0] sm:$0xff]
      %v5643 = vld [vmem:[%s5611 + $0xf8] sm:$0xff]
      %v5644 = vld [vmem:[%s5611 + $0x100] sm:$0xff]
      %v5645 = vld [vmem:[%s5611 + $0x108] sm:$0xff]
      %v5646 = vld [vmem:[%s5611 + $0x110] sm:$0xff]
      %v5647 = vld [vmem:[%s5611 + $0x118] sm:$0xff]
      %v5648 = vld [vmem:[%s5611 + $0x120] sm:$0xff]
      %v5649 = vld [vmem:[%s5611 + $0x128] sm:$0xff]
      %v5650 = vld [vmem:[%s5611 + $0x130] sm:$0xff]
      %v5651 = vld [vmem:[%s5611 + $0x138] sm:$0xff]
      %v5652 = vld [vmem:[%s5611 + $0x140] sm:$0xff]
      %v5653 = vld [vmem:[%s5611 + $0x148] sm:$0xff]
      %v5654 = vld [vmem:[%s5611 + $0x150] sm:$0xff]
      %v5655 = vld [vmem:[%s5611 + $0x158] sm:$0xff]
      %v5656 = vld [vmem:[%s5611 + $0x160] sm:$0xff]
      %v5657 = vld [vmem:[%s5611 + $0x168] sm:$0xff]
      %v5658 = vld [vmem:[%s5611 + $0x170] sm:$0xff]
      %v5659 = vld [vmem:[%s5611 + $0x178] sm:$0xff]
      %v5660 = vld [vmem:[%s5611 + $0x180] sm:$0xff]
      %v5661 = vld [vmem:[%s5611 + $0x188] sm:$0xff]
      %v5662 = vld [vmem:[%s5611 + $0x190] sm:$0xff]
      %v5663 = vld [vmem:[%s5611 + $0x198] sm:$0xff]
      %v5664 = vld [vmem:[%s5611 + $0x1a0] sm:$0xff]
      %v5665 = vld [vmem:[%s5611 + $0x1a8] sm:$0xff]
      %v5666 = vld [vmem:[%s5611 + $0x1b0] sm:$0xff]
      %v5667 = vld [vmem:[%s5611 + $0x1b8] sm:$0xff]
      %v5668 = vld [vmem:[%s5611 + $0x1c0] sm:$0xff]
      %v5669 = vld [vmem:[%s5611 + $0x1c8] sm:$0xff]
      %v5670 = vld [vmem:[%s5611 + $0x1d0] sm:$0xff]
      %v5671 = vld [vmem:[%s5611 + $0x1d8] sm:$0xff]
      %v5672 = vld [vmem:[%s5611 + $0x1e0] sm:$0xff]
      %v5673 = vld [vmem:[%s5611 + $0x1e8] sm:$0xff]
      %v5674 = vld [vmem:[%s5611 + $0x1f0] sm:$0xff]
      %v5675 = vld [vmem:[%s5611 + $0x1f8] sm:$0xff]
      %v5676 = vld [vmem:[%s5611 + $0x200] sm:$0xff]
      %v5677 = vld [vmem:[%s5611 + $0x208] sm:$0xff]
      %v5678 = vld [vmem:[%s5611 + $0x210] sm:$0xff]
      %v5679 = vld [vmem:[%s5611 + $0x218] sm:$0xff]
      %v5680 = vld [vmem:[%s5611 + $0x220] sm:$0xff]
      %v5681 = vld [vmem:[%s5611 + $0x228] sm:$0xff]
      %v5682 = vld [vmem:[%s5611 + $0x230] sm:$0xff]
      %v5683 = vld [vmem:[%s5611 + $0x238] sm:$0xff]
      %v5684 = vld [vmem:[%s5611 + $0x240] sm:$0xff]
      %v5685 = vld [vmem:[%s5611 + $0x248] sm:$0xff]
      %v5686 = vld [vmem:[%s5611 + $0x250] sm:$0xff]
      %v5687 = vld [vmem:[%s5611 + $0x258] sm:$0xff]
      %v5688 = vld [vmem:[%s5611 + $0x260] sm:$0xff]
      %v5689 = vld [vmem:[%s5611 + $0x268] sm:$0xff]
      %v5690 = vld [vmem:[%s5611 + $0x270] sm:$0xff]
      %v5691 = vld [vmem:[%s5611 + $0x278] sm:$0xff]
      %v5692 = vld [vmem:[%s5611 + $0x280] sm:$0xff]
      %v5693 = vld [vmem:[%s5611 + $0x288] sm:$0xff]
      %v5694 = vld [vmem:[%s5611 + $0x290] sm:$0xff]
      %v5695 = vld [vmem:[%s5611 + $0x298] sm:$0xff]
      %v5696 = vld [vmem:[%s5611 + $0x2a0] sm:$0xff]
      %v5697 = vld [vmem:[%s5611 + $0x2a8] sm:$0xff]
      %v5698 = vld [vmem:[%s5611 + $0x2b0] sm:$0xff]
      %v5699 = vld [vmem:[%s5611 + $0x2b8] sm:$0xff]
      %v5700 = vld [vmem:[%s5611 + $0x2c0] sm:$0xff]
      %v5701 = vld [vmem:[%s5611 + $0x2c8] sm:$0xff]
      %v5702 = vld [vmem:[%s5611 + $0x2d0] sm:$0xff]
      %v5703 = vld [vmem:[%s5611 + $0x2d8] sm:$0xff]
      %v5704 = vld [vmem:[%s5611 + $0x2e0] sm:$0xff]
      %v5705 = vld [vmem:[%s5611 + $0x2e8] sm:$0xff]
      %v5706 = vld [vmem:[%s5611 + $0x2f0] sm:$0xff]
      %v5707 = vld [vmem:[%s5611 + $0x2f8] sm:$0xff]
      %v5708 = vld [vmem:[%s5611 + $0x300] sm:$0xff]
      %v5709 = vld [vmem:[%s5611 + $0x308] sm:$0xff]
      %v5710 = vld [vmem:[%s5611 + $0x310] sm:$0xff]
      %v5711 = vld [vmem:[%s5611 + $0x318] sm:$0xff]
      %v5712 = vld [vmem:[%s5611 + $0x320] sm:$0xff]
      %v5713 = vld [vmem:[%s5611 + $0x328] sm:$0xff]
      %v5714 = vld [vmem:[%s5611 + $0x330] sm:$0xff]
      %v5715 = vld [vmem:[%s5611 + $0x338] sm:$0xff]
      %v5716 = vld [vmem:[%s5611 + $0x340] sm:$0xff]
      %v5717 = vld [vmem:[%s5611 + $0x348] sm:$0xff]
      %v5718 = vld [vmem:[%s5611 + $0x350] sm:$0xff]
      %v5719 = vld [vmem:[%s5611 + $0x358] sm:$0xff]
      %v5720 = vld [vmem:[%s5611 + $0x360] sm:$0xff]
      %v5721 = vld [vmem:[%s5611 + $0x368] sm:$0xff]
      %v5722 = vld [vmem:[%s5611 + $0x370] sm:$0xff]
      %v5723 = vld [vmem:[%s5611 + $0x378] sm:$0xff]
      %v5724 = vld [vmem:[%s5611 + $0x380] sm:$0xff]
      %v5725 = vld [vmem:[%s5611 + $0x388] sm:$0xff]
      %v5726 = vld [vmem:[%s5611 + $0x390] sm:$0xff]
      %v5727 = vld [vmem:[%s5611 + $0x398] sm:$0xff]
      %v5728 = vld [vmem:[%s5611 + $0x3a0] sm:$0xff]
      %v5729 = vld [vmem:[%s5611 + $0x3a8] sm:$0xff]
      %v5730 = vld [vmem:[%s5611 + $0x3b0] sm:$0xff]
      %v5731 = vld [vmem:[%s5611 + $0x3b8] sm:$0xff]
      %v5732 = vld [vmem:[%s5611 + $0x3c0] sm:$0xff]
      %v5733 = vld [vmem:[%s5611 + $0x3c8] sm:$0xff]
      %v5734 = vld [vmem:[%s5611 + $0x3d0] sm:$0xff]
      %v5735 = vld [vmem:[%s5611 + $0x3d8] sm:$0xff]
      %v5736 = vld [vmem:[%s5611 + $0x3e0] sm:$0xff]
      %v5737 = vld [vmem:[%s5611 + $0x3e8] sm:$0xff]
      %v5738 = vld [vmem:[%s5611 + $0x3f0] sm:$0xff]
      %v5739 = vld [vmem:[%s5611 + $0x3f8] sm:$0xff]
      %v5868 = vunpack.c.l.b16 %v5612
      %v5869 = vunpack.c.h.b16 %v5612
      %v5870 = vunpack.c.l.b16 %v5613
      %v5871 = vunpack.c.h.b16 %v5613
      %v5872 = vunpack.c.l.b16 %v5614
      %v5873 = vunpack.c.h.b16 %v5614
      %v5874 = vunpack.c.l.b16 %v5615
      %v5875 = vunpack.c.h.b16 %v5615
      %v5876 = vunpack.c.l.b16 %v5616
      %v5877 = vunpack.c.h.b16 %v5616
      %v5878 = vunpack.c.l.b16 %v5617
      %v5879 = vunpack.c.h.b16 %v5617
      %v5880 = vunpack.c.l.b16 %v5618
      %v5881 = vunpack.c.h.b16 %v5618
      %v5882 = vunpack.c.l.b16 %v5619
      %v5883 = vunpack.c.h.b16 %v5619
      %v5884 = vunpack.c.l.b16 %v5620
      %v5885 = vunpack.c.h.b16 %v5620
      %v5886 = vunpack.c.l.b16 %v5621
      %v5887 = vunpack.c.h.b16 %v5621
      %v5888 = vunpack.c.l.b16 %v5622
      %v5889 = vunpack.c.h.b16 %v5622
      %v5890 = vunpack.c.l.b16 %v5623
      %v5891 = vunpack.c.h.b16 %v5623
      %v5892 = vunpack.c.l.b16 %v5624
      %v5893 = vunpack.c.h.b16 %v5624
      %v5894 = vunpack.c.l.b16 %v5625
      %v5895 = vunpack.c.h.b16 %v5625
      %v5896 = vunpack.c.l.b16 %v5626
      %v5897 = vunpack.c.h.b16 %v5626
      %v5898 = vunpack.c.l.b16 %v5627
      %v5899 = vunpack.c.h.b16 %v5627
      %v5900 = vunpack.c.l.b16 %v5628
      %v5901 = vunpack.c.h.b16 %v5628
      %v5902 = vunpack.c.l.b16 %v5629
      %v5903 = vunpack.c.h.b16 %v5629
      %v5904 = vunpack.c.l.b16 %v5630
      %v5905 = vunpack.c.h.b16 %v5630
      %v5906 = vunpack.c.l.b16 %v5631
      %v5907 = vunpack.c.h.b16 %v5631
      %v5908 = vunpack.c.l.b16 %v5632
      %v5909 = vunpack.c.h.b16 %v5632
      %v5910 = vunpack.c.l.b16 %v5633
      %v5911 = vunpack.c.h.b16 %v5633
      %v5912 = vunpack.c.l.b16 %v5634
      %v5913 = vunpack.c.h.b16 %v5634
      %v5914 = vunpack.c.l.b16 %v5635
      %v5915 = vunpack.c.h.b16 %v5635
      %v5916 = vunpack.c.l.b16 %v5636
      %v5917 = vunpack.c.h.b16 %v5636
      %v5918 = vunpack.c.l.b16 %v5637
      %v5919 = vunpack.c.h.b16 %v5637
      %v5920 = vunpack.c.l.b16 %v5638
      %v5921 = vunpack.c.h.b16 %v5638
      %v5922 = vunpack.c.l.b16 %v5639
      %v5923 = vunpack.c.h.b16 %v5639
      %v5924 = vunpack.c.l.b16 %v5640
      %v5925 = vunpack.c.h.b16 %v5640
      %v5926 = vunpack.c.l.b16 %v5641
      %v5927 = vunpack.c.h.b16 %v5641
      %v5928 = vunpack.c.l.b16 %v5642
      %v5929 = vunpack.c.h.b16 %v5642
      %v5930 = vunpack.c.l.b16 %v5643
      %v5931 = vunpack.c.h.b16 %v5643
      %v5932 = vunpack.c.l.b16 %v5644
      %v5933 = vunpack.c.h.b16 %v5644
      %v5934 = vunpack.c.l.b16 %v5645
      %v5935 = vunpack.c.h.b16 %v5645
      %v5936 = vunpack.c.l.b16 %v5646
      %v5937 = vunpack.c.h.b16 %v5646
      %v5938 = vunpack.c.l.b16 %v5647
      %v5939 = vunpack.c.h.b16 %v5647
      %v5940 = vunpack.c.l.b16 %v5648
      %v5941 = vunpack.c.h.b16 %v5648
      %v5942 = vunpack.c.l.b16 %v5649
      %v5943 = vunpack.c.h.b16 %v5649
      %v5944 = vunpack.c.l.b16 %v5650
      %v5945 = vunpack.c.h.b16 %v5650
      %v5946 = vunpack.c.l.b16 %v5651
      %v5947 = vunpack.c.h.b16 %v5651
      %v5948 = vunpack.c.l.b16 %v5652
      %v5949 = vunpack.c.h.b16 %v5652
      %v5950 = vunpack.c.l.b16 %v5653
      %v5951 = vunpack.c.h.b16 %v5653
      %v5952 = vunpack.c.l.b16 %v5654
      %v5953 = vunpack.c.h.b16 %v5654
      %v5954 = vunpack.c.l.b16 %v5655
      %v5955 = vunpack.c.h.b16 %v5655
      %v5956 = vunpack.c.l.b16 %v5656
      %v5957 = vunpack.c.h.b16 %v5656
      %v5958 = vunpack.c.l.b16 %v5657
      %v5959 = vunpack.c.h.b16 %v5657
      %v5960 = vunpack.c.l.b16 %v5658
      %v5961 = vunpack.c.h.b16 %v5658
      %v5962 = vunpack.c.l.b16 %v5659
      %v5963 = vunpack.c.h.b16 %v5659
      %v5964 = vunpack.c.l.b16 %v5660
      %v5965 = vunpack.c.h.b16 %v5660
      %v5966 = vunpack.c.l.b16 %v5661
      %v5967 = vunpack.c.h.b16 %v5661
      %v5968 = vunpack.c.l.b16 %v5662
      %v5969 = vunpack.c.h.b16 %v5662
      %v5970 = vunpack.c.l.b16 %v5663
      %v5971 = vunpack.c.h.b16 %v5663
      %v5972 = vunpack.c.l.b16 %v5664
      %v5973 = vunpack.c.h.b16 %v5664
      %v5974 = vunpack.c.l.b16 %v5665
      %v5975 = vunpack.c.h.b16 %v5665
      %v5976 = vunpack.c.l.b16 %v5666
      %v5977 = vunpack.c.h.b16 %v5666
      %v5978 = vunpack.c.l.b16 %v5667
      %v5979 = vunpack.c.h.b16 %v5667
      %v5980 = vunpack.c.l.b16 %v5668
      %v5981 = vunpack.c.h.b16 %v5668
      %v5982 = vunpack.c.l.b16 %v5669
      %v5983 = vunpack.c.h.b16 %v5669
      %v5984 = vunpack.c.l.b16 %v5670
      %v5985 = vunpack.c.h.b16 %v5670
      %v5986 = vunpack.c.l.b16 %v5671
      %v5987 = vunpack.c.h.b16 %v5671
      %v5988 = vunpack.c.l.b16 %v5672
      %v5989 = vunpack.c.h.b16 %v5672
      %v5990 = vunpack.c.l.b16 %v5673
      %v5991 = vunpack.c.h.b16 %v5673
      %v5992 = vunpack.c.l.b16 %v5674
      %v5993 = vunpack.c.h.b16 %v5674
      %v5994 = vunpack.c.l.b16 %v5675
      %v5995 = vunpack.c.h.b16 %v5675
      %v5996 = vunpack.c.l.b16 %v5676
      %v5997 = vunpack.c.h.b16 %v5676
      %v5998 = vunpack.c.l.b16 %v5677
      %v5999 = vunpack.c.h.b16 %v5677
      %v6000 = vunpack.c.l.b16 %v5678
      %v6001 = vunpack.c.h.b16 %v5678
      %v6002 = vunpack.c.l.b16 %v5679
      %v6003 = vunpack.c.h.b16 %v5679
      %v6004 = vunpack.c.l.b16 %v5680
      %v6005 = vunpack.c.h.b16 %v5680
      %v6006 = vunpack.c.l.b16 %v5681
      %v6007 = vunpack.c.h.b16 %v5681
      %v6008 = vunpack.c.l.b16 %v5682
      %v6009 = vunpack.c.h.b16 %v5682
      %v6010 = vunpack.c.l.b16 %v5683
      %v6011 = vunpack.c.h.b16 %v5683
      %v6012 = vunpack.c.l.b16 %v5684
      %v6013 = vunpack.c.h.b16 %v5684
      %v6014 = vunpack.c.l.b16 %v5685
      %v6015 = vunpack.c.h.b16 %v5685
      %v6016 = vunpack.c.l.b16 %v5686
      %v6017 = vunpack.c.h.b16 %v5686
      %v6018 = vunpack.c.l.b16 %v5687
      %v6019 = vunpack.c.h.b16 %v5687
      %v6020 = vunpack.c.l.b16 %v5688
      %v6021 = vunpack.c.h.b16 %v5688
      %v6022 = vunpack.c.l.b16 %v5689
      %v6023 = vunpack.c.h.b16 %v5689
      %v6024 = vunpack.c.l.b16 %v5690
      %v6025 = vunpack.c.h.b16 %v5690
      %v6026 = vunpack.c.l.b16 %v5691
      %v6027 = vunpack.c.h.b16 %v5691
      %v6028 = vunpack.c.l.b16 %v5692
      %v6029 = vunpack.c.h.b16 %v5692
      %v6030 = vunpack.c.l.b16 %v5693
      %v6031 = vunpack.c.h.b16 %v5693
      %v6032 = vunpack.c.l.b16 %v5694
      %v6033 = vunpack.c.h.b16 %v5694
      %v6034 = vunpack.c.l.b16 %v5695
      %v6035 = vunpack.c.h.b16 %v5695
      %v6036 = vunpack.c.l.b16 %v5696
      %v6037 = vunpack.c.h.b16 %v5696
      %v6038 = vunpack.c.l.b16 %v5697
      %v6039 = vunpack.c.h.b16 %v5697
      %v6040 = vunpack.c.l.b16 %v5698
      %v6041 = vunpack.c.h.b16 %v5698
      %v6042 = vunpack.c.l.b16 %v5699
      %v6043 = vunpack.c.h.b16 %v5699
      %v6044 = vunpack.c.l.b16 %v5700
      %v6045 = vunpack.c.h.b16 %v5700
      %v6046 = vunpack.c.l.b16 %v5701
      %v6047 = vunpack.c.h.b16 %v5701
      %v6048 = vunpack.c.l.b16 %v5702
      %v6049 = vunpack.c.h.b16 %v5702
      %v6050 = vunpack.c.l.b16 %v5703
      %v6051 = vunpack.c.h.b16 %v5703
      %v6052 = vunpack.c.l.b16 %v5704
      %v6053 = vunpack.c.h.b16 %v5704
      %v6054 = vunpack.c.l.b16 %v5705
      %v6055 = vunpack.c.h.b16 %v5705
      %v6056 = vunpack.c.l.b16 %v5706
      %v6057 = vunpack.c.h.b16 %v5706
      %v6058 = vunpack.c.l.b16 %v5707
      %v6059 = vunpack.c.h.b16 %v5707
      %v6060 = vunpack.c.l.b16 %v5708
      %v6061 = vunpack.c.h.b16 %v5708
      %v6062 = vunpack.c.l.b16 %v5709
      %v6063 = vunpack.c.h.b16 %v5709
      %v6064 = vunpack.c.l.b16 %v5710
      %v6065 = vunpack.c.h.b16 %v5710
      %v6066 = vunpack.c.l.b16 %v5711
      %v6067 = vunpack.c.h.b16 %v5711
      %v6068 = vunpack.c.l.b16 %v5712
      %v6069 = vunpack.c.h.b16 %v5712
      %v6070 = vunpack.c.l.b16 %v5713
      %v6071 = vunpack.c.h.b16 %v5713
      %v6072 = vunpack.c.l.b16 %v5714
      %v6073 = vunpack.c.h.b16 %v5714
      %v6074 = vunpack.c.l.b16 %v5715
      %v6075 = vunpack.c.h.b16 %v5715
      %v6076 = vunpack.c.l.b16 %v5716
      %v6077 = vunpack.c.h.b16 %v5716
      %v6078 = vunpack.c.l.b16 %v5717
      %v6079 = vunpack.c.h.b16 %v5717
      %v6080 = vunpack.c.l.b16 %v5718
      %v6081 = vunpack.c.h.b16 %v5718
      %v6082 = vunpack.c.l.b16 %v5719
      %v6083 = vunpack.c.h.b16 %v5719
      %v6084 = vunpack.c.l.b16 %v5720
      %v6085 = vunpack.c.h.b16 %v5720
      %v6086 = vunpack.c.l.b16 %v5721
      %v6087 = vunpack.c.h.b16 %v5721
      %v6088 = vunpack.c.l.b16 %v5722
      %v6089 = vunpack.c.h.b16 %v5722
      %v6090 = vunpack.c.l.b16 %v5723
      %v6091 = vunpack.c.h.b16 %v5723
      %v6092 = vunpack.c.l.b16 %v5724
      %v6093 = vunpack.c.h.b16 %v5724
      %v6094 = vunpack.c.l.b16 %v5725
      %v6095 = vunpack.c.h.b16 %v5725
      %v6096 = vunpack.c.l.b16 %v5726
      %v6097 = vunpack.c.h.b16 %v5726
      %v6098 = vunpack.c.l.b16 %v5727
      %v6099 = vunpack.c.h.b16 %v5727
      %v6100 = vunpack.c.l.b16 %v5728
      %v6101 = vunpack.c.h.b16 %v5728
      %v6102 = vunpack.c.l.b16 %v5729
      %v6103 = vunpack.c.h.b16 %v5729
      %v6104 = vunpack.c.l.b16 %v5730
      %v6105 = vunpack.c.h.b16 %v5730
      %v6106 = vunpack.c.l.b16 %v5731
      %v6107 = vunpack.c.h.b16 %v5731
      %v6108 = vunpack.c.l.b16 %v5732
      %v6109 = vunpack.c.h.b16 %v5732
      %v6110 = vunpack.c.l.b16 %v5733
      %v6111 = vunpack.c.h.b16 %v5733
      %v6112 = vunpack.c.l.b16 %v5734
      %v6113 = vunpack.c.h.b16 %v5734
      %v6114 = vunpack.c.l.b16 %v5735
      %v6115 = vunpack.c.h.b16 %v5735
      %v6116 = vunpack.c.l.b16 %v5736
      %v6117 = vunpack.c.h.b16 %v5736
      %v6118 = vunpack.c.l.b16 %v5737
      %v6119 = vunpack.c.h.b16 %v5737
      %v6120 = vunpack.c.l.b16 %v5738
      %v6121 = vunpack.c.h.b16 %v5738
      %v6122 = vunpack.c.l.b16 %v5739
      %v6123 = vunpack.c.h.b16 %v5739
      %v6124 = vpack.c.b16 %v5872, %v5868
      %v6125 = vpack.c.b16 %v5873, %v5869
      %v6126 = vpack.c.b16 %v5874, %v5870
      %v6127 = vpack.c.b16 %v5875, %v5871
      %v6128 = vpack.c.b16 %v5880, %v5876
      %v6129 = vpack.c.b16 %v5881, %v5877
      %v6130 = vpack.c.b16 %v5882, %v5878
      %v6131 = vpack.c.b16 %v5883, %v5879
      %v6132 = vpack.c.b16 %v5888, %v5884
      %v6133 = vpack.c.b16 %v5889, %v5885
      %v6134 = vpack.c.b16 %v5890, %v5886
      %v6135 = vpack.c.b16 %v5891, %v5887
      %v6136 = vpack.c.b16 %v5896, %v5892
      %v6137 = vpack.c.b16 %v5897, %v5893
      %v6138 = vpack.c.b16 %v5898, %v5894
      %v6139 = vpack.c.b16 %v5899, %v5895
      %v6140 = vpack.c.b16 %v5904, %v5900
      %v6141 = vpack.c.b16 %v5905, %v5901
      %v6142 = vpack.c.b16 %v5906, %v5902
      %v6143 = vpack.c.b16 %v5907, %v5903
      %v6144 = vpack.c.b16 %v5912, %v5908
      %v6145 = vpack.c.b16 %v5913, %v5909
      %v6146 = vpack.c.b16 %v5914, %v5910
      %v6147 = vpack.c.b16 %v5915, %v5911
      %v6148 = vpack.c.b16 %v5920, %v5916
      %v6149 = vpack.c.b16 %v5921, %v5917
      %v6150 = vpack.c.b16 %v5922, %v5918
      %v6151 = vpack.c.b16 %v5923, %v5919
      %v6152 = vpack.c.b16 %v5928, %v5924
      %v6153 = vpack.c.b16 %v5929, %v5925
      %v6154 = vpack.c.b16 %v5930, %v5926
      %v6155 = vpack.c.b16 %v5931, %v5927
      %v6156 = vpack.c.b16 %v5936, %v5932
      %v6157 = vpack.c.b16 %v5937, %v5933
      %v6158 = vpack.c.b16 %v5938, %v5934
      %v6159 = vpack.c.b16 %v5939, %v5935
      %v6160 = vpack.c.b16 %v5944, %v5940
      %v6161 = vpack.c.b16 %v5945, %v5941
      %v6162 = vpack.c.b16 %v5946, %v5942
      %v6163 = vpack.c.b16 %v5947, %v5943
      %v6164 = vpack.c.b16 %v5952, %v5948
      %v6165 = vpack.c.b16 %v5953, %v5949
      %v6166 = vpack.c.b16 %v5954, %v5950
      %v6167 = vpack.c.b16 %v5955, %v5951
      %v6168 = vpack.c.b16 %v5960, %v5956
      %v6169 = vpack.c.b16 %v5961, %v5957
      %v6170 = vpack.c.b16 %v5962, %v5958
      %v6171 = vpack.c.b16 %v5963, %v5959
      %v6172 = vpack.c.b16 %v5968, %v5964
      %v6173 = vpack.c.b16 %v5969, %v5965
      %v6174 = vpack.c.b16 %v5970, %v5966
      %v6175 = vpack.c.b16 %v5971, %v5967
      %v6176 = vpack.c.b16 %v5976, %v5972
      %v6177 = vpack.c.b16 %v5977, %v5973
      %v6178 = vpack.c.b16 %v5978, %v5974
      %v6179 = vpack.c.b16 %v5979, %v5975
      %v6180 = vpack.c.b16 %v5984, %v5980
      %v6181 = vpack.c.b16 %v5985, %v5981
      %v6182 = vpack.c.b16 %v5986, %v5982
      %v6183 = vpack.c.b16 %v5987, %v5983
      %v6184 = vpack.c.b16 %v5992, %v5988
      %v6185 = vpack.c.b16 %v5993, %v5989
      %v6186 = vpack.c.b16 %v5994, %v5990
      %v6187 = vpack.c.b16 %v5995, %v5991
      %v6188 = vpack.c.b16 %v6000, %v5996
      %v6189 = vpack.c.b16 %v6001, %v5997
      %v6190 = vpack.c.b16 %v6002, %v5998
      %v6191 = vpack.c.b16 %v6003, %v5999
      %v6192 = vpack.c.b16 %v6008, %v6004
      %v6193 = vpack.c.b16 %v6009, %v6005
      %v6194 = vpack.c.b16 %v6010, %v6006
      %v6195 = vpack.c.b16 %v6011, %v6007
      %v6196 = vpack.c.b16 %v6016, %v6012
      %v6197 = vpack.c.b16 %v6017, %v6013
      %v6198 = vpack.c.b16 %v6018, %v6014
      %v6199 = vpack.c.b16 %v6019, %v6015
      %v6200 = vpack.c.b16 %v6024, %v6020
      %v6201 = vpack.c.b16 %v6025, %v6021
      %v6202 = vpack.c.b16 %v6026, %v6022
      %v6203 = vpack.c.b16 %v6027, %v6023
      %v6204 = vpack.c.b16 %v6032, %v6028
      %v6205 = vpack.c.b16 %v6033, %v6029
      %v6206 = vpack.c.b16 %v6034, %v6030
      %v6207 = vpack.c.b16 %v6035, %v6031
      %v6208 = vpack.c.b16 %v6040, %v6036
      %v6209 = vpack.c.b16 %v6041, %v6037
      %v6210 = vpack.c.b16 %v6042, %v6038
      %v6211 = vpack.c.b16 %v6043, %v6039
      %v6212 = vpack.c.b16 %v6048, %v6044
      %v6213 = vpack.c.b16 %v6049, %v6045
      %v6214 = vpack.c.b16 %v6050, %v6046
      %v6215 = vpack.c.b16 %v6051, %v6047
      %v6216 = vpack.c.b16 %v6056, %v6052
      %v6217 = vpack.c.b16 %v6057, %v6053
      %v6218 = vpack.c.b16 %v6058, %v6054
      %v6219 = vpack.c.b16 %v6059, %v6055
      %v6220 = vpack.c.b16 %v6064, %v6060
      %v6221 = vpack.c.b16 %v6065, %v6061
      %v6222 = vpack.c.b16 %v6066, %v6062
      %v6223 = vpack.c.b16 %v6067, %v6063
      %v6224 = vpack.c.b16 %v6072, %v6068
      %v6225 = vpack.c.b16 %v6073, %v6069
      %v6226 = vpack.c.b16 %v6074, %v6070
      %v6227 = vpack.c.b16 %v6075, %v6071
      %v6228 = vpack.c.b16 %v6080, %v6076
      %v6229 = vpack.c.b16 %v6081, %v6077
      %v6230 = vpack.c.b16 %v6082, %v6078
      %v6231 = vpack.c.b16 %v6083, %v6079
      %v6232 = vpack.c.b16 %v6088, %v6084
      %v6233 = vpack.c.b16 %v6089, %v6085
      %v6234 = vpack.c.b16 %v6090, %v6086
      %v6235 = vpack.c.b16 %v6091, %v6087
      %v6236 = vpack.c.b16 %v6096, %v6092
      %v6237 = vpack.c.b16 %v6097, %v6093
      %v6238 = vpack.c.b16 %v6098, %v6094
      %v6239 = vpack.c.b16 %v6099, %v6095
      %v6240 = vpack.c.b16 %v6104, %v6100
      %v6241 = vpack.c.b16 %v6105, %v6101
      %v6242 = vpack.c.b16 %v6106, %v6102
      %v6243 = vpack.c.b16 %v6107, %v6103
      %v6244 = vpack.c.b16 %v6112, %v6108
      %v6245 = vpack.c.b16 %v6113, %v6109
      %v6246 = vpack.c.b16 %v6114, %v6110
      %v6247 = vpack.c.b16 %v6115, %v6111
      %v6248 = vpack.c.b16 %v6120, %v6116
      %v6249 = vpack.c.b16 %v6121, %v6117
      %v6250 = vpack.c.b16 %v6122, %v6118
      %v6251 = vpack.c.b16 %v6123, %v6119
      %6380 = vmatprep.subr.bf16.mxu0 %v6125
      %6381 = vmatpush1.bf16.msra.mxu0 %v6124
      %6382 = vmatprep.subr.bf16.mxu0 %v6129
      %6383 = vmatpush1.bf16.msra.mxu0 %v6128
      %6384 = vmatprep.subr.bf16.mxu0 %v6133
      %6385 = vmatpush1.bf16.msra.mxu0 %v6132
      %6386 = vmatprep.subr.bf16.mxu0 %v6137
      %6387 = vmatpush1.bf16.msra.mxu0 %v6136
      %6388 = vmatprep.subr.bf16.mxu0 %v6141
      %6389 = vmatpush1.bf16.msra.mxu0 %v6140
      %6390 = vmatprep.subr.bf16.mxu0 %v6145
      %6391 = vmatpush1.bf16.msra.mxu0 %v6144
      %6392 = vmatprep.subr.bf16.mxu0 %v6149
      %6393 = vmatpush1.bf16.msra.mxu0 %v6148
      %6394 = vmatprep.subr.bf16.mxu0 %v6153
      %6395 = vmatpush1.bf16.msra.mxu0 %v6152
      %6396 = vmatprep.subr.bf16.mxu0 %v6157
      %6397 = vmatpush1.bf16.msra.mxu0 %v6156
      %6398 = vmatprep.subr.bf16.mxu0 %v6161
      %6399 = vmatpush1.bf16.msra.mxu0 %v6160
      %6400 = vmatprep.subr.bf16.mxu0 %v6165
      %6401 = vmatpush1.bf16.msra.mxu0 %v6164
      %6402 = vmatprep.subr.bf16.mxu0 %v6169
      %6403 = vmatpush1.bf16.msra.mxu0 %v6168
      %6404 = vmatprep.subr.bf16.mxu0 %v6173
      %6405 = vmatpush1.bf16.msra.mxu0 %v6172
      %6406 = vmatprep.subr.bf16.mxu0 %v6177
      %6407 = vmatpush1.bf16.msra.mxu0 %v6176
      %6408 = vmatprep.subr.bf16.mxu0 %v6181
      %6409 = vmatpush1.bf16.msra.mxu0 %v6180
      %6410 = vmatprep.subr.bf16.mxu0 %v6185
      %6411 = vmatpush1.bf16.msra.mxu0 %v6184
      %6412 = vmatprep.mubr.bf16.mxu0 %v5604
      %6413 = vmatmul.mubr.bf16.gmra.mrb[0].mxu0 %v5603
      %v6414 = vpop.f32.mrb[0].mxu0
      %v6415 = vadd.f32 0.0, %v6414
      %v6416 = vpop.f32.mrb[0].mxu0
      %v6417 = vadd.f32 0.0, %v6416
      %v6418 = vpop.f32.mrb[0].mxu0
      %v6419 = vadd.f32 0.0, %v6418
      %v6420 = vpop.f32.mrb[0].mxu0
      %v6421 = vadd.f32 0.0, %v6420
      %6422 = vmatprep.mubr.bf16.mxu0 %v5608
      %6423 = vmatmul.mubr.bf16.gmra.mrb[0].mxu0 %v5607
      %v6424 = vpop.f32.mrb[0].mxu0
      %v6425 = vadd.f32 0.0, %v6424
      %v6426 = vpop.f32.mrb[0].mxu0
      %v6427 = vadd.f32 0.0, %v6426
      %v6428 = vpop.f32.mrb[0].mxu0
      %v6429 = vadd.f32 0.0, %v6428
      %v6430 = vpop.f32.mrb[0].mxu0
      %v6431 = vadd.f32 0.0, %v6430
      %6432 = vdwg.mxu0
      %6433 = vmatprep.subr.bf16.mxu0 %v6189
      %6434 = vmatpush1.bf16.msra.mxu0 %v6188
      %6435 = vmatprep.subr.bf16.mxu0 %v6193
      %6436 = vmatpush1.bf16.msra.mxu0 %v6192
      %6437 = vmatprep.subr.bf16.mxu0 %v6197
      %6438 = vmatpush1.bf16.msra.mxu0 %v6196
      %6439 = vmatprep.subr.bf16.mxu0 %v6201
      %6440 = vmatpush1.bf16.msra.mxu0 %v6200
      %6441 = vmatprep.subr.bf16.mxu0 %v6205
      %6442 = vmatpush1.bf16.msra.mxu0 %v6204
      %6443 = vmatprep.subr.bf16.mxu0 %v6209
      %6444 = vmatpush1.bf16.msra.mxu0 %v6208
      %6445 = vmatprep.subr.bf16.mxu0 %v6213
      %6446 = vmatpush1.bf16.msra.mxu0 %v6212
      %6447 = vmatprep.subr.bf16.mxu0 %v6217
      %6448 = vmatpush1.bf16.msra.mxu0 %v6216
      %6449 = vmatprep.subr.bf16.mxu0 %v6221
      %6450 = vmatpush1.bf16.msra.mxu0 %v6220
      %6451 = vmatprep.subr.bf16.mxu0 %v6225
      %6452 = vmatpush1.bf16.msra.mxu0 %v6224
      %6453 = vmatprep.subr.bf16.mxu0 %v6229
      %6454 = vmatpush1.bf16.msra.mxu0 %v6228
      %6455 = vmatprep.subr.bf16.mxu0 %v6233
      %6456 = vmatpush1.bf16.msra.mxu0 %v6232
      %6457 = vmatprep.subr.bf16.mxu0 %v6237
      %6458 = vmatpush1.bf16.msra.mxu0 %v6236
      %6459 = vmatprep.subr.bf16.mxu0 %v6241
      %6460 = vmatpush1.bf16.msra.mxu0 %v6240
      %6461 = vmatprep.subr.bf16.mxu0 %v6245
      %6462 = vmatpush1.bf16.msra.mxu0 %v6244
      %6463 = vmatprep.subr.bf16.mxu0 %v6249
      %6464 = vmatpush1.bf16.msra.mxu0 %v6248
      %6465 = vmatprep.mubr.bf16.mxu0 %v5606
      %6466 = vmatmul.mubr.bf16.gmra.mrb[0].mxu0 %v5605
      %v6467 = vpop.f32.mrb[0].mxu0
      %v6468 = vadd.f32 %v6415, %v6467
      %v6469 = vpop.f32.mrb[0].mxu0
      %v6470 = vadd.f32 %v6417, %v6469
      %v6471 = vpop.f32.mrb[0].mxu0
      %v6472 = vadd.f32 %v6419, %v6471
      %v6473 = vpop.f32.mrb[0].mxu0
      %v6474 = vadd.f32 %v6421, %v6473
      %6475 = vmatprep.mubr.bf16.mxu0 %v5610
      %6476 = vmatmul.mubr.bf16.gmra.mrb[0].mxu0 %v5609
      %v6477 = vpop.f32.mrb[0].mxu0
      %v6478 = vadd.f32 %v6425, %v6477
      %v6479 = vpop.f32.mrb[0].mxu0
      %v6480 = vadd.f32 %v6427, %v6479
      %v6481 = vpop.f32.mrb[0].mxu0
      %v6482 = vadd.f32 %v6429, %v6481
      %v6483 = vpop.f32.mrb[0].mxu0
      %v6484 = vadd.f32 %v6431, %v6483
      %6485 = vdwg.mxu0
      %6486 = vmatprep.subr.bf16.mxu0 %v6127
      %6487 = vmatpush1.bf16.msra.mxu0 %v6126
      %6488 = vmatprep.subr.bf16.mxu0 %v6131
      %6489 = vmatpush1.bf16.msra.mxu0 %v6130
      %6490 = vmatprep.subr.bf16.mxu0 %v6135
      %6491 = vmatpush1.bf16.msra.mxu0 %v6134
      %6492 = vmatprep.subr.bf16.mxu0 %v6139
      %6493 = vmatpush1.bf16.msra.mxu0 %v6138
      %6494 = vmatprep.subr.bf16.mxu0 %v6143
      %6495 = vmatpush1.bf16.msra.mxu0 %v6142
      %6496 = vmatprep.subr.bf16.mxu0 %v6147
      %6497 = vmatpush1.bf16.msra.mxu0 %v6146
      %6498 = vmatprep.subr.bf16.mxu0 %v6151
      %6499 = vmatpush1.bf16.msra.mxu0 %v6150
      %6500 = vmatprep.subr.bf16.mxu0 %v6155
      %6501 = vmatpush1.bf16.msra.mxu0 %v6154
      %6502 = vmatprep.subr.bf16.mxu0 %v6159
      %6503 = vmatpush1.bf16.msra.mxu0 %v6158
      %6504 = vmatprep.subr.bf16.mxu0 %v6163
      %6505 = vmatpush1.bf16.msra.mxu0 %v6162
      %6506 = vmatprep.subr.bf16.mxu0 %v6167
      %6507 = vmatpush1.bf16.msra.mxu0 %v6166
      %6508 = vmatprep.subr.bf16.mxu0 %v6171
      %6509 = vmatpush1.bf16.msra.mxu0 %v6170
      %6510 = vmatprep.subr.bf16.mxu0 %v6175
      %6511 = vmatpush1.bf16.msra.mxu0 %v6174
      %6512 = vmatprep.subr.bf16.mxu0 %v6179
      %6513 = vmatpush1.bf16.msra.mxu0 %v6178
      %6514 = vmatprep.subr.bf16.mxu0 %v6183
      %6515 = vmatpush1.bf16.msra.mxu0 %v6182
      %6516 = vmatprep.subr.bf16.mxu0 %v6187
      %6517 = vmatpush1.bf16.msra.mxu0 %v6186
      %6518 = vmatprep.mubr.bf16.mxu0 %v5604
      %6519 = vmatmul.mubr.bf16.gmra.mrb[0].mxu0 %v5603
      %v6520 = vpop.f32.mrb[0].mxu0
      %v6521 = vadd.f32 0.0, %v6520
      %v6522 = vpop.f32.mrb[0].mxu0
      %v6523 = vadd.f32 0.0, %v6522
      %v6524 = vpop.f32.mrb[0].mxu0
      %v6525 = vadd.f32 0.0, %v6524
      %v6526 = vpop.f32.mrb[0].mxu0
      %v6527 = vadd.f32 0.0, %v6526
      %6528 = vmatprep.mubr.bf16.mxu0 %v5608
      %6529 = vmatmul.mubr.bf16.gmra.mrb[0].mxu0 %v5607
      %v6530 = vpop.f32.mrb[0].mxu0
      %v6531 = vadd.f32 0.0, %v6530
      %v6532 = vpop.f32.mrb[0].mxu0
      %v6533 = vadd.f32 0.0, %v6532
      %v6534 = vpop.f32.mrb[0].mxu0
      %v6535 = vadd.f32 0.0, %v6534
      %v6536 = vpop.f32.mrb[0].mxu0
      %v6537 = vadd.f32 0.0, %v6536
      %6538 = vdwg.mxu0
      %6539 = vmatprep.subr.bf16.mxu0 %v6191
      %6540 = vmatpush1.bf16.msra.mxu0 %v6190
      %6541 = vmatprep.subr.bf16.mxu0 %v6195
      %6542 = vmatpush1.bf16.msra.mxu0 %v6194
      %6543 = vmatprep.subr.bf16.mxu0 %v6199
      %6544 = vmatpush1.bf16.msra.mxu0 %v6198
      %6545 = vmatprep.subr.bf16.mxu0 %v6203
      %6546 = vmatpush1.bf16.msra.mxu0 %v6202
      %6547 = vmatprep.subr.bf16.mxu0 %v6207
      %6548 = vmatpush1.bf16.msra.mxu0 %v6206
      %6549 = vmatprep.subr.bf16.mxu0 %v6211
      %6550 = vmatpush1.bf16.msra.mxu0 %v6210
      %6551 = vmatprep.subr.bf16.mxu0 %v6215
      %6552 = vmatpush1.bf16.msra.mxu0 %v6214
      %6553 = vmatprep.subr.bf16.mxu0 %v6219
      %6554 = vmatpush1.bf16.msra.mxu0 %v6218
      %6555 = vmatprep.subr.bf16.mxu0 %v6223
      %6556 = vmatpush1.bf16.msra.mxu0 %v6222
      %6557 = vmatprep.subr.bf16.mxu0 %v6227
      %6558 = vmatpush1.bf16.msra.mxu0 %v6226
      %6559 = vmatprep.subr.bf16.mxu0 %v6231
      %6560 = vmatpush1.bf16.msra.mxu0 %v6230
      %6561 = vmatprep.subr.bf16.mxu0 %v6235
      %6562 = vmatpush1.bf16.msra.mxu0 %v6234
      %6563 = vmatprep.subr.bf16.mxu0 %v6239
      %6564 = vmatpush1.bf16.msra.mxu0 %v6238
      %6565 = vmatprep.subr.bf16.mxu0 %v6243
      %6566 = vmatpush1.bf16.msra.mxu0 %v6242
      %6567 = vmatprep.subr.bf16.mxu0 %v6247
      %6568 = vmatpush1.bf16.msra.mxu0 %v6246
      %6569 = vmatprep.subr.bf16.mxu0 %v6251
      %6570 = vmatpush1.bf16.msra.mxu0 %v6250
      %6571 = vmatprep.mubr.bf16.mxu0 %v5606
      %6572 = vmatmul.mubr.bf16.gmra.mrb[0].mxu0 %v5605
      %v6573 = vpop.f32.mrb[0].mxu0
      %v6574 = vadd.f32 %v6521, %v6573
      %v6575 = vpop.f32.mrb[0].mxu0
      %v6576 = vadd.f32 %v6523, %v6575
      %v6577 = vpop.f32.mrb[0].mxu0
      %v6578 = vadd.f32 %v6525, %v6577
      %v6579 = vpop.f32.mrb[0].mxu0
      %v6580 = vadd.f32 %v6527, %v6579
      %6581 = vmatprep.mubr.bf16.mxu0 %v5610
      %6582 = vmatmul.mubr.bf16.gmra.mrb[0].mxu0 %v5609
      %v6583 = vpop.f32.mrb[0].mxu0
      %v6584 = vadd.f32 %v6531, %v6583
      %v6585 = vpop.f32.mrb[0].mxu0
      %v6586 = vadd.f32 %v6533, %v6585
      %v6587 = vpop.f32.mrb[0].mxu0
      %v6588 = vadd.f32 %v6535, %v6587
      %v6589 = vpop.f32.mrb[0].mxu0
      %v6590 = vadd.f32 %v6537, %v6589
      %6591 = vdwg.mxu0
      %v6720 = vunpack.c.l.b16 %v5379
      %v6721 = vunpack.c.h.b16 %v5379
      %v6722 = vunpack.c.l.b16 %v5380
      %v6723 = vunpack.c.h.b16 %v5380
      %v6724 = vunpack.c.l.b16 %v5381
      %v6725 = vunpack.c.h.b16 %v5381
      %v6726 = vunpack.c.l.b16 %v5382
      %v6727 = vunpack.c.h.b16 %v5382
      %v6728 = vunpack.c.l.b16 %v5383
      %v6729 = vunpack.c.h.b16 %v5383
      %v6730 = vunpack.c.l.b16 %v5384
      %v6731 = vunpack.c.h.b16 %v5384
      %v6732 = vunpack.c.l.b16 %v5385
      %v6733 = vunpack.c.h.b16 %v5385
      %v6734 = vunpack.c.l.b16 %v5386
      %v6735 = vunpack.c.h.b16 %v5386
      %v6736 = vunpack.c.l.b16 %v5387
      %v6737 = vunpack.c.h.b16 %v5387
      %v6738 = vunpack.c.l.b16 %v5388
      %v6739 = vunpack.c.h.b16 %v5388
      %v6740 = vunpack.c.l.b16 %v5389
      %v6741 = vunpack.c.h.b16 %v5389
      %v6742 = vunpack.c.l.b16 %v5390
      %v6743 = vunpack.c.h.b16 %v5390
      %v6744 = vunpack.c.l.b16 %v5391
      %v6745 = vunpack.c.h.b16 %v5391
      %v6746 = vunpack.c.l.b16 %v5392
      %v6747 = vunpack.c.h.b16 %v5392
      %v6748 = vunpack.c.l.b16 %v5393
      %v6749 = vunpack.c.h.b16 %v5393
      %v6750 = vunpack.c.l.b16 %v5394
      %v6751 = vunpack.c.h.b16 %v5394
      %v6752 = vunpack.c.l.b16 %v5395
      %v6753 = vunpack.c.h.b16 %v5395
      %v6754 = vunpack.c.l.b16 %v5396
      %v6755 = vunpack.c.h.b16 %v5396
      %v6756 = vunpack.c.l.b16 %v5397
      %v6757 = vunpack.c.h.b16 %v5397
      %v6758 = vunpack.c.l.b16 %v5398
      %v6759 = vunpack.c.h.b16 %v5398
      %v6760 = vunpack.c.l.b16 %v5399
      %v6761 = vunpack.c.h.b16 %v5399
      %v6762 = vunpack.c.l.b16 %v5400
      %v6763 = vunpack.c.h.b16 %v5400
      %v6764 = vunpack.c.l.b16 %v5401
      %v6765 = vunpack.c.h.b16 %v5401
      %v6766 = vunpack.c.l.b16 %v5402
      %v6767 = vunpack.c.h.b16 %v5402
      %v6768 = vunpack.c.l.b16 %v5403
      %v6769 = vunpack.c.h.b16 %v5403
      %v6770 = vunpack.c.l.b16 %v5404
      %v6771 = vunpack.c.h.b16 %v5404
      %v6772 = vunpack.c.l.b16 %v5405
      %v6773 = vunpack.c.h.b16 %v5405
      %v6774 = vunpack.c.l.b16 %v5406
      %v6775 = vunpack.c.h.b16 %v5406
      %v6776 = vunpack.c.l.b16 %v5407
      %v6777 = vunpack.c.h.b16 %v5407
      %v6778 = vunpack.c.l.b16 %v5408
      %v6779 = vunpack.c.h.b16 %v5408
      %v6780 = vunpack.c.l.b16 %v5409
      %v6781 = vunpack.c.h.b16 %v5409
      %v6782 = vunpack.c.l.b16 %v5410
      %v6783 = vunpack.c.h.b16 %v5410
      %v6784 = vunpack.c.l.b16 %v5411
      %v6785 = vunpack.c.h.b16 %v5411
      %v6786 = vunpack.c.l.b16 %v5412
      %v6787 = vunpack.c.h.b16 %v5412
      %v6788 = vunpack.c.l.b16 %v5413
      %v6789 = vunpack.c.h.b16 %v5413
      %v6790 = vunpack.c.l.b16 %v5414
      %v6791 = vunpack.c.h.b16 %v5414
      %v6792 = vunpack.c.l.b16 %v5415
      %v6793 = vunpack.c.h.b16 %v5415
      %v6794 = vunpack.c.l.b16 %v5416
      %v6795 = vunpack.c.h.b16 %v5416
      %v6796 = vunpack.c.l.b16 %v5417
      %v6797 = vunpack.c.h.b16 %v5417
      %v6798 = vunpack.c.l.b16 %v5418
      %v6799 = vunpack.c.h.b16 %v5418
      %v6800 = vunpack.c.l.b16 %v5419
      %v6801 = vunpack.c.h.b16 %v5419
      %v6802 = vunpack.c.l.b16 %v5420
      %v6803 = vunpack.c.h.b16 %v5420
      %v6804 = vunpack.c.l.b16 %v5421
      %v6805 = vunpack.c.h.b16 %v5421
      %v6806 = vunpack.c.l.b16 %v5422
      %v6807 = vunpack.c.h.b16 %v5422
      %v6808 = vunpack.c.l.b16 %v5423
      %v6809 = vunpack.c.h.b16 %v5423
      %v6810 = vunpack.c.l.b16 %v5424
      %v6811 = vunpack.c.h.b16 %v5424
      %v6812 = vunpack.c.l.b16 %v5425
      %v6813 = vunpack.c.h.b16 %v5425
      %v6814 = vunpack.c.l.b16 %v5426
      %v6815 = vunpack.c.h.b16 %v5426
      %v6816 = vunpack.c.l.b16 %v5427
      %v6817 = vunpack.c.h.b16 %v5427
      %v6818 = vunpack.c.l.b16 %v5428
      %v6819 = vunpack.c.h.b16 %v5428
      %v6820 = vunpack.c.l.b16 %v5429
      %v6821 = vunpack.c.h.b16 %v5429
      %v6822 = vunpack.c.l.b16 %v5430
      %v6823 = vunpack.c.h.b16 %v5430
      %v6824 = vunpack.c.l.b16 %v5431
      %v6825 = vunpack.c.h.b16 %v5431
      %v6826 = vunpack.c.l.b16 %v5432
      %v6827 = vunpack.c.h.b16 %v5432
      %v6828 = vunpack.c.l.b16 %v5433
      %v6829 = vunpack.c.h.b16 %v5433
      %v6830 = vunpack.c.l.b16 %v5434
      %v6831 = vunpack.c.h.b16 %v5434
      %v6832 = vunpack.c.l.b16 %v5435
      %v6833 = vunpack.c.h.b16 %v5435
      %v6834 = vunpack.c.l.b16 %v5436
      %v6835 = vunpack.c.h.b16 %v5436
      %v6836 = vunpack.c.l.b16 %v5437
      %v6837 = vunpack.c.h.b16 %v5437
      %v6838 = vunpack.c.l.b16 %v5438
      %v6839 = vunpack.c.h.b16 %v5438
      %v6840 = vunpack.c.l.b16 %v5439
      %v6841 = vunpack.c.h.b16 %v5439
      %v6842 = vunpack.c.l.b16 %v5440
      %v6843 = vunpack.c.h.b16 %v5440
      %v6844 = vunpack.c.l.b16 %v5441
      %v6845 = vunpack.c.h.b16 %v5441
      %v6846 = vunpack.c.l.b16 %v5442
      %v6847 = vunpack.c.h.b16 %v5442
      %v6848 = vunpack.c.l.b16 %v5443
      %v6849 = vunpack.c.h.b16 %v5443
      %v6850 = vunpack.c.l.b16 %v5444
      %v6851 = vunpack.c.h.b16 %v5444
      %v6852 = vunpack.c.l.b16 %v5445
      %v6853 = vunpack.c.h.b16 %v5445
      %v6854 = vunpack.c.l.b16 %v5446
      %v6855 = vunpack.c.h.b16 %v5446
      %v6856 = vunpack.c.l.b16 %v5447
      %v6857 = vunpack.c.h.b16 %v5447
      %v6858 = vunpack.c.l.b16 %v5448
      %v6859 = vunpack.c.h.b16 %v5448
      %v6860 = vunpack.c.l.b16 %v5449
      %v6861 = vunpack.c.h.b16 %v5449
      %v6862 = vunpack.c.l.b16 %v5450
      %v6863 = vunpack.c.h.b16 %v5450
      %v6864 = vunpack.c.l.b16 %v5451
      %v6865 = vunpack.c.h.b16 %v5451
      %v6866 = vunpack.c.l.b16 %v5452
      %v6867 = vunpack.c.h.b16 %v5452
      %v6868 = vunpack.c.l.b16 %v5453
      %v6869 = vunpack.c.h.b16 %v5453
      %v6870 = vunpack.c.l.b16 %v5454
      %v6871 = vunpack.c.h.b16 %v5454
      %v6872 = vunpack.c.l.b16 %v5455
      %v6873 = vunpack.c.h.b16 %v5455
      %v6874 = vunpack.c.l.b16 %v5456
      %v6875 = vunpack.c.h.b16 %v5456
      %v6876 = vunpack.c.l.b16 %v5457
      %v6877 = vunpack.c.h.b16 %v5457
      %v6878 = vunpack.c.l.b16 %v5458
      %v6879 = vunpack.c.h.b16 %v5458
      %v6880 = vunpack.c.l.b16 %v5459
      %v6881 = vunpack.c.h.b16 %v5459
      %v6882 = vunpack.c.l.b16 %v5460
      %v6883 = vunpack.c.h.b16 %v5460
      %v6884 = vunpack.c.l.b16 %v5461
      %v6885 = vunpack.c.h.b16 %v5461
      %v6886 = vunpack.c.l.b16 %v5462
      %v6887 = vunpack.c.h.b16 %v5462
      %v6888 = vunpack.c.l.b16 %v5463
      %v6889 = vunpack.c.h.b16 %v5463
      %v6890 = vunpack.c.l.b16 %v5464
      %v6891 = vunpack.c.h.b16 %v5464
      %v6892 = vunpack.c.l.b16 %v5465
      %v6893 = vunpack.c.h.b16 %v5465
      %v6894 = vunpack.c.l.b16 %v5466
      %v6895 = vunpack.c.h.b16 %v5466
      %v6896 = vunpack.c.l.b16 %v5467
      %v6897 = vunpack.c.h.b16 %v5467
      %v6898 = vunpack.c.l.b16 %v5468
      %v6899 = vunpack.c.h.b16 %v5468
      %v6900 = vunpack.c.l.b16 %v5469
      %v6901 = vunpack.c.h.b16 %v5469
      %v6902 = vunpack.c.l.b16 %v5470
      %v6903 = vunpack.c.h.b16 %v5470
      %v6904 = vunpack.c.l.b16 %v5471
      %v6905 = vunpack.c.h.b16 %v5471
      %v6906 = vunpack.c.l.b16 %v5472
      %v6907 = vunpack.c.h.b16 %v5472
      %v6908 = vunpack.c.l.b16 %v5473
      %v6909 = vunpack.c.h.b16 %v5473
      %v6910 = vunpack.c.l.b16 %v5474
      %v6911 = vunpack.c.h.b16 %v5474
      %v6912 = vunpack.c.l.b16 %v5475
      %v6913 = vunpack.c.h.b16 %v5475
      %v6914 = vunpack.c.l.b16 %v5476
      %v6915 = vunpack.c.h.b16 %v5476
      %v6916 = vunpack.c.l.b16 %v5477
      %v6917 = vunpack.c.h.b16 %v5477
      %v6918 = vunpack.c.l.b16 %v5478
      %v6919 = vunpack.c.h.b16 %v5478
      %v6920 = vunpack.c.l.b16 %v5479
      %v6921 = vunpack.c.h.b16 %v5479
      %v6922 = vunpack.c.l.b16 %v5480
      %v6923 = vunpack.c.h.b16 %v5480
      %v6924 = vunpack.c.l.b16 %v5481
      %v6925 = vunpack.c.h.b16 %v5481
      %v6926 = vunpack.c.l.b16 %v5482
      %v6927 = vunpack.c.h.b16 %v5482
      %v6928 = vunpack.c.l.b16 %v5483
      %v6929 = vunpack.c.h.b16 %v5483
      %v6930 = vunpack.c.l.b16 %v5484
      %v6931 = vunpack.c.h.b16 %v5484
      %v6932 = vunpack.c.l.b16 %v5485
      %v6933 = vunpack.c.h.b16 %v5485
      %v6934 = vunpack.c.l.b16 %v5486
      %v6935 = vunpack.c.h.b16 %v5486
      %v6936 = vunpack.c.l.b16 %v5487
      %v6937 = vunpack.c.h.b16 %v5487
      %v6938 = vunpack.c.l.b16 %v5488
      %v6939 = vunpack.c.h.b16 %v5488
      %v6940 = vunpack.c.l.b16 %v5489
      %v6941 = vunpack.c.h.b16 %v5489
      %v6942 = vunpack.c.l.b16 %v5490
      %v6943 = vunpack.c.h.b16 %v5490
      %v6944 = vunpack.c.l.b16 %v5491
      %v6945 = vunpack.c.h.b16 %v5491
      %v6946 = vunpack.c.l.b16 %v5492
      %v6947 = vunpack.c.h.b16 %v5492
      %v6948 = vunpack.c.l.b16 %v5493
      %v6949 = vunpack.c.h.b16 %v5493
      %v6950 = vunpack.c.l.b16 %v5494
      %v6951 = vunpack.c.h.b16 %v5494
      %v6952 = vunpack.c.l.b16 %v5495
      %v6953 = vunpack.c.h.b16 %v5495
      %v6954 = vunpack.c.l.b16 %v5496
      %v6955 = vunpack.c.h.b16 %v5496
      %v6956 = vunpack.c.l.b16 %v5497
      %v6957 = vunpack.c.h.b16 %v5497
      %v6958 = vunpack.c.l.b16 %v5498
      %v6959 = vunpack.c.h.b16 %v5498
      %v6960 = vunpack.c.l.b16 %v5499
      %v6961 = vunpack.c.h.b16 %v5499
      %v6962 = vunpack.c.l.b16 %v5500
      %v6963 = vunpack.c.h.b16 %v5500
      %v6964 = vunpack.c.l.b16 %v5501
      %v6965 = vunpack.c.h.b16 %v5501
      %v6966 = vunpack.c.l.b16 %v5502
      %v6967 = vunpack.c.h.b16 %v5502
      %v6968 = vunpack.c.l.b16 %v5503
      %v6969 = vunpack.c.h.b16 %v5503
      %v6970 = vunpack.c.l.b16 %v5504
      %v6971 = vunpack.c.h.b16 %v5504
      %v6972 = vunpack.c.l.b16 %v5505
      %v6973 = vunpack.c.h.b16 %v5505
      %v6974 = vunpack.c.l.b16 %v5506
      %v6975 = vunpack.c.h.b16 %v5506
      %v6976 = vpack.c.b16 %v6724, %v6720
      %v6977 = vpack.c.b16 %v6725, %v6721
      %v6978 = vpack.c.b16 %v6726, %v6722
      %v6979 = vpack.c.b16 %v6727, %v6723
      %v6980 = vpack.c.b16 %v6732, %v6728
      %v6981 = vpack.c.b16 %v6733, %v6729
      %v6982 = vpack.c.b16 %v6734, %v6730
      %v6983 = vpack.c.b16 %v6735, %v6731
      %v6984 = vpack.c.b16 %v6740, %v6736
      %v6985 = vpack.c.b16 %v6741, %v6737
      %v6986 = vpack.c.b16 %v6742, %v6738
      %v6987 = vpack.c.b16 %v6743, %v6739
      %v6988 = vpack.c.b16 %v6748, %v6744
      %v6989 = vpack.c.b16 %v6749, %v6745
      %v6990 = vpack.c.b16 %v6750, %v6746
      %v6991 = vpack.c.b16 %v6751, %v6747
      %v6992 = vpack.c.b16 %v6756, %v6752
      %v6993 = vpack.c.b16 %v6757, %v6753
      %v6994 = vpack.c.b16 %v6758, %v6754
      %v6995 = vpack.c.b16 %v6759, %v6755
      %v6996 = vpack.c.b16 %v6764, %v6760
      %v6997 = vpack.c.b16 %v6765, %v6761
      %v6998 = vpack.c.b16 %v6766, %v6762
      %v6999 = vpack.c.b16 %v6767, %v6763
      %v7000 = vpack.c.b16 %v6772, %v6768
      %v7001 = vpack.c.b16 %v6773, %v6769
      %v7002 = vpack.c.b16 %v6774, %v6770
      %v7003 = vpack.c.b16 %v6775, %v6771
      %v7004 = vpack.c.b16 %v6780, %v6776
      %v7005 = vpack.c.b16 %v6781, %v6777
      %v7006 = vpack.c.b16 %v6782, %v6778
      %v7007 = vpack.c.b16 %v6783, %v6779
      %v7008 = vpack.c.b16 %v6788, %v6784
      %v7009 = vpack.c.b16 %v6789, %v6785
      %v7010 = vpack.c.b16 %v6790, %v6786
      %v7011 = vpack.c.b16 %v6791, %v6787
      %v7012 = vpack.c.b16 %v6796, %v6792
      %v7013 = vpack.c.b16 %v6797, %v6793
      %v7014 = vpack.c.b16 %v6798, %v6794
      %v7015 = vpack.c.b16 %v6799, %v6795
      %v7016 = vpack.c.b16 %v6804, %v6800
      %v7017 = vpack.c.b16 %v6805, %v6801
      %v7018 = vpack.c.b16 %v6806, %v6802
      %v7019 = vpack.c.b16 %v6807, %v6803
      %v7020 = vpack.c.b16 %v6812, %v6808
      %v7021 = vpack.c.b16 %v6813, %v6809
      %v7022 = vpack.c.b16 %v6814, %v6810
      %v7023 = vpack.c.b16 %v6815, %v6811
      %v7024 = vpack.c.b16 %v6820, %v6816
      %v7025 = vpack.c.b16 %v6821, %v6817
      %v7026 = vpack.c.b16 %v6822, %v6818
      %v7027 = vpack.c.b16 %v6823, %v6819
      %v7028 = vpack.c.b16 %v6828, %v6824
      %v7029 = vpack.c.b16 %v6829, %v6825
      %v7030 = vpack.c.b16 %v6830, %v6826
      %v7031 = vpack.c.b16 %v6831, %v6827
      %v7032 = vpack.c.b16 %v6836, %v6832
      %v7033 = vpack.c.b16 %v6837, %v6833
      %v7034 = vpack.c.b16 %v6838, %v6834
      %v7035 = vpack.c.b16 %v6839, %v6835
      %v7036 = vpack.c.b16 %v6844, %v6840
      %v7037 = vpack.c.b16 %v6845, %v6841
      %v7038 = vpack.c.b16 %v6846, %v6842
      %v7039 = vpack.c.b16 %v6847, %v6843
      %v7040 = vpack.c.b16 %v6852, %v6848
      %v7041 = vpack.c.b16 %v6853, %v6849
      %v7042 = vpack.c.b16 %v6854, %v6850
      %v7043 = vpack.c.b16 %v6855, %v6851
      %v7044 = vpack.c.b16 %v6860, %v6856
      %v7045 = vpack.c.b16 %v6861, %v6857
      %v7046 = vpack.c.b16 %v6862, %v6858
      %v7047 = vpack.c.b16 %v6863, %v6859
      %v7048 = vpack.c.b16 %v6868, %v6864
      %v7049 = vpack.c.b16 %v6869, %v6865
      %v7050 = vpack.c.b16 %v6870, %v6866
      %v7051 = vpack.c.b16 %v6871, %v6867
      %v7052 = vpack.c.b16 %v6876, %v6872
      %v7053 = vpack.c.b16 %v6877, %v6873
      %v7054 = vpack.c.b16 %v6878, %v6874
      %v7055 = vpack.c.b16 %v6879, %v6875
      %v7056 = vpack.c.b16 %v6884, %v6880
      %v7057 = vpack.c.b16 %v6885, %v6881
      %v7058 = vpack.c.b16 %v6886, %v6882
      %v7059 = vpack.c.b16 %v6887, %v6883
      %v7060 = vpack.c.b16 %v6892, %v6888
      %v7061 = vpack.c.b16 %v6893, %v6889
      %v7062 = vpack.c.b16 %v6894, %v6890
      %v7063 = vpack.c.b16 %v6895, %v6891
      %v7064 = vpack.c.b16 %v6900, %v6896
      %v7065 = vpack.c.b16 %v6901, %v6897
      %v7066 = vpack.c.b16 %v6902, %v6898
      %v7067 = vpack.c.b16 %v6903, %v6899
      %v7068 = vpack.c.b16 %v6908, %v6904
      %v7069 = vpack.c.b16 %v6909, %v6905
      %v7070 = vpack.c.b16 %v6910, %v6906
      %v7071 = vpack.c.b16 %v6911, %v6907
      %v7072 = vpack.c.b16 %v6916, %v6912
      %v7073 = vpack.c.b16 %v6917, %v6913
      %v7074 = vpack.c.b16 %v6918, %v6914
      %v7075 = vpack.c.b16 %v6919, %v6915
      %v7076 = vpack.c.b16 %v6924, %v6920
      %v7077 = vpack.c.b16 %v6925, %v6921
      %v7078 = vpack.c.b16 %v6926, %v6922
      %v7079 = vpack.c.b16 %v6927, %v6923
      %v7080 = vpack.c.b16 %v6932, %v6928
      %v7081 = vpack.c.b16 %v6933, %v6929
      %v7082 = vpack.c.b16 %v6934, %v6930
      %v7083 = vpack.c.b16 %v6935, %v6931
      %v7084 = vpack.c.b16 %v6940, %v6936
      %v7085 = vpack.c.b16 %v6941, %v6937
      %v7086 = vpack.c.b16 %v6942, %v6938
      %v7087 = vpack.c.b16 %v6943, %v6939
      %v7088 = vpack.c.b16 %v6948, %v6944
      %v7089 = vpack.c.b16 %v6949, %v6945
      %v7090 = vpack.c.b16 %v6950, %v6946
      %v7091 = vpack.c.b16 %v6951, %v6947
      %v7092 = vpack.c.b16 %v6956, %v6952
      %v7093 = vpack.c.b16 %v6957, %v6953
      %v7094 = vpack.c.b16 %v6958, %v6954
      %v7095 = vpack.c.b16 %v6959, %v6955
      %v7096 = vpack.c.b16 %v6964, %v6960
      %v7097 = vpack.c.b16 %v6965, %v6961
      %v7098 = vpack.c.b16 %v6966, %v6962
      %v7099 = vpack.c.b16 %v6967, %v6963
      %v7100 = vpack.c.b16 %v6972, %v6968
      %v7101 = vpack.c.b16 %v6973, %v6969
      %v7102 = vpack.c.b16 %v6974, %v6970
      %v7103 = vpack.c.b16 %v6975, %v6971
      %7232 = vmatprep.subr.bf16.mxu0 %v6977
      %7233 = vmatpush1.bf16.msra.mxu0 %v6976
      %7234 = vmatprep.subr.bf16.mxu0 %v6981
      %7235 = vmatpush1.bf16.msra.mxu0 %v6980
      %7236 = vmatprep.subr.bf16.mxu0 %v6985
      %7237 = vmatpush1.bf16.msra.mxu0 %v6984
      %7238 = vmatprep.subr.bf16.mxu0 %v6989
      %7239 = vmatpush1.bf16.msra.mxu0 %v6988
      %7240 = vmatprep.subr.bf16.mxu0 %v6993
      %7241 = vmatpush1.bf16.msra.mxu0 %v6992
      %7242 = vmatprep.subr.bf16.mxu0 %v6997
      %7243 = vmatpush1.bf16.msra.mxu0 %v6996
      %7244 = vmatprep.subr.bf16.mxu0 %v7001
      %7245 = vmatpush1.bf16.msra.mxu0 %v7000
      %7246 = vmatprep.subr.bf16.mxu0 %v7005
      %7247 = vmatpush1.bf16.msra.mxu0 %v7004
      %7248 = vmatprep.subr.bf16.mxu0 %v7009
      %7249 = vmatpush1.bf16.msra.mxu0 %v7008
      %7250 = vmatprep.subr.bf16.mxu0 %v7013
      %7251 = vmatpush1.bf16.msra.mxu0 %v7012
      %7252 = vmatprep.subr.bf16.mxu0 %v7017
      %7253 = vmatpush1.bf16.msra.mxu0 %v7016
      %7254 = vmatprep.subr.bf16.mxu0 %v7021
      %7255 = vmatpush1.bf16.msra.mxu0 %v7020
      %7256 = vmatprep.subr.bf16.mxu0 %v7025
      %7257 = vmatpush1.bf16.msra.mxu0 %v7024
      %7258 = vmatprep.subr.bf16.mxu0 %v7029
      %7259 = vmatpush1.bf16.msra.mxu0 %v7028
      %7260 = vmatprep.subr.bf16.mxu0 %v7033
      %7261 = vmatpush1.bf16.msra.mxu0 %v7032
      %7262 = vmatprep.subr.bf16.mxu0 %v7037
      %7263 = vmatpush1.bf16.msra.mxu0 %v7036
      %7264 = vmatprep.mubr.bf16.mxu0 %v5372
      %7265 = vmatmul.mubr.bf16.gmra.mrb[0].mxu0 %v5371
      %v7266 = vpop.f32.mrb[0].mxu0
      %v7267 = vadd.f32 %v6468, %v7266
      %v7268 = vpop.f32.mrb[0].mxu0
      %v7269 = vadd.f32 %v6470, %v7268
      %v7270 = vpop.f32.mrb[0].mxu0
      %v7271 = vadd.f32 %v6472, %v7270
      %v7272 = vpop.f32.mrb[0].mxu0
      %v7273 = vadd.f32 %v6474, %v7272
      %7274 = vmatprep.mubr.bf16.mxu0 %v5376
      %7275 = vmatmul.mubr.bf16.gmra.mrb[0].mxu0 %v5375
      %v7276 = vpop.f32.mrb[0].mxu0
      %v7277 = vadd.f32 %v6478, %v7276
      %v7278 = vpop.f32.mrb[0].mxu0
      %v7279 = vadd.f32 %v6480, %v7278
      %v7280 = vpop.f32.mrb[0].mxu0
      %v7281 = vadd.f32 %v6482, %v7280
      %v7282 = vpop.f32.mrb[0].mxu0
      %v7283 = vadd.f32 %v6484, %v7282
      %7284 = vdwg.mxu0
      %7285 = vmatprep.subr.bf16.mxu0 %v7041
      %7286 = vmatpush1.bf16.msra.mxu0 %v7040
      %7287 = vmatprep.subr.bf16.mxu0 %v7045
      %7288 = vmatpush1.bf16.msra.mxu0 %v7044
      %7289 = vmatprep.subr.bf16.mxu0 %v7049
      %7290 = vmatpush1.bf16.msra.mxu0 %v7048
      %7291 = vmatprep.subr.bf16.mxu0 %v7053
      %7292 = vmatpush1.bf16.msra.mxu0 %v7052
      %7293 = vmatprep.subr.bf16.mxu0 %v7057
      %7294 = vmatpush1.bf16.msra.mxu0 %v7056
      %7295 = vmatprep.subr.bf16.mxu0 %v7061
      %7296 = vmatpush1.bf16.msra.mxu0 %v7060
      %7297 = vmatprep.subr.bf16.mxu0 %v7065
      %7298 = vmatpush1.bf16.msra.mxu0 %v7064
      %7299 = vmatprep.subr.bf16.mxu0 %v7069
      %7300 = vmatpush1.bf16.msra.mxu0 %v7068
      %7301 = vmatprep.subr.bf16.mxu0 %v7073
      %7302 = vmatpush1.bf16.msra.mxu0 %v7072
      %7303 = vmatprep.subr.bf16.mxu0 %v7077
      %7304 = vmatpush1.bf16.msra.mxu0 %v7076
      %7305 = vmatprep.subr.bf16.mxu0 %v7081
      %7306 = vmatpush1.bf16.msra.mxu0 %v7080
      %7307 = vmatprep.subr.bf16.mxu0 %v7085
      %7308 = vmatpush1.bf16.msra.mxu0 %v7084
      %7309 = vmatprep.subr.bf16.mxu0 %v7089
      %7310 = vmatpush1.bf16.msra.mxu0 %v7088
      %7311 = vmatprep.subr.bf16.mxu0 %v7093
      %7312 = vmatpush1.bf16.msra.mxu0 %v7092
      %7313 = vmatprep.subr.bf16.mxu0 %v7097
      %7314 = vmatpush1.bf16.msra.mxu0 %v7096
      %7315 = vmatprep.subr.bf16.mxu0 %v7101
      %7316 = vmatpush1.bf16.msra.mxu0 %v7100
      %7317 = vmatprep.mubr.bf16.mxu0 %v5374
      %7318 = vmatmul.mubr.bf16.gmra.mrb[0].mxu0 %v5373
      %v7319 = vpop.f32.mrb[0].mxu0
      %v7320 = vadd.f32 %v7267, %v7319
      %v7321 = vpop.f32.mrb[0].mxu0
      %v7322 = vadd.f32 %v7269, %v7321
      %v7323 = vpop.f32.mrb[0].mxu0
      %v7324 = vadd.f32 %v7271, %v7323
      %v7325 = vpop.f32.mrb[0].mxu0
      %v7326 = vadd.f32 %v7273, %v7325
      %7327 = vmatprep.mubr.bf16.mxu0 %v5378
      %7328 = vmatmul.mubr.bf16.gmra.mrb[0].mxu0 %v5377
      %v7329 = vpop.f32.mrb[0].mxu0
      %v7330 = vadd.f32 %v7277, %v7329
      %v7331 = vpop.f32.mrb[0].mxu0
      %v7332 = vadd.f32 %v7279, %v7331
      %v7333 = vpop.f32.mrb[0].mxu0
      %v7334 = vadd.f32 %v7281, %v7333
      %v7335 = vpop.f32.mrb[0].mxu0
      %v7336 = vadd.f32 %v7283, %v7335
      %7337 = vdwg.mxu0
      %7338 = vmatprep.subr.bf16.mxu0 %v6979
      %7339 = vmatpush1.bf16.msra.mxu0 %v6978
      %7340 = vmatprep.subr.bf16.mxu0 %v6983
      %7341 = vmatpush1.bf16.msra.mxu0 %v6982
      %7342 = vmatprep.subr.bf16.mxu0 %v6987
      %7343 = vmatpush1.bf16.msra.mxu0 %v6986
      %7344 = vmatprep.subr.bf16.mxu0 %v6991
      %7345 = vmatpush1.bf16.msra.mxu0 %v6990
      %7346 = vmatprep.subr.bf16.mxu0 %v6995
      %7347 = vmatpush1.bf16.msra.mxu0 %v6994
      %7348 = vmatprep.subr.bf16.mxu0 %v6999
      %7349 = vmatpush1.bf16.msra.mxu0 %v6998
      %7350 = vmatprep.subr.bf16.mxu0 %v7003
      %7351 = vmatpush1.bf16.msra.mxu0 %v7002
      %7352 = vmatprep.subr.bf16.mxu0 %v7007
      %7353 = vmatpush1.bf16.msra.mxu0 %v7006
      %7354 = vmatprep.subr.bf16.mxu0 %v7011
      %7355 = vmatpush1.bf16.msra.mxu0 %v7010
      %7356 = vmatprep.subr.bf16.mxu0 %v7015
      %7357 = vmatpush1.bf16.msra.mxu0 %v7014
      %7358 = vmatprep.subr.bf16.mxu0 %v7019
      %7359 = vmatpush1.bf16.msra.mxu0 %v7018
      %7360 = vmatprep.subr.bf16.mxu0 %v7023
      %7361 = vmatpush1.bf16.msra.mxu0 %v7022
      %7362 = vmatprep.subr.bf16.mxu0 %v7027
      %7363 = vmatpush1.bf16.msra.mxu0 %v7026
      %7364 = vmatprep.subr.bf16.mxu0 %v7031
      %7365 = vmatpush1.bf16.msra.mxu0 %v7030
      %7366 = vmatprep.subr.bf16.mxu0 %v7035
      %7367 = vmatpush1.bf16.msra.mxu0 %v7034
      %7368 = vmatprep.subr.bf16.mxu0 %v7039
      %7369 = vmatpush1.bf16.msra.mxu0 %v7038
      %7370 = vmatprep.mubr.bf16.mxu0 %v5372
      %7371 = vmatmul.mubr.bf16.gmra.mrb[0].mxu0 %v5371
      %v7372 = vpop.f32.mrb[0].mxu0
      %v7373 = vadd.f32 %v6574, %v7372
      %v7374 = vpop.f32.mrb[0].mxu0
      %v7375 = vadd.f32 %v6576, %v7374
      %v7376 = vpop.f32.mrb[0].mxu0
      %v7377 = vadd.f32 %v6578, %v7376
      %v7378 = vpop.f32.mrb[0].mxu0
      %v7379 = vadd.f32 %v6580, %v7378
      %7380 = vmatprep.mubr.bf16.mxu0 %v5376
      %7381 = vmatmul.mubr.bf16.gmra.mrb[0].mxu0 %v5375
      %v7382 = vpop.f32.mrb[0].mxu0
      %v7383 = vadd.f32 %v6584, %v7382
      %v7384 = vpop.f32.mrb[0].mxu0
      %v7385 = vadd.f32 %v6586, %v7384
      %v7386 = vpop.f32.mrb[0].mxu0
      %v7387 = vadd.f32 %v6588, %v7386
      %v7388 = vpop.f32.mrb[0].mxu0
      %v7389 = vadd.f32 %v6590, %v7388
      %7390 = vdwg.mxu0
      %7391 = vmatprep.subr.bf16.mxu0 %v7043
      %7392 = vmatpush1.bf16.msra.mxu0 %v7042
      %7393 = vmatprep.subr.bf16.mxu0 %v7047
      %7394 = vmatpush1.bf16.msra.mxu0 %v7046
      %7395 = vmatprep.subr.bf16.mxu0 %v7051
      %7396 = vmatpush1.bf16.msra.mxu0 %v7050
      %7397 = vmatprep.subr.bf16.mxu0 %v7055
      %7398 = vmatpush1.bf16.msra.mxu0 %v7054
      %7399 = vmatprep.subr.bf16.mxu0 %v7059
      %7400 = vmatpush1.bf16.msra.mxu0 %v7058
      %7401 = vmatprep.subr.bf16.mxu0 %v7063
      %7402 = vmatpush1.bf16.msra.mxu0 %v7062
      %7403 = vmatprep.subr.bf16.mxu0 %v7067
      %7404 = vmatpush1.bf16.msra.mxu0 %v7066
      %7405 = vmatprep.subr.bf16.mxu0 %v7071
      %7406 = vmatpush1.bf16.msra.mxu0 %v7070
      %7407 = vmatprep.subr.bf16.mxu0 %v7075
      %7408 = vmatpush1.bf16.msra.mxu0 %v7074
      %7409 = vmatprep.subr.bf16.mxu0 %v7079
      %7410 = vmatpush1.bf16.msra.mxu0 %v7078
      %7411 = vmatprep.subr.bf16.mxu0 %v7083
      %7412 = vmatpush1.bf16.msra.mxu0 %v7082
      %7413 = vmatprep.subr.bf16.mxu0 %v7087
      %7414 = vmatpush1.bf16.msra.mxu0 %v7086
      %7415 = vmatprep.subr.bf16.mxu0 %v7091
      %7416 = vmatpush1.bf16.msra.mxu0 %v7090
      %7417 = vmatprep.subr.bf16.mxu0 %v7095
      %7418 = vmatpush1.bf16.msra.mxu0 %v7094
      %7419 = vmatprep.subr.bf16.mxu0 %v7099
      %7420 = vmatpush1.bf16.msra.mxu0 %v7098
      %7421 = vmatprep.subr.bf16.mxu0 %v7103
      %7422 = vmatpush1.bf16.msra.mxu0 %v7102
      %7423 = vmatprep.mubr.bf16.mxu0 %v5374
      %7424 = vmatmul.mubr.bf16.gmra.mrb[0].mxu0 %v5373
      %v7425 = vpop.f32.mrb[0].mxu0
      %v7426 = vadd.f32 %v7373, %v7425
      %v7427 = vpop.f32.mrb[0].mxu0
      %v7428 = vadd.f32 %v7375, %v7427
      %v7429 = vpop.f32.mrb[0].mxu0
      %v7430 = vadd.f32 %v7377, %v7429
      %v7431 = vpop.f32.mrb[0].mxu0
      %v7432 = vadd.f32 %v7379, %v7431
      %7433 = vmatprep.mubr.bf16.mxu0 %v5378
      %7434 = vmatmul.mubr.bf16.gmra.mrb[0].mxu0 %v5377
      %v7435 = vpop.f32.mrb[0].mxu0
      %v7436 = vadd.f32 %v7383, %v7435
      %v7437 = vpop.f32.mrb[0].mxu0
      %v7438 = vadd.f32 %v7385, %v7437
      %v7439 = vpop.f32.mrb[0].mxu0
      %v7440 = vadd.f32 %v7387, %v7439
      %v7441 = vpop.f32.mrb[0].mxu0
      %v7442 = vadd.f32 %v7389, %v7441
      %7443 = vdwg.mxu0
      %v7444 = vld [vmem:[#allocation3] sm:$0xfc]
      %v7445 = vld [vmem:[#allocation3 + $0x8] sm:$0xfc]
      %v7446 = vld [vmem:[#allocation3 + $0x10] sm:$0xfc]
      %v7447 = vld [vmem:[#allocation3 + $0x18] sm:$0xfc]
      %v7448 = vld [vmem:[#allocation3 + $0x40] sm:$0x3]
      %v7449 = vld [vmem:[#allocation3 + $0x48] sm:$0x3]
      %v7450 = vld [vmem:[#allocation3 + $0x50] sm:$0x3]
      %v7451 = vld [vmem:[#allocation3 + $0x58] sm:$0x3]
      %v7452 = vld [vmem:[#allocation3 + $0x60] sm:$0xfc]
      %v7453 = vld [vmem:[#allocation3 + $0x68] sm:$0xfc]
      %v7454 = vld [vmem:[#allocation3 + $0x70] sm:$0xfc]
      %v7455 = vld [vmem:[#allocation3 + $0x78] sm:$0xfc]
      %v7456 = vld [vmem:[#allocation3 + $0xa0] sm:$0x3]
      %v7457 = vld [vmem:[#allocation3 + $0xa8] sm:$0x3]
      %v7458 = vld [vmem:[#allocation3 + $0xb0] sm:$0x3]
      %v7459 = vld [vmem:[#allocation3 + $0xb8] sm:$0x3]
      %v7476 = vrot.slane %v7444, 2
      %v7477 = vrot.slane %v5359, 2
      %v7478 = vsel %vm3533, %v7476, %v7477
      %v7479 = vrot.slane %v7445, 2
      %v7480 = vrot.slane %v5360, 2
      %v7481 = vsel %vm3533, %v7479, %v7480
      %v7482 = vrot.slane %v7446, 2
      %v7483 = vrot.slane %v5361, 2
      %v7484 = vsel %vm3533, %v7482, %v7483
      %v7485 = vrot.slane %v7447, 2
      %v7486 = vrot.slane %v5362, 2
      %v7487 = vsel %vm3533, %v7485, %v7486
      %v7488 = vrot.slane %v7448, 2
      %v7489 = vsel %vm3533, %v7477, %v7488
      %v7490 = vrot.slane %v7449, 2
      %v7491 = vsel %vm3533, %v7480, %v7490
      %v7492 = vrot.slane %v7450, 2
      %v7493 = vsel %vm3533, %v7483, %v7492
      %v7494 = vrot.slane %v7451, 2
      %v7495 = vsel %vm3533, %v7486, %v7494
      %v7496 = vrot.slane %v7452, 2
      %v7497 = vrot.slane %v5367, 2
      %v7498 = vsel %vm3533, %v7496, %v7497
      %v7499 = vrot.slane %v7453, 2
      %v7500 = vrot.slane %v5368, 2
      %v7501 = vsel %vm3533, %v7499, %v7500
      %v7502 = vrot.slane %v7454, 2
      %v7503 = vrot.slane %v5369, 2
      %v7504 = vsel %vm3533, %v7502, %v7503
      %v7505 = vrot.slane %v7455, 2
      %v7506 = vrot.slane %v5370, 2
      %v7507 = vsel %vm3533, %v7505, %v7506
      %v7508 = vrot.slane %v7456, 2
      %v7509 = vsel %vm3533, %v7497, %v7508
      %v7510 = vrot.slane %v7457, 2
      %v7511 = vsel %vm3533, %v7500, %v7510
      %v7512 = vrot.slane %v7458, 2
      %v7513 = vsel %vm3533, %v7503, %v7512
      %v7514 = vrot.slane %v7459, 2
      %v7515 = vsel %vm3533, %v7506, %v7514
      %v7532 = vpack.c.bf16 %v7489, %v7478
      %v7533 = vpack.c.bf16 %v7491, %v7481
      %v7534 = vpack.c.bf16 %v7493, %v7484
      %v7535 = vpack.c.bf16 %v7495, %v7487
      %v7536 = vpack.c.bf16 %v7509, %v7498
      %v7537 = vpack.c.bf16 %v7511, %v7501
      %v7538 = vpack.c.bf16 %v7513, %v7504
      %v7539 = vpack.c.bf16 %v7515, %v7507
      %s7540 = scalar_lea.vmem [#allocation10], 2048
      %v7541 = vld [vmem:[%s7540] sm:$0xff]
      %v7542 = vld [vmem:[%s7540 + $0x8] sm:$0xff]
      %v7543 = vld [vmem:[%s7540 + $0x10] sm:$0xff]
      %v7544 = vld [vmem:[%s7540 + $0x18] sm:$0xff]
      %v7545 = vld [vmem:[%s7540 + $0x20] sm:$0xff]
      %v7546 = vld [vmem:[%s7540 + $0x28] sm:$0xff]
      %v7547 = vld [vmem:[%s7540 + $0x30] sm:$0xff]
      %v7548 = vld [vmem:[%s7540 + $0x38] sm:$0xff]
      %v7549 = vld [vmem:[%s7540 + $0x40] sm:$0xff]
      %v7550 = vld [vmem:[%s7540 + $0x48] sm:$0xff]
      %v7551 = vld [vmem:[%s7540 + $0x50] sm:$0xff]
      %v7552 = vld [vmem:[%s7540 + $0x58] sm:$0xff]
      %v7553 = vld [vmem:[%s7540 + $0x60] sm:$0xff]
      %v7554 = vld [vmem:[%s7540 + $0x68] sm:$0xff]
      %v7555 = vld [vmem:[%s7540 + $0x70] sm:$0xff]
      %v7556 = vld [vmem:[%s7540 + $0x78] sm:$0xff]
      %v7557 = vld [vmem:[%s7540 + $0x80] sm:$0xff]
      %v7558 = vld [vmem:[%s7540 + $0x88] sm:$0xff]
      %v7559 = vld [vmem:[%s7540 + $0x90] sm:$0xff]
      %v7560 = vld [vmem:[%s7540 + $0x98] sm:$0xff]
      %v7561 = vld [vmem:[%s7540 + $0xa0] sm:$0xff]
      %v7562 = vld [vmem:[%s7540 + $0xa8] sm:$0xff]
      %v7563 = vld [vmem:[%s7540 + $0xb0] sm:$0xff]
      %v7564 = vld [vmem:[%s7540 + $0xb8] sm:$0xff]
      %v7565 = vld [vmem:[%s7540 + $0xc0] sm:$0xff]
      %v7566 = vld [vmem:[%s7540 + $0xc8] sm:$0xff]
      %v7567 = vld [vmem:[%s7540 + $0xd0] sm:$0xff]
      %v7568 = vld [vmem:[%s7540 + $0xd8] sm:$0xff]
      %v7569 = vld [vmem:[%s7540 + $0xe0] sm:$0xff]
      %v7570 = vld [vmem:[%s7540 + $0xe8] sm:$0xff]
      %v7571 = vld [vmem:[%s7540 + $0xf0] sm:$0xff]
      %v7572 = vld [vmem:[%s7540 + $0xf8] sm:$0xff]
      %v7573 = vld [vmem:[%s7540 + $0x100] sm:$0xff]
      %v7574 = vld [vmem:[%s7540 + $0x108] sm:$0xff]
      %v7575 = vld [vmem:[%s7540 + $0x110] sm:$0xff]
      %v7576 = vld [vmem:[%s7540 + $0x118] sm:$0xff]
      %v7577 = vld [vmem:[%s7540 + $0x120] sm:$0xff]
      %v7578 = vld [vmem:[%s7540 + $0x128] sm:$0xff]
      %v7579 = vld [vmem:[%s7540 + $0x130] sm:$0xff]
      %v7580 = vld [vmem:[%s7540 + $0x138] sm:$0xff]
      %v7581 = vld [vmem:[%s7540 + $0x140] sm:$0xff]
      %v7582 = vld [vmem:[%s7540 + $0x148] sm:$0xff]
      %v7583 = vld [vmem:[%s7540 + $0x150] sm:$0xff]
      %v7584 = vld [vmem:[%s7540 + $0x158] sm:$0xff]
      %v7585 = vld [vmem:[%s7540 + $0x160] sm:$0xff]
      %v7586 = vld [vmem:[%s7540 + $0x168] sm:$0xff]
      %v7587 = vld [vmem:[%s7540 + $0x170] sm:$0xff]
      %v7588 = vld [vmem:[%s7540 + $0x178] sm:$0xff]
      %v7589 = vld [vmem:[%s7540 + $0x180] sm:$0xff]
      %v7590 = vld [vmem:[%s7540 + $0x188] sm:$0xff]
      %v7591 = vld [vmem:[%s7540 + $0x190] sm:$0xff]
      %v7592 = vld [vmem:[%s7540 + $0x198] sm:$0xff]
      %v7593 = vld [vmem:[%s7540 + $0x1a0] sm:$0xff]
      %v7594 = vld [vmem:[%s7540 + $0x1a8] sm:$0xff]
      %v7595 = vld [vmem:[%s7540 + $0x1b0] sm:$0xff]
      %v7596 = vld [vmem:[%s7540 + $0x1b8] sm:$0xff]
      %v7597 = vld [vmem:[%s7540 + $0x1c0] sm:$0xff]
      %v7598 = vld [vmem:[%s7540 + $0x1c8] sm:$0xff]
      %v7599 = vld [vmem:[%s7540 + $0x1d0] sm:$0xff]
      %v7600 = vld [vmem:[%s7540 + $0x1d8] sm:$0xff]
      %v7601 = vld [vmem:[%s7540 + $0x1e0] sm:$0xff]
      %v7602 = vld [vmem:[%s7540 + $0x1e8] sm:$0xff]
      %v7603 = vld [vmem:[%s7540 + $0x1f0] sm:$0xff]
      %v7604 = vld [vmem:[%s7540 + $0x1f8] sm:$0xff]
      %v7605 = vld [vmem:[%s7540 + $0x200] sm:$0xff]
      %v7606 = vld [vmem:[%s7540 + $0x208] sm:$0xff]
      %v7607 = vld [vmem:[%s7540 + $0x210] sm:$0xff]
      %v7608 = vld [vmem:[%s7540 + $0x218] sm:$0xff]
      %v7609 = vld [vmem:[%s7540 + $0x220] sm:$0xff]
      %v7610 = vld [vmem:[%s7540 + $0x228] sm:$0xff]
      %v7611 = vld [vmem:[%s7540 + $0x230] sm:$0xff]
      %v7612 = vld [vmem:[%s7540 + $0x238] sm:$0xff]
      %v7613 = vld [vmem:[%s7540 + $0x240] sm:$0xff]
      %v7614 = vld [vmem:[%s7540 + $0x248] sm:$0xff]
      %v7615 = vld [vmem:[%s7540 + $0x250] sm:$0xff]
      %v7616 = vld [vmem:[%s7540 + $0x258] sm:$0xff]
      %v7617 = vld [vmem:[%s7540 + $0x260] sm:$0xff]
      %v7618 = vld [vmem:[%s7540 + $0x268] sm:$0xff]
      %v7619 = vld [vmem:[%s7540 + $0x270] sm:$0xff]
      %v7620 = vld [vmem:[%s7540 + $0x278] sm:$0xff]
      %v7621 = vld [vmem:[%s7540 + $0x280] sm:$0xff]
      %v7622 = vld [vmem:[%s7540 + $0x288] sm:$0xff]
      %v7623 = vld [vmem:[%s7540 + $0x290] sm:$0xff]
      %v7624 = vld [vmem:[%s7540 + $0x298] sm:$0xff]
      %v7625 = vld [vmem:[%s7540 + $0x2a0] sm:$0xff]
      %v7626 = vld [vmem:[%s7540 + $0x2a8] sm:$0xff]
      %v7627 = vld [vmem:[%s7540 + $0x2b0] sm:$0xff]
      %v7628 = vld [vmem:[%s7540 + $0x2b8] sm:$0xff]
      %v7629 = vld [vmem:[%s7540 + $0x2c0] sm:$0xff]
      %v7630 = vld [vmem:[%s7540 + $0x2c8] sm:$0xff]
      %v7631 = vld [vmem:[%s7540 + $0x2d0] sm:$0xff]
      %v7632 = vld [vmem:[%s7540 + $0x2d8] sm:$0xff]
      %v7633 = vld [vmem:[%s7540 + $0x2e0] sm:$0xff]
      %v7634 = vld [vmem:[%s7540 + $0x2e8] sm:$0xff]
      %v7635 = vld [vmem:[%s7540 + $0x2f0] sm:$0xff]
      %v7636 = vld [vmem:[%s7540 + $0x2f8] sm:$0xff]
      %v7637 = vld [vmem:[%s7540 + $0x300] sm:$0xff]
      %v7638 = vld [vmem:[%s7540 + $0x308] sm:$0xff]
      %v7639 = vld [vmem:[%s7540 + $0x310] sm:$0xff]
      %v7640 = vld [vmem:[%s7540 + $0x318] sm:$0xff]
      %v7641 = vld [vmem:[%s7540 + $0x320] sm:$0xff]
      %v7642 = vld [vmem:[%s7540 + $0x328] sm:$0xff]
      %v7643 = vld [vmem:[%s7540 + $0x330] sm:$0xff]
      %v7644 = vld [vmem:[%s7540 + $0x338] sm:$0xff]
      %v7645 = vld [vmem:[%s7540 + $0x340] sm:$0xff]
      %v7646 = vld [vmem:[%s7540 + $0x348] sm:$0xff]
      %v7647 = vld [vmem:[%s7540 + $0x350] sm:$0xff]
      %v7648 = vld [vmem:[%s7540 + $0x358] sm:$0xff]
      %v7649 = vld [vmem:[%s7540 + $0x360] sm:$0xff]
      %v7650 = vld [vmem:[%s7540 + $0x368] sm:$0xff]
      %v7651 = vld [vmem:[%s7540 + $0x370] sm:$0xff]
      %v7652 = vld [vmem:[%s7540 + $0x378] sm:$0xff]
      %v7653 = vld [vmem:[%s7540 + $0x380] sm:$0xff]
      %v7654 = vld [vmem:[%s7540 + $0x388] sm:$0xff]
      %v7655 = vld [vmem:[%s7540 + $0x390] sm:$0xff]
      %v7656 = vld [vmem:[%s7540 + $0x398] sm:$0xff]
      %v7657 = vld [vmem:[%s7540 + $0x3a0] sm:$0xff]
      %v7658 = vld [vmem:[%s7540 + $0x3a8] sm:$0xff]
      %v7659 = vld [vmem:[%s7540 + $0x3b0] sm:$0xff]
      %v7660 = vld [vmem:[%s7540 + $0x3b8] sm:$0xff]
      %v7661 = vld [vmem:[%s7540 + $0x3c0] sm:$0xff]
      %v7662 = vld [vmem:[%s7540 + $0x3c8] sm:$0xff]
      %v7663 = vld [vmem:[%s7540 + $0x3d0] sm:$0xff]
      %v7664 = vld [vmem:[%s7540 + $0x3d8] sm:$0xff]
      %v7665 = vld [vmem:[%s7540 + $0x3e0] sm:$0xff]
      %v7666 = vld [vmem:[%s7540 + $0x3e8] sm:$0xff]
      %v7667 = vld [vmem:[%s7540 + $0x3f0] sm:$0xff]
      %v7668 = vld [vmem:[%s7540 + $0x3f8] sm:$0xff]
      %v7797 = vunpack.c.l.b16 %v7541
      %v7798 = vunpack.c.h.b16 %v7541
      %v7799 = vunpack.c.l.b16 %v7542
      %v7800 = vunpack.c.h.b16 %v7542
      %v7801 = vunpack.c.l.b16 %v7543
      %v7802 = vunpack.c.h.b16 %v7543
      %v7803 = vunpack.c.l.b16 %v7544
      %v7804 = vunpack.c.h.b16 %v7544
      %v7805 = vunpack.c.l.b16 %v7545
      %v7806 = vunpack.c.h.b16 %v7545
      %v7807 = vunpack.c.l.b16 %v7546
      %v7808 = vunpack.c.h.b16 %v7546
      %v7809 = vunpack.c.l.b16 %v7547
      %v7810 = vunpack.c.h.b16 %v7547
      %v7811 = vunpack.c.l.b16 %v7548
      %v7812 = vunpack.c.h.b16 %v7548
      %v7813 = vunpack.c.l.b16 %v7549
      %v7814 = vunpack.c.h.b16 %v7549
      %v7815 = vunpack.c.l.b16 %v7550
      %v7816 = vunpack.c.h.b16 %v7550
      %v7817 = vunpack.c.l.b16 %v7551
      %v7818 = vunpack.c.h.b16 %v7551
      %v7819 = vunpack.c.l.b16 %v7552
      %v7820 = vunpack.c.h.b16 %v7552
      %v7821 = vunpack.c.l.b16 %v7553
      %v7822 = vunpack.c.h.b16 %v7553
      %v7823 = vunpack.c.l.b16 %v7554
      %v7824 = vunpack.c.h.b16 %v7554
      %v7825 = vunpack.c.l.b16 %v7555
      %v7826 = vunpack.c.h.b16 %v7555
      %v7827 = vunpack.c.l.b16 %v7556
      %v7828 = vunpack.c.h.b16 %v7556
      %v7829 = vunpack.c.l.b16 %v7557
      %v7830 = vunpack.c.h.b16 %v7557
      %v7831 = vunpack.c.l.b16 %v7558
      %v7832 = vunpack.c.h.b16 %v7558
      %v7833 = vunpack.c.l.b16 %v7559
      %v7834 = vunpack.c.h.b16 %v7559
      %v7835 = vunpack.c.l.b16 %v7560
      %v7836 = vunpack.c.h.b16 %v7560
      %v7837 = vunpack.c.l.b16 %v7561
      %v7838 = vunpack.c.h.b16 %v7561
      %v7839 = vunpack.c.l.b16 %v7562
      %v7840 = vunpack.c.h.b16 %v7562
      %v7841 = vunpack.c.l.b16 %v7563
      %v7842 = vunpack.c.h.b16 %v7563
      %v7843 = vunpack.c.l.b16 %v7564
      %v7844 = vunpack.c.h.b16 %v7564
      %v7845 = vunpack.c.l.b16 %v7565
      %v7846 = vunpack.c.h.b16 %v7565
      %v7847 = vunpack.c.l.b16 %v7566
      %v7848 = vunpack.c.h.b16 %v7566
      %v7849 = vunpack.c.l.b16 %v7567
      %v7850 = vunpack.c.h.b16 %v7567
      %v7851 = vunpack.c.l.b16 %v7568
      %v7852 = vunpack.c.h.b16 %v7568
      %v7853 = vunpack.c.l.b16 %v7569
      %v7854 = vunpack.c.h.b16 %v7569
      %v7855 = vunpack.c.l.b16 %v7570
      %v7856 = vunpack.c.h.b16 %v7570
      %v7857 = vunpack.c.l.b16 %v7571
      %v7858 = vunpack.c.h.b16 %v7571
      %v7859 = vunpack.c.l.b16 %v7572
      %v7860 = vunpack.c.h.b16 %v7572
      %v7861 = vunpack.c.l.b16 %v7573
      %v7862 = vunpack.c.h.b16 %v7573
      %v7863 = vunpack.c.l.b16 %v7574
      %v7864 = vunpack.c.h.b16 %v7574
      %v7865 = vunpack.c.l.b16 %v7575
      %v7866 = vunpack.c.h.b16 %v7575
      %v7867 = vunpack.c.l.b16 %v7576
      %v7868 = vunpack.c.h.b16 %v7576
      %v7869 = vunpack.c.l.b16 %v7577
      %v7870 = vunpack.c.h.b16 %v7577
      %v7871 = vunpack.c.l.b16 %v7578
      %v7872 = vunpack.c.h.b16 %v7578
      %v7873 = vunpack.c.l.b16 %v7579
      %v7874 = vunpack.c.h.b16 %v7579
      %v7875 = vunpack.c.l.b16 %v7580
      %v7876 = vunpack.c.h.b16 %v7580
      %v7877 = vunpack.c.l.b16 %v7581
      %v7878 = vunpack.c.h.b16 %v7581
      %v7879 = vunpack.c.l.b16 %v7582
      %v7880 = vunpack.c.h.b16 %v7582
      %v7881 = vunpack.c.l.b16 %v7583
      %v7882 = vunpack.c.h.b16 %v7583
      %v7883 = vunpack.c.l.b16 %v7584
      %v7884 = vunpack.c.h.b16 %v7584
      %v7885 = vunpack.c.l.b16 %v7585
      %v7886 = vunpack.c.h.b16 %v7585
      %v7887 = vunpack.c.l.b16 %v7586
      %v7888 = vunpack.c.h.b16 %v7586
      %v7889 = vunpack.c.l.b16 %v7587
      %v7890 = vunpack.c.h.b16 %v7587
      %v7891 = vunpack.c.l.b16 %v7588
      %v7892 = vunpack.c.h.b16 %v7588
      %v7893 = vunpack.c.l.b16 %v7589
      %v7894 = vunpack.c.h.b16 %v7589
      %v7895 = vunpack.c.l.b16 %v7590
      %v7896 = vunpack.c.h.b16 %v7590
      %v7897 = vunpack.c.l.b16 %v7591
      %v7898 = vunpack.c.h.b16 %v7591
      %v7899 = vunpack.c.l.b16 %v7592
      %v7900 = vunpack.c.h.b16 %v7592
      %v7901 = vunpack.c.l.b16 %v7593
      %v7902 = vunpack.c.h.b16 %v7593
      %v7903 = vunpack.c.l.b16 %v7594
      %v7904 = vunpack.c.h.b16 %v7594
      %v7905 = vunpack.c.l.b16 %v7595
      %v7906 = vunpack.c.h.b16 %v7595
      %v7907 = vunpack.c.l.b16 %v7596
      %v7908 = vunpack.c.h.b16 %v7596
      %v7909 = vunpack.c.l.b16 %v7597
      %v7910 = vunpack.c.h.b16 %v7597
      %v7911 = vunpack.c.l.b16 %v7598
      %v7912 = vunpack.c.h.b16 %v7598
      %v7913 = vunpack.c.l.b16 %v7599
      %v7914 = vunpack.c.h.b16 %v7599
      %v7915 = vunpack.c.l.b16 %v7600
      %v7916 = vunpack.c.h.b16 %v7600
      %v7917 = vunpack.c.l.b16 %v7601
      %v7918 = vunpack.c.h.b16 %v7601
      %v7919 = vunpack.c.l.b16 %v7602
      %v7920 = vunpack.c.h.b16 %v7602
      %v7921 = vunpack.c.l.b16 %v7603
      %v7922 = vunpack.c.h.b16 %v7603
      %v7923 = vunpack.c.l.b16 %v7604
      %v7924 = vunpack.c.h.b16 %v7604
      %v7925 = vunpack.c.l.b16 %v7605
      %v7926 = vunpack.c.h.b16 %v7605
      %v7927 = vunpack.c.l.b16 %v7606
      %v7928 = vunpack.c.h.b16 %v7606
      %v7929 = vunpack.c.l.b16 %v7607
      %v7930 = vunpack.c.h.b16 %v7607
      %v7931 = vunpack.c.l.b16 %v7608
      %v7932 = vunpack.c.h.b16 %v7608
      %v7933 = vunpack.c.l.b16 %v7609
      %v7934 = vunpack.c.h.b16 %v7609
      %v7935 = vunpack.c.l.b16 %v7610
      %v7936 = vunpack.c.h.b16 %v7610
      %v7937 = vunpack.c.l.b16 %v7611
      %v7938 = vunpack.c.h.b16 %v7611
      %v7939 = vunpack.c.l.b16 %v7612
      %v7940 = vunpack.c.h.b16 %v7612
      %v7941 = vunpack.c.l.b16 %v7613
      %v7942 = vunpack.c.h.b16 %v7613
      %v7943 = vunpack.c.l.b16 %v7614
      %v7944 = vunpack.c.h.b16 %v7614
      %v7945 = vunpack.c.l.b16 %v7615
      %v7946 = vunpack.c.h.b16 %v7615
      %v7947 = vunpack.c.l.b16 %v7616
      %v7948 = vunpack.c.h.b16 %v7616
      %v7949 = vunpack.c.l.b16 %v7617
      %v7950 = vunpack.c.h.b16 %v7617
      %v7951 = vunpack.c.l.b16 %v7618
      %v7952 = vunpack.c.h.b16 %v7618
      %v7953 = vunpack.c.l.b16 %v7619
      %v7954 = vunpack.c.h.b16 %v7619
      %v7955 = vunpack.c.l.b16 %v7620
      %v7956 = vunpack.c.h.b16 %v7620
      %v7957 = vunpack.c.l.b16 %v7621
      %v7958 = vunpack.c.h.b16 %v7621
      %v7959 = vunpack.c.l.b16 %v7622
      %v7960 = vunpack.c.h.b16 %v7622
      %v7961 = vunpack.c.l.b16 %v7623
      %v7962 = vunpack.c.h.b16 %v7623
      %v7963 = vunpack.c.l.b16 %v7624
      %v7964 = vunpack.c.h.b16 %v7624
      %v7965 = vunpack.c.l.b16 %v7625
      %v7966 = vunpack.c.h.b16 %v7625
      %v7967 = vunpack.c.l.b16 %v7626
      %v7968 = vunpack.c.h.b16 %v7626
      %v7969 = vunpack.c.l.b16 %v7627
      %v7970 = vunpack.c.h.b16 %v7627
      %v7971 = vunpack.c.l.b16 %v7628
      %v7972 = vunpack.c.h.b16 %v7628
      %v7973 = vunpack.c.l.b16 %v7629
      %v7974 = vunpack.c.h.b16 %v7629
      %v7975 = vunpack.c.l.b16 %v7630
      %v7976 = vunpack.c.h.b16 %v7630
      %v7977 = vunpack.c.l.b16 %v7631
      %v7978 = vunpack.c.h.b16 %v7631
      %v7979 = vunpack.c.l.b16 %v7632
      %v7980 = vunpack.c.h.b16 %v7632
      %v7981 = vunpack.c.l.b16 %v7633
      %v7982 = vunpack.c.h.b16 %v7633
      %v7983 = vunpack.c.l.b16 %v7634
      %v7984 = vunpack.c.h.b16 %v7634
      %v7985 = vunpack.c.l.b16 %v7635
      %v7986 = vunpack.c.h.b16 %v7635
      %v7987 = vunpack.c.l.b16 %v7636
      %v7988 = vunpack.c.h.b16 %v7636
      %v7989 = vunpack.c.l.b16 %v7637
      %v7990 = vunpack.c.h.b16 %v7637
      %v7991 = vunpack.c.l.b16 %v7638
      %v7992 = vunpack.c.h.b16 %v7638
      %v7993 = vunpack.c.l.b16 %v7639
      %v7994 = vunpack.c.h.b16 %v7639
      %v7995 = vunpack.c.l.b16 %v7640
      %v7996 = vunpack.c.h.b16 %v7640
      %v7997 = vunpack.c.l.b16 %v7641
      %v7998 = vunpack.c.h.b16 %v7641
      %v7999 = vunpack.c.l.b16 %v7642
      %v8000 = vunpack.c.h.b16 %v7642
      %v8001 = vunpack.c.l.b16 %v7643
      %v8002 = vunpack.c.h.b16 %v7643
      %v8003 = vunpack.c.l.b16 %v7644
      %v8004 = vunpack.c.h.b16 %v7644
      %v8005 = vunpack.c.l.b16 %v7645
      %v8006 = vunpack.c.h.b16 %v7645
      %v8007 = vunpack.c.l.b16 %v7646
      %v8008 = vunpack.c.h.b16 %v7646
      %v8009 = vunpack.c.l.b16 %v7647
      %v8010 = vunpack.c.h.b16 %v7647
      %v8011 = vunpack.c.l.b16 %v7648
      %v8012 = vunpack.c.h.b16 %v7648
      %v8013 = vunpack.c.l.b16 %v7649
      %v8014 = vunpack.c.h.b16 %v7649
      %v8015 = vunpack.c.l.b16 %v7650
      %v8016 = vunpack.c.h.b16 %v7650
      %v8017 = vunpack.c.l.b16 %v7651
      %v8018 = vunpack.c.h.b16 %v7651
      %v8019 = vunpack.c.l.b16 %v7652
      %v8020 = vunpack.c.h.b16 %v7652
      %v8021 = vunpack.c.l.b16 %v7653
      %v8022 = vunpack.c.h.b16 %v7653
      %v8023 = vunpack.c.l.b16 %v7654
      %v8024 = vunpack.c.h.b16 %v7654
      %v8025 = vunpack.c.l.b16 %v7655
      %v8026 = vunpack.c.h.b16 %v7655
      %v8027 = vunpack.c.l.b16 %v7656
      %v8028 = vunpack.c.h.b16 %v7656
      %v8029 = vunpack.c.l.b16 %v7657
      %v8030 = vunpack.c.h.b16 %v7657
      %v8031 = vunpack.c.l.b16 %v7658
      %v8032 = vunpack.c.h.b16 %v7658
      %v8033 = vunpack.c.l.b16 %v7659
      %v8034 = vunpack.c.h.b16 %v7659
      %v8035 = vunpack.c.l.b16 %v7660
      %v8036 = vunpack.c.h.b16 %v7660
      %v8037 = vunpack.c.l.b16 %v7661
      %v8038 = vunpack.c.h.b16 %v7661
      %v8039 = vunpack.c.l.b16 %v7662
      %v8040 = vunpack.c.h.b16 %v7662
      %v8041 = vunpack.c.l.b16 %v7663
      %v8042 = vunpack.c.h.b16 %v7663
      %v8043 = vunpack.c.l.b16 %v7664
      %v8044 = vunpack.c.h.b16 %v7664
      %v8045 = vunpack.c.l.b16 %v7665
      %v8046 = vunpack.c.h.b16 %v7665
      %v8047 = vunpack.c.l.b16 %v7666
      %v8048 = vunpack.c.h.b16 %v7666
      %v8049 = vunpack.c.l.b16 %v7667
      %v8050 = vunpack.c.h.b16 %v7667
      %v8051 = vunpack.c.l.b16 %v7668
      %v8052 = vunpack.c.h.b16 %v7668
      %v8053 = vpack.c.b16 %v7801, %v7797
      %v8054 = vpack.c.b16 %v7802, %v7798
      %v8055 = vpack.c.b16 %v7803, %v7799
      %v8056 = vpack.c.b16 %v7804, %v7800
      %v8057 = vpack.c.b16 %v7809, %v7805
      %v8058 = vpack.c.b16 %v7810, %v7806
      %v8059 = vpack.c.b16 %v7811, %v7807
      %v8060 = vpack.c.b16 %v7812, %v7808
      %v8061 = vpack.c.b16 %v7817, %v7813
      %v8062 = vpack.c.b16 %v7818, %v7814
      %v8063 = vpack.c.b16 %v7819, %v7815
      %v8064 = vpack.c.b16 %v7820, %v7816
      %v8065 = vpack.c.b16 %v7825, %v7821
      %v8066 = vpack.c.b16 %v7826, %v7822
      %v8067 = vpack.c.b16 %v7827, %v7823
      %v8068 = vpack.c.b16 %v7828, %v7824
      %v8069 = vpack.c.b16 %v7833, %v7829
      %v8070 = vpack.c.b16 %v7834, %v7830
      %v8071 = vpack.c.b16 %v7835, %v7831
      %v8072 = vpack.c.b16 %v7836, %v7832
      %v8073 = vpack.c.b16 %v7841, %v7837
      %v8074 = vpack.c.b16 %v7842, %v7838
      %v8075 = vpack.c.b16 %v7843, %v7839
      %v8076 = vpack.c.b16 %v7844, %v7840
      %v8077 = vpack.c.b16 %v7849, %v7845
      %v8078 = vpack.c.b16 %v7850, %v7846
      %v8079 = vpack.c.b16 %v7851, %v7847
      %v8080 = vpack.c.b16 %v7852, %v7848
      %v8081 = vpack.c.b16 %v7857, %v7853
      %v8082 = vpack.c.b16 %v7858, %v7854
      %v8083 = vpack.c.b16 %v7859, %v7855
      %v8084 = vpack.c.b16 %v7860, %v7856
      %v8085 = vpack.c.b16 %v7865, %v7861
      %v8086 = vpack.c.b16 %v7866, %v7862
      %v8087 = vpack.c.b16 %v7867, %v7863
      %v8088 = vpack.c.b16 %v7868, %v7864
      %v8089 = vpack.c.b16 %v7873, %v7869
      %v8090 = vpack.c.b16 %v7874, %v7870
      %v8091 = vpack.c.b16 %v7875, %v7871
      %v8092 = vpack.c.b16 %v7876, %v7872
      %v8093 = vpack.c.b16 %v7881, %v7877
      %v8094 = vpack.c.b16 %v7882, %v7878
      %v8095 = vpack.c.b16 %v7883, %v7879
      %v8096 = vpack.c.b16 %v7884, %v7880
      %v8097 = vpack.c.b16 %v7889, %v7885
      %v8098 = vpack.c.b16 %v7890, %v7886
      %v8099 = vpack.c.b16 %v7891, %v7887
      %v8100 = vpack.c.b16 %v7892, %v7888
      %v8101 = vpack.c.b16 %v7897, %v7893
      %v8102 = vpack.c.b16 %v7898, %v7894
      %v8103 = vpack.c.b16 %v7899, %v7895
      %v8104 = vpack.c.b16 %v7900, %v7896
      %v8105 = vpack.c.b16 %v7905, %v7901
      %v8106 = vpack.c.b16 %v7906, %v7902
      %v8107 = vpack.c.b16 %v7907, %v7903
      %v8108 = vpack.c.b16 %v7908, %v7904
      %v8109 = vpack.c.b16 %v7913, %v7909
      %v8110 = vpack.c.b16 %v7914, %v7910
      %v8111 = vpack.c.b16 %v7915, %v7911
      %v8112 = vpack.c.b16 %v7916, %v7912
      %v8113 = vpack.c.b16 %v7921, %v7917
      %v8114 = vpack.c.b16 %v7922, %v7918
      %v8115 = vpack.c.b16 %v7923, %v7919
      %v8116 = vpack.c.b16 %v7924, %v7920
      %v8117 = vpack.c.b16 %v7929, %v7925
      %v8118 = vpack.c.b16 %v7930, %v7926
      %v8119 = vpack.c.b16 %v7931, %v7927
      %v8120 = vpack.c.b16 %v7932, %v7928
      %v8121 = vpack.c.b16 %v7937, %v7933
      %v8122 = vpack.c.b16 %v7938, %v7934
      %v8123 = vpack.c.b16 %v7939, %v7935
      %v8124 = vpack.c.b16 %v7940, %v7936
      %v8125 = vpack.c.b16 %v7945, %v7941
      %v8126 = vpack.c.b16 %v7946, %v7942
      %v8127 = vpack.c.b16 %v7947, %v7943
      %v8128 = vpack.c.b16 %v7948, %v7944
      %v8129 = vpack.c.b16 %v7953, %v7949
      %v8130 = vpack.c.b16 %v7954, %v7950
      %v8131 = vpack.c.b16 %v7955, %v7951
      %v8132 = vpack.c.b16 %v7956, %v7952
      %v8133 = vpack.c.b16 %v7961, %v7957
      %v8134 = vpack.c.b16 %v7962, %v7958
      %v8135 = vpack.c.b16 %v7963, %v7959
      %v8136 = vpack.c.b16 %v7964, %v7960
      %v8137 = vpack.c.b16 %v7969, %v7965
      %v8138 = vpack.c.b16 %v7970, %v7966
      %v8139 = vpack.c.b16 %v7971, %v7967
      %v8140 = vpack.c.b16 %v7972, %v7968
      %v8141 = vpack.c.b16 %v7977, %v7973
      %v8142 = vpack.c.b16 %v7978, %v7974
      %v8143 = vpack.c.b16 %v7979, %v7975
      %v8144 = vpack.c.b16 %v7980, %v7976
      %v8145 = vpack.c.b16 %v7985, %v7981
      %v8146 = vpack.c.b16 %v7986, %v7982
      %v8147 = vpack.c.b16 %v7987, %v7983
      %v8148 = vpack.c.b16 %v7988, %v7984
      %v8149 = vpack.c.b16 %v7993, %v7989
      %v8150 = vpack.c.b16 %v7994, %v7990
      %v8151 = vpack.c.b16 %v7995, %v7991
      %v8152 = vpack.c.b16 %v7996, %v7992
      %v8153 = vpack.c.b16 %v8001, %v7997
      %v8154 = vpack.c.b16 %v8002, %v7998
      %v8155 = vpack.c.b16 %v8003, %v7999
      %v8156 = vpack.c.b16 %v8004, %v8000
      %v8157 = vpack.c.b16 %v8009, %v8005
      %v8158 = vpack.c.b16 %v8010, %v8006
      %v8159 = vpack.c.b16 %v8011, %v8007
      %v8160 = vpack.c.b16 %v8012, %v8008
      %v8161 = vpack.c.b16 %v8017, %v8013
      %v8162 = vpack.c.b16 %v8018, %v8014
      %v8163 = vpack.c.b16 %v8019, %v8015
      %v8164 = vpack.c.b16 %v8020, %v8016
      %v8165 = vpack.c.b16 %v8025, %v8021
      %v8166 = vpack.c.b16 %v8026, %v8022
      %v8167 = vpack.c.b16 %v8027, %v8023
      %v8168 = vpack.c.b16 %v8028, %v8024
      %v8169 = vpack.c.b16 %v8033, %v8029
      %v8170 = vpack.c.b16 %v8034, %v8030
      %v8171 = vpack.c.b16 %v8035, %v8031
      %v8172 = vpack.c.b16 %v8036, %v8032
      %v8173 = vpack.c.b16 %v8041, %v8037
      %v8174 = vpack.c.b16 %v8042, %v8038
      %v8175 = vpack.c.b16 %v8043, %v8039
      %v8176 = vpack.c.b16 %v8044, %v8040
      %v8177 = vpack.c.b16 %v8049, %v8045
      %v8178 = vpack.c.b16 %v8050, %v8046
      %v8179 = vpack.c.b16 %v8051, %v8047
      %v8180 = vpack.c.b16 %v8052, %v8048
      %8309 = vmatprep.subr.bf16.mxu0 %v8054
      %8310 = vmatpush1.bf16.msra.mxu0 %v8053
      %8311 = vmatprep.subr.bf16.mxu0 %v8058
      %8312 = vmatpush1.bf16.msra.mxu0 %v8057
      %8313 = vmatprep.subr.bf16.mxu0 %v8062
      %8314 = vmatpush1.bf16.msra.mxu0 %v8061
      %8315 = vmatprep.subr.bf16.mxu0 %v8066
      %8316 = vmatpush1.bf16.msra.mxu0 %v8065
      %8317 = vmatprep.subr.bf16.mxu0 %v8070
      %8318 = vmatpush1.bf16.msra.mxu0 %v8069
      %8319 = vmatprep.subr.bf16.mxu0 %v8074
      %8320 = vmatpush1.bf16.msra.mxu0 %v8073
      %8321 = vmatprep.subr.bf16.mxu0 %v8078
      %8322 = vmatpush1.bf16.msra.mxu0 %v8077
      %8323 = vmatprep.subr.bf16.mxu0 %v8082
      %8324 = vmatpush1.bf16.msra.mxu0 %v8081
      %8325 = vmatprep.subr.bf16.mxu0 %v8086
      %8326 = vmatpush1.bf16.msra.mxu0 %v8085
      %8327 = vmatprep.subr.bf16.mxu0 %v8090
      %8328 = vmatpush1.bf16.msra.mxu0 %v8089
      %8329 = vmatprep.subr.bf16.mxu0 %v8094
      %8330 = vmatpush1.bf16.msra.mxu0 %v8093
      %8331 = vmatprep.subr.bf16.mxu0 %v8098
      %8332 = vmatpush1.bf16.msra.mxu0 %v8097
      %8333 = vmatprep.subr.bf16.mxu0 %v8102
      %8334 = vmatpush1.bf16.msra.mxu0 %v8101
      %8335 = vmatprep.subr.bf16.mxu0 %v8106
      %8336 = vmatpush1.bf16.msra.mxu0 %v8105
      %8337 = vmatprep.subr.bf16.mxu0 %v8110
      %8338 = vmatpush1.bf16.msra.mxu0 %v8109
      %8339 = vmatprep.subr.bf16.mxu0 %v8114
      %8340 = vmatpush1.bf16.msra.mxu0 %v8113
      %8341 = vmatprep.mubr.bf16.mxu0 %v7533
      %8342 = vmatmul.mubr.bf16.gmra.mrb[0].mxu0 %v7532
      %v8343 = vpop.f32.mrb[0].mxu0
      %v8344 = vadd.f32 0.0, %v8343
      %v8345 = vpop.f32.mrb[0].mxu0
      %v8346 = vadd.f32 0.0, %v8345
      %v8347 = vpop.f32.mrb[0].mxu0
      %v8348 = vadd.f32 0.0, %v8347
      %v8349 = vpop.f32.mrb[0].mxu0
      %v8350 = vadd.f32 0.0, %v8349
      %8351 = vmatprep.mubr.bf16.mxu0 %v7537
      %8352 = vmatmul.mubr.bf16.gmra.mrb[0].mxu0 %v7536
      %v8353 = vpop.f32.mrb[0].mxu0
      %v8354 = vadd.f32 0.0, %v8353
      %v8355 = vpop.f32.mrb[0].mxu0
      %v8356 = vadd.f32 0.0, %v8355
      %v8357 = vpop.f32.mrb[0].mxu0
      %v8358 = vadd.f32 0.0, %v8357
      %v8359 = vpop.f32.mrb[0].mxu0
      %v8360 = vadd.f32 0.0, %v8359
      %8361 = vdwg.mxu0
      %8362 = vmatprep.subr.bf16.mxu0 %v8118
      %8363 = vmatpush1.bf16.msra.mxu0 %v8117
      %8364 = vmatprep.subr.bf16.mxu0 %v8122
      %8365 = vmatpush1.bf16.msra.mxu0 %v8121
      %8366 = vmatprep.subr.bf16.mxu0 %v8126
      %8367 = vmatpush1.bf16.msra.mxu0 %v8125
      %8368 = vmatprep.subr.bf16.mxu0 %v8130
      %8369 = vmatpush1.bf16.msra.mxu0 %v8129
      %8370 = vmatprep.subr.bf16.mxu0 %v8134
      %8371 = vmatpush1.bf16.msra.mxu0 %v8133
      %8372 = vmatprep.subr.bf16.mxu0 %v8138
      %8373 = vmatpush1.bf16.msra.mxu0 %v8137
      %8374 = vmatprep.subr.bf16.mxu0 %v8142
      %8375 = vmatpush1.bf16.msra.mxu0 %v8141
      %8376 = vmatprep.subr.bf16.mxu0 %v8146
      %8377 = vmatpush1.bf16.msra.mxu0 %v8145
      %8378 = vmatprep.subr.bf16.mxu0 %v8150
      %8379 = vmatpush1.bf16.msra.mxu0 %v8149
      %8380 = vmatprep.subr.bf16.mxu0 %v8154
      %8381 = vmatpush1.bf16.msra.mxu0 %v8153
      %8382 = vmatprep.subr.bf16.mxu0 %v8158
      %8383 = vmatpush1.bf16.msra.mxu0 %v8157
      %8384 = vmatprep.subr.bf16.mxu0 %v8162
      %8385 = vmatpush1.bf16.msra.mxu0 %v8161
      %8386 = vmatprep.subr.bf16.mxu0 %v8166
      %8387 = vmatpush1.bf16.msra.mxu0 %v8165
      %8388 = vmatprep.subr.bf16.mxu0 %v8170
      %8389 = vmatpush1.bf16.msra.mxu0 %v8169
      %8390 = vmatprep.subr.bf16.mxu0 %v8174
      %8391 = vmatpush1.bf16.msra.mxu0 %v8173
      %8392 = vmatprep.subr.bf16.mxu0 %v8178
      %8393 = vmatpush1.bf16.msra.mxu0 %v8177
      %8394 = vmatprep.mubr.bf16.mxu0 %v7535
      %8395 = vmatmul.mubr.bf16.gmra.mrb[0].mxu0 %v7534
      %v8396 = vpop.f32.mrb[0].mxu0
      %v8397 = vadd.f32 %v8344, %v8396
      %v8398 = vpop.f32.mrb[0].mxu0
      %v8399 = vadd.f32 %v8346, %v8398
      %v8400 = vpop.f32.mrb[0].mxu0
      %v8401 = vadd.f32 %v8348, %v8400
      %v8402 = vpop.f32.mrb[0].mxu0
      %v8403 = vadd.f32 %v8350, %v8402
      %8404 = vmatprep.mubr.bf16.mxu0 %v7539
      %8405 = vmatmul.mubr.bf16.gmra.mrb[0].mxu0 %v7538
      %v8406 = vpop.f32.mrb[0].mxu0
      %v8407 = vadd.f32 %v8354, %v8406
      %v8408 = vpop.f32.mrb[0].mxu0
      %v8409 = vadd.f32 %v8356, %v8408
      %v8410 = vpop.f32.mrb[0].mxu0
      %v8411 = vadd.f32 %v8358, %v8410
      %v8412 = vpop.f32.mrb[0].mxu0
      %v8413 = vadd.f32 %v8360, %v8412
      %8414 = vdwg.mxu0
      %8415 = vmatprep.subr.bf16.mxu0 %v8056
      %8416 = vmatpush1.bf16.msra.mxu0 %v8055
      %8417 = vmatprep.subr.bf16.mxu0 %v8060
      %8418 = vmatpush1.bf16.msra.mxu0 %v8059
      %8419 = vmatprep.subr.bf16.mxu0 %v8064
      %8420 = vmatpush1.bf16.msra.mxu0 %v8063
      %8421 = vmatprep.subr.bf16.mxu0 %v8068
      %8422 = vmatpush1.bf16.msra.mxu0 %v8067
      %8423 = vmatprep.subr.bf16.mxu0 %v8072
      %8424 = vmatpush1.bf16.msra.mxu0 %v8071
      %8425 = vmatprep.subr.bf16.mxu0 %v8076
      %8426 = vmatpush1.bf16.msra.mxu0 %v8075
      %8427 = vmatprep.subr.bf16.mxu0 %v8080
      %8428 = vmatpush1.bf16.msra.mxu0 %v8079
      %8429 = vmatprep.subr.bf16.mxu0 %v8084
      %8430 = vmatpush1.bf16.msra.mxu0 %v8083
      %8431 = vmatprep.subr.bf16.mxu0 %v8088
      %8432 = vmatpush1.bf16.msra.mxu0 %v8087
      %8433 = vmatprep.subr.bf16.mxu0 %v8092
      %8434 = vmatpush1.bf16.msra.mxu0 %v8091
      %8435 = vmatprep.subr.bf16.mxu0 %v8096
      %8436 = vmatpush1.bf16.msra.mxu0 %v8095
      %8437 = vmatprep.subr.bf16.mxu0 %v8100
      %8438 = vmatpush1.bf16.msra.mxu0 %v8099
      %8439 = vmatprep.subr.bf16.mxu0 %v8104
      %8440 = vmatpush1.bf16.msra.mxu0 %v8103
      %8441 = vmatprep.subr.bf16.mxu0 %v8108
      %8442 = vmatpush1.bf16.msra.mxu0 %v8107
      %8443 = vmatprep.subr.bf16.mxu0 %v8112
      %8444 = vmatpush1.bf16.msra.mxu0 %v8111
      %8445 = vmatprep.subr.bf16.mxu0 %v8116
      %8446 = vmatpush1.bf16.msra.mxu0 %v8115
      %8447 = vmatprep.mubr.bf16.mxu0 %v7533
      %8448 = vmatmul.mubr.bf16.gmra.mrb[0].mxu0 %v7532
      %v8449 = vpop.f32.mrb[0].mxu0
      %v8450 = vadd.f32 0.0, %v8449
      %v8451 = vpop.f32.mrb[0].mxu0
      %v8452 = vadd.f32 0.0, %v8451
      %v8453 = vpop.f32.mrb[0].mxu0
      %v8454 = vadd.f32 0.0, %v8453
      %v8455 = vpop.f32.mrb[0].mxu0
      %v8456 = vadd.f32 0.0, %v8455
      %8457 = vmatprep.mubr.bf16.mxu0 %v7537
      %8458 = vmatmul.mubr.bf16.gmra.mrb[0].mxu0 %v7536
      %v8459 = vpop.f32.mrb[0].mxu0
      %v8460 = vadd.f32 0.0, %v8459
      %v8461 = vpop.f32.mrb[0].mxu0
      %v8462 = vadd.f32 0.0, %v8461
      %v8463 = vpop.f32.mrb[0].mxu0
      %v8464 = vadd.f32 0.0, %v8463
      %v8465 = vpop.f32.mrb[0].mxu0
      %v8466 = vadd.f32 0.0, %v8465
      %8467 = vdwg.mxu0
      %8468 = vmatprep.subr.bf16.mxu0 %v8120
      %8469 = vmatpush1.bf16.msra.mxu0 %v8119
      %8470 = vmatprep.subr.bf16.mxu0 %v8124
      %8471 = vmatpush1.bf16.msra.mxu0 %v8123
      %8472 = vmatprep.subr.bf16.mxu0 %v8128
      %8473 = vmatpush1.bf16.msra.mxu0 %v8127
      %8474 = vmatprep.subr.bf16.mxu0 %v8132
      %8475 = vmatpush1.bf16.msra.mxu0 %v8131
      %8476 = vmatprep.subr.bf16.mxu0 %v8136
      %8477 = vmatpush1.bf16.msra.mxu0 %v8135
      %8478 = vmatprep.subr.bf16.mxu0 %v8140
      %8479 = vmatpush1.bf16.msra.mxu0 %v8139
      %8480 = vmatprep.subr.bf16.mxu0 %v8144
      %8481 = vmatpush1.bf16.msra.mxu0 %v8143
      %8482 = vmatprep.subr.bf16.mxu0 %v8148
      %8483 = vmatpush1.bf16.msra.mxu0 %v8147
      %8484 = vmatprep.subr.bf16.mxu0 %v8152
      %8485 = vmatpush1.bf16.msra.mxu0 %v8151
      %8486 = vmatprep.subr.bf16.mxu0 %v8156
      %8487 = vmatpush1.bf16.msra.mxu0 %v8155
      %8488 = vmatprep.subr.bf16.mxu0 %v8160
      %8489 = vmatpush1.bf16.msra.mxu0 %v8159
      %8490 = vmatprep.subr.bf16.mxu0 %v8164
      %8491 = vmatpush1.bf16.msra.mxu0 %v8163
      %8492 = vmatprep.subr.bf16.mxu0 %v8168
      %8493 = vmatpush1.bf16.msra.mxu0 %v8167
      %8494 = vmatprep.subr.bf16.mxu0 %v8172
      %8495 = vmatpush1.bf16.msra.mxu0 %v8171
      %8496 = vmatprep.subr.bf16.mxu0 %v8176
      %8497 = vmatpush1.bf16.msra.mxu0 %v8175
      %8498 = vmatprep.subr.bf16.mxu0 %v8180
      %8499 = vmatpush1.bf16.msra.mxu0 %v8179
      %8500 = vmatprep.mubr.bf16.mxu0 %v7535
      %8501 = vmatmul.mubr.bf16.gmra.mrb[0].mxu0 %v7534
      %v8502 = vpop.f32.mrb[0].mxu0
      %v8503 = vadd.f32 %v8450, %v8502
      %v8504 = vpop.f32.mrb[0].mxu0
      %v8505 = vadd.f32 %v8452, %v8504
      %v8506 = vpop.f32.mrb[0].mxu0
      %v8507 = vadd.f32 %v8454, %v8506
      %v8508 = vpop.f32.mrb[0].mxu0
      %v8509 = vadd.f32 %v8456, %v8508
      %8510 = vmatprep.mubr.bf16.mxu0 %v7539
      %8511 = vmatmul.mubr.bf16.gmra.mrb[0].mxu0 %v7538
      %v8512 = vpop.f32.mrb[0].mxu0
      %v8513 = vadd.f32 %v8460, %v8512
      %v8514 = vpop.f32.mrb[0].mxu0
      %v8515 = vadd.f32 %v8462, %v8514
      %v8516 = vpop.f32.mrb[0].mxu0
      %v8517 = vadd.f32 %v8464, %v8516
      %v8518 = vpop.f32.mrb[0].mxu0
      %v8519 = vadd.f32 %v8466, %v8518
      %8520 = vdwg.mxu0
      %v8521 = vadd.f32 %v7320, %v8397
      %v8522 = vadd.f32 %v7322, %v8399
      %v8523 = vadd.f32 %v7426, %v8503
      %v8524 = vadd.f32 %v7428, %v8505
      %v8525 = vadd.f32 %v7324, %v8401
      %v8526 = vadd.f32 %v7326, %v8403
      %v8527 = vadd.f32 %v7430, %v8507
      %v8528 = vadd.f32 %v7432, %v8509
      %v8529 = vadd.f32 %v7330, %v8407
      %v8530 = vadd.f32 %v7332, %v8409
      %v8531 = vadd.f32 %v7436, %v8513
      %v8532 = vadd.f32 %v7438, %v8515
      %v8533 = vadd.f32 %v7334, %v8411
      %v8534 = vadd.f32 %v7336, %v8413
      %v8535 = vadd.f32 %v7440, %v8517
      %v8536 = vadd.f32 %v7442, %v8519
      %s8537 = scalar_lea.vmem [#allocation15], 7
      %v8538 = vld [vmem:[%s8537] ss:$8 sm:$0xf]
      %s8539 = scalar_lea.vmem [#allocation15], 32
      %v8540 = vld [vmem:[%s8539] ss:$8 sm:$0xf]
      %v8541 = vadd.f32 %v8521, %v8525
      %v8542 = vadd.f32 %v8541, %v8529
      %v8543 = vadd.f32 %v8542, %v8533
      %v8544 = vrot.slane %v8543, 4
      %v8545 = vadd.f32 %v8543, %v8544
      %v8546 = vrot.slane %v8545, 2
      %v8547 = vadd.f32 %v8545, %v8546
      %v8548 = vrot.slane %v8547, 1
      %v8549 = vadd.f32 %v8547, %v8548
      %v8550 = vadd.f32 %v8522, %v8526
      %v8551 = vadd.f32 %v8550, %v8530
      %v8552 = vadd.f32 %v8551, %v8534
      %v8553 = vrot.slane %v8552, 4
      %v8554 = vadd.f32 %v8552, %v8553
      %v8555 = vrot.slane %v8554, 2
      %v8556 = vadd.f32 %v8554, %v8555
      %v8557 = vrot.slane %v8556, 1
      %v8558 = vadd.f32 %v8556, %v8557
      %v8559 = vadd.f32 %v8523, %v8527
      %v8560 = vadd.f32 %v8559, %v8531
      %v8561 = vadd.f32 %v8560, %v8535
      %v8562 = vrot.slane %v8561, 4
      %v8563 = vadd.f32 %v8561, %v8562
      %v8564 = vrot.slane %v8563, 2
      %v8565 = vadd.f32 %v8563, %v8564
      %v8566 = vrot.slane %v8565, 1
      %v8567 = vadd.f32 %v8565, %v8566
      %v8568 = vadd.f32 %v8524, %v8528
      %v8569 = vadd.f32 %v8568, %v8532
      %v8570 = vadd.f32 %v8569, %v8536
      %v8571 = vrot.slane %v8570, 4
      %v8572 = vadd.f32 %v8570, %v8571
      %v8573 = vrot.slane %v8572, 2
      %v8574 = vadd.f32 %v8572, %v8573
      %v8575 = vrot.slane %v8574, 1
      %v8576 = vadd.f32 %v8574, %v8575
      %v8577 = vmul.f32 %v8521, %v8521
      %v8578 = vmul.f32 %v8522, %v8522
      %v8579 = vmul.f32 %v8523, %v8523
      %v8580 = vmul.f32 %v8524, %v8524
      %v8581 = vmul.f32 %v8525, %v8525
      %v8582 = vmul.f32 %v8526, %v8526
      %v8583 = vmul.f32 %v8527, %v8527
      %v8584 = vmul.f32 %v8528, %v8528
      %v8585 = vmul.f32 %v8529, %v8529
      %v8586 = vmul.f32 %v8530, %v8530
      %v8587 = vmul.f32 %v8531, %v8531
      %v8588 = vmul.f32 %v8532, %v8532
      %v8589 = vmul.f32 %v8533, %v8533
      %v8590 = vmul.f32 %v8534, %v8534
      %v8591 = vmul.f32 %v8535, %v8535
      %v8592 = vmul.f32 %v8536, %v8536
      %v8593 = vadd.f32 %v8577, %v8581
      %v8594 = vadd.f32 %v8593, %v8585
      %v8595 = vadd.f32 %v8594, %v8589
      %v8596 = vrot.slane %v8595, 4
      %v8597 = vadd.f32 %v8595, %v8596
      %v8598 = vrot.slane %v8597, 2
      %v8599 = vadd.f32 %v8597, %v8598
      %v8600 = vrot.slane %v8599, 1
      %v8601 = vadd.f32 %v8599, %v8600
      %v8602 = vadd.f32 %v8578, %v8582
      %v8603 = vadd.f32 %v8602, %v8586
      %v8604 = vadd.f32 %v8603, %v8590
      %v8605 = vrot.slane %v8604, 4
      %v8606 = vadd.f32 %v8604, %v8605
      %v8607 = vrot.slane %v8606, 2
      %v8608 = vadd.f32 %v8606, %v8607
      %v8609 = vrot.slane %v8608, 1
      %v8610 = vadd.f32 %v8608, %v8609
      %v8611 = vadd.f32 %v8579, %v8583
      %v8612 = vadd.f32 %v8611, %v8587
      %v8613 = vadd.f32 %v8612, %v8591
      %v8614 = vrot.slane %v8613, 4
      %v8615 = vadd.f32 %v8613, %v8614
      %v8616 = vrot.slane %v8615, 2
      %v8617 = vadd.f32 %v8615, %v8616
      %v8618 = vrot.slane %v8617, 1
      %v8619 = vadd.f32 %v8617, %v8618
      %v8620 = vadd.f32 %v8580, %v8584
      %v8621 = vadd.f32 %v8620, %v8588
      %v8622 = vadd.f32 %v8621, %v8592
      %v8623 = vrot.slane %v8622, 4
      %v8624 = vadd.f32 %v8622, %v8623
      %v8625 = vrot.slane %v8624, 2
      %v8626 = vadd.f32 %v8624, %v8625
      %v8627 = vrot.slane %v8626, 1
      %v8628 = vadd.f32 %v8626, %v8627
      %v8629 = vsel %vm1338, %v8549, %v8601
      %v8630 = vsel %vm1338, %v8558, %v8610
      %v8631 = vsel %vm1338, %v8567, %v8619
      %v8632 = vsel %vm1338, %v8576, %v8628
      %8633 = vrot.lane.b32.xlu0 %v8629, 32
      %v8634 = vpop.permute.xlu0 %8633
      %8635 = vrot.lane.b32.xlu0 %v8630, 32
      %v8636 = vpop.permute.xlu0 %8635
      %8637 = vrot.lane.b32.xlu0 %v8631, 32
      %v8638 = vpop.permute.xlu0 %8637
      %8639 = vrot.lane.b32.xlu0 %v8632, 32
      %v8640 = vpop.permute.xlu0 %8639
      %v8641 = vsel %vm4701, %v8638, %v8640
      %v8642 = vsel %vm4701, %v8636, %v8638
      %v8643 = vsel %vm4701, %v8634, %v8636
      %v8644 = vsel %vm4701, %v8640, %v8634
      %v8645 = vadd.f32 %v8629, %v8644
      %v8646 = vadd.f32 %v8630, %v8643
      %v8647 = vadd.f32 %v8631, %v8642
      %v8648 = vadd.f32 %v8632, %v8641
      %8649 = vrot.lane.b32.xlu0 %v8645, 64
      %v8650 = vpop.permute.xlu0 %8649
      %8651 = vrot.lane.b32.xlu0 %v8646, 64
      %v8652 = vpop.permute.xlu0 %8651
      %8653 = vrot.lane.b32.xlu0 %v8647, 64
      %v8654 = vpop.permute.xlu0 %8653
      %8655 = vrot.lane.b32.xlu0 %v8648, 64
      %v8656 = vpop.permute.xlu0 %8655
      %v8657 = vsel %vm4718, %v8654, %v8656
      %v8658 = vsel %vm4718, %v8652, %v8654
      %v8659 = vsel %vm4718, %v8650, %v8652
      %v8660 = vsel %vm4718, %v8656, %v8650
      %v8661 = vadd.f32 %v8645, %v8660
      %v8662 = vadd.f32 %v8646, %v8659
      %v8663 = vadd.f32 %v8647, %v8658
      %v8664 = vadd.f32 %v8648, %v8657
      %v8665 = vadd.f32 %v8661, %v8664
      %v8666 = vadd.f32 %v8662, %v8661
      %v8667 = vadd.f32 %v8663, %v8662
      %v8668 = vadd.f32 %v8664, %v8663
      %v8669 = vadd.f32 %v8665, %v8667
      %v8670 = vadd.f32 %v8666, %v8668
      %v8671 = vmul.f32 %v8669, 0.001953125
      %v8672 = vmul.f32 %v8670, 0.001953125
      %v8673 = vmul.f32 %v8671, %v8671
      %v8674 = vmul.f32 %v8672, %v8672
      %v8677 = vrot.slane %v8673, 7
      %v8678 = vrot.slane %v8674, 7
      %v8681 = vsub.f32 %v8671, %v8677
      %v8682 = vsub.f32 %v8672, %v8678
      %v8683 = vmax.f32 %v8681, 0.0
      %v8684 = vmax.f32 %v8682, 0.0
      %v8685 = vlaneseq
      %v8686 = vshrl.u32 %v8685, 7
      %v8687 = vsub.s32 0, %v8686
      %v8688 = vrot.slane %v8671, %v8687
      %v8689 = vlaneseq
      %v8690 = vshrl.u32 %v8689, 7
      %v8691 = vsub.s32 0, %v8690
      %v8692 = vrot.slane %v8672, %v8691
      %v8693 = vsub.f32 %v8521, %v8688
      %v8694 = vsub.f32 %v8522, %v8692
      %v8695 = vsub.f32 %v8523, %v8688
      %v8696 = vsub.f32 %v8524, %v8692
      %v8697 = vsub.f32 %v8525, %v8688
      %v8698 = vsub.f32 %v8526, %v8692
      %v8699 = vsub.f32 %v8527, %v8688
      %v8700 = vsub.f32 %v8528, %v8692
      %v8701 = vsub.f32 %v8529, %v8688
      %v8702 = vsub.f32 %v8530, %v8692
      %v8703 = vsub.f32 %v8531, %v8688
      %v8704 = vsub.f32 %v8532, %v8692
      %v8705 = vsub.f32 %v8533, %v8688
      %v8706 = vsub.f32 %v8534, %v8692
      %v8707 = vsub.f32 %v8535, %v8688
      %v8708 = vsub.f32 %v8536, %v8692
      %v8710 = vlaneseq
      %v8711 = vshrl.u32 %v8710, 7
      %v8712 = vsub.s32 0, %v8711
      %v8713 = vrot.slane %v8538, %v8712
      %v8714 = vlaneseq
      %v8715 = vshrl.u32 %v8714, 7
      %v8716 = vsub.s32 1, %v8715
      %v8717 = vrot.slane %v8538, %v8716
      %v8718 = vlaneseq
      %v8719 = vshrl.u32 %v8718, 7
      %v8720 = vsub.s32 2, %v8719
      %v8721 = vrot.slane %v8538, %v8720
      %v8722 = vlaneseq
      %v8723 = vshrl.u32 %v8722, 7
      %v8724 = vsub.s32 3, %v8723
      %v8725 = vrot.slane %v8538, %v8724
      %v8730 = vmul.f32 %v8713, %v8693
      %v8731 = vmul.f32 %v8717, %v8694
      %v8732 = vmul.f32 %v8721, %v8695
      %v8733 = vmul.f32 %v8725, %v8696
      %v8734 = vmul.f32 %v8713, %v8697
      %v8735 = vmul.f32 %v8717, %v8698
      %v8736 = vmul.f32 %v8721, %v8699
      %v8737 = vmul.f32 %v8725, %v8700
      %v8738 = vmul.f32 %v8713, %v8701
      %v8739 = vmul.f32 %v8717, %v8702
      %v8740 = vmul.f32 %v8721, %v8703
      %v8741 = vmul.f32 %v8725, %v8704
      %v8742 = vmul.f32 %v8713, %v8705
      %v8743 = vmul.f32 %v8717, %v8706
      %v8744 = vmul.f32 %v8721, %v8707
      %v8745 = vmul.f32 %v8725, %v8708
      %v8746 = vadd.f32 %v8683, 0.001
      %v8747 = vadd.f32 %v8684, 0.001
      %v8748 = vrsqrt.pop %v8746
      %v8749 = vrsqrt.pop %v8747
      %v8750 = vlaneseq
      %v8751 = vshrl.u32 %v8750, 7
      %v8752 = vsub.s32 1, %v8751
      %v8753 = vrot.slane %v8748, %v8752
      %v8754 = vlaneseq
      %v8755 = vshrl.u32 %v8754, 7
      %v8756 = vsub.s32 1, %v8755
      %v8757 = vrot.slane %v8749, %v8756
      %v8758 = vmul.f32 %v8730, %v8753
      %v8759 = vmul.f32 %v8731, %v8757
      %v8760 = vmul.f32 %v8732, %v8753
      %v8761 = vmul.f32 %v8733, %v8757
      %v8762 = vmul.f32 %v8734, %v8753
      %v8763 = vmul.f32 %v8735, %v8757
      %v8764 = vmul.f32 %v8736, %v8753
      %v8765 = vmul.f32 %v8737, %v8757
      %v8766 = vmul.f32 %v8738, %v8753
      %v8767 = vmul.f32 %v8739, %v8757
      %v8768 = vmul.f32 %v8740, %v8753
      %v8769 = vmul.f32 %v8741, %v8757
      %v8770 = vmul.f32 %v8742, %v8753
      %v8771 = vmul.f32 %v8743, %v8757
      %v8772 = vmul.f32 %v8744, %v8753
      %v8773 = vmul.f32 %v8745, %v8757
      %v8775 = vlaneseq
      %v8776 = vshrl.u32 %v8775, 7
      %v8777 = vsub.s32 0, %v8776
      %v8778 = vrot.slane %v8540, %v8777
      %v8779 = vlaneseq
      %v8780 = vshrl.u32 %v8779, 7
      %v8781 = vsub.s32 1, %v8780
      %v8782 = vrot.slane %v8540, %v8781
      %v8783 = vlaneseq
      %v8784 = vshrl.u32 %v8783, 7
      %v8785 = vsub.s32 2, %v8784
      %v8786 = vrot.slane %v8540, %v8785
      %v8787 = vlaneseq
      %v8788 = vshrl.u32 %v8787, 7
      %v8789 = vsub.s32 3, %v8788
      %v8790 = vrot.slane %v8540, %v8789
      %v8795 = vadd.f32 %v8758, %v8778
      %v8796 = vadd.f32 %v8759, %v8782
      %v8797 = vadd.f32 %v8760, %v8786
      %v8798 = vadd.f32 %v8761, %v8790
      %v8799 = vadd.f32 %v8762, %v8778
      %v8800 = vadd.f32 %v8763, %v8782
      %v8801 = vadd.f32 %v8764, %v8786
      %v8802 = vadd.f32 %v8765, %v8790
      %v8803 = vadd.f32 %v8766, %v8778
      %v8804 = vadd.f32 %v8767, %v8782
      %v8805 = vadd.f32 %v8768, %v8786
      %v8806 = vadd.f32 %v8769, %v8790
      %v8807 = vadd.f32 %v8770, %v8778
      %v8808 = vadd.f32 %v8771, %v8782
      %v8809 = vadd.f32 %v8772, %v8786
      %v8810 = vadd.f32 %v8773, %v8790
      %v8812 = vlaneseq
      %v8813 = vshrl.u32 %v8812, 7
      %v8814 = vsub.s32 0, %v8813
      %v8815 = vrot.slane %v191, %v8814
      %v8816 = vlaneseq
      %v8817 = vshrl.u32 %v8816, 7
      %v8818 = vsub.s32 1, %v8817
      %v8819 = vrot.slane %v191, %v8818
      %v8820 = vlaneseq
      %v8821 = vshrl.u32 %v8820, 7
      %v8822 = vsub.s32 2, %v8821
      %v8823 = vrot.slane %v191, %v8822
      %v8824 = vlaneseq
      %v8825 = vshrl.u32 %v8824, 7
      %v8826 = vsub.s32 3, %v8825
      %v8827 = vrot.slane %v191, %v8826
      %v8832 = vmul.f32 %v8815, %v5251
      %v8833 = vmul.f32 %v8819, %v5252
      %v8834 = vmul.f32 %v8823, %v5253
      %v8835 = vmul.f32 %v8827, %v5254
      %v8836 = vmul.f32 %v8815, %v5255
      %v8837 = vmul.f32 %v8819, %v5256
      %v8838 = vmul.f32 %v8823, %v5257
      %v8839 = vmul.f32 %v8827, %v5258
      %v8840 = vmul.f32 %v8815, %v5259
      %v8841 = vmul.f32 %v8819, %v5260
      %v8842 = vmul.f32 %v8823, %v5261
      %v8843 = vmul.f32 %v8827, %v5262
      %v8844 = vmul.f32 %v8815, %v5263
      %v8845 = vmul.f32 %v8819, %v5264
      %v8846 = vmul.f32 %v8823, %v5265
      %v8847 = vmul.f32 %v8827, %v5266
      %v8849 = vlaneseq
      %v8850 = vshrl.u32 %v8849, 7
      %v8851 = vsub.s32 0, %v8850
      %v8852 = vrot.slane %v193, %v8851
      %v8853 = vlaneseq
      %v8854 = vshrl.u32 %v8853, 7
      %v8855 = vsub.s32 1, %v8854
      %v8856 = vrot.slane %v193, %v8855
      %v8857 = vlaneseq
      %v8858 = vshrl.u32 %v8857, 7
      %v8859 = vsub.s32 2, %v8858
      %v8860 = vrot.slane %v193, %v8859
      %v8861 = vlaneseq
      %v8862 = vshrl.u32 %v8861, 7
      %v8863 = vsub.s32 3, %v8862
      %v8864 = vrot.slane %v193, %v8863
      %v8869 = vmul.f32 %v8852, %v8795
      %v8870 = vmul.f32 %v8856, %v8796
      %v8871 = vmul.f32 %v8860, %v8797
      %v8872 = vmul.f32 %v8864, %v8798
      %v8873 = vmul.f32 %v8852, %v8799
      %v8874 = vmul.f32 %v8856, %v8800
      %v8875 = vmul.f32 %v8860, %v8801
      %v8876 = vmul.f32 %v8864, %v8802
      %v8877 = vmul.f32 %v8852, %v8803
      %v8878 = vmul.f32 %v8856, %v8804
      %v8879 = vmul.f32 %v8860, %v8805
      %v8880 = vmul.f32 %v8864, %v8806
      %v8881 = vmul.f32 %v8852, %v8807
      %v8882 = vmul.f32 %v8856, %v8808
      %v8883 = vmul.f32 %v8860, %v8809
      %v8884 = vmul.f32 %v8864, %v8810
      %v8885 = vadd.f32 %v8832, %v8869
      %v8886 = vadd.f32 %v8833, %v8870
      %v8887 = vadd.f32 %v8834, %v8871
      %v8888 = vadd.f32 %v8835, %v8872
      %v8889 = vadd.f32 %v8836, %v8873
      %v8890 = vadd.f32 %v8837, %v8874
      %v8891 = vadd.f32 %v8838, %v8875
      %v8892 = vadd.f32 %v8839, %v8876
      %v8893 = vadd.f32 %v8840, %v8877
      %v8894 = vadd.f32 %v8841, %v8878
      %v8895 = vadd.f32 %v8842, %v8879
      %v8896 = vadd.f32 %v8843, %v8880
      %v8897 = vadd.f32 %v8844, %v8881
      %v8898 = vadd.f32 %v8845, %v8882
      %v8899 = vadd.f32 %v8846, %v8883
      %v8900 = vadd.f32 %v8847, %v8884
      %v8902 = vlaneseq
      %v8903 = vshrl.u32 %v8902, 7
      %v8904 = vsub.s32 0, %v8903
      %v8905 = vrot.slane %v195, %v8904
      %v8906 = vlaneseq
      %v8907 = vshrl.u32 %v8906, 7
      %v8908 = vsub.s32 1, %v8907
      %v8909 = vrot.slane %v195, %v8908
      %v8910 = vlaneseq
      %v8911 = vshrl.u32 %v8910, 7
      %v8912 = vsub.s32 2, %v8911
      %v8913 = vrot.slane %v195, %v8912
      %v8914 = vlaneseq
      %v8915 = vshrl.u32 %v8914, 7
      %v8916 = vsub.s32 3, %v8915
      %v8917 = vrot.slane %v195, %v8916
      %v8922 = vmul.f32 %v8905, %v5251
      %v8923 = vmul.f32 %v8909, %v5252
      %v8924 = vmul.f32 %v8913, %v5253
      %v8925 = vmul.f32 %v8917, %v5254
      %v8926 = vmul.f32 %v8905, %v5255
      %v8927 = vmul.f32 %v8909, %v5256
      %v8928 = vmul.f32 %v8913, %v5257
      %v8929 = vmul.f32 %v8917, %v5258
      %v8930 = vmul.f32 %v8905, %v5259
      %v8931 = vmul.f32 %v8909, %v5260
      %v8932 = vmul.f32 %v8913, %v5261
      %v8933 = vmul.f32 %v8917, %v5262
      %v8934 = vmul.f32 %v8905, %v5263
      %v8935 = vmul.f32 %v8909, %v5264
      %v8936 = vmul.f32 %v8913, %v5265
      %v8937 = vmul.f32 %v8917, %v5266
      %v8938 = vmul.f32 %v8922, %v8795
      %v8939 = vmul.f32 %v8923, %v8796
      %v8940 = vmul.f32 %v8924, %v8797
      %v8941 = vmul.f32 %v8925, %v8798
      %v8942 = vmul.f32 %v8926, %v8799
      %v8943 = vmul.f32 %v8927, %v8800
      %v8944 = vmul.f32 %v8928, %v8801
      %v8945 = vmul.f32 %v8929, %v8802
      %v8946 = vmul.f32 %v8930, %v8803
      %v8947 = vmul.f32 %v8931, %v8804
      %v8948 = vmul.f32 %v8932, %v8805
      %v8949 = vmul.f32 %v8933, %v8806
      %v8950 = vmul.f32 %v8934, %v8807
      %v8951 = vmul.f32 %v8935, %v8808
      %v8952 = vmul.f32 %v8936, %v8809
      %v8953 = vmul.f32 %v8937, %v8810
      %v8954 = vadd.f32 %v8885, %v8938
      %v8955 = vadd.f32 %v8886, %v8939
      %v8956 = vadd.f32 %v8887, %v8940
      %v8957 = vadd.f32 %v8888, %v8941
      %v8958 = vadd.f32 %v8889, %v8942
      %v8959 = vadd.f32 %v8890, %v8943
      %v8960 = vadd.f32 %v8891, %v8944
      %v8961 = vadd.f32 %v8892, %v8945
      %v8962 = vadd.f32 %v8893, %v8946
      %v8963 = vadd.f32 %v8894, %v8947
      %v8964 = vadd.f32 %v8895, %v8948
      %v8965 = vadd.f32 %v8896, %v8949
      %v8966 = vadd.f32 %v8897, %v8950
      %v8967 = vadd.f32 %v8898, %v8951
      %v8968 = vadd.f32 %v8899, %v8952
      %v8969 = vadd.f32 %v8900, %v8953
      %v8970 = vmax.f32 %v8954, 0.0
      %v8971 = vmax.f32 %v8955, 0.0
      %v8972 = vmax.f32 %v8956, 0.0
      %v8973 = vmax.f32 %v8957, 0.0
      %v8974 = vmax.f32 %v8958, 0.0
      %v8975 = vmax.f32 %v8959, 0.0
      %v8976 = vmax.f32 %v8960, 0.0
      %v8977 = vmax.f32 %v8961, 0.0
      %v8978 = vmax.f32 %v8962, 0.0
      %v8979 = vmax.f32 %v8963, 0.0
      %v8980 = vmax.f32 %v8964, 0.0
      %v8981 = vmax.f32 %v8965, 0.0
      %v8982 = vmax.f32 %v8966, 0.0
      %v8983 = vmax.f32 %v8967, 0.0
      %v8984 = vmax.f32 %v8968, 0.0
      %v8985 = vmax.f32 %v8969, 0.0
      %v8986 = vand.u32 2147483647, %v8954
      %v8987 = vand.u32 2147483647, %v8955
      %v8988 = vand.u32 2147483647, %v8956
      %v8989 = vand.u32 2147483647, %v8957
      %v8990 = vand.u32 2147483647, %v8958
      %v8991 = vand.u32 2147483647, %v8959
      %v8992 = vand.u32 2147483647, %v8960
      %v8993 = vand.u32 2147483647, %v8961
      %v8994 = vand.u32 2147483647, %v8962
      %v8995 = vand.u32 2147483647, %v8963
      %v8996 = vand.u32 2147483647, %v8964
      %v8997 = vand.u32 2147483647, %v8965
      %v8998 = vand.u32 2147483647, %v8966
      %v8999 = vand.u32 2147483647, %v8967
      %v9000 = vand.u32 2147483647, %v8968
      %v9001 = vand.u32 2147483647, %v8969
      %v9002 = vsub.f32 0.0, %v8986
      %v9003 = vsub.f32 0.0, %v8987
      %v9004 = vsub.f32 0.0, %v8988
      %v9005 = vsub.f32 0.0, %v8989
      %v9006 = vsub.f32 0.0, %v8990
      %v9007 = vsub.f32 0.0, %v8991
      %v9008 = vsub.f32 0.0, %v8992
      %v9009 = vsub.f32 0.0, %v8993
      %v9010 = vsub.f32 0.0, %v8994
      %v9011 = vsub.f32 0.0, %v8995
      %v9012 = vsub.f32 0.0, %v8996
      %v9013 = vsub.f32 0.0, %v8997
      %v9014 = vsub.f32 0.0, %v8998
      %v9015 = vsub.f32 0.0, %v8999
      %v9016 = vsub.f32 0.0, %v9000
      %v9017 = vsub.f32 0.0, %v9001
      %v9018 = vmul.f32 %v9002, 1.442695
      %v9019 = vpow.pop %v9018
      %v9020 = vmul.f32 %v9003, 1.442695
      %v9021 = vpow.pop %v9020
      %v9022 = vmul.f32 %v9004, 1.442695
      %v9023 = vpow.pop %v9022
      %v9024 = vmul.f32 %v9005, 1.442695
      %v9025 = vpow.pop %v9024
      %v9026 = vmul.f32 %v9006, 1.442695
      %v9027 = vpow.pop %v9026
      %v9028 = vmul.f32 %v9007, 1.442695
      %v9029 = vpow.pop %v9028
      %v9030 = vmul.f32 %v9008, 1.442695
      %v9031 = vpow.pop %v9030
      %v9032 = vmul.f32 %v9009, 1.442695
      %v9033 = vpow.pop %v9032
      %v9034 = vmul.f32 %v9010, 1.442695
      %v9035 = vpow.pop %v9034
      %v9036 = vmul.f32 %v9011, 1.442695
      %v9037 = vpow.pop %v9036
      %v9038 = vmul.f32 %v9012, 1.442695
      %v9039 = vpow.pop %v9038
      %v9040 = vmul.f32 %v9013, 1.442695
      %v9041 = vpow.pop %v9040
      %v9042 = vmul.f32 %v9014, 1.442695
      %v9043 = vpow.pop %v9042
      %v9044 = vmul.f32 %v9015, 1.442695
      %v9045 = vpow.pop %v9044
      %v9046 = vmul.f32 %v9016, 1.442695
      %v9047 = vpow.pop %v9046
      %v9048 = vmul.f32 %v9017, 1.442695
      %v9049 = vpow.pop %v9048
      %v9050 = vadd.f32 %v9019, 1.0
      %v9051 = vadd.f32 %v9021, 1.0
      %v9052 = vadd.f32 %v9023, 1.0
      %v9053 = vadd.f32 %v9025, 1.0
      %v9054 = vadd.f32 %v9027, 1.0
      %v9055 = vadd.f32 %v9029, 1.0
      %v9056 = vadd.f32 %v9031, 1.0
      %v9057 = vadd.f32 %v9033, 1.0
      %v9058 = vadd.f32 %v9035, 1.0
      %v9059 = vadd.f32 %v9037, 1.0
      %v9060 = vadd.f32 %v9039, 1.0
      %v9061 = vadd.f32 %v9041, 1.0
      %v9062 = vadd.f32 %v9043, 1.0
      %v9063 = vadd.f32 %v9045, 1.0
      %v9064 = vadd.f32 %v9047, 1.0
      %v9065 = vadd.f32 %v9049, 1.0
      %v9066 = vlog2.pop %v9050
      %v9067 = vmul.f32 %v9066, 0.6931472
      %v9068 = vlog2.pop %v9051
      %v9069 = vmul.f32 %v9068, 0.6931472
      %v9070 = vlog2.pop %v9052
      %v9071 = vmul.f32 %v9070, 0.6931472
      %v9072 = vlog2.pop %v9053
      %v9073 = vmul.f32 %v9072, 0.6931472
      %v9074 = vlog2.pop %v9054
      %v9075 = vmul.f32 %v9074, 0.6931472
      %v9076 = vlog2.pop %v9055
      %v9077 = vmul.f32 %v9076, 0.6931472
      %v9078 = vlog2.pop %v9056
      %v9079 = vmul.f32 %v9078, 0.6931472
      %v9080 = vlog2.pop %v9057
      %v9081 = vmul.f32 %v9080, 0.6931472
      %v9082 = vlog2.pop %v9058
      %v9083 = vmul.f32 %v9082, 0.6931472
      %v9084 = vlog2.pop %v9059
      %v9085 = vmul.f32 %v9084, 0.6931472
      %v9086 = vlog2.pop %v9060
      %v9087 = vmul.f32 %v9086, 0.6931472
      %v9088 = vlog2.pop %v9061
      %v9089 = vmul.f32 %v9088, 0.6931472
      %v9090 = vlog2.pop %v9062
      %v9091 = vmul.f32 %v9090, 0.6931472
      %v9092 = vlog2.pop %v9063
      %v9093 = vmul.f32 %v9092, 0.6931472
      %v9094 = vlog2.pop %v9064
      %v9095 = vmul.f32 %v9094, 0.6931472
      %v9096 = vlog2.pop %v9065
      %v9097 = vmul.f32 %v9096, 0.6931472
      %v9098 = vadd.f32 %v8970, %v9067
      %v9099 = vadd.f32 %v8971, %v9069
      %v9100 = vadd.f32 %v8972, %v9071
      %v9101 = vadd.f32 %v8973, %v9073
      %v9102 = vadd.f32 %v8974, %v9075
      %v9103 = vadd.f32 %v8975, %v9077
      %v9104 = vadd.f32 %v8976, %v9079
      %v9105 = vadd.f32 %v8977, %v9081
      %v9106 = vadd.f32 %v8978, %v9083
      %v9107 = vadd.f32 %v8979, %v9085
      %v9108 = vadd.f32 %v8980, %v9087
      %v9109 = vadd.f32 %v8981, %v9089
      %v9110 = vadd.f32 %v8982, %v9091
      %v9111 = vadd.f32 %v8983, %v9093
      %v9112 = vadd.f32 %v8984, %v9095
      %v9113 = vadd.f32 %v8985, %v9097
      %s9114 = scalar_lea.vmem [#allocation15], 34
      %v9115 = vld [vmem:[%s9114] ss:$8 sm:$0xf]
      %v9116 = vpack.c.bf16 %v5255, %v5251
      %v9117 = vpack.c.bf16 %v5256, %v5252
      %v9118 = vpack.c.bf16 %v5257, %v5253
      %v9119 = vpack.c.bf16 %v5258, %v5254
      %v9120 = vpack.c.bf16 %v5263, %v5259
      %v9121 = vpack.c.bf16 %v5264, %v5260
      %v9122 = vpack.c.bf16 %v5265, %v5261
      %v9123 = vpack.c.bf16 %v5266, %v5262
      %v9124 = vld [vmem:[#allocation13] sm:$0xff]
      %v9125 = vld [vmem:[#allocation13 + $0x8] sm:$0xff]
      %v9126 = vld [vmem:[#allocation13 + $0x10] sm:$0xff]
      %v9127 = vld [vmem:[#allocation13 + $0x18] sm:$0xff]
      %v9128 = vld [vmem:[#allocation13 + $0x20] sm:$0xff]
      %v9129 = vld [vmem:[#allocation13 + $0x28] sm:$0xff]
      %v9130 = vld [vmem:[#allocation13 + $0x30] sm:$0xff]
      %v9131 = vld [vmem:[#allocation13 + $0x38] sm:$0xff]
      %v9132 = vld [vmem:[#allocation13 + $0x40] sm:$0xff]
      %v9133 = vld [vmem:[#allocation13 + $0x48] sm:$0xff]
      %v9134 = vld [vmem:[#allocation13 + $0x50] sm:$0xff]
      %v9135 = vld [vmem:[#allocation13 + $0x58] sm:$0xff]
      %v9136 = vld [vmem:[#allocation13 + $0x60] sm:$0xff]
      %v9137 = vld [vmem:[#allocation13 + $0x68] sm:$0xff]
      %v9138 = vld [vmem:[#allocation13 + $0x70] sm:$0xff]
      %v9139 = vld [vmem:[#allocation13 + $0x78] sm:$0xff]
      %v9140 = vld [vmem:[#allocation13 + $0x80] sm:$0xff]
      %v9141 = vld [vmem:[#allocation13 + $0x88] sm:$0xff]
      %v9142 = vld [vmem:[#allocation13 + $0x90] sm:$0xff]
      %v9143 = vld [vmem:[#allocation13 + $0x98] sm:$0xff]
      %v9144 = vld [vmem:[#allocation13 + $0xa0] sm:$0xff]
      %v9145 = vld [vmem:[#allocation13 + $0xa8] sm:$0xff]
      %v9146 = vld [vmem:[#allocation13 + $0xb0] sm:$0xff]
      %v9147 = vld [vmem:[#allocation13 + $0xb8] sm:$0xff]
      %v9148 = vld [vmem:[#allocation13 + $0xc0] sm:$0xff]
      %v9149 = vld [vmem:[#allocation13 + $0xc8] sm:$0xff]
      %v9150 = vld [vmem:[#allocation13 + $0xd0] sm:$0xff]
      %v9151 = vld [vmem:[#allocation13 + $0xd8] sm:$0xff]
      %v9152 = vld [vmem:[#allocation13 + $0xe0] sm:$0xff]
      %v9153 = vld [vmem:[#allocation13 + $0xe8] sm:$0xff]
      %v9154 = vld [vmem:[#allocation13 + $0xf0] sm:$0xff]
      %v9155 = vld [vmem:[#allocation13 + $0xf8] sm:$0xff]
      %v9156 = vld [vmem:[#allocation13 + $0x100] sm:$0xff]
      %v9157 = vld [vmem:[#allocation13 + $0x108] sm:$0xff]
      %v9158 = vld [vmem:[#allocation13 + $0x110] sm:$0xff]
      %v9159 = vld [vmem:[#allocation13 + $0x118] sm:$0xff]
      %v9160 = vld [vmem:[#allocation13 + $0x120] sm:$0xff]
      %v9161 = vld [vmem:[#allocation13 + $0x128] sm:$0xff]
      %v9162 = vld [vmem:[#allocation13 + $0x130] sm:$0xff]
      %v9163 = vld [vmem:[#allocation13 + $0x138] sm:$0xff]
      %v9164 = vld [vmem:[#allocation13 + $0x140] sm:$0xff]
      %v9165 = vld [vmem:[#allocation13 + $0x148] sm:$0xff]
      %v9166 = vld [vmem:[#allocation13 + $0x150] sm:$0xff]
      %v9167 = vld [vmem:[#allocation13 + $0x158] sm:$0xff]
      %v9168 = vld [vmem:[#allocation13 + $0x160] sm:$0xff]
      %v9169 = vld [vmem:[#allocation13 + $0x168] sm:$0xff]
      %v9170 = vld [vmem:[#allocation13 + $0x170] sm:$0xff]
      %v9171 = vld [vmem:[#allocation13 + $0x178] sm:$0xff]
      %v9172 = vld [vmem:[#allocation13 + $0x180] sm:$0xff]
      %v9173 = vld [vmem:[#allocation13 + $0x188] sm:$0xff]
      %v9174 = vld [vmem:[#allocation13 + $0x190] sm:$0xff]
      %v9175 = vld [vmem:[#allocation13 + $0x198] sm:$0xff]
      %v9176 = vld [vmem:[#allocation13 + $0x1a0] sm:$0xff]
      %v9177 = vld [vmem:[#allocation13 + $0x1a8] sm:$0xff]
      %v9178 = vld [vmem:[#allocation13 + $0x1b0] sm:$0xff]
      %v9179 = vld [vmem:[#allocation13 + $0x1b8] sm:$0xff]
      %v9180 = vld [vmem:[#allocation13 + $0x1c0] sm:$0xff]
      %v9181 = vld [vmem:[#allocation13 + $0x1c8] sm:$0xff]
      %v9182 = vld [vmem:[#allocation13 + $0x1d0] sm:$0xff]
      %v9183 = vld [vmem:[#allocation13 + $0x1d8] sm:$0xff]
      %v9184 = vld [vmem:[#allocation13 + $0x1e0] sm:$0xff]
      %v9185 = vld [vmem:[#allocation13 + $0x1e8] sm:$0xff]
      %v9186 = vld [vmem:[#allocation13 + $0x1f0] sm:$0xff]
      %v9187 = vld [vmem:[#allocation13 + $0x1f8] sm:$0xff]
      %v9188 = vld [vmem:[#allocation13 + $0x200] sm:$0xff]
      %v9189 = vld [vmem:[#allocation13 + $0x208] sm:$0xff]
      %v9190 = vld [vmem:[#allocation13 + $0x210] sm:$0xff]
      %v9191 = vld [vmem:[#allocation13 + $0x218] sm:$0xff]
      %v9192 = vld [vmem:[#allocation13 + $0x220] sm:$0xff]
      %v9193 = vld [vmem:[#allocation13 + $0x228] sm:$0xff]
      %v9194 = vld [vmem:[#allocation13 + $0x230] sm:$0xff]
      %v9195 = vld [vmem:[#allocation13 + $0x238] sm:$0xff]
      %v9196 = vld [vmem:[#allocation13 + $0x240] sm:$0xff]
      %v9197 = vld [vmem:[#allocation13 + $0x248] sm:$0xff]
      %v9198 = vld [vmem:[#allocation13 + $0x250] sm:$0xff]
      %v9199 = vld [vmem:[#allocation13 + $0x258] sm:$0xff]
      %v9200 = vld [vmem:[#allocation13 + $0x260] sm:$0xff]
      %v9201 = vld [vmem:[#allocation13 + $0x268] sm:$0xff]
      %v9202 = vld [vmem:[#allocation13 + $0x270] sm:$0xff]
      %v9203 = vld [vmem:[#allocation13 + $0x278] sm:$0xff]
      %v9204 = vld [vmem:[#allocation13 + $0x280] sm:$0xff]
      %v9205 = vld [vmem:[#allocation13 + $0x288] sm:$0xff]
      %v9206 = vld [vmem:[#allocation13 + $0x290] sm:$0xff]
      %v9207 = vld [vmem:[#allocation13 + $0x298] sm:$0xff]
      %v9208 = vld [vmem:[#allocation13 + $0x2a0] sm:$0xff]
      %v9209 = vld [vmem:[#allocation13 + $0x2a8] sm:$0xff]
      %v9210 = vld [vmem:[#allocation13 + $0x2b0] sm:$0xff]
      %v9211 = vld [vmem:[#allocation13 + $0x2b8] sm:$0xff]
      %v9212 = vld [vmem:[#allocation13 + $0x2c0] sm:$0xff]
      %v9213 = vld [vmem:[#allocation13 + $0x2c8] sm:$0xff]
      %v9214 = vld [vmem:[#allocation13 + $0x2d0] sm:$0xff]
      %v9215 = vld [vmem:[#allocation13 + $0x2d8] sm:$0xff]
      %v9216 = vld [vmem:[#allocation13 + $0x2e0] sm:$0xff]
      %v9217 = vld [vmem:[#allocation13 + $0x2e8] sm:$0xff]
      %v9218 = vld [vmem:[#allocation13 + $0x2f0] sm:$0xff]
      %v9219 = vld [vmem:[#allocation13 + $0x2f8] sm:$0xff]
      %v9220 = vld [vmem:[#allocation13 + $0x300] sm:$0xff]
      %v9221 = vld [vmem:[#allocation13 + $0x308] sm:$0xff]
      %v9222 = vld [vmem:[#allocation13 + $0x310] sm:$0xff]
      %v9223 = vld [vmem:[#allocation13 + $0x318] sm:$0xff]
      %v9224 = vld [vmem:[#allocation13 + $0x320] sm:$0xff]
      %v9225 = vld [vmem:[#allocation13 + $0x328] sm:$0xff]
      %v9226 = vld [vmem:[#allocation13 + $0x330] sm:$0xff]
      %v9227 = vld [vmem:[#allocation13 + $0x338] sm:$0xff]
      %v9228 = vld [vmem:[#allocation13 + $0x340] sm:$0xff]
      %v9229 = vld [vmem:[#allocation13 + $0x348] sm:$0xff]
      %v9230 = vld [vmem:[#allocation13 + $0x350] sm:$0xff]
      %v9231 = vld [vmem:[#allocation13 + $0x358] sm:$0xff]
      %v9232 = vld [vmem:[#allocation13 + $0x360] sm:$0xff]
      %v9233 = vld [vmem:[#allocation13 + $0x368] sm:$0xff]
      %v9234 = vld [vmem:[#allocation13 + $0x370] sm:$0xff]
      %v9235 = vld [vmem:[#allocation13 + $0x378] sm:$0xff]
      %v9236 = vld [vmem:[#allocation13 + $0x380] sm:$0xff]
      %v9237 = vld [vmem:[#allocation13 + $0x388] sm:$0xff]
      %v9238 = vld [vmem:[#allocation13 + $0x390] sm:$0xff]
      %v9239 = vld [vmem:[#allocation13 + $0x398] sm:$0xff]
      %v9240 = vld [vmem:[#allocation13 + $0x3a0] sm:$0xff]
      %v9241 = vld [vmem:[#allocation13 + $0x3a8] sm:$0xff]
      %v9242 = vld [vmem:[#allocation13 + $0x3b0] sm:$0xff]
      %v9243 = vld [vmem:[#allocation13 + $0x3b8] sm:$0xff]
      %v9244 = vld [vmem:[#allocation13 + $0x3c0] sm:$0xff]
      %v9245 = vld [vmem:[#allocation13 + $0x3c8] sm:$0xff]
      %v9246 = vld [vmem:[#allocation13 + $0x3d0] sm:$0xff]
      %v9247 = vld [vmem:[#allocation13 + $0x3d8] sm:$0xff]
      %v9248 = vld [vmem:[#allocation13 + $0x3e0] sm:$0xff]
      %v9249 = vld [vmem:[#allocation13 + $0x3e8] sm:$0xff]
      %v9250 = vld [vmem:[#allocation13 + $0x3f0] sm:$0xff]
      %v9251 = vld [vmem:[#allocation13 + $0x3f8] sm:$0xff]
      %v9253 = vlaneseq
      %v9254 = vshrl.u32 %v9253, 7
      %v9255 = vsub.s32 0, %v9254
      %v9256 = vrot.slane %v9115, %v9255
      %v9257 = vlaneseq
      %v9258 = vshrl.u32 %v9257, 7
      %v9259 = vsub.s32 1, %v9258
      %v9260 = vrot.slane %v9115, %v9259
      %v9261 = vlaneseq
      %v9262 = vshrl.u32 %v9261, 7
      %v9263 = vsub.s32 2, %v9262
      %v9264 = vrot.slane %v9115, %v9263
      %v9265 = vlaneseq
      %v9266 = vshrl.u32 %v9265, 7
      %v9267 = vsub.s32 3, %v9266
      %v9268 = vrot.slane %v9115, %v9267
      %v9401 = vunpack.c.l.b16 %v9124
      %v9402 = vunpack.c.h.b16 %v9124
      %v9403 = vunpack.c.l.b16 %v9125
      %v9404 = vunpack.c.h.b16 %v9125
      %v9405 = vunpack.c.l.b16 %v9126
      %v9406 = vunpack.c.h.b16 %v9126
      %v9407 = vunpack.c.l.b16 %v9127
      %v9408 = vunpack.c.h.b16 %v9127
      %v9409 = vunpack.c.l.b16 %v9128
      %v9410 = vunpack.c.h.b16 %v9128
      %v9411 = vunpack.c.l.b16 %v9129
      %v9412 = vunpack.c.h.b16 %v9129
      %v9413 = vunpack.c.l.b16 %v9130
      %v9414 = vunpack.c.h.b16 %v9130
      %v9415 = vunpack.c.l.b16 %v9131
      %v9416 = vunpack.c.h.b16 %v9131
      %v9417 = vunpack.c.l.b16 %v9132
      %v9418 = vunpack.c.h.b16 %v9132
      %v9419 = vunpack.c.l.b16 %v9133
      %v9420 = vunpack.c.h.b16 %v9133
      %v9421 = vunpack.c.l.b16 %v9134
      %v9422 = vunpack.c.h.b16 %v9134
      %v9423 = vunpack.c.l.b16 %v9135
      %v9424 = vunpack.c.h.b16 %v9135
      %v9425 = vunpack.c.l.b16 %v9136
      %v9426 = vunpack.c.h.b16 %v9136
      %v9427 = vunpack.c.l.b16 %v9137
      %v9428 = vunpack.c.h.b16 %v9137
      %v9429 = vunpack.c.l.b16 %v9138
      %v9430 = vunpack.c.h.b16 %v9138
      %v9431 = vunpack.c.l.b16 %v9139
      %v9432 = vunpack.c.h.b16 %v9139
      %v9433 = vunpack.c.l.b16 %v9140
      %v9434 = vunpack.c.h.b16 %v9140
      %v9435 = vunpack.c.l.b16 %v9141
      %v9436 = vunpack.c.h.b16 %v9141
      %v9437 = vunpack.c.l.b16 %v9142
      %v9438 = vunpack.c.h.b16 %v9142
      %v9439 = vunpack.c.l.b16 %v9143
      %v9440 = vunpack.c.h.b16 %v9143
      %v9441 = vunpack.c.l.b16 %v9144
      %v9442 = vunpack.c.h.b16 %v9144
      %v9443 = vunpack.c.l.b16 %v9145
      %v9444 = vunpack.c.h.b16 %v9145
      %v9445 = vunpack.c.l.b16 %v9146
      %v9446 = vunpack.c.h.b16 %v9146
      %v9447 = vunpack.c.l.b16 %v9147
      %v9448 = vunpack.c.h.b16 %v9147
      %v9449 = vunpack.c.l.b16 %v9148
      %v9450 = vunpack.c.h.b16 %v9148
      %v9451 = vunpack.c.l.b16 %v9149
      %v9452 = vunpack.c.h.b16 %v9149
      %v9453 = vunpack.c.l.b16 %v9150
      %v9454 = vunpack.c.h.b16 %v9150
      %v9455 = vunpack.c.l.b16 %v9151
      %v9456 = vunpack.c.h.b16 %v9151
      %v9457 = vunpack.c.l.b16 %v9152
      %v9458 = vunpack.c.h.b16 %v9152
      %v9459 = vunpack.c.l.b16 %v9153
      %v9460 = vunpack.c.h.b16 %v9153
      %v9461 = vunpack.c.l.b16 %v9154
      %v9462 = vunpack.c.h.b16 %v9154
      %v9463 = vunpack.c.l.b16 %v9155
      %v9464 = vunpack.c.h.b16 %v9155
      %v9465 = vunpack.c.l.b16 %v9156
      %v9466 = vunpack.c.h.b16 %v9156
      %v9467 = vunpack.c.l.b16 %v9157
      %v9468 = vunpack.c.h.b16 %v9157
      %v9469 = vunpack.c.l.b16 %v9158
      %v9470 = vunpack.c.h.b16 %v9158
      %v9471 = vunpack.c.l.b16 %v9159
      %v9472 = vunpack.c.h.b16 %v9159
      %v9473 = vunpack.c.l.b16 %v9160
      %v9474 = vunpack.c.h.b16 %v9160
      %v9475 = vunpack.c.l.b16 %v9161
      %v9476 = vunpack.c.h.b16 %v9161
      %v9477 = vunpack.c.l.b16 %v9162
      %v9478 = vunpack.c.h.b16 %v9162
      %v9479 = vunpack.c.l.b16 %v9163
      %v9480 = vunpack.c.h.b16 %v9163
      %v9481 = vunpack.c.l.b16 %v9164
      %v9482 = vunpack.c.h.b16 %v9164
      %v9483 = vunpack.c.l.b16 %v9165
      %v9484 = vunpack.c.h.b16 %v9165
      %v9485 = vunpack.c.l.b16 %v9166
      %v9486 = vunpack.c.h.b16 %v9166
      %v9487 = vunpack.c.l.b16 %v9167
      %v9488 = vunpack.c.h.b16 %v9167
      %v9489 = vunpack.c.l.b16 %v9168
      %v9490 = vunpack.c.h.b16 %v9168
      %v9491 = vunpack.c.l.b16 %v9169
      %v9492 = vunpack.c.h.b16 %v9169
      %v9493 = vunpack.c.l.b16 %v9170
      %v9494 = vunpack.c.h.b16 %v9170
      %v9495 = vunpack.c.l.b16 %v9171
      %v9496 = vunpack.c.h.b16 %v9171
      %v9497 = vunpack.c.l.b16 %v9172
      %v9498 = vunpack.c.h.b16 %v9172
      %v9499 = vunpack.c.l.b16 %v9173
      %v9500 = vunpack.c.h.b16 %v9173
      %v9501 = vunpack.c.l.b16 %v9174
      %v9502 = vunpack.c.h.b16 %v9174
      %v9503 = vunpack.c.l.b16 %v9175
      %v9504 = vunpack.c.h.b16 %v9175
      %v9505 = vunpack.c.l.b16 %v9176
      %v9506 = vunpack.c.h.b16 %v9176
      %v9507 = vunpack.c.l.b16 %v9177
      %v9508 = vunpack.c.h.b16 %v9177
      %v9509 = vunpack.c.l.b16 %v9178
      %v9510 = vunpack.c.h.b16 %v9178
      %v9511 = vunpack.c.l.b16 %v9179
      %v9512 = vunpack.c.h.b16 %v9179
      %v9513 = vunpack.c.l.b16 %v9180
      %v9514 = vunpack.c.h.b16 %v9180
      %v9515 = vunpack.c.l.b16 %v9181
      %v9516 = vunpack.c.h.b16 %v9181
      %v9517 = vunpack.c.l.b16 %v9182
      %v9518 = vunpack.c.h.b16 %v9182
      %v9519 = vunpack.c.l.b16 %v9183
      %v9520 = vunpack.c.h.b16 %v9183
      %v9521 = vunpack.c.l.b16 %v9184
      %v9522 = vunpack.c.h.b16 %v9184
      %v9523 = vunpack.c.l.b16 %v9185
      %v9524 = vunpack.c.h.b16 %v9185
      %v9525 = vunpack.c.l.b16 %v9186
      %v9526 = vunpack.c.h.b16 %v9186
      %v9527 = vunpack.c.l.b16 %v9187
      %v9528 = vunpack.c.h.b16 %v9187
      %v9529 = vunpack.c.l.b16 %v9188
      %v9530 = vunpack.c.h.b16 %v9188
      %v9531 = vunpack.c.l.b16 %v9189
      %v9532 = vunpack.c.h.b16 %v9189
      %v9533 = vunpack.c.l.b16 %v9190
      %v9534 = vunpack.c.h.b16 %v9190
      %v9535 = vunpack.c.l.b16 %v9191
      %v9536 = vunpack.c.h.b16 %v9191
      %v9537 = vunpack.c.l.b16 %v9192
      %v9538 = vunpack.c.h.b16 %v9192
      %v9539 = vunpack.c.l.b16 %v9193
      %v9540 = vunpack.c.h.b16 %v9193
      %v9541 = vunpack.c.l.b16 %v9194
      %v9542 = vunpack.c.h.b16 %v9194
      %v9543 = vunpack.c.l.b16 %v9195
      %v9544 = vunpack.c.h.b16 %v9195
      %v9545 = vunpack.c.l.b16 %v9196
      %v9546 = vunpack.c.h.b16 %v9196
      %v9547 = vunpack.c.l.b16 %v9197
      %v9548 = vunpack.c.h.b16 %v9197
      %v9549 = vunpack.c.l.b16 %v9198
      %v9550 = vunpack.c.h.b16 %v9198
      %v9551 = vunpack.c.l.b16 %v9199
      %v9552 = vunpack.c.h.b16 %v9199
      %v9553 = vunpack.c.l.b16 %v9200
      %v9554 = vunpack.c.h.b16 %v9200
      %v9555 = vunpack.c.l.b16 %v9201
      %v9556 = vunpack.c.h.b16 %v9201
      %v9557 = vunpack.c.l.b16 %v9202
      %v9558 = vunpack.c.h.b16 %v9202
      %v9559 = vunpack.c.l.b16 %v9203
      %v9560 = vunpack.c.h.b16 %v9203
      %v9561 = vunpack.c.l.b16 %v9204
      %v9562 = vunpack.c.h.b16 %v9204
      %v9563 = vunpack.c.l.b16 %v9205
      %v9564 = vunpack.c.h.b16 %v9205
      %v9565 = vunpack.c.l.b16 %v9206
      %v9566 = vunpack.c.h.b16 %v9206
      %v9567 = vunpack.c.l.b16 %v9207
      %v9568 = vunpack.c.h.b16 %v9207
      %v9569 = vunpack.c.l.b16 %v9208
      %v9570 = vunpack.c.h.b16 %v9208
      %v9571 = vunpack.c.l.b16 %v9209
      %v9572 = vunpack.c.h.b16 %v9209
      %v9573 = vunpack.c.l.b16 %v9210
      %v9574 = vunpack.c.h.b16 %v9210
      %v9575 = vunpack.c.l.b16 %v9211
      %v9576 = vunpack.c.h.b16 %v9211
      %v9577 = vunpack.c.l.b16 %v9212
      %v9578 = vunpack.c.h.b16 %v9212
      %v9579 = vunpack.c.l.b16 %v9213
      %v9580 = vunpack.c.h.b16 %v9213
      %v9581 = vunpack.c.l.b16 %v9214
      %v9582 = vunpack.c.h.b16 %v9214
      %v9583 = vunpack.c.l.b16 %v9215
      %v9584 = vunpack.c.h.b16 %v9215
      %v9585 = vunpack.c.l.b16 %v9216
      %v9586 = vunpack.c.h.b16 %v9216
      %v9587 = vunpack.c.l.b16 %v9217
      %v9588 = vunpack.c.h.b16 %v9217
      %v9589 = vunpack.c.l.b16 %v9218
      %v9590 = vunpack.c.h.b16 %v9218
      %v9591 = vunpack.c.l.b16 %v9219
      %v9592 = vunpack.c.h.b16 %v9219
      %v9593 = vunpack.c.l.b16 %v9220
      %v9594 = vunpack.c.h.b16 %v9220
      %v9595 = vunpack.c.l.b16 %v9221
      %v9596 = vunpack.c.h.b16 %v9221
      %v9597 = vunpack.c.l.b16 %v9222
      %v9598 = vunpack.c.h.b16 %v9222
      %v9599 = vunpack.c.l.b16 %v9223
      %v9600 = vunpack.c.h.b16 %v9223
      %v9601 = vunpack.c.l.b16 %v9224
      %v9602 = vunpack.c.h.b16 %v9224
      %v9603 = vunpack.c.l.b16 %v9225
      %v9604 = vunpack.c.h.b16 %v9225
      %v9605 = vunpack.c.l.b16 %v9226
      %v9606 = vunpack.c.h.b16 %v9226
      %v9607 = vunpack.c.l.b16 %v9227
      %v9608 = vunpack.c.h.b16 %v9227
      %v9609 = vunpack.c.l.b16 %v9228
      %v9610 = vunpack.c.h.b16 %v9228
      %v9611 = vunpack.c.l.b16 %v9229
      %v9612 = vunpack.c.h.b16 %v9229
      %v9613 = vunpack.c.l.b16 %v9230
      %v9614 = vunpack.c.h.b16 %v9230
      %v9615 = vunpack.c.l.b16 %v9231
      %v9616 = vunpack.c.h.b16 %v9231
      %v9617 = vunpack.c.l.b16 %v9232
      %v9618 = vunpack.c.h.b16 %v9232
      %v9619 = vunpack.c.l.b16 %v9233
      %v9620 = vunpack.c.h.b16 %v9233
      %v9621 = vunpack.c.l.b16 %v9234
      %v9622 = vunpack.c.h.b16 %v9234
      %v9623 = vunpack.c.l.b16 %v9235
      %v9624 = vunpack.c.h.b16 %v9235
      %v9625 = vunpack.c.l.b16 %v9236
      %v9626 = vunpack.c.h.b16 %v9236
      %v9627 = vunpack.c.l.b16 %v9237
      %v9628 = vunpack.c.h.b16 %v9237
      %v9629 = vunpack.c.l.b16 %v9238
      %v9630 = vunpack.c.h.b16 %v9238
      %v9631 = vunpack.c.l.b16 %v9239
      %v9632 = vunpack.c.h.b16 %v9239
      %v9633 = vunpack.c.l.b16 %v9240
      %v9634 = vunpack.c.h.b16 %v9240
      %v9635 = vunpack.c.l.b16 %v9241
      %v9636 = vunpack.c.h.b16 %v9241
      %v9637 = vunpack.c.l.b16 %v9242
      %v9638 = vunpack.c.h.b16 %v9242
      %v9639 = vunpack.c.l.b16 %v9243
      %v9640 = vunpack.c.h.b16 %v9243
      %v9641 = vunpack.c.l.b16 %v9244
      %v9642 = vunpack.c.h.b16 %v9244
      %v9643 = vunpack.c.l.b16 %v9245
      %v9644 = vunpack.c.h.b16 %v9245
      %v9645 = vunpack.c.l.b16 %v9246
      %v9646 = vunpack.c.h.b16 %v9246
      %v9647 = vunpack.c.l.b16 %v9247
      %v9648 = vunpack.c.h.b16 %v9247
      %v9649 = vunpack.c.l.b16 %v9248
      %v9650 = vunpack.c.h.b16 %v9248
      %v9651 = vunpack.c.l.b16 %v9249
      %v9652 = vunpack.c.h.b16 %v9249
      %v9653 = vunpack.c.l.b16 %v9250
      %v9654 = vunpack.c.h.b16 %v9250
      %v9655 = vunpack.c.l.b16 %v9251
      %v9656 = vunpack.c.h.b16 %v9251
      %v9657 = vpack.c.b16 %v9405, %v9401
      %v9658 = vpack.c.b16 %v9406, %v9402
      %v9659 = vpack.c.b16 %v9407, %v9403
      %v9660 = vpack.c.b16 %v9408, %v9404
      %v9661 = vpack.c.b16 %v9413, %v9409
      %v9662 = vpack.c.b16 %v9414, %v9410
      %v9663 = vpack.c.b16 %v9415, %v9411
      %v9664 = vpack.c.b16 %v9416, %v9412
      %v9665 = vpack.c.b16 %v9421, %v9417
      %v9666 = vpack.c.b16 %v9422, %v9418
      %v9667 = vpack.c.b16 %v9423, %v9419
      %v9668 = vpack.c.b16 %v9424, %v9420
      %v9669 = vpack.c.b16 %v9429, %v9425
      %v9670 = vpack.c.b16 %v9430, %v9426
      %v9671 = vpack.c.b16 %v9431, %v9427
      %v9672 = vpack.c.b16 %v9432, %v9428
      %v9673 = vpack.c.b16 %v9437, %v9433
      %v9674 = vpack.c.b16 %v9438, %v9434
      %v9675 = vpack.c.b16 %v9439, %v9435
      %v9676 = vpack.c.b16 %v9440, %v9436
      %v9677 = vpack.c.b16 %v9445, %v9441
      %v9678 = vpack.c.b16 %v9446, %v9442
      %v9679 = vpack.c.b16 %v9447, %v9443
      %v9680 = vpack.c.b16 %v9448, %v9444
      %v9681 = vpack.c.b16 %v9453, %v9449
      %v9682 = vpack.c.b16 %v9454, %v9450
      %v9683 = vpack.c.b16 %v9455, %v9451
      %v9684 = vpack.c.b16 %v9456, %v9452
      %v9685 = vpack.c.b16 %v9461, %v9457
      %v9686 = vpack.c.b16 %v9462, %v9458
      %v9687 = vpack.c.b16 %v9463, %v9459
      %v9688 = vpack.c.b16 %v9464, %v9460
      %v9689 = vpack.c.b16 %v9469, %v9465
      %v9690 = vpack.c.b16 %v9470, %v9466
      %v9691 = vpack.c.b16 %v9471, %v9467
      %v9692 = vpack.c.b16 %v9472, %v9468
      %v9693 = vpack.c.b16 %v9477, %v9473
      %v9694 = vpack.c.b16 %v9478, %v9474
      %v9695 = vpack.c.b16 %v9479, %v9475
      %v9696 = vpack.c.b16 %v9480, %v9476
      %v9697 = vpack.c.b16 %v9485, %v9481
      %v9698 = vpack.c.b16 %v9486, %v9482
      %v9699 = vpack.c.b16 %v9487, %v9483
      %v9700 = vpack.c.b16 %v9488, %v9484
      %v9701 = vpack.c.b16 %v9493, %v9489
      %v9702 = vpack.c.b16 %v9494, %v9490
      %v9703 = vpack.c.b16 %v9495, %v9491
      %v9704 = vpack.c.b16 %v9496, %v9492
      %v9705 = vpack.c.b16 %v9501, %v9497
      %v9706 = vpack.c.b16 %v9502, %v9498
      %v9707 = vpack.c.b16 %v9503, %v9499
      %v9708 = vpack.c.b16 %v9504, %v9500
      %v9709 = vpack.c.b16 %v9509, %v9505
      %v9710 = vpack.c.b16 %v9510, %v9506
      %v9711 = vpack.c.b16 %v9511, %v9507
      %v9712 = vpack.c.b16 %v9512, %v9508
      %v9713 = vpack.c.b16 %v9517, %v9513
      %v9714 = vpack.c.b16 %v9518, %v9514
      %v9715 = vpack.c.b16 %v9519, %v9515
      %v9716 = vpack.c.b16 %v9520, %v9516
      %v9717 = vpack.c.b16 %v9525, %v9521
      %v9718 = vpack.c.b16 %v9526, %v9522
      %v9719 = vpack.c.b16 %v9527, %v9523
      %v9720 = vpack.c.b16 %v9528, %v9524
      %v9721 = vpack.c.b16 %v9533, %v9529
      %v9722 = vpack.c.b16 %v9534, %v9530
      %v9723 = vpack.c.b16 %v9535, %v9531
      %v9724 = vpack.c.b16 %v9536, %v9532
      %v9725 = vpack.c.b16 %v9541, %v9537
      %v9726 = vpack.c.b16 %v9542, %v9538
      %v9727 = vpack.c.b16 %v9543, %v9539
      %v9728 = vpack.c.b16 %v9544, %v9540
      %v9729 = vpack.c.b16 %v9549, %v9545
      %v9730 = vpack.c.b16 %v9550, %v9546
      %v9731 = vpack.c.b16 %v9551, %v9547
      %v9732 = vpack.c.b16 %v9552, %v9548
      %v9733 = vpack.c.b16 %v9557, %v9553
      %v9734 = vpack.c.b16 %v9558, %v9554
      %v9735 = vpack.c.b16 %v9559, %v9555
      %v9736 = vpack.c.b16 %v9560, %v9556
      %v9737 = vpack.c.b16 %v9565, %v9561
      %v9738 = vpack.c.b16 %v9566, %v9562
      %v9739 = vpack.c.b16 %v9567, %v9563
      %v9740 = vpack.c.b16 %v9568, %v9564
      %v9741 = vpack.c.b16 %v9573, %v9569
      %v9742 = vpack.c.b16 %v9574, %v9570
      %v9743 = vpack.c.b16 %v9575, %v9571
      %v9744 = vpack.c.b16 %v9576, %v9572
      %v9745 = vpack.c.b16 %v9581, %v9577
      %v9746 = vpack.c.b16 %v9582, %v9578
      %v9747 = vpack.c.b16 %v9583, %v9579
      %v9748 = vpack.c.b16 %v9584, %v9580
      %v9749 = vpack.c.b16 %v9589, %v9585
      %v9750 = vpack.c.b16 %v9590, %v9586
      %v9751 = vpack.c.b16 %v9591, %v9587
      %v9752 = vpack.c.b16 %v9592, %v9588
      %v9753 = vpack.c.b16 %v9597, %v9593
      %v9754 = vpack.c.b16 %v9598, %v9594
      %v9755 = vpack.c.b16 %v9599, %v9595
      %v9756 = vpack.c.b16 %v9600, %v9596
      %v9757 = vpack.c.b16 %v9605, %v9601
      %v9758 = vpack.c.b16 %v9606, %v9602
      %v9759 = vpack.c.b16 %v9607, %v9603
      %v9760 = vpack.c.b16 %v9608, %v9604
      %v9761 = vpack.c.b16 %v9613, %v9609
      %v9762 = vpack.c.b16 %v9614, %v9610
      %v9763 = vpack.c.b16 %v9615, %v9611
      %v9764 = vpack.c.b16 %v9616, %v9612
      %v9765 = vpack.c.b16 %v9621, %v9617
      %v9766 = vpack.c.b16 %v9622, %v9618
      %v9767 = vpack.c.b16 %v9623, %v9619
      %v9768 = vpack.c.b16 %v9624, %v9620
      %v9769 = vpack.c.b16 %v9629, %v9625
      %v9770 = vpack.c.b16 %v9630, %v9626
      %v9771 = vpack.c.b16 %v9631, %v9627
      %v9772 = vpack.c.b16 %v9632, %v9628
      %v9773 = vpack.c.b16 %v9637, %v9633
      %v9774 = vpack.c.b16 %v9638, %v9634
      %v9775 = vpack.c.b16 %v9639, %v9635
      %v9776 = vpack.c.b16 %v9640, %v9636
      %v9777 = vpack.c.b16 %v9645, %v9641
      %v9778 = vpack.c.b16 %v9646, %v9642
      %v9779 = vpack.c.b16 %v9647, %v9643
      %v9780 = vpack.c.b16 %v9648, %v9644
      %v9781 = vpack.c.b16 %v9653, %v9649
      %v9782 = vpack.c.b16 %v9654, %v9650
      %v9783 = vpack.c.b16 %v9655, %v9651
      %v9784 = vpack.c.b16 %v9656, %v9652
      %9913 = vmatprep.subr.bf16.mxu0 %v9658
      %9914 = vmatpush1.bf16.msra.mxu0 %v9657
      %9915 = vmatprep.subr.bf16.mxu0 %v9662
      %9916 = vmatpush1.bf16.msra.mxu0 %v9661
      %9917 = vmatprep.subr.bf16.mxu0 %v9666
      %9918 = vmatpush1.bf16.msra.mxu0 %v9665
      %9919 = vmatprep.subr.bf16.mxu0 %v9670
      %9920 = vmatpush1.bf16.msra.mxu0 %v9669
      %9921 = vmatprep.subr.bf16.mxu0 %v9674
      %9922 = vmatpush1.bf16.msra.mxu0 %v9673
      %9923 = vmatprep.subr.bf16.mxu0 %v9678
      %9924 = vmatpush1.bf16.msra.mxu0 %v9677
      %9925 = vmatprep.subr.bf16.mxu0 %v9682
      %9926 = vmatpush1.bf16.msra.mxu0 %v9681
      %9927 = vmatprep.subr.bf16.mxu0 %v9686
      %9928 = vmatpush1.bf16.msra.mxu0 %v9685
      %9929 = vmatprep.subr.bf16.mxu0 %v9690
      %9930 = vmatpush1.bf16.msra.mxu0 %v9689
      %9931 = vmatprep.subr.bf16.mxu0 %v9694
      %9932 = vmatpush1.bf16.msra.mxu0 %v9693
      %9933 = vmatprep.subr.bf16.mxu0 %v9698
      %9934 = vmatpush1.bf16.msra.mxu0 %v9697
      %9935 = vmatprep.subr.bf16.mxu0 %v9702
      %9936 = vmatpush1.bf16.msra.mxu0 %v9701
      %9937 = vmatprep.subr.bf16.mxu0 %v9706
      %9938 = vmatpush1.bf16.msra.mxu0 %v9705
      %9939 = vmatprep.subr.bf16.mxu0 %v9710
      %9940 = vmatpush1.bf16.msra.mxu0 %v9709
      %9941 = vmatprep.subr.bf16.mxu0 %v9714
      %9942 = vmatpush1.bf16.msra.mxu0 %v9713
      %9943 = vmatprep.subr.bf16.mxu0 %v9718
      %9944 = vmatpush1.bf16.msra.mxu0 %v9717
      %9945 = vmatprep.mubr.bf16.mxu0 %v9117
      %9946 = vmatmul.mubr.bf16.gmra.mrb[0].mxu0 %v9116
      %v9947 = vpop.f32.mrb[0].mxu0
      %v9948 = vadd.f32 %v9256, %v9947
      %v9949 = vpop.f32.mrb[0].mxu0
      %v9950 = vadd.f32 %v9260, %v9949
      %v9951 = vpop.f32.mrb[0].mxu0
      %v9952 = vadd.f32 %v9256, %v9951
      %v9953 = vpop.f32.mrb[0].mxu0
      %v9954 = vadd.f32 %v9260, %v9953
      %9955 = vmatprep.mubr.bf16.mxu0 %v9121
      %9956 = vmatmul.mubr.bf16.gmra.mrb[0].mxu0 %v9120
      %v9957 = vpop.f32.mrb[0].mxu0
      %v9958 = vadd.f32 %v9256, %v9957
      %v9959 = vpop.f32.mrb[0].mxu0
      %v9960 = vadd.f32 %v9260, %v9959
      %v9961 = vpop.f32.mrb[0].mxu0
      %v9962 = vadd.f32 %v9256, %v9961
      %v9963 = vpop.f32.mrb[0].mxu0
      %v9964 = vadd.f32 %v9260, %v9963
      %9965 = vdwg.mxu0
      %9966 = vmatprep.subr.bf16.mxu0 %v9722
      %9967 = vmatpush1.bf16.msra.mxu0 %v9721
      %9968 = vmatprep.subr.bf16.mxu0 %v9726
      %9969 = vmatpush1.bf16.msra.mxu0 %v9725
      %9970 = vmatprep.subr.bf16.mxu0 %v9730
      %9971 = vmatpush1.bf16.msra.mxu0 %v9729
      %9972 = vmatprep.subr.bf16.mxu0 %v9734
      %9973 = vmatpush1.bf16.msra.mxu0 %v9733
      %9974 = vmatprep.subr.bf16.mxu0 %v9738
      %9975 = vmatpush1.bf16.msra.mxu0 %v9737
      %9976 = vmatprep.subr.bf16.mxu0 %v9742
      %9977 = vmatpush1.bf16.msra.mxu0 %v9741
      %9978 = vmatprep.subr.bf16.mxu0 %v9746
      %9979 = vmatpush1.bf16.msra.mxu0 %v9745
      %9980 = vmatprep.subr.bf16.mxu0 %v9750
      %9981 = vmatpush1.bf16.msra.mxu0 %v9749
      %9982 = vmatprep.subr.bf16.mxu0 %v9754
      %9983 = vmatpush1.bf16.msra.mxu0 %v9753
      %9984 = vmatprep.subr.bf16.mxu0 %v9758
      %9985 = vmatpush1.bf16.msra.mxu0 %v9757
      %9986 = vmatprep.subr.bf16.mxu0 %v9762
      %9987 = vmatpush1.bf16.msra.mxu0 %v9761
      %9988 = vmatprep.subr.bf16.mxu0 %v9766
      %9989 = vmatpush1.bf16.msra.mxu0 %v9765
      %9990 = vmatprep.subr.bf16.mxu0 %v9770
      %9991 = vmatpush1.bf16.msra.mxu0 %v9769
      %9992 = vmatprep.subr.bf16.mxu0 %v9774
      %9993 = vmatpush1.bf16.msra.mxu0 %v9773
      %9994 = vmatprep.subr.bf16.mxu0 %v9778
      %9995 = vmatpush1.bf16.msra.mxu0 %v9777
      %9996 = vmatprep.subr.bf16.mxu0 %v9782
      %9997 = vmatpush1.bf16.msra.mxu0 %v9781
      %9998 = vmatprep.mubr.bf16.mxu0 %v9119
      %9999 = vmatmul.mubr.bf16.gmra.mrb[0].mxu0 %v9118
      %v10000 = vpop.f32.mrb[0].mxu0
      %v10001 = vadd.f32 %v9948, %v10000
      %v10002 = vpop.f32.mrb[0].mxu0
      %v10003 = vadd.f32 %v9950, %v10002
      %v10004 = vpop.f32.mrb[0].mxu0
      %v10005 = vadd.f32 %v9952, %v10004
      %v10006 = vpop.f32.mrb[0].mxu0
      %v10007 = vadd.f32 %v9954, %v10006
      %10008 = vmatprep.mubr.bf16.mxu0 %v9123
      %10009 = vmatmul.mubr.bf16.gmra.mrb[0].mxu0 %v9122
      %v10010 = vpop.f32.mrb[0].mxu0
      %v10011 = vadd.f32 %v9958, %v10010
      %v10012 = vpop.f32.mrb[0].mxu0
      %v10013 = vadd.f32 %v9960, %v10012
      %v10014 = vpop.f32.mrb[0].mxu0
      %v10015 = vadd.f32 %v9962, %v10014
      %v10016 = vpop.f32.mrb[0].mxu0
      %v10017 = vadd.f32 %v9964, %v10016
      %10018 = vdwg.mxu0
      %10019 = vmatprep.subr.bf16.mxu0 %v9660
      %10020 = vmatpush1.bf16.msra.mxu0 %v9659
      %10021 = vmatprep.subr.bf16.mxu0 %v9664
      %10022 = vmatpush1.bf16.msra.mxu0 %v9663
      %10023 = vmatprep.subr.bf16.mxu0 %v9668
      %10024 = vmatpush1.bf16.msra.mxu0 %v9667
      %10025 = vmatprep.subr.bf16.mxu0 %v9672
      %10026 = vmatpush1.bf16.msra.mxu0 %v9671
      %10027 = vmatprep.subr.bf16.mxu0 %v9676
      %10028 = vmatpush1.bf16.msra.mxu0 %v9675
      %10029 = vmatprep.subr.bf16.mxu0 %v9680
      %10030 = vmatpush1.bf16.msra.mxu0 %v9679
      %10031 = vmatprep.subr.bf16.mxu0 %v9684
      %10032 = vmatpush1.bf16.msra.mxu0 %v9683
      %10033 = vmatprep.subr.bf16.mxu0 %v9688
      %10034 = vmatpush1.bf16.msra.mxu0 %v9687
      %10035 = vmatprep.subr.bf16.mxu0 %v9692
      %10036 = vmatpush1.bf16.msra.mxu0 %v9691
      %10037 = vmatprep.subr.bf16.mxu0 %v9696
      %10038 = vmatpush1.bf16.msra.mxu0 %v9695
      %10039 = vmatprep.subr.bf16.mxu0 %v9700
      %10040 = vmatpush1.bf16.msra.mxu0 %v9699
      %10041 = vmatprep.subr.bf16.mxu0 %v9704
      %10042 = vmatpush1.bf16.msra.mxu0 %v9703
      %10043 = vmatprep.subr.bf16.mxu0 %v9708
      %10044 = vmatpush1.bf16.msra.mxu0 %v9707
      %10045 = vmatprep.subr.bf16.mxu0 %v9712
      %10046 = vmatpush1.bf16.msra.mxu0 %v9711
      %10047 = vmatprep.subr.bf16.mxu0 %v9716
      %10048 = vmatpush1.bf16.msra.mxu0 %v9715
      %10049 = vmatprep.subr.bf16.mxu0 %v9720
      %10050 = vmatpush1.bf16.msra.mxu0 %v9719
      %10051 = vmatprep.mubr.bf16.mxu0 %v9117
      %10052 = vmatmul.mubr.bf16.gmra.mrb[0].mxu0 %v9116
      %v10053 = vpop.f32.mrb[0].mxu0
      %v10054 = vadd.f32 %v9264, %v10053
      %v10055 = vpop.f32.mrb[0].mxu0
      %v10056 = vadd.f32 %v9268, %v10055
      %v10057 = vpop.f32.mrb[0].mxu0
      %v10058 = vadd.f32 %v9264, %v10057
      %v10059 = vpop.f32.mrb[0].mxu0
      %v10060 = vadd.f32 %v9268, %v10059
      %10061 = vmatprep.mubr.bf16.mxu0 %v9121
      %10062 = vmatmul.mubr.bf16.gmra.mrb[0].mxu0 %v9120
      %v10063 = vpop.f32.mrb[0].mxu0
      %v10064 = vadd.f32 %v9264, %v10063
      %v10065 = vpop.f32.mrb[0].mxu0
      %v10066 = vadd.f32 %v9268, %v10065
      %v10067 = vpop.f32.mrb[0].mxu0
      %v10068 = vadd.f32 %v9264, %v10067
      %v10069 = vpop.f32.mrb[0].mxu0
      %v10070 = vadd.f32 %v9268, %v10069
      %10071 = vdwg.mxu0
      %10072 = vmatprep.subr.bf16.mxu0 %v9724
      %10073 = vmatpush1.bf16.msra.mxu0 %v9723
      %10074 = vmatprep.subr.bf16.mxu0 %v9728
      %10075 = vmatpush1.bf16.msra.mxu0 %v9727
      %10076 = vmatprep.subr.bf16.mxu0 %v9732
      %10077 = vmatpush1.bf16.msra.mxu0 %v9731
      %10078 = vmatprep.subr.bf16.mxu0 %v9736
      %10079 = vmatpush1.bf16.msra.mxu0 %v9735
      %10080 = vmatprep.subr.bf16.mxu0 %v9740
      %10081 = vmatpush1.bf16.msra.mxu0 %v9739
      %10082 = vmatprep.subr.bf16.mxu0 %v9744
      %10083 = vmatpush1.bf16.msra.mxu0 %v9743
      %10084 = vmatprep.subr.bf16.mxu0 %v9748
      %10085 = vmatpush1.bf16.msra.mxu0 %v9747
      %10086 = vmatprep.subr.bf16.mxu0 %v9752
      %10087 = vmatpush1.bf16.msra.mxu0 %v9751
      %10088 = vmatprep.subr.bf16.mxu0 %v9756
      %10089 = vmatpush1.bf16.msra.mxu0 %v9755
      %10090 = vmatprep.subr.bf16.mxu0 %v9760
      %10091 = vmatpush1.bf16.msra.mxu0 %v9759
      %10092 = vmatprep.subr.bf16.mxu0 %v9764
      %10093 = vmatpush1.bf16.msra.mxu0 %v9763
      %10094 = vmatprep.subr.bf16.mxu0 %v9768
      %10095 = vmatpush1.bf16.msra.mxu0 %v9767
      %10096 = vmatprep.subr.bf16.mxu0 %v9772
      %10097 = vmatpush1.bf16.msra.mxu0 %v9771
      %10098 = vmatprep.subr.bf16.mxu0 %v9776
      %10099 = vmatpush1.bf16.msra.mxu0 %v9775
      %10100 = vmatprep.subr.bf16.mxu0 %v9780
      %10101 = vmatpush1.bf16.msra.mxu0 %v9779
      %10102 = vmatprep.subr.bf16.mxu0 %v9784
      %10103 = vmatpush1.bf16.msra.mxu0 %v9783
      %10104 = vmatprep.mubr.bf16.mxu0 %v9119
      %10105 = vmatmul.mubr.bf16.gmra.mrb[0].mxu0 %v9118
      %v10106 = vpop.f32.mrb[0].mxu0
      %v10107 = vadd.f32 %v10054, %v10106
      %v10108 = vpop.f32.mrb[0].mxu0
      %v10109 = vadd.f32 %v10056, %v10108
      %v10110 = vpop.f32.mrb[0].mxu0
      %v10111 = vadd.f32 %v10058, %v10110
      %v10112 = vpop.f32.mrb[0].mxu0
      %v10113 = vadd.f32 %v10060, %v10112
      %10114 = vmatprep.mubr.bf16.mxu0 %v9123
      %10115 = vmatmul.mubr.bf16.gmra.mrb[0].mxu0 %v9122
      %v10116 = vpop.f32.mrb[0].mxu0
      %v10117 = vadd.f32 %v10064, %v10116
      %v10118 = vpop.f32.mrb[0].mxu0
      %v10119 = vadd.f32 %v10066, %v10118
      %v10120 = vpop.f32.mrb[0].mxu0
      %v10121 = vadd.f32 %v10068, %v10120
      %v10122 = vpop.f32.mrb[0].mxu0
      %v10123 = vadd.f32 %v10070, %v10122
      %10124 = vdwg.mxu0
      %v10125 = vmul.f32 %v10001, 0.5
      %v10126 = vmul.f32 %v10003, 0.5
      %v10127 = vmul.f32 %v10107, 0.5
      %v10128 = vmul.f32 %v10109, 0.5
      %v10129 = vmul.f32 %v10005, 0.5
      %v10130 = vmul.f32 %v10007, 0.5
      %v10131 = vmul.f32 %v10111, 0.5
      %v10132 = vmul.f32 %v10113, 0.5
      %v10133 = vmul.f32 %v10011, 0.5
      %v10134 = vmul.f32 %v10013, 0.5
      %v10135 = vmul.f32 %v10117, 0.5
      %v10136 = vmul.f32 %v10119, 0.5
      %v10137 = vmul.f32 %v10015, 0.5
      %v10138 = vmul.f32 %v10017, 0.5
      %v10139 = vmul.f32 %v10121, 0.5
      %v10140 = vmul.f32 %v10123, 0.5
      %v10141 = vtanh.pop %v10125
      %v10142 = vtanh.pop %v10126
      %v10143 = vtanh.pop %v10127
      %v10144 = vtanh.pop %v10128
      %v10145 = vtanh.pop %v10129
      %v10146 = vtanh.pop %v10130
      %v10147 = vtanh.pop %v10131
      %v10148 = vtanh.pop %v10132
      %v10149 = vtanh.pop %v10133
      %v10150 = vtanh.pop %v10134
      %v10151 = vtanh.pop %v10135
      %v10152 = vtanh.pop %v10136
      %v10153 = vtanh.pop %v10137
      %v10154 = vtanh.pop %v10138
      %v10155 = vtanh.pop %v10139
      %v10156 = vtanh.pop %v10140
      %v10157 = vadd.f32 %v10141, 1.0
      %v10158 = vadd.f32 %v10142, 1.0
      %v10159 = vadd.f32 %v10143, 1.0
      %v10160 = vadd.f32 %v10144, 1.0
      %v10161 = vadd.f32 %v10145, 1.0
      %v10162 = vadd.f32 %v10146, 1.0
      %v10163 = vadd.f32 %v10147, 1.0
      %v10164 = vadd.f32 %v10148, 1.0
      %v10165 = vadd.f32 %v10149, 1.0
      %v10166 = vadd.f32 %v10150, 1.0
      %v10167 = vadd.f32 %v10151, 1.0
      %v10168 = vadd.f32 %v10152, 1.0
      %v10169 = vadd.f32 %v10153, 1.0
      %v10170 = vadd.f32 %v10154, 1.0
      %v10171 = vadd.f32 %v10155, 1.0
      %v10172 = vadd.f32 %v10156, 1.0
      %v10173 = vmul.f32 %v10157, 0.5
      %v10174 = vmul.f32 %v10158, 0.5
      %v10175 = vmul.f32 %v10159, 0.5
      %v10176 = vmul.f32 %v10160, 0.5
      %v10177 = vmul.f32 %v10161, 0.5
      %v10178 = vmul.f32 %v10162, 0.5
      %v10179 = vmul.f32 %v10163, 0.5
      %v10180 = vmul.f32 %v10164, 0.5
      %v10181 = vmul.f32 %v10165, 0.5
      %v10182 = vmul.f32 %v10166, 0.5
      %v10183 = vmul.f32 %v10167, 0.5
      %v10184 = vmul.f32 %v10168, 0.5
      %v10185 = vmul.f32 %v10169, 0.5
      %v10186 = vmul.f32 %v10170, 0.5
      %v10187 = vmul.f32 %v10171, 0.5
      %v10188 = vmul.f32 %v10172, 0.5
      %v10189 = vsub.f32 1.0, %v10173
      %v10190 = vsub.f32 1.0, %v10174
      %v10191 = vsub.f32 1.0, %v10175
      %v10192 = vsub.f32 1.0, %v10176
      %v10193 = vsub.f32 1.0, %v10177
      %v10194 = vsub.f32 1.0, %v10178
      %v10195 = vsub.f32 1.0, %v10179
      %v10196 = vsub.f32 1.0, %v10180
      %v10197 = vsub.f32 1.0, %v10181
      %v10198 = vsub.f32 1.0, %v10182
      %v10199 = vsub.f32 1.0, %v10183
      %v10200 = vsub.f32 1.0, %v10184
      %v10201 = vsub.f32 1.0, %v10185
      %v10202 = vsub.f32 1.0, %v10186
      %v10203 = vsub.f32 1.0, %v10187
      %v10204 = vsub.f32 1.0, %v10188
      %v10205 = vmul.f32 %v10189, %v215
      %v10206 = vmul.f32 %v10190, %v216
      %v10207 = vmul.f32 %v10191, %v217
      %v10208 = vmul.f32 %v10192, %v218
      %v10209 = vmul.f32 %v10193, %v219
      %v10210 = vmul.f32 %v10194, %v220
      %v10211 = vmul.f32 %v10195, %v221
      %v10212 = vmul.f32 %v10196, %v222
      %v10213 = vmul.f32 %v10197, %v223
      %v10214 = vmul.f32 %v10198, %v224
      %v10215 = vmul.f32 %v10199, %v225
      %v10216 = vmul.f32 %v10200, %v226
      %v10217 = vmul.f32 %v10201, %v227
      %v10218 = vmul.f32 %v10202, %v228
      %v10219 = vmul.f32 %v10203, %v229
      %v10220 = vmul.f32 %v10204, %v230
      %v10221 = vmul.f32 %v10173, %v9098
      %v10222 = vmul.f32 %v10174, %v9099
      %v10223 = vmul.f32 %v10175, %v9100
      %v10224 = vmul.f32 %v10176, %v9101
      %v10225 = vmul.f32 %v10177, %v9102
      %v10226 = vmul.f32 %v10178, %v9103
      %v10227 = vmul.f32 %v10179, %v9104
      %v10228 = vmul.f32 %v10180, %v9105
      %v10229 = vmul.f32 %v10181, %v9106
      %v10230 = vmul.f32 %v10182, %v9107
      %v10231 = vmul.f32 %v10183, %v9108
      %v10232 = vmul.f32 %v10184, %v9109
      %v10233 = vmul.f32 %v10185, %v9110
      %v10234 = vmul.f32 %v10186, %v9111
      %v10235 = vmul.f32 %v10187, %v9112
      %v10236 = vmul.f32 %v10188, %v9113
      %v10237 = vadd.f32 %v10205, %v10221
      %v10238 = vadd.f32 %v10206, %v10222
      %v10239 = vadd.f32 %v10207, %v10223
      %v10240 = vadd.f32 %v10208, %v10224
      %v10241 = vadd.f32 %v10209, %v10225
      %v10242 = vadd.f32 %v10210, %v10226
      %v10243 = vadd.f32 %v10211, %v10227
      %v10244 = vadd.f32 %v10212, %v10228
      %v10245 = vadd.f32 %v10213, %v10229
      %v10246 = vadd.f32 %v10214, %v10230
      %v10247 = vadd.f32 %v10215, %v10231
      %v10248 = vadd.f32 %v10216, %v10232
      %v10249 = vadd.f32 %v10217, %v10233
      %v10250 = vadd.f32 %v10218, %v10234
      %v10251 = vadd.f32 %v10219, %v10235
      %v10252 = vadd.f32 %v10220, %v10236
      %v10253 = vmax.f32 %v10237, 0.0
      %v10254 = vmax.f32 %v10238, 0.0
      %v10255 = vmax.f32 %v10239, 0.0
      %v10256 = vmax.f32 %v10240, 0.0
      %v10257 = vmax.f32 %v10241, 0.0
      %v10258 = vmax.f32 %v10242, 0.0
      %v10259 = vmax.f32 %v10243, 0.0
      %v10260 = vmax.f32 %v10244, 0.0
      %v10261 = vmax.f32 %v10245, 0.0
      %v10262 = vmax.f32 %v10246, 0.0
      %v10263 = vmax.f32 %v10247, 0.0
      %v10264 = vmax.f32 %v10248, 0.0
      %v10265 = vmax.f32 %v10249, 0.0
      %v10266 = vmax.f32 %v10250, 0.0
      %v10267 = vmax.f32 %v10251, 0.0
      %v10268 = vmax.f32 %v10252, 0.0
      %v10269 = vand.u32 2147483647, %v10237
      %v10270 = vand.u32 2147483647, %v10238
      %v10271 = vand.u32 2147483647, %v10239
      %v10272 = vand.u32 2147483647, %v10240
      %v10273 = vand.u32 2147483647, %v10241
      %v10274 = vand.u32 2147483647, %v10242
      %v10275 = vand.u32 2147483647, %v10243
      %v10276 = vand.u32 2147483647, %v10244
      %v10277 = vand.u32 2147483647, %v10245
      %v10278 = vand.u32 2147483647, %v10246
      %v10279 = vand.u32 2147483647, %v10247
      %v10280 = vand.u32 2147483647, %v10248
      %v10281 = vand.u32 2147483647, %v10249
      %v10282 = vand.u32 2147483647, %v10250
      %v10283 = vand.u32 2147483647, %v10251
      %v10284 = vand.u32 2147483647, %v10252
      %v10285 = vsub.f32 0.0, %v10269
      %v10286 = vsub.f32 0.0, %v10270
      %v10287 = vsub.f32 0.0, %v10271
      %v10288 = vsub.f32 0.0, %v10272
      %v10289 = vsub.f32 0.0, %v10273
      %v10290 = vsub.f32 0.0, %v10274
      %v10291 = vsub.f32 0.0, %v10275
      %v10292 = vsub.f32 0.0, %v10276
      %v10293 = vsub.f32 0.0, %v10277
      %v10294 = vsub.f32 0.0, %v10278
      %v10295 = vsub.f32 0.0, %v10279
      %v10296 = vsub.f32 0.0, %v10280
      %v10297 = vsub.f32 0.0, %v10281
      %v10298 = vsub.f32 0.0, %v10282
      %v10299 = vsub.f32 0.0, %v10283
      %v10300 = vsub.f32 0.0, %v10284
      %v10301 = vmul.f32 %v10285, 1.442695
      %v10302 = vpow.pop %v10301
      %v10303 = vmul.f32 %v10286, 1.442695
      %v10304 = vpow.pop %v10303
      %v10305 = vmul.f32 %v10287, 1.442695
      %v10306 = vpow.pop %v10305
      %v10307 = vmul.f32 %v10288, 1.442695
      %v10308 = vpow.pop %v10307
      %v10309 = vmul.f32 %v10289, 1.442695
      %v10310 = vpow.pop %v10309
      %v10311 = vmul.f32 %v10290, 1.442695
      %v10312 = vpow.pop %v10311
      %v10313 = vmul.f32 %v10291, 1.442695
      %v10314 = vpow.pop %v10313
      %v10315 = vmul.f32 %v10292, 1.442695
      %v10316 = vpow.pop %v10315
      %v10317 = vmul.f32 %v10293, 1.442695
      %v10318 = vpow.pop %v10317
      %v10319 = vmul.f32 %v10294, 1.442695
      %v10320 = vpow.pop %v10319
      %v10321 = vmul.f32 %v10295, 1.442695
      %v10322 = vpow.pop %v10321
      %v10323 = vmul.f32 %v10296, 1.442695
      %v10324 = vpow.pop %v10323
      %v10325 = vmul.f32 %v10297, 1.442695
      %v10326 = vpow.pop %v10325
      %v10327 = vmul.f32 %v10298, 1.442695
      %v10328 = vpow.pop %v10327
      %v10329 = vmul.f32 %v10299, 1.442695
      %v10330 = vpow.pop %v10329
      %v10331 = vmul.f32 %v10300, 1.442695
      %v10332 = vpow.pop %v10331
      %v10333 = vadd.f32 %v10302, 1.0
      %v10334 = vadd.f32 %v10304, 1.0
      %v10335 = vadd.f32 %v10306, 1.0
      %v10336 = vadd.f32 %v10308, 1.0
      %v10337 = vadd.f32 %v10310, 1.0
      %v10338 = vadd.f32 %v10312, 1.0
      %v10339 = vadd.f32 %v10314, 1.0
      %v10340 = vadd.f32 %v10316, 1.0
      %v10341 = vadd.f32 %v10318, 1.0
      %v10342 = vadd.f32 %v10320, 1.0
      %v10343 = vadd.f32 %v10322, 1.0
      %v10344 = vadd.f32 %v10324, 1.0
      %v10345 = vadd.f32 %v10326, 1.0
      %v10346 = vadd.f32 %v10328, 1.0
      %v10347 = vadd.f32 %v10330, 1.0
      %v10348 = vadd.f32 %v10332, 1.0
      %v10349 = vlog2.pop %v10333
      %v10350 = vmul.f32 %v10349, 0.6931472
      %v10351 = vlog2.pop %v10334
      %v10352 = vmul.f32 %v10351, 0.6931472
      %v10353 = vlog2.pop %v10335
      %v10354 = vmul.f32 %v10353, 0.6931472
      %v10355 = vlog2.pop %v10336
      %v10356 = vmul.f32 %v10355, 0.6931472
      %v10357 = vlog2.pop %v10337
      %v10358 = vmul.f32 %v10357, 0.6931472
      %v10359 = vlog2.pop %v10338
      %v10360 = vmul.f32 %v10359, 0.6931472
      %v10361 = vlog2.pop %v10339
      %v10362 = vmul.f32 %v10361, 0.6931472
      %v10363 = vlog2.pop %v10340
      %v10364 = vmul.f32 %v10363, 0.6931472
      %v10365 = vlog2.pop %v10341
      %v10366 = vmul.f32 %v10365, 0.6931472
      %v10367 = vlog2.pop %v10342
      %v10368 = vmul.f32 %v10367, 0.6931472
      %v10369 = vlog2.pop %v10343
      %v10370 = vmul.f32 %v10369, 0.6931472
      %v10371 = vlog2.pop %v10344
      %v10372 = vmul.f32 %v10371, 0.6931472
      %v10373 = vlog2.pop %v10345
      %v10374 = vmul.f32 %v10373, 0.6931472
      %v10375 = vlog2.pop %v10346
      %v10376 = vmul.f32 %v10375, 0.6931472
      %v10377 = vlog2.pop %v10347
      %v10378 = vmul.f32 %v10377, 0.6931472
      %v10379 = vlog2.pop %v10348
      %v10380 = vmul.f32 %v10379, 0.6931472
      %v10381 = vadd.f32 %v10253, %v10350
      %v10382 = vadd.f32 %v10254, %v10352
      %v10383 = vadd.f32 %v10255, %v10354
      %v10384 = vadd.f32 %v10256, %v10356
      %v10385 = vadd.f32 %v10257, %v10358
      %v10386 = vadd.f32 %v10258, %v10360
      %v10387 = vadd.f32 %v10259, %v10362
      %v10388 = vadd.f32 %v10260, %v10364
      %v10389 = vadd.f32 %v10261, %v10366
      %v10390 = vadd.f32 %v10262, %v10368
      %v10391 = vadd.f32 %v10263, %v10370
      %v10392 = vadd.f32 %v10264, %v10372
      %v10393 = vadd.f32 %v10265, %v10374
      %v10394 = vadd.f32 %v10266, %v10376
      %v10395 = vadd.f32 %v10267, %v10378
      %v10396 = vadd.f32 %v10268, %v10380
      %10397 = vst [vmem:[#allocation2] sm:$0xff] %v10381
      %10398 = vst [vmem:[#allocation2 + $0x8] sm:$0xff] %v10382
      %10399 = vst [vmem:[#allocation2 + $0x10] sm:$0xff] %v10383
      %10400 = vst [vmem:[#allocation2 + $0x18] sm:$0xff] %v10384
      %10401 = vst [vmem:[#allocation2 + $0x20] sm:$0xff] %v10385
      %10402 = vst [vmem:[#allocation2 + $0x28] sm:$0xff] %v10386
      %10403 = vst [vmem:[#allocation2 + $0x30] sm:$0xff] %v10387
      %10404 = vst [vmem:[#allocation2 + $0x38] sm:$0xff] %v10388
      %10405 = vst [vmem:[#allocation2 + $0x40] sm:$0xff] %v10389
      %10406 = vst [vmem:[#allocation2 + $0x48] sm:$0xff] %v10390
      %10407 = vst [vmem:[#allocation2 + $0x50] sm:$0xff] %v10391
      %10408 = vst [vmem:[#allocation2 + $0x58] sm:$0xff] %v10392
      %10409 = vst [vmem:[#allocation2 + $0x60] sm:$0xff] %v10393
      %10410 = vst [vmem:[#allocation2 + $0x68] sm:$0xff] %v10394
      %10411 = vst [vmem:[#allocation2 + $0x70] sm:$0xff] %v10395
      %10412 = vst [vmem:[#allocation2 + $0x78] sm:$0xff] %v10396
      %s10413 = smul.addr %s196, 8
      %s10414 = scalar_lea.vmem [#allocation16], %s10413
      %10415 = vst [vmem:[%s10414] sm:$0xff] %v10381
      %10416 = vst [vmem:[%s10414 + $0x8] sm:$0xff] %v10382
      %10417 = vst [vmem:[%s10414 + $0x10] sm:$0xff] %v10383
      %10418 = vst [vmem:[%s10414 + $0x18] sm:$0xff] %v10384
      %10419 = vst [vmem:[%s10414 + $0x20] sm:$0xff] %v10385
      %10420 = vst [vmem:[%s10414 + $0x28] sm:$0xff] %v10386
      %10421 = vst [vmem:[%s10414 + $0x30] sm:$0xff] %v10387
      %10422 = vst [vmem:[%s10414 + $0x38] sm:$0xff] %v10388
      %10423 = vst [vmem:[%s10414 + $0x40] sm:$0xff] %v10389
      %10424 = vst [vmem:[%s10414 + $0x48] sm:$0xff] %v10390
      %10425 = vst [vmem:[%s10414 + $0x50] sm:$0xff] %v10391
      %10426 = vst [vmem:[%s10414 + $0x58] sm:$0xff] %v10392
      %10427 = vst [vmem:[%s10414 + $0x60] sm:$0xff] %v10393
      %10428 = vst [vmem:[%s10414 + $0x68] sm:$0xff] %v10394
      %10429 = vst [vmem:[%s10414 + $0x70] sm:$0xff] %v10395
      %10430 = vst [vmem:[%s10414 + $0x78] sm:$0xff] %v10396
      %s10431 = smul.addr %s196, 8
      %s10432 = scalar_lea.vmem [#allocation17], %s10431
      %10433 = vst [vmem:[%s10432] sm:$0xff] %v10173
      %10434 = vst [vmem:[%s10432 + $0x8] sm:$0xff] %v10174
      %10435 = vst [vmem:[%s10432 + $0x10] sm:$0xff] %v10175
      %10436 = vst [vmem:[%s10432 + $0x18] sm:$0xff] %v10176
      %10437 = vst [vmem:[%s10432 + $0x20] sm:$0xff] %v10177
      %10438 = vst [vmem:[%s10432 + $0x28] sm:$0xff] %v10178
      %10439 = vst [vmem:[%s10432 + $0x30] sm:$0xff] %v10179
      %10440 = vst [vmem:[%s10432 + $0x38] sm:$0xff] %v10180
      %10441 = vst [vmem:[%s10432 + $0x40] sm:$0xff] %v10181
      %10442 = vst [vmem:[%s10432 + $0x48] sm:$0xff] %v10182
      %10443 = vst [vmem:[%s10432 + $0x50] sm:$0xff] %v10183
      %10444 = vst [vmem:[%s10432 + $0x58] sm:$0xff] %v10184
      %10445 = vst [vmem:[%s10432 + $0x60] sm:$0xff] %v10185
      %10446 = vst [vmem:[%s10432 + $0x68] sm:$0xff] %v10186
      %10447 = vst [vmem:[%s10432 + $0x70] sm:$0xff] %v10187
      %10448 = vst [vmem:[%s10432 + $0x78] sm:$0xff] %v10188
    $region62: #{tpu_custom_call.1} parent=1 // loop_footer
      %s186 = sadd.s32 1, %s182
    $region63: #{tpu_custom_call.1} parent=1 // loop_footer_branch
      %181 = sbr.rel target = $region59
    $region64: #{tpu_custom_call.1} parent=1 // loop_exit
      _
    // Predicated region
    $region65: #{tpu_custom_call.1} parent=1 // pred_check
      _
    $region66: #{tpu_custom_call.1} parent=1 // pred_check_branch
      %10450 = sbr.rel (0) target = $region68
    $region67: #{tpu_custom_call.1} parent=1 // pred_region
      %s10452 = ssub.s32 16384, 16384
      %10453 = vsyncadd [#allocation6], %s10452
      %s10454 = sshll.u32 [#allocation16], 4
      %s10455 = int_to_ptr.vmem [resolvable:$true] %s10454
      %10460 = dma.vmem_to_hbm [thread:$0]  %s10455, 16384, %s7, [#allocation6], 512, 512, 32
    $region68: #{tpu_custom_call.1} parent=1 // pred_fallthru
      _
    // Predicated region
    $region69: #{tpu_custom_call.1} parent=1 // pred_check
      _
    $region70: #{tpu_custom_call.1} parent=1 // pred_check_branch
      %10462 = sbr.rel (0) target = $region72
    $region71: #{tpu_custom_call.1} parent=1 // pred_region
      %s10464 = ssub.s32 16384, 16384
      %10465 = vsyncadd [#allocation18], %s10464
      %s10466 = sshll.u32 [#allocation17], 4
      %s10467 = int_to_ptr.vmem [resolvable:$true] %s10466
      %10472 = dma.vmem_to_hbm [thread:$0]  %s10467, 16384, %s8, [#allocation18], 512, 512, 32
    $region72: #{tpu_custom_call.1} parent=1 // pred_fallthru
      _
    // Predicated region
    $region73: #{tpu_custom_call.1} parent=1 // pred_check
      _
    $region74: #{tpu_custom_call.1} parent=1 // pred_check_branch
      %10474 = sbr.rel (0) target = $region76
    $region75: #{tpu_custom_call.1} parent=1 // pred_region
      %10475 = dma.done [#allocation6], 16384
    $region76: #{tpu_custom_call.1} parent=1 // pred_fallthru
      _
    // Predicated region
    $region77: #{tpu_custom_call.1} parent=1 // pred_check
      _
    $region78: #{tpu_custom_call.1} parent=1 // pred_check_branch
      %10477 = sbr.rel (0) target = $region80
    $region79: #{tpu_custom_call.1} parent=1 // pred_region
      %10478 = dma.done [#allocation18], 16384
    $region80: #{tpu_custom_call.1} parent=1 // pred_fallthru
      _
    %10479 = vsyncpa [#allocation5], 1
    %10480 = vsyncpa [#allocation8], 1
    %10481 = vsyncpa [#allocation11], 1
    %10482 = vsyncpa [#allocation14], 1
    %10483 = vsyncpa [#allocation6], 1
    %10484 = vsyncpa [#allocation18], 1

</llo_original>
